<compile_context>
chip_gen: v7x
topology: tpu7x:2x2x1
jax: 0.10.0
libtpu: 0.0.40
codegen_flags: <defaults>
</compile_context>

<pallas_src>
import functools

import jax
import jax.numpy as jnp
from jax.experimental import pallas as pl
from jax.experimental.pallas import tpu as pltpu


def _round_up(n, m):
    return -(-n // m) * m


def _pack_offsets(c):
    """8-aligned row offsets of [A | B | W9 | shift] inside one packed weight segment."""
    a_off = 0
    b_off = a_off + _round_up(c, 8)
    w_off = b_off + _round_up(c, 8)
    s_off = w_off + _round_up(9 * c, 8)
    seg = s_off + 8
    return a_off, b_off, w_off, s_off, seg


# ---------------------------------------------------------------------------
# In-kernel helpers (operate on values already resident in VMEM/registers)
# ---------------------------------------------------------------------------
def _attention(xs, A, B):
    """Single-head bias-free attention with folded projections.

    xs: (N, T, C) sequences.  A = Wq @ Wk^T / sqrt(C),  B = Wv @ Wo, so
    out = softmax(xs A xs^T) xs B == softmax((xs Wq)(xs Wk)^T / sqrt(C)) (xs Wv) Wo.
    """
    n, t, c = xs.shape
    y = jnp.dot(xs.reshape(n * t, c), A,
                preferred_element_type=jnp.float32).reshape(n, t, c)
    s = jnp.einsum("ntc,nsc->nts", y, xs, preferred_element_type=jnp.float32)
    s = s - jnp.max(s, axis=-1, keepdims=True)
    e = jnp.exp(s)
    p = e * pl.reciprocal(jnp.sum(e, axis=-1, keepdims=True), approx=True)
    o = jnp.einsum("nts,nsc->ntc", p, xs, preferred_element_type=jnp.float32)
    return jnp.dot(o.reshape(n * t, c), B,
                   preferred_element_type=jnp.float32).reshape(n, t, c)


def _conv3x3_shift_relu(x, w9, shift):
    """Zero-padded 3x3 conv (+ folded eval-BN shift) + ReLU as ONE im2col MXU matmul.

    x: (H, W, C); w9: (9C, C) rows ordered (tap=(ky,kx), cin) with the BN scale already
    folded into the cout columns; shift: (1, C).
    """
    H, W, C = x.shape
    # Pad by 1 pixel in registers (two concats) -- no scratch round trip / zero-fill store.
    zc = jnp.zeros((H, 1, C), jnp.float32)
    zr = jnp.zeros((1, W + 2, C), jnp.float32)
    xp = jnp.concatenate([zc, x, zc], axis=1)            # (H,   W+2, C)
    xp = jnp.concatenate([zr, xp, zr], axis=0)           # (H+2, W+2, C)
    # im2col assembled in registers: nine shifted taps -> one (H*W, 9C) matrix.
    taps = [xp[ky:ky + H, kx:kx + W, :] for ky in range(3) for kx in range(3)]
    pm = jnp.concatenate(taps, axis=-1).reshape(H * W, 9 * C)
    acc = jnp.dot(pm, w9, preferred_element_type=jnp.float32) + shift
    return jnp.maximum(acc, 0.0).reshape(H, W, C)


# ---------------------------------------------------------------------------
# Fused LRCS kernel: one batch image per grid step, both branches on-chip.
# ---------------------------------------------------------------------------
def _lrcs_kernel(x_ref, wp_ref, o_ref, *, c):
    a_off, b_off, w_off, s_off, _ = _pack_offsets(c)

    def unpack(branch):
        seg = wp_ref[branch]                              # (seg_rows, C)
        return (seg[a_off:a_off + c],                     # A  = Wq Wk^T / sqrt(C)
                seg[b_off:b_off + c],                     # B  = Wv Wo
                seg[w_off:w_off + 9 * c],                 # 3x3 weights, BN scale folded
                seg[s_off:s_off + 1])                     # shift = bias*scale + beta

    x = x_ref[0]                                          # (H, W, C), one image

    # Vertical branch: columns are sequences.  H<->W swap stays in VMEM (pltpu.einshape).
    a_v, b_v, w_v, s_v = unpack(0)
    xv = pltpu.einshape("hwc->whc", x)                    # (W, H, C)
    av = _attention(xv, a_v, b_v)
    av = pltpu.einshape("whc->hwc", av)                   # (H, W, C)
    x1 = _conv3x3_shift_relu(av + x, w_v, s_v)            # residual fused in

    # Horizontal branch: rows are already the leading dim -> no transpose needed.
    a_h, b_h, w_h, s_h = unpack(1)
    ah = _attention(x1, a_h, b_h)
    x2 = _conv3x3_shift_relu(ah + x1, w_h, s_h)

    o_ref[0] = x2


def lrcs_fused_call(x_nhwc, wpack):
    b, h, w, c = x_nhwc.shape
    _, seg, _ = wpack.shape

    # VMEM guard for the un-tiled fused kernel (largest live values: scores + im2col).
    approx_live_bytes = 4 * (max(w * h * h, h * w * w) + h * w * 9 * c + 8 * h * w * c)
    assert approx_live_bytes < 8 * 1024 * 1024, (
        "TODO(synk): strip-tile H (1-row halo) for large shapes (v7x 64 MiB VMEM)")

    # Advisory cost estimate for XLA scheduling around the custom call.
    def attn_flops(nseq, t):
        return nseq * (4 * t * c * c + 4 * t * t * c)
    flops = b * (attn_flops(w, h) + attn_flops(h, w) + 2 * (2 * h * w * 9 * c * c))
    transcendentals = b * (w * h * h + h * w * w)
    bytes_accessed = 2 * b * h * w * c * 4 + int(wpack.size) * 4

    kernel = functools.partial(_lrcs_kernel, c=c)
    return pl.pallas_call(
        kernel,
        out_shape=jax.ShapeDtypeStruct((b, h, w, c), jnp.float32),
        grid=(b,),
        in_specs=[
            pl.BlockSpec((1, h, w, c), lambda i: (i, 0, 0, 0)),
            pl.BlockSpec((2, seg, c), lambda i: (0, 0, 0)),
        ],
        out_specs=pl.BlockSpec((1, h, w, c), lambda i: (i, 0, 0, 0)),
        compiler_params=pltpu.CompilerParams(
            dimension_semantics=("parallel",),
            vmem_limit_bytes=32 * 1024 * 1024),
        cost_estimate=pl.CostEstimate(flops=flops,
                                      transcendentals=transcendentals,
                                      bytes_accessed=bytes_accessed),
    )(x_nhwc, wpack)


def lrcs_forward(x_nchw, wpack):
    """LRCS.forward with label=None (loss == 0).  NCHW in/out like the PyTorch module."""
    x = jnp.transpose(x_nchw, (0, 2, 3, 1))               # single NCHW -> NHWC transpose
    y = lrcs_fused_call(x, wpack)
    out = jnp.transpose(y, (0, 3, 1, 2))                  # back to NCHW
    loss = jnp.float32(0.0) * 10.0                        # TODO(synk): label/L1 loss branch
    return out, loss


# ---------------------------------------------------------------------------
# Parameter construction: raw (module-equivalent) params + folded/packed kernel weights.
# ---------------------------------------------------------------------------
def pack_params(raw, c, eps=1e-5):
    a_off, b_off, w_off, s_off, seg = _pack_offsets(c)

    def branch(wq, wk, wv, wo, w9, bias, gamma, beta):
        A = (wq @ wk.T) / (c ** 0.5)                      # fold Wq Wk^T / sqrt(C)
        B = wv @ wo                                       # fold Wv Wo
        scale = gamma / jnp.sqrt(1.0 + eps)               # eval BN (mean 0, var 1)
        w9c = (w9 * scale[None, None, :]).reshape(9 * c, c)
        shift = (bias * scale + beta).reshape(1, c)
        buf = jnp.zeros((seg, c), jnp.float32)
        buf = buf.at[a_off:a_off + c].set(A)
        buf = buf.at[b_off:b_off + c].set(B)
        buf = buf.at[w_off:w_off + 9 * c].set(w9c)
        buf = buf.at[s_off:s_off + 1].set(shift)
        return buf

    return jnp.stack([branch(*raw["msa_v"], *raw["conv_v"]),
                      branch(*raw["msa_h"], *raw["conv_h"])],
                     axis=0).astype(jnp.float32)


def make_params(c, key):
    ks = jax.random.split(key, 14)
    it = iter(ks)

    def lin(k):                                           # stored (in, out):  y = x @ W
        return (0.2 * jax.random.normal(k, (c, c))).astype(jnp.float32)

    def conv_raw(k1, k2, k3):
        w9 = (0.1 * jax.random.normal(k1, (9, c, c))).astype(jnp.float32)  # (tap, cin, cout)
        bias = (0.05 * jax.random.normal(k2, (c,))).astype(jnp.float32)
        gamma = jnp.ones((c,), jnp.float32)
        beta = (0.05 * jax.random.normal(k3, (c,))).astype(jnp.float32)
        return (w9, bias, gamma, beta)

    raw = {
        "msa_v": tuple(lin(next(it)) for _ in range(4)),  # Wq, Wk, Wv, Wo
        "msa_h": tuple(lin(next(it)) for _ in range(4)),
        "conv_v": conv_raw(next(it), next(it), next(it)),
        "conv_h": conv_raw(next(it), next(it), next(it)),
    }
    return raw, pack_params(raw, c)


# ---------------------------------------------------------------------------
# Pure-JAX reference (original, unfolded formulation) for correctness check.
# ---------------------------------------------------------------------------
def _ref_attention(xs, wq, wk, wv, wo):
    c = xs.shape[-1]
    q, k, v = xs @ wq, xs @ wk, xs @ wv
    s = jnp.einsum("ntc,nsc->nts", q, k) / (c ** 0.5)
    p = jax.nn.softmax(s, axis=-1)
    return jnp.einsum("nts,nsc->ntc", p, v) @ wo


def _ref_conv_block(x, w9, bias, gamma, beta, eps=1e-5):
    b, h, w, c = x.shape
    xp = jnp.pad(x, ((0, 0), (1, 1), (1, 1), (0, 0)))
    acc = jnp.zeros_like(x)
    for tap in range(9):
        ky, kx = tap // 3, tap % 3
        acc = acc + jnp.einsum("bhwc,cd->bhwd", xp[:, ky:ky + h, kx:kx + w, :], w9[tap])
    acc = acc + bias
    acc = acc / jnp.sqrt(1.0 + eps) * gamma + beta        # eval BN (running mean 0 / var 1)
    return jnp.maximum(acc, 0.0)


def lrcs_reference(x_nchw, raw):
    b, c, h, w = x_nchw.shape
    x = jnp.transpose(x_nchw, (0, 2, 3, 1))
    vseq = jnp.transpose(x, (0, 2, 1, 3)).reshape(b * w, h, c)
    av = _ref_attention(vseq, *raw["msa_v"])
    av = jnp.transpose(av.reshape(b, w, h, c), (0, 2, 1, 3))
    x1 = _ref_conv_block(av + x, *raw["conv_v"])
    ah = _ref_attention(x1.reshape(b * h, w, c), *raw["msa_h"]).reshape(b, h, w, c)
    x2 = _ref_conv_block(ah + x1, *raw["conv_h"])
    return jnp.transpose(x2, (0, 3, 1, 2)), jnp.float32(0.0)


if __name__ == "__main__":
    b, c, h, w = 2, 4, 16, 16
    x = jax.random.normal(jax.random.PRNGKey(0), (b, c, h, w), dtype=jnp.float32)
    raw, wpack = make_params(c, jax.random.PRNGKey(42))

    fwd = jax.jit(lrcs_forward)
    out, loss = fwd(x, wpack)
    out = jax.block_until_ready(out)
    loss = jax.block_until_ready(loss)

    ref_out, ref_loss = lrcs_reference(x, raw)
    assert out.shape == (b, c, h, w)
    # approx reciprocal in the softmax + folded-weight association order => 2e-3 tolerance.
    assert jnp.allclose(out, ref_out, atol=2e-3, rtol=2e-3), float(
        jnp.max(jnp.abs(out - ref_out)))
    assert jnp.allclose(loss, ref_loss)
    print("KERNEL_OK")
</pallas_src>

<mosaic_0001>
module attributes {stable_mosaic.version = 11 : i64} {
  func.func @_lrcs_kernel(%arg0: i32, %arg1: memref<1x16x16x4xf32, #tpu.memory_space<vmem>>, %arg2: memref<2x64x4xf32, #tpu.memory_space<vmem>>, %arg3: memref<1x16x16x4xf32, #tpu.memory_space<vmem>>) attributes {dimension_semantics = [#tpu.dimension_semantics<parallel>], iteration_bounds = array<i64: 2>, scalar_prefetch = 0 : i64, scratch_operands = 0 : i64, tpu.core_type = #tpu.core_type<tc>, window_params = [{transform_indices = @transform_0, window_bounds = array<i64: 1, 16, 16, 4>}, {pipeline_mode = #tpu.pipeline_mode<synchronous>, transform_indices = @transform_1, window_bounds = array<i64: 2, 64, 4>}, {transform_indices = @transform_2, window_bounds = array<i64: 1, 16, 16, 4>}]} {
    %c0 = arith.constant 0 : index
    %c0_0 = arith.constant 0 : index
    %c0_1 = arith.constant 0 : index
    %c0_2 = arith.constant 0 : index
    %0 = vector.load %arg1[%c0, %c0_0, %c0_1, %c0_2] : memref<1x16x16x4xf32, #tpu.memory_space<vmem>>, vector<1x16x16x4xf32>
    %1 = vector.shape_cast %0 : vector<1x16x16x4xf32> to vector<16x16x4xf32>
    %c0_3 = arith.constant 0 : index
    %c0_4 = arith.constant 0 : index
    %c0_5 = arith.constant 0 : index
    %2 = vector.load %arg2[%c0_3, %c0_4, %c0_5] : memref<2x64x4xf32, #tpu.memory_space<vmem>>, vector<1x64x4xf32>
    %3 = vector.shape_cast %2 : vector<1x64x4xf32> to vector<64x4xf32>
    %4 = vector.extract_strided_slice %3 {offsets = [0, 0], sizes = [4, 4], strides = [1, 1]} : vector<64x4xf32> to vector<4x4xf32>
    %5 = vector.extract_strided_slice %3 {offsets = [8, 0], sizes = [4, 4], strides = [1, 1]} : vector<64x4xf32> to vector<4x4xf32>
    %6 = vector.extract_strided_slice %3 {offsets = [16, 0], sizes = [36, 4], strides = [1, 1]} : vector<64x4xf32> to vector<36x4xf32>
    %7 = vector.extract_strided_slice %3 {offsets = [56, 0], sizes = [1, 4], strides = [1, 1]} : vector<64x4xf32> to vector<1x4xf32>
    %8 = tpu.transpose %1, [1, 0, 2] : vector<16x16x4xf32> -> vector<16x16x4xf32>
    %9 = vector.shape_cast %8 : vector<16x16x4xf32> to vector<256x4xf32>
    %cst = arith.constant dense<0.000000e+00> : vector<256x4xf32>
    %10 = tpu.matmul %9, %4, %cst {dimension_numbers = #tpu.dot_dimension_numbers<[1], [0], [0], [1], [0, 0, 1, 1], [], []>} : vector<256x4xf32>, vector<4x4xf32>, vector<256x4xf32> -> vector<256x4xf32>
    %11 = vector.shape_cast %10 : vector<256x4xf32> to vector<16x16x4xf32>
    "tpu.trace_start"() <{level = 10 : i32, message = "ntc,nsc->nts"}> : () -> ()
    %cst_6 = arith.constant dense<0.000000e+00> : vector<16x16x16xf32>
    %12 = tpu.matmul %11, %8, %cst_6 {dimension_numbers = #tpu.dot_dimension_numbers<[2], [2], [1], [1], [0, 0, 0, 1, 1, 1], [0], [0]>} : vector<16x16x4xf32>, vector<16x16x4xf32>, vector<16x16x16xf32> -> vector<16x16x16xf32>
    "tpu.trace_stop"() : () -> ()
    %cst_7 = arith.constant dense<0xFF800000> : vector<16x16xf32>
    %13 = vector.multi_reduction <maximumf>, %12, %cst_7 [2] : vector<16x16x16xf32> to vector<16x16xf32>
    %14 = vector.shape_cast %13 : vector<16x16xf32> to vector<16x16x1xf32>
    %15 = vector.broadcast %14 : vector<16x16x1xf32> to vector<16x16x16xf32>
    %16 = arith.subf %12, %15 : vector<16x16x16xf32>
    %17 = math.exp %16 : vector<16x16x16xf32>
    %cst_8 = arith.constant dense<0.000000e+00> : vector<16x16xf32>
    %18 = vector.multi_reduction <add>, %17, %cst_8 [2] : vector<16x16x16xf32> to vector<16x16xf32>
    %19 = vector.shape_cast %18 : vector<16x16xf32> to vector<16x16x1xf32>
    %20 = tpu.reciprocal %19 {approx = true} : vector<16x16x1xf32> -> vector<16x16x1xf32>
    %21 = vector.broadcast %20 : vector<16x16x1xf32> to vector<16x16x16xf32>
    %22 = arith.mulf %17, %21 : vector<16x16x16xf32>
    "tpu.trace_start"() <{level = 10 : i32, message = "nts,nsc->ntc"}> : () -> ()
    %cst_9 = arith.constant dense<0.000000e+00> : vector<16x16x4xf32>
    %23 = tpu.matmul %22, %8, %cst_9 {dimension_numbers = #tpu.dot_dimension_numbers<[2], [1], [1], [2], [0, 0, 0, 1, 1, 2], [0], [0]>} : vector<16x16x16xf32>, vector<16x16x4xf32>, vector<16x16x4xf32> -> vector<16x16x4xf32>
    "tpu.trace_stop"() : () -> ()
    %24 = vector.shape_cast %23 : vector<16x16x4xf32> to vector<256x4xf32>
    %cst_10 = arith.constant dense<0.000000e+00> : vector<256x4xf32>
    %25 = tpu.matmul %24, %5, %cst_10 {dimension_numbers = #tpu.dot_dimension_numbers<[1], [0], [0], [1], [0, 0, 1, 1], [], []>} : vector<256x4xf32>, vector<4x4xf32>, vector<256x4xf32> -> vector<256x4xf32>
    %26 = vector.shape_cast %25 : vector<256x4xf32> to vector<16x16x4xf32>
    %27 = tpu.transpose %26, [1, 0, 2] : vector<16x16x4xf32> -> vector<16x16x4xf32>
    %28 = arith.addf %27, %1 : vector<16x16x4xf32>
    %cst_11 = arith.constant 0.000000e+00 : f32
    %29 = vector.broadcast %cst_11 : f32 to vector<16x1x4xf32>
    %cst_12 = arith.constant 0.000000e+00 : f32
    %30 = vector.broadcast %cst_12 : f32 to vector<1x18x4xf32>
    %31 = tpu.concatenate %29, %28, %29 in 1 : vector<16x1x4xf32>, vector<16x16x4xf32>, vector<16x1x4xf32> -> vector<16x18x4xf32>
    %32 = tpu.concatenate %30, %31, %30 in 0 : vector<1x18x4xf32>, vector<16x18x4xf32>, vector<1x18x4xf32> -> vector<18x18x4xf32>
    %33 = vector.extract_strided_slice %32 {offsets = [0, 0, 0], sizes = [16, 16, 4], strides = [1, 1, 1]} : vector<18x18x4xf32> to vector<16x16x4xf32>
    %34 = vector.extract_strided_slice %32 {offsets = [0, 1, 0], sizes = [16, 16, 4], strides = [1, 1, 1]} : vector<18x18x4xf32> to vector<16x16x4xf32>
    %35 = vector.extract_strided_slice %32 {offsets = [0, 2, 0], sizes = [16, 16, 4], strides = [1, 1, 1]} : vector<18x18x4xf32> to vector<16x16x4xf32>
    %36 = vector.extract_strided_slice %32 {offsets = [1, 0, 0], sizes = [16, 16, 4], strides = [1, 1, 1]} : vector<18x18x4xf32> to vector<16x16x4xf32>
    %37 = vector.extract_strided_slice %32 {offsets = [1, 1, 0], sizes = [16, 16, 4], strides = [1, 1, 1]} : vector<18x18x4xf32> to vector<16x16x4xf32>
    %38 = vector.extract_strided_slice %32 {offsets = [1, 2, 0], sizes = [16, 16, 4], strides = [1, 1, 1]} : vector<18x18x4xf32> to vector<16x16x4xf32>
    %39 = vector.extract_strided_slice %32 {offsets = [2, 0, 0], sizes = [16, 16, 4], strides = [1, 1, 1]} : vector<18x18x4xf32> to vector<16x16x4xf32>
    %40 = vector.extract_strided_slice %32 {offsets = [2, 1, 0], sizes = [16, 16, 4], strides = [1, 1, 1]} : vector<18x18x4xf32> to vector<16x16x4xf32>
    %41 = vector.extract_strided_slice %32 {offsets = [2, 2, 0], sizes = [16, 16, 4], strides = [1, 1, 1]} : vector<18x18x4xf32> to vector<16x16x4xf32>
    %42 = tpu.concatenate %33, %34, %35, %36, %37, %38, %39, %40, %41 in 2 : vector<16x16x4xf32>, vector<16x16x4xf32>, vector<16x16x4xf32>, vector<16x16x4xf32>, vector<16x16x4xf32>, vector<16x16x4xf32>, vector<16x16x4xf32>, vector<16x16x4xf32>, vector<16x16x4xf32> -> vector<16x16x36xf32>
    %43 = vector.shape_cast %42 : vector<16x16x36xf32> to vector<256x36xf32>
    %cst_13 = arith.constant dense<0.000000e+00> : vector<256x4xf32>
    %44 = tpu.matmul %43, %6, %cst_13 {dimension_numbers = #tpu.dot_dimension_numbers<[1], [0], [0], [1], [0, 0, 1, 1], [], []>} : vector<256x36xf32>, vector<36x4xf32>, vector<256x4xf32> -> vector<256x4xf32>
    %45 = vector.broadcast %7 : vector<1x4xf32> to vector<256x4xf32>
    %46 = arith.addf %44, %45 : vector<256x4xf32>
    %cst_14 = arith.constant 0.000000e+00 : f32
    %47 = vector.broadcast %cst_14 : f32 to vector<256x4xf32>
    %48 = arith.maximumf %46, %47 : vector<256x4xf32>
    %49 = vector.shape_cast %48 : vector<256x4xf32> to vector<16x16x4xf32>
    %c1 = arith.constant 1 : index
    %c0_15 = arith.constant 0 : index
    %c0_16 = arith.constant 0 : index
    %50 = vector.load %arg2[%c1, %c0_15, %c0_16] : memref<2x64x4xf32, #tpu.memory_space<vmem>>, vector<1x64x4xf32>
    %51 = vector.shape_cast %50 : vector<1x64x4xf32> to vector<64x4xf32>
    %52 = vector.extract_strided_slice %51 {offsets = [0, 0], sizes = [4, 4], strides = [1, 1]} : vector<64x4xf32> to vector<4x4xf32>
    %53 = vector.extract_strided_slice %51 {offsets = [8, 0], sizes = [4, 4], strides = [1, 1]} : vector<64x4xf32> to vector<4x4xf32>
    %54 = vector.extract_strided_slice %51 {offsets = [16, 0], sizes = [36, 4], strides = [1, 1]} : vector<64x4xf32> to vector<36x4xf32>
    %55 = vector.extract_strided_slice %51 {offsets = [56, 0], sizes = [1, 4], strides = [1, 1]} : vector<64x4xf32> to vector<1x4xf32>
    %56 = vector.shape_cast %49 : vector<16x16x4xf32> to vector<256x4xf32>
    %cst_17 = arith.constant dense<0.000000e+00> : vector<256x4xf32>
    %57 = tpu.matmul %56, %52, %cst_17 {dimension_numbers = #tpu.dot_dimension_numbers<[1], [0], [0], [1], [0, 0, 1, 1], [], []>} : vector<256x4xf32>, vector<4x4xf32>, vector<256x4xf32> -> vector<256x4xf32>
    %58 = vector.shape_cast %57 : vector<256x4xf32> to vector<16x16x4xf32>
    "tpu.trace_start"() <{level = 10 : i32, message = "ntc,nsc->nts"}> : () -> ()
    %cst_18 = arith.constant dense<0.000000e+00> : vector<16x16x16xf32>
    %59 = tpu.matmul %58, %49, %cst_18 {dimension_numbers = #tpu.dot_dimension_numbers<[2], [2], [1], [1], [0, 0, 0, 1, 1, 1], [0], [0]>} : vector<16x16x4xf32>, vector<16x16x4xf32>, vector<16x16x16xf32> -> vector<16x16x16xf32>
    "tpu.trace_stop"() : () -> ()
    %cst_19 = arith.constant dense<0xFF800000> : vector<16x16xf32>
    %60 = vector.multi_reduction <maximumf>, %59, %cst_19 [2] : vector<16x16x16xf32> to vector<16x16xf32>
    %61 = vector.shape_cast %60 : vector<16x16xf32> to vector<16x16x1xf32>
    %62 = vector.broadcast %61 : vector<16x16x1xf32> to vector<16x16x16xf32>
    %63 = arith.subf %59, %62 : vector<16x16x16xf32>
    %64 = math.exp %63 : vector<16x16x16xf32>
    %cst_20 = arith.constant dense<0.000000e+00> : vector<16x16xf32>
    %65 = vector.multi_reduction <add>, %64, %cst_20 [2] : vector<16x16x16xf32> to vector<16x16xf32>
    %66 = vector.shape_cast %65 : vector<16x16xf32> to vector<16x16x1xf32>
    %67 = tpu.reciprocal %66 {approx = true} : vector<16x16x1xf32> -> vector<16x16x1xf32>
    %68 = vector.broadcast %67 : vector<16x16x1xf32> to vector<16x16x16xf32>
    %69 = arith.mulf %64, %68 : vector<16x16x16xf32>
    "tpu.trace_start"() <{level = 10 : i32, message = "nts,nsc->ntc"}> : () -> ()
    %cst_21 = arith.constant dense<0.000000e+00> : vector<16x16x4xf32>
    %70 = tpu.matmul %69, %49, %cst_21 {dimension_numbers = #tpu.dot_dimension_numbers<[2], [1], [1], [2], [0, 0, 0, 1, 1, 2], [0], [0]>} : vector<16x16x16xf32>, vector<16x16x4xf32>, vector<16x16x4xf32> -> vector<16x16x4xf32>
    "tpu.trace_stop"() : () -> ()
    %71 = vector.shape_cast %70 : vector<16x16x4xf32> to vector<256x4xf32>
    %cst_22 = arith.constant dense<0.000000e+00> : vector<256x4xf32>
    %72 = tpu.matmul %71, %53, %cst_22 {dimension_numbers = #tpu.dot_dimension_numbers<[1], [0], [0], [1], [0, 0, 1, 1], [], []>} : vector<256x4xf32>, vector<4x4xf32>, vector<256x4xf32> -> vector<256x4xf32>
    %73 = vector.shape_cast %72 : vector<256x4xf32> to vector<16x16x4xf32>
    %74 = arith.addf %73, %49 : vector<16x16x4xf32>
    %cst_23 = arith.constant 0.000000e+00 : f32
    %75 = vector.broadcast %cst_23 : f32 to vector<16x1x4xf32>
    %cst_24 = arith.constant 0.000000e+00 : f32
    %76 = vector.broadcast %cst_24 : f32 to vector<1x18x4xf32>
    %77 = tpu.concatenate %75, %74, %75 in 1 : vector<16x1x4xf32>, vector<16x16x4xf32>, vector<16x1x4xf32> -> vector<16x18x4xf32>
    %78 = tpu.concatenate %76, %77, %76 in 0 : vector<1x18x4xf32>, vector<16x18x4xf32>, vector<1x18x4xf32> -> vector<18x18x4xf32>
    %79 = vector.extract_strided_slice %78 {offsets = [0, 0, 0], sizes = [16, 16, 4], strides = [1, 1, 1]} : vector<18x18x4xf32> to vector<16x16x4xf32>
    %80 = vector.extract_strided_slice %78 {offsets = [0, 1, 0], sizes = [16, 16, 4], strides = [1, 1, 1]} : vector<18x18x4xf32> to vector<16x16x4xf32>
    %81 = vector.extract_strided_slice %78 {offsets = [0, 2, 0], sizes = [16, 16, 4], strides = [1, 1, 1]} : vector<18x18x4xf32> to vector<16x16x4xf32>
    %82 = vector.extract_strided_slice %78 {offsets = [1, 0, 0], sizes = [16, 16, 4], strides = [1, 1, 1]} : vector<18x18x4xf32> to vector<16x16x4xf32>
    %83 = vector.extract_strided_slice %78 {offsets = [1, 1, 0], sizes = [16, 16, 4], strides = [1, 1, 1]} : vector<18x18x4xf32> to vector<16x16x4xf32>
    %84 = vector.extract_strided_slice %78 {offsets = [1, 2, 0], sizes = [16, 16, 4], strides = [1, 1, 1]} : vector<18x18x4xf32> to vector<16x16x4xf32>
    %85 = vector.extract_strided_slice %78 {offsets = [2, 0, 0], sizes = [16, 16, 4], strides = [1, 1, 1]} : vector<18x18x4xf32> to vector<16x16x4xf32>
    %86 = vector.extract_strided_slice %78 {offsets = [2, 1, 0], sizes = [16, 16, 4], strides = [1, 1, 1]} : vector<18x18x4xf32> to vector<16x16x4xf32>
    %87 = vector.extract_strided_slice %78 {offsets = [2, 2, 0], sizes = [16, 16, 4], strides = [1, 1, 1]} : vector<18x18x4xf32> to vector<16x16x4xf32>
    %88 = tpu.concatenate %79, %80, %81, %82, %83, %84, %85, %86, %87 in 2 : vector<16x16x4xf32>, vector<16x16x4xf32>, vector<16x16x4xf32>, vector<16x16x4xf32>, vector<16x16x4xf32>, vector<16x16x4xf32>, vector<16x16x4xf32>, vector<16x16x4xf32>, vector<16x16x4xf32> -> vector<16x16x36xf32>
    %89 = vector.shape_cast %88 : vector<16x16x36xf32> to vector<256x36xf32>
    %cst_25 = arith.constant dense<0.000000e+00> : vector<256x4xf32>
    %90 = tpu.matmul %89, %54, %cst_25 {dimension_numbers = #tpu.dot_dimension_numbers<[1], [0], [0], [1], [0, 0, 1, 1], [], []>} : vector<256x36xf32>, vector<36x4xf32>, vector<256x4xf32> -> vector<256x4xf32>
    %91 = vector.broadcast %55 : vector<1x4xf32> to vector<256x4xf32>
    %92 = arith.addf %90, %91 : vector<256x4xf32>
    %cst_26 = arith.constant 0.000000e+00 : f32
    %93 = vector.broadcast %cst_26 : f32 to vector<256x4xf32>
    %94 = arith.maximumf %92, %93 : vector<256x4xf32>
    %95 = vector.shape_cast %94 : vector<256x4xf32> to vector<16x16x4xf32>
    %c0_27 = arith.constant 0 : index
    %c0_28 = arith.constant 0 : index
    %c0_29 = arith.constant 0 : index
    %c0_30 = arith.constant 0 : index
    %96 = vector.load %arg3[%c0_27, %c0_28, %c0_29, %c0_30] : memref<1x16x16x4xf32, #tpu.memory_space<vmem>>, vector<1x16x16x4xf32>
    %97 = vector.shape_cast %96 : vector<1x16x16x4xf32> to vector<16x16x4xf32>
    %98 = vector.shape_cast %95 : vector<16x16x4xf32> to vector<1x16x16x4xf32>
    tpu.vector_store %arg3[%c0_27, %c0_28, %c0_29, %c0_30], %98 {strides = array<i32>} : memref<1x16x16x4xf32, #tpu.memory_space<vmem>>, vector<1x16x16x4xf32>,
    return
  }
  func.func @transform_0(%arg0: i32) -> (i32, i32, i32, i32) {
    %c0_i32 = arith.constant 0 : i32
    %c0_i32_0 = arith.constant 0 : i32
    %c0_i32_1 = arith.constant 0 : i32
    %c0_i32_2 = arith.constant 0 : i32
    return %arg0, %c0_i32, %c0_i32_0, %c0_i32_1 : i32, i32, i32, i32
  }
  func.func @transform_1(%arg0: i32) -> (i32, i32, i32) {
    %c0_i32 = arith.constant 0 : i32
    %c0_i32_0 = arith.constant 0 : i32
    %c0_i32_1 = arith.constant 0 : i32
    %c0_i32_2 = arith.constant 0 : i32
    return %c0_i32, %c0_i32_0, %c0_i32_1 : i32, i32, i32
  }
  func.func @transform_2(%arg0: i32) -> (i32, i32, i32, i32) {
    %c0_i32 = arith.constant 0 : i32
    %c0_i32_0 = arith.constant 0 : i32
    %c0_i32_1 = arith.constant 0 : i32
    %c0_i32_2 = arith.constant 0 : i32
    return %arg0, %c0_i32, %c0_i32_0, %c0_i32_1 : i32, i32, i32, i32
  }
}

</mosaic_0001>

<llo_original>
// kernel: lrcs_forward.1
$region0: #{lrcs_forward.1}
  #allocation0 [shape = 'u32[]', space=smem, size = 0x4, offset = 0x4, fixed_abs, tag = 'smem constant byte address 0x4 - core index']
  #allocation1 [shape = 'u32[144,128]{1,0:T(1,128)}', space=vmem, size = 0x12000, scoped, tag = 'internal scratch']
  %s0 = inlined_call_operand.vmem [shape: f32[2,16,16,4], index: 0, kind: input, shape index: {}]
  %s1 = inlined_call_operand.vmem [shape: f32[2,64,4], index: 1, kind: input, shape index: {}]
  %s2 = inlined_call_operand.vmem [shape: f32[2,16,16,4], index: 2, kind: output, shape index: {}]
  %s3 = sld [smem:[#allocation0]]
  $region41: #{lrcs_forward.1} parent=0
    _
  %s5 = ssub.s32 1, %s3
  %s6 = scalar_select 0, %s5, %s3
  loop: start=0, step=1, limit=4
  $region2: #{lrcs_forward.1} parent=0 // loop_pre_header
    _
  $region3: #{lrcs_forward.1} parent=0 // loop_header
    %s8 = sphi 0, %s12
    %p9 = scmp.ge.s32.totalorder %s8, 4
    %s18 = sphi 0, %s20
    %s21 = sphi 0, %s18
    %s22 = sphi 0, %s21
    %s38 = sphi 0, %s22
    %s42 = sphi 0, %s42
    %s44 = sphi 0, %s42
    %s45 = sphi 0, %s44
    %s59 = sphi 0, %s45
    %s65 = sphi 0, %s67
    %s68 = sphi 0, %s65
    %s69 = sphi 0, %s68
    %s85 = sphi 0, %s69
  $region4: #{lrcs_forward.1} parent=0 // loop_header_branch
    %11 = sbr.rel (%p9) target = $region8
  $region5: #{lrcs_forward.1} parent=0 // loop_body
    %s13 = ssub.s32 %s8, 1
    %s14 = ssub.s32 %s8, 2
    %s15 = sadd.s32 %s8, 1
    %s16 = ssub.s32 %s8, %s15
    %p17 = scmp.eq.s32.totalorder %s16, 0
    %s19 = sadd.s32 %s18, 1
    %s20 = scalar_select %p17, %s18, %s19
    %p23 = pneg %p17
    %p24 = scmp.eq.s32.totalorder %s8, 1
    %p25 = por %p23, %p24
    %p26 = scmp.ne.s32.totalorder %s18, %s21
    %p27 = scmp.eq.s32.totalorder %s8, 0
    %p28 = por %p26, %p27
    %p29 = scmp.ne.s32.totalorder %s18, %s21
    %p30 = scmp.eq.s32.totalorder %s13, 1
    %p31 = por %p29, %p30
    %p32 = scmp.ne.s32.totalorder %s21, %s22
    %p33 = scmp.eq.s32.totalorder %s13, 0
    %p34 = por %p32, %p33
    %p35 = scmp.ne.s32.totalorder %s21, %s22
    %p36 = scmp.eq.s32.totalorder %s14, 1
    %p37 = por %p35, %p36
    %p39 = scmp.ne.s32.totalorder %s22, %s38
    %p40 = scmp.eq.s32.totalorder %s14, 0
    %p41 = por %p39, %p40
    %s43 = sadd.s32 %s42, 1
    %p46 = scmp.eq.s32.totalorder %s8, 1
    %p47 = scmp.ne.s32.totalorder %s42, %s44
    %p48 = scmp.eq.s32.totalorder %s8, 0
    %p49 = por %p47, %p48
    %p50 = scmp.ne.s32.totalorder %s42, %s44
    %p51 = scmp.eq.s32.totalorder %s13, 1
    %p52 = por %p50, %p51
    %p53 = scmp.ne.s32.totalorder %s44, %s45
    %p54 = scmp.eq.s32.totalorder %s13, 0
    %p55 = por %p53, %p54
    %p56 = scmp.ne.s32.totalorder %s44, %s45
    %p57 = scmp.eq.s32.totalorder %s14, 1
    %p58 = por %p56, %p57
    %p60 = scmp.ne.s32.totalorder %s45, %s59
    %p61 = scmp.eq.s32.totalorder %s14, 0
    %p62 = por %p60, %p61
    %s63 = ssub.s32 %s8, %s15
    %p64 = scmp.eq.s32.totalorder %s63, 0
    %s66 = sadd.s32 %s65, 1
    %s67 = scalar_select %p64, %s65, %s66
    %p70 = pneg %p64
    %p71 = scmp.eq.s32.totalorder %s8, 1
    %p72 = por %p70, %p71
    %p73 = scmp.ne.s32.totalorder %s65, %s68
    %p74 = scmp.eq.s32.totalorder %s8, 0
    %p75 = por %p73, %p74
    %p76 = scmp.ne.s32.totalorder %s65, %s68
    %p77 = scmp.eq.s32.totalorder %s13, 1
    %p78 = por %p76, %p77
    %p79 = scmp.ne.s32.totalorder %s68, %s69
    %p80 = scmp.eq.s32.totalorder %s13, 0
    %p81 = por %p79, %p80
    %p82 = scmp.ne.s32.totalorder %s68, %s69
    %p83 = scmp.eq.s32.totalorder %s14, 1
    %p84 = por %p82, %p83
    %p86 = scmp.ne.s32.totalorder %s69, %s85
    %p87 = scmp.eq.s32.totalorder %s14, 0
    %p88 = por %p86, %p87
    %p89 = scmp.le.s32.totalorder 1, %s8
    %p90 = scmp.lt.s32.totalorder %s8, 3
    %p91 = pnand %p89, %p90
    %p92 = pneg %p91
    // Predicated region
    $region9: #{lrcs_forward.1} parent=5 // pred_check
      _
    $region10: #{lrcs_forward.1} parent=5 // pred_check_branch
      %94 = sbr.rel (%p91) target = $region12
    $region11: #{lrcs_forward.1} parent=5 // pred_region
      %s95 = ssub.s32 %s8, 1
      // Predicated region
      $region13: #{lrcs_forward.1} parent=11 // pred_check
        %p96 = pneg %p55
      $region14: #{lrcs_forward.1} parent=11 // pred_check_branch
        %98 = sbr.rel (%p96) target = $region16
      $region15: #{lrcs_forward.1} parent=11 // pred_region
        _
      $region16: #{lrcs_forward.1} parent=11 // pred_fallthru
        _
    $region12: #{lrcs_forward.1} parent=5 // pred_fallthru
      _
    %p99 = scmp.lt.s32.totalorder %s8, 2
    // Predicated region
    $region17: #{lrcs_forward.1} parent=5 // pred_check
      %p100 = pneg %p99
    $region18: #{lrcs_forward.1} parent=5 // pred_check_branch
      %102 = sbr.rel (%p100) target = $region20
    $region19: #{lrcs_forward.1} parent=5 // pred_region
      // Predicated region
      $region21: #{lrcs_forward.1} parent=19 // pred_check
        %p103 = pneg %p28
      $region22: #{lrcs_forward.1} parent=19 // pred_check_branch
        %105 = sbr.rel (%p103) target = $region24
      $region23: #{lrcs_forward.1} parent=19 // pred_region
        %p106 = scmp.lt.s32.totalorder %s8, 1
        %s107 = scalar_select %p106, %s8, 1
        %s108 = smul.addr %s107, 32
        %s109 = smul.addr %s108, 8
        %s110 = scalar_lea.vmem %s0, %s109
      $region24: #{lrcs_forward.1} parent=19 // pred_fallthru
        _
    $region20: #{lrcs_forward.1} parent=5 // pred_fallthru
      _
    %p111 = scmp.le.s32.totalorder 1, %s8
    %p112 = scmp.lt.s32.totalorder %s8, 3
    %p113 = pnand %p111, %p112
    %p114 = pneg %p113
    // Predicated region
    $region25: #{lrcs_forward.1} parent=5 // pred_check
      _
    $region26: #{lrcs_forward.1} parent=5 // pred_check_branch
      %116 = sbr.rel (%p113) target = $region28
    $region27: #{lrcs_forward.1} parent=5 // pred_region
      %s117 = ssub.s32 %s8, 1
      %p118 = scmp.lt.s32.totalorder %s13, 1
      %s119 = scalar_select %p118, %s13, 1
      %s120 = smul.addr %s119, 32
      %s121 = smul.addr %s120, 8
      %s122 = scalar_lea.vmem %s0, %s121
      %p123 = pneg %p34
      %p124 = pneg %p31
      %p125 = pneg %p55
      %p126 = pneg %p52
      %p127 = pneg %p81
      %p128 = pneg %p78
      %p129 = scmp.lt.s32.totalorder %s13, 1
      %s130 = scalar_select %p129, %s13, 1
      %s131 = smul.addr %s130, 32
      %s132 = smul.addr %s131, 8
      %s133 = scalar_lea.vmem %s2, %s132
      %p134 = scmp.lt.s32.totalorder %s13, 1
      %s135 = scalar_select %p134, %s13, 1
      %s136 = smul.addr %s135, 32
      %s137 = smul.addr %s136, 8
      %s138 = scalar_lea.vmem %s0, %s137
      %p139 = scmp.lt.s32.totalorder %s13, 1
      %s140 = scalar_select %p139, %s13, 1
      %s141 = smul.addr %s140, 32
      %s142 = smul.addr %s141, 8
      %s143 = scalar_lea.vmem %s2, %s142
      %v144 = vld [vmem:[%s138] sm:$0xff]
      %v145 = vld [vmem:[%s138 + $0x8] sm:$0xff]
      %v146 = vld [vmem:[%s138 + $0x10] sm:$0xff]
      %v147 = vld [vmem:[%s138 + $0x18] sm:$0xff]
      %v148 = vld [vmem:[%s138 + $0x20] sm:$0xff]
      %v149 = vld [vmem:[%s138 + $0x28] sm:$0xff]
      %v150 = vld [vmem:[%s138 + $0x30] sm:$0xff]
      %v151 = vld [vmem:[%s138 + $0x38] sm:$0xff]
      %v152 = vld [vmem:[%s138 + $0x40] sm:$0xff]
      %v153 = vld [vmem:[%s138 + $0x48] sm:$0xff]
      %v154 = vld [vmem:[%s138 + $0x50] sm:$0xff]
      %v155 = vld [vmem:[%s138 + $0x58] sm:$0xff]
      %v156 = vld [vmem:[%s138 + $0x60] sm:$0xff]
      %v157 = vld [vmem:[%s138 + $0x68] sm:$0xff]
      %v158 = vld [vmem:[%s138 + $0x70] sm:$0xff]
      %v159 = vld [vmem:[%s138 + $0x78] sm:$0xff]
      %v160 = vld [vmem:[%s138 + $0x80] sm:$0xff]
      %v161 = vld [vmem:[%s138 + $0x88] sm:$0xff]
      %v162 = vld [vmem:[%s138 + $0x90] sm:$0xff]
      %v163 = vld [vmem:[%s138 + $0x98] sm:$0xff]
      %v164 = vld [vmem:[%s138 + $0xa0] sm:$0xff]
      %v165 = vld [vmem:[%s138 + $0xa8] sm:$0xff]
      %v166 = vld [vmem:[%s138 + $0xb0] sm:$0xff]
      %v167 = vld [vmem:[%s138 + $0xb8] sm:$0xff]
      %v168 = vld [vmem:[%s138 + $0xc0] sm:$0xff]
      %v169 = vld [vmem:[%s138 + $0xc8] sm:$0xff]
      %v170 = vld [vmem:[%s138 + $0xd0] sm:$0xff]
      %v171 = vld [vmem:[%s138 + $0xd8] sm:$0xff]
      %v172 = vld [vmem:[%s138 + $0xe0] sm:$0xff]
      %v173 = vld [vmem:[%s138 + $0xe8] sm:$0xff]
      %v174 = vld [vmem:[%s138 + $0xf0] sm:$0xff]
      %v175 = vld [vmem:[%s138 + $0xf8] sm:$0xff]
      %v176 = vld [vmem:[%s1] sm:$0xff]
      %v177 = vld [vmem:[%s1 + $0x8] sm:$0xff]
      %v178 = vld [vmem:[%s1 + $0x10] sm:$0xff]
      %v179 = vld [vmem:[%s1 + $0x18] sm:$0xff]
      %v180 = vld [vmem:[%s1 + $0x20] sm:$0xff]
      %v181 = vld [vmem:[%s1 + $0x28] sm:$0xff]
      %v182 = vld [vmem:[%s1 + $0x30] sm:$0xff]
      %v183 = vld [vmem:[%s1 + $0x38] sm:$0xff]
      %v184 = vcombine.low %v144, %v148
      %v185 = vcombine.high %v144, %v148
      %v187 = vunpack.c.l.s4 1983009808
      %v188 = vunpack.c.0.s8 %v187
      %v189 = vlaneseq
      %v190 = vshrl.u32 %v189, 7
      %v191 = vsub.s32 %v188, %v190
      %v192 = vrot.slane %v184, %v191
      %v194 = vunpack.c.l.s4 1983009808
      %v195 = vunpack.c.0.s8 %v194
      %v196 = vlaneseq
      %v197 = vshrl.u32 %v196, 7
      %v198 = vsub.s32 %v195, %v197
      %v199 = vrot.slane %v185, %v198
      %v200 = vcombine.low %v146, %v150
      %v201 = vcombine.high %v146, %v150
      %v203 = vunpack.c.l.s4 1983009808
      %v204 = vunpack.c.0.s8 %v203
      %v205 = vlaneseq
      %v206 = vshrl.u32 %v205, 7
      %v207 = vsub.s32 %v204, %v206
      %v208 = vrot.slane %v200, %v207
      %v210 = vunpack.c.l.s4 1983009808
      %v211 = vunpack.c.0.s8 %v210
      %v212 = vlaneseq
      %v213 = vshrl.u32 %v212, 7
      %v214 = vsub.s32 %v211, %v213
      %v215 = vrot.slane %v201, %v214
      %v216 = vcombine.low %v152, %v156
      %v217 = vcombine.high %v152, %v156
      %v219 = vunpack.c.l.s4 1983009808
      %v220 = vunpack.c.0.s8 %v219
      %v221 = vlaneseq
      %v222 = vshrl.u32 %v221, 7
      %v223 = vsub.s32 %v220, %v222
      %v224 = vrot.slane %v216, %v223
      %v226 = vunpack.c.l.s4 1983009808
      %v227 = vunpack.c.0.s8 %v226
      %v228 = vlaneseq
      %v229 = vshrl.u32 %v228, 7
      %v230 = vsub.s32 %v227, %v229
      %v231 = vrot.slane %v217, %v230
      %v232 = vcombine.low %v154, %v158
      %v233 = vcombine.high %v154, %v158
      %v235 = vunpack.c.l.s4 1983009808
      %v236 = vunpack.c.0.s8 %v235
      %v237 = vlaneseq
      %v238 = vshrl.u32 %v237, 7
      %v239 = vsub.s32 %v236, %v238
      %v240 = vrot.slane %v232, %v239
      %v242 = vunpack.c.l.s4 1983009808
      %v243 = vunpack.c.0.s8 %v242
      %v244 = vlaneseq
      %v245 = vshrl.u32 %v244, 7
      %v246 = vsub.s32 %v243, %v245
      %v247 = vrot.slane %v233, %v246
      %v248 = vcombine.low %v192, %v208
      %v249 = vcombine.high %v192, %v208
      %v251 = vunpack.c.l.s4 1934713408
      %v252 = vunpack.c.0.s8 %v251
      %v253 = vlaneseq
      %v254 = vshrl.u32 %v253, 7
      %v255 = vsub.s32 %v252, %v254
      %v256 = vrot.slane %v248, %v255
      %v258 = vunpack.c.l.s4 1934713408
      %v259 = vunpack.c.0.s8 %v258
      %v260 = vlaneseq
      %v261 = vshrl.u32 %v260, 7
      %v262 = vsub.s32 %v259, %v261
      %v263 = vrot.slane %v249, %v262
      %v264 = vcombine.low %v199, %v215
      %v265 = vcombine.high %v199, %v215
      %v267 = vunpack.c.l.s4 1934713408
      %v268 = vunpack.c.0.s8 %v267
      %v269 = vlaneseq
      %v270 = vshrl.u32 %v269, 7
      %v271 = vsub.s32 %v268, %v270
      %v272 = vrot.slane %v264, %v271
      %v274 = vunpack.c.l.s4 1934713408
      %v275 = vunpack.c.0.s8 %v274
      %v276 = vlaneseq
      %v277 = vshrl.u32 %v276, 7
      %v278 = vsub.s32 %v275, %v277
      %v279 = vrot.slane %v265, %v278
      %v280 = vcombine.low %v224, %v240
      %v281 = vcombine.high %v224, %v240
      %v283 = vunpack.c.l.s4 1934713408
      %v284 = vunpack.c.0.s8 %v283
      %v285 = vlaneseq
      %v286 = vshrl.u32 %v285, 7
      %v287 = vsub.s32 %v284, %v286
      %v288 = vrot.slane %v280, %v287
      %v290 = vunpack.c.l.s4 1934713408
      %v291 = vunpack.c.0.s8 %v290
      %v292 = vlaneseq
      %v293 = vshrl.u32 %v292, 7
      %v294 = vsub.s32 %v291, %v293
      %v295 = vrot.slane %v281, %v294
      %v296 = vcombine.low %v231, %v247
      %v297 = vcombine.high %v231, %v247
      %v299 = vunpack.c.l.s4 1934713408
      %v300 = vunpack.c.0.s8 %v299
      %v301 = vlaneseq
      %v302 = vshrl.u32 %v301, 7
      %v303 = vsub.s32 %v300, %v302
      %v304 = vrot.slane %v296, %v303
      %v306 = vunpack.c.l.s4 1934713408
      %v307 = vunpack.c.0.s8 %v306
      %v308 = vlaneseq
      %v309 = vshrl.u32 %v308, 7
      %v310 = vsub.s32 %v307, %v309
      %v311 = vrot.slane %v297, %v310
      %v312 = vcombine.low %v256, %v288
      %v313 = vcombine.high %v256, %v288
      %v314 = vcombine.low %v263, %v295
      %v315 = vcombine.high %v263, %v295
      %v316 = vcombine.low %v272, %v304
      %v317 = vcombine.high %v272, %v304
      %v318 = vcombine.low %v279, %v311
      %v319 = vcombine.high %v279, %v311
      %v320 = vcombine.low %v160, %v164
      %v321 = vcombine.high %v160, %v164
      %v323 = vunpack.c.l.s4 1983009808
      %v324 = vunpack.c.0.s8 %v323
      %v325 = vlaneseq
      %v326 = vshrl.u32 %v325, 7
      %v327 = vsub.s32 %v324, %v326
      %v328 = vrot.slane %v320, %v327
      %v330 = vunpack.c.l.s4 1983009808
      %v331 = vunpack.c.0.s8 %v330
      %v332 = vlaneseq
      %v333 = vshrl.u32 %v332, 7
      %v334 = vsub.s32 %v331, %v333
      %v335 = vrot.slane %v321, %v334
      %v336 = vcombine.low %v162, %v166
      %v337 = vcombine.high %v162, %v166
      %v339 = vunpack.c.l.s4 1983009808
      %v340 = vunpack.c.0.s8 %v339
      %v341 = vlaneseq
      %v342 = vshrl.u32 %v341, 7
      %v343 = vsub.s32 %v340, %v342
      %v344 = vrot.slane %v336, %v343
      %v346 = vunpack.c.l.s4 1983009808
      %v347 = vunpack.c.0.s8 %v346
      %v348 = vlaneseq
      %v349 = vshrl.u32 %v348, 7
      %v350 = vsub.s32 %v347, %v349
      %v351 = vrot.slane %v337, %v350
      %v352 = vcombine.low %v168, %v172
      %v353 = vcombine.high %v168, %v172
      %v355 = vunpack.c.l.s4 1983009808
      %v356 = vunpack.c.0.s8 %v355
      %v357 = vlaneseq
      %v358 = vshrl.u32 %v357, 7
      %v359 = vsub.s32 %v356, %v358
      %v360 = vrot.slane %v352, %v359
      %v362 = vunpack.c.l.s4 1983009808
      %v363 = vunpack.c.0.s8 %v362
      %v364 = vlaneseq
      %v365 = vshrl.u32 %v364, 7
      %v366 = vsub.s32 %v363, %v365
      %v367 = vrot.slane %v353, %v366
      %v368 = vcombine.low %v170, %v174
      %v369 = vcombine.high %v170, %v174
      %v371 = vunpack.c.l.s4 1983009808
      %v372 = vunpack.c.0.s8 %v371
      %v373 = vlaneseq
      %v374 = vshrl.u32 %v373, 7
      %v375 = vsub.s32 %v372, %v374
      %v376 = vrot.slane %v368, %v375
      %v378 = vunpack.c.l.s4 1983009808
      %v379 = vunpack.c.0.s8 %v378
      %v380 = vlaneseq
      %v381 = vshrl.u32 %v380, 7
      %v382 = vsub.s32 %v379, %v381
      %v383 = vrot.slane %v369, %v382
      %v384 = vcombine.low %v328, %v344
      %v385 = vcombine.high %v328, %v344
      %v387 = vunpack.c.l.s4 1934713408
      %v388 = vunpack.c.0.s8 %v387
      %v389 = vlaneseq
      %v390 = vshrl.u32 %v389, 7
      %v391 = vsub.s32 %v388, %v390
      %v392 = vrot.slane %v384, %v391
      %v394 = vunpack.c.l.s4 1934713408
      %v395 = vunpack.c.0.s8 %v394
      %v396 = vlaneseq
      %v397 = vshrl.u32 %v396, 7
      %v398 = vsub.s32 %v395, %v397
      %v399 = vrot.slane %v385, %v398
      %v400 = vcombine.low %v335, %v351
      %v401 = vcombine.high %v335, %v351
      %v403 = vunpack.c.l.s4 1934713408
      %v404 = vunpack.c.0.s8 %v403
      %v405 = vlaneseq
      %v406 = vshrl.u32 %v405, 7
      %v407 = vsub.s32 %v404, %v406
      %v408 = vrot.slane %v400, %v407
      %v410 = vunpack.c.l.s4 1934713408
      %v411 = vunpack.c.0.s8 %v410
      %v412 = vlaneseq
      %v413 = vshrl.u32 %v412, 7
      %v414 = vsub.s32 %v411, %v413
      %v415 = vrot.slane %v401, %v414
      %v416 = vcombine.low %v360, %v376
      %v417 = vcombine.high %v360, %v376
      %v419 = vunpack.c.l.s4 1934713408
      %v420 = vunpack.c.0.s8 %v419
      %v421 = vlaneseq
      %v422 = vshrl.u32 %v421, 7
      %v423 = vsub.s32 %v420, %v422
      %v424 = vrot.slane %v416, %v423
      %v426 = vunpack.c.l.s4 1934713408
      %v427 = vunpack.c.0.s8 %v426
      %v428 = vlaneseq
      %v429 = vshrl.u32 %v428, 7
      %v430 = vsub.s32 %v427, %v429
      %v431 = vrot.slane %v417, %v430
      %v432 = vcombine.low %v367, %v383
      %v433 = vcombine.high %v367, %v383
      %v435 = vunpack.c.l.s4 1934713408
      %v436 = vunpack.c.0.s8 %v435
      %v437 = vlaneseq
      %v438 = vshrl.u32 %v437, 7
      %v439 = vsub.s32 %v436, %v438
      %v440 = vrot.slane %v432, %v439
      %v442 = vunpack.c.l.s4 1934713408
      %v443 = vunpack.c.0.s8 %v442
      %v444 = vlaneseq
      %v445 = vshrl.u32 %v444, 7
      %v446 = vsub.s32 %v443, %v445
      %v447 = vrot.slane %v433, %v446
      %v448 = vcombine.low %v392, %v424
      %v449 = vcombine.high %v392, %v424
      %v450 = vcombine.low %v399, %v431
      %v451 = vcombine.high %v399, %v431
      %v452 = vcombine.low %v408, %v440
      %v453 = vcombine.high %v408, %v440
      %v454 = vcombine.low %v415, %v447
      %v455 = vcombine.high %v415, %v447
      %v456 = vcombine.low %v145, %v149
      %v457 = vcombine.high %v145, %v149
      %v459 = vunpack.c.l.s4 1983009808
      %v460 = vunpack.c.0.s8 %v459
      %v461 = vlaneseq
      %v462 = vshrl.u32 %v461, 7
      %v463 = vsub.s32 %v460, %v462
      %v464 = vrot.slane %v456, %v463
      %v466 = vunpack.c.l.s4 1983009808
      %v467 = vunpack.c.0.s8 %v466
      %v468 = vlaneseq
      %v469 = vshrl.u32 %v468, 7
      %v470 = vsub.s32 %v467, %v469
      %v471 = vrot.slane %v457, %v470
      %v472 = vcombine.low %v147, %v151
      %v473 = vcombine.high %v147, %v151
      %v475 = vunpack.c.l.s4 1983009808
      %v476 = vunpack.c.0.s8 %v475
      %v477 = vlaneseq
      %v478 = vshrl.u32 %v477, 7
      %v479 = vsub.s32 %v476, %v478
      %v480 = vrot.slane %v472, %v479
      %v482 = vunpack.c.l.s4 1983009808
      %v483 = vunpack.c.0.s8 %v482
      %v484 = vlaneseq
      %v485 = vshrl.u32 %v484, 7
      %v486 = vsub.s32 %v483, %v485
      %v487 = vrot.slane %v473, %v486
      %v488 = vcombine.low %v153, %v157
      %v489 = vcombine.high %v153, %v157
      %v491 = vunpack.c.l.s4 1983009808
      %v492 = vunpack.c.0.s8 %v491
      %v493 = vlaneseq
      %v494 = vshrl.u32 %v493, 7
      %v495 = vsub.s32 %v492, %v494
      %v496 = vrot.slane %v488, %v495
      %v498 = vunpack.c.l.s4 1983009808
      %v499 = vunpack.c.0.s8 %v498
      %v500 = vlaneseq
      %v501 = vshrl.u32 %v500, 7
      %v502 = vsub.s32 %v499, %v501
      %v503 = vrot.slane %v489, %v502
      %v504 = vcombine.low %v155, %v159
      %v505 = vcombine.high %v155, %v159
      %v507 = vunpack.c.l.s4 1983009808
      %v508 = vunpack.c.0.s8 %v507
      %v509 = vlaneseq
      %v510 = vshrl.u32 %v509, 7
      %v511 = vsub.s32 %v508, %v510
      %v512 = vrot.slane %v504, %v511
      %v514 = vunpack.c.l.s4 1983009808
      %v515 = vunpack.c.0.s8 %v514
      %v516 = vlaneseq
      %v517 = vshrl.u32 %v516, 7
      %v518 = vsub.s32 %v515, %v517
      %v519 = vrot.slane %v505, %v518
      %v520 = vcombine.low %v464, %v480
      %v521 = vcombine.high %v464, %v480
      %v523 = vunpack.c.l.s4 1934713408
      %v524 = vunpack.c.0.s8 %v523
      %v525 = vlaneseq
      %v526 = vshrl.u32 %v525, 7
      %v527 = vsub.s32 %v524, %v526
      %v528 = vrot.slane %v520, %v527
      %v530 = vunpack.c.l.s4 1934713408
      %v531 = vunpack.c.0.s8 %v530
      %v532 = vlaneseq
      %v533 = vshrl.u32 %v532, 7
      %v534 = vsub.s32 %v531, %v533
      %v535 = vrot.slane %v521, %v534
      %v536 = vcombine.low %v471, %v487
      %v537 = vcombine.high %v471, %v487
      %v539 = vunpack.c.l.s4 1934713408
      %v540 = vunpack.c.0.s8 %v539
      %v541 = vlaneseq
      %v542 = vshrl.u32 %v541, 7
      %v543 = vsub.s32 %v540, %v542
      %v544 = vrot.slane %v536, %v543
      %v546 = vunpack.c.l.s4 1934713408
      %v547 = vunpack.c.0.s8 %v546
      %v548 = vlaneseq
      %v549 = vshrl.u32 %v548, 7
      %v550 = vsub.s32 %v547, %v549
      %v551 = vrot.slane %v537, %v550
      %v552 = vcombine.low %v496, %v512
      %v553 = vcombine.high %v496, %v512
      %v555 = vunpack.c.l.s4 1934713408
      %v556 = vunpack.c.0.s8 %v555
      %v557 = vlaneseq
      %v558 = vshrl.u32 %v557, 7
      %v559 = vsub.s32 %v556, %v558
      %v560 = vrot.slane %v552, %v559
      %v562 = vunpack.c.l.s4 1934713408
      %v563 = vunpack.c.0.s8 %v562
      %v564 = vlaneseq
      %v565 = vshrl.u32 %v564, 7
      %v566 = vsub.s32 %v563, %v565
      %v567 = vrot.slane %v553, %v566
      %v568 = vcombine.low %v503, %v519
      %v569 = vcombine.high %v503, %v519
      %v571 = vunpack.c.l.s4 1934713408
      %v572 = vunpack.c.0.s8 %v571
      %v573 = vlaneseq
      %v574 = vshrl.u32 %v573, 7
      %v575 = vsub.s32 %v572, %v574
      %v576 = vrot.slane %v568, %v575
      %v578 = vunpack.c.l.s4 1934713408
      %v579 = vunpack.c.0.s8 %v578
      %v580 = vlaneseq
      %v581 = vshrl.u32 %v580, 7
      %v582 = vsub.s32 %v579, %v581
      %v583 = vrot.slane %v569, %v582
      %v584 = vcombine.low %v528, %v560
      %v585 = vcombine.high %v528, %v560
      %v586 = vcombine.low %v535, %v567
      %v587 = vcombine.high %v535, %v567
      %v588 = vcombine.low %v544, %v576
      %v589 = vcombine.high %v544, %v576
      %v590 = vcombine.low %v551, %v583
      %v591 = vcombine.high %v551, %v583
      %v592 = vcombine.low %v161, %v165
      %v593 = vcombine.high %v161, %v165
      %v595 = vunpack.c.l.s4 1983009808
      %v596 = vunpack.c.0.s8 %v595
      %v597 = vlaneseq
      %v598 = vshrl.u32 %v597, 7
      %v599 = vsub.s32 %v596, %v598
      %v600 = vrot.slane %v592, %v599
      %v602 = vunpack.c.l.s4 1983009808
      %v603 = vunpack.c.0.s8 %v602
      %v604 = vlaneseq
      %v605 = vshrl.u32 %v604, 7
      %v606 = vsub.s32 %v603, %v605
      %v607 = vrot.slane %v593, %v606
      %v608 = vcombine.low %v163, %v167
      %v609 = vcombine.high %v163, %v167
      %v611 = vunpack.c.l.s4 1983009808
      %v612 = vunpack.c.0.s8 %v611
      %v613 = vlaneseq
      %v614 = vshrl.u32 %v613, 7
      %v615 = vsub.s32 %v612, %v614
      %v616 = vrot.slane %v608, %v615
      %v618 = vunpack.c.l.s4 1983009808
      %v619 = vunpack.c.0.s8 %v618
      %v620 = vlaneseq
      %v621 = vshrl.u32 %v620, 7
      %v622 = vsub.s32 %v619, %v621
      %v623 = vrot.slane %v609, %v622
      %v624 = vcombine.low %v169, %v173
      %v625 = vcombine.high %v169, %v173
      %v627 = vunpack.c.l.s4 1983009808
      %v628 = vunpack.c.0.s8 %v627
      %v629 = vlaneseq
      %v630 = vshrl.u32 %v629, 7
      %v631 = vsub.s32 %v628, %v630
      %v632 = vrot.slane %v624, %v631
      %v634 = vunpack.c.l.s4 1983009808
      %v635 = vunpack.c.0.s8 %v634
      %v636 = vlaneseq
      %v637 = vshrl.u32 %v636, 7
      %v638 = vsub.s32 %v635, %v637
      %v639 = vrot.slane %v625, %v638
      %v640 = vcombine.low %v171, %v175
      %v641 = vcombine.high %v171, %v175
      %v643 = vunpack.c.l.s4 1983009808
      %v644 = vunpack.c.0.s8 %v643
      %v645 = vlaneseq
      %v646 = vshrl.u32 %v645, 7
      %v647 = vsub.s32 %v644, %v646
      %v648 = vrot.slane %v640, %v647
      %v650 = vunpack.c.l.s4 1983009808
      %v651 = vunpack.c.0.s8 %v650
      %v652 = vlaneseq
      %v653 = vshrl.u32 %v652, 7
      %v654 = vsub.s32 %v651, %v653
      %v655 = vrot.slane %v641, %v654
      %v656 = vcombine.low %v600, %v616
      %v657 = vcombine.high %v600, %v616
      %v659 = vunpack.c.l.s4 1934713408
      %v660 = vunpack.c.0.s8 %v659
      %v661 = vlaneseq
      %v662 = vshrl.u32 %v661, 7
      %v663 = vsub.s32 %v660, %v662
      %v664 = vrot.slane %v656, %v663
      %v666 = vunpack.c.l.s4 1934713408
      %v667 = vunpack.c.0.s8 %v666
      %v668 = vlaneseq
      %v669 = vshrl.u32 %v668, 7
      %v670 = vsub.s32 %v667, %v669
      %v671 = vrot.slane %v657, %v670
      %v672 = vcombine.low %v607, %v623
      %v673 = vcombine.high %v607, %v623
      %v675 = vunpack.c.l.s4 1934713408
      %v676 = vunpack.c.0.s8 %v675
      %v677 = vlaneseq
      %v678 = vshrl.u32 %v677, 7
      %v679 = vsub.s32 %v676, %v678
      %v680 = vrot.slane %v672, %v679
      %v682 = vunpack.c.l.s4 1934713408
      %v683 = vunpack.c.0.s8 %v682
      %v684 = vlaneseq
      %v685 = vshrl.u32 %v684, 7
      %v686 = vsub.s32 %v683, %v685
      %v687 = vrot.slane %v673, %v686
      %v688 = vcombine.low %v632, %v648
      %v689 = vcombine.high %v632, %v648
      %v691 = vunpack.c.l.s4 1934713408
      %v692 = vunpack.c.0.s8 %v691
      %v693 = vlaneseq
      %v694 = vshrl.u32 %v693, 7
      %v695 = vsub.s32 %v692, %v694
      %v696 = vrot.slane %v688, %v695
      %v698 = vunpack.c.l.s4 1934713408
      %v699 = vunpack.c.0.s8 %v698
      %v700 = vlaneseq
      %v701 = vshrl.u32 %v700, 7
      %v702 = vsub.s32 %v699, %v701
      %v703 = vrot.slane %v689, %v702
      %v704 = vcombine.low %v639, %v655
      %v705 = vcombine.high %v639, %v655
      %v707 = vunpack.c.l.s4 1934713408
      %v708 = vunpack.c.0.s8 %v707
      %v709 = vlaneseq
      %v710 = vshrl.u32 %v709, 7
      %v711 = vsub.s32 %v708, %v710
      %v712 = vrot.slane %v704, %v711
      %v714 = vunpack.c.l.s4 1934713408
      %v715 = vunpack.c.0.s8 %v714
      %v716 = vlaneseq
      %v717 = vshrl.u32 %v716, 7
      %v718 = vsub.s32 %v715, %v717
      %v719 = vrot.slane %v705, %v718
      %v720 = vcombine.low %v664, %v696
      %v721 = vcombine.high %v664, %v696
      %v722 = vcombine.low %v671, %v703
      %v723 = vcombine.high %v671, %v703
      %v724 = vcombine.low %v680, %v712
      %v725 = vcombine.high %v680, %v712
      %v726 = vcombine.low %v687, %v719
      %v727 = vcombine.high %v687, %v719
      %vm728 = vcmask 31744
      %v730 = vsel %vm728, %v312, 0
      %v733 = vsel %vm728, %v448, 0
      %v736 = vsel %vm728, %v313, 0
      %v739 = vsel %vm728, %v449, 0
      %v742 = vsel %vm728, %v314, 0
      %v745 = vsel %vm728, %v450, 0
      %v748 = vsel %vm728, %v315, 0
      %v751 = vsel %vm728, %v451, 0
      %v754 = vsel %vm728, %v316, 0
      %v757 = vsel %vm728, %v452, 0
      %v760 = vsel %vm728, %v317, 0
      %v763 = vsel %vm728, %v453, 0
      %v766 = vsel %vm728, %v318, 0
      %v769 = vsel %vm728, %v454, 0
      %v772 = vsel %vm728, %v319, 0
      %v775 = vsel %vm728, %v455, 0
      %v778 = vsel %vm728, %v584, 0
      %v781 = vsel %vm728, %v720, 0
      %v784 = vsel %vm728, %v585, 0
      %v787 = vsel %vm728, %v721, 0
      %v790 = vsel %vm728, %v586, 0
      %v793 = vsel %vm728, %v722, 0
      %v796 = vsel %vm728, %v587, 0
      %v799 = vsel %vm728, %v723, 0
      %v802 = vsel %vm728, %v588, 0
      %v805 = vsel %vm728, %v724, 0
      %v808 = vsel %vm728, %v589, 0
      %v811 = vsel %vm728, %v725, 0
      %v814 = vsel %vm728, %v590, 0
      %v817 = vsel %vm728, %v726, 0
      %v820 = vsel %vm728, %v591, 0
      %v823 = vsel %vm728, %v727, 0
      %vm825 = vcmask 1043456
      %v827 = vsel %vm825, %v176, 0
      %829 = vmatprep.subr.mxu0 0.0
      %830 = vmatpush1.msra.mxu0 %v827
      %831 = vmatprep.subr.mxu0 0.0
      %832 = vmatpush1.msra.mxu0 0.0
      %833 = vmatprep.subr.mxu0 0.0
      %834 = vmatpush1.msra.mxu0 0.0
      %835 = vmatprep.subr.mxu0 0.0
      %836 = vmatpush1.msra.mxu0 0.0
      %837 = vmatprep.subr.mxu0 0.0
      %838 = vmatpush1.msra.mxu0 0.0
      %839 = vmatprep.subr.mxu0 0.0
      %840 = vmatpush1.msra.mxu0 0.0
      %841 = vmatprep.subr.mxu0 0.0
      %842 = vmatpush1.msra.mxu0 0.0
      %843 = vmatprep.subr.mxu0 0.0
      %844 = vmatpush1.msra.mxu0 0.0
      %845 = vmatprep.subr.mxu0 0.0
      %846 = vmatpush1.msra.mxu0 0.0
      %847 = vmatprep.subr.mxu0 0.0
      %848 = vmatpush1.msra.mxu0 0.0
      %849 = vmatprep.subr.mxu0 0.0
      %850 = vmatpush1.msra.mxu0 0.0
      %851 = vmatprep.subr.mxu0 0.0
      %852 = vmatpush1.msra.mxu0 0.0
      %853 = vmatprep.subr.mxu0 0.0
      %854 = vmatpush1.msra.mxu0 0.0
      %855 = vmatprep.subr.mxu0 0.0
      %856 = vmatpush1.msra.mxu0 0.0
      %857 = vmatprep.subr.mxu0 0.0
      %858 = vmatpush1.msra.mxu0 0.0
      %859 = vmatprep.subr.mxu0 0.0
      %860 = vmatpush1.msra.mxu0 0.0
      %861 = vmatprep.subr.mxu0 0.0
      %862 = vmatpush1.msra.mxu0 0.0
      %863 = vmatprep.subr.mxu0 0.0
      %864 = vmatpush1.msra.mxu0 0.0
      %865 = vmatprep.subr.mxu0 0.0
      %866 = vmatpush1.msra.mxu0 0.0
      %867 = vmatprep.subr.mxu0 0.0
      %868 = vmatpush1.msra.mxu0 0.0
      %869 = vmatprep.subr.mxu0 0.0
      %870 = vmatpush1.msra.mxu0 0.0
      %871 = vmatprep.subr.mxu0 0.0
      %872 = vmatpush1.msra.mxu0 0.0
      %873 = vmatprep.subr.mxu0 0.0
      %874 = vmatpush1.msra.mxu0 0.0
      %875 = vmatprep.subr.mxu0 0.0
      %876 = vmatpush1.msra.mxu0 0.0
      %877 = vmatprep.subr.mxu0 0.0
      %878 = vmatpush1.msra.mxu0 0.0
      %879 = vmatprep.subr.mxu0 0.0
      %880 = vmatpush1.msra.mxu0 0.0
      %881 = vmatprep.subr.mxu0 0.0
      %882 = vmatpush1.msra.mxu0 0.0
      %883 = vmatprep.subr.mxu0 0.0
      %884 = vmatpush1.msra.mxu0 0.0
      %885 = vmatprep.subr.mxu0 0.0
      %886 = vmatpush1.msra.mxu0 0.0
      %887 = vmatprep.subr.mxu0 0.0
      %888 = vmatpush1.msra.mxu0 0.0
      %889 = vmatprep.subr.mxu0 0.0
      %890 = vmatpush1.msra.mxu0 0.0
      %891 = vmatprep.subr.mxu0 0.0
      %892 = vmatpush1.msra.mxu0 0.0
      %893 = vmatprep.mubr.f32.mxu0 0.0
      %894 = vmatmul.mubr.f32.gmra.mrb[0].mxu0 %v730
      %v895 = vpop.f32.mrb[0].mxu0
      %v896 = vadd.f32 0.0, %v895
      %v897 = vpop.f32.mrb[0].mxu0
      %898 = vmatprep.mubr.f32.mxu0 0.0
      %899 = vmatmul.mubr.f32.gmra.mrb[0].mxu0 %v733
      %v900 = vpop.f32.mrb[0].mxu0
      %v901 = vadd.f32 0.0, %v900
      %v902 = vpop.f32.mrb[0].mxu0
      %903 = vmatprep.mubr.f32.mxu0 0.0
      %904 = vmatmul.mubr.f32.gmra.mrb[0].mxu0 %v736
      %v905 = vpop.f32.mrb[0].mxu0
      %v906 = vadd.f32 0.0, %v905
      %v907 = vpop.f32.mrb[0].mxu0
      %908 = vmatprep.mubr.f32.mxu0 0.0
      %909 = vmatmul.mubr.f32.gmra.mrb[0].mxu0 %v739
      %v910 = vpop.f32.mrb[0].mxu0
      %v911 = vadd.f32 0.0, %v910
      %v912 = vpop.f32.mrb[0].mxu0
      %913 = vmatprep.mubr.f32.mxu0 0.0
      %914 = vmatmul.mubr.f32.gmra.mrb[0].mxu0 %v742
      %v915 = vpop.f32.mrb[0].mxu0
      %v916 = vadd.f32 0.0, %v915
      %v917 = vpop.f32.mrb[0].mxu0
      %918 = vmatprep.mubr.f32.mxu0 0.0
      %919 = vmatmul.mubr.f32.gmra.mrb[0].mxu0 %v745
      %v920 = vpop.f32.mrb[0].mxu0
      %v921 = vadd.f32 0.0, %v920
      %v922 = vpop.f32.mrb[0].mxu0
      %923 = vmatprep.mubr.f32.mxu0 0.0
      %924 = vmatmul.mubr.f32.gmra.mrb[0].mxu0 %v748
      %v925 = vpop.f32.mrb[0].mxu0
      %v926 = vadd.f32 0.0, %v925
      %v927 = vpop.f32.mrb[0].mxu0
      %928 = vmatprep.mubr.f32.mxu0 0.0
      %929 = vmatmul.mubr.f32.gmra.mrb[0].mxu0 %v751
      %v930 = vpop.f32.mrb[0].mxu0
      %v931 = vadd.f32 0.0, %v930
      %v932 = vpop.f32.mrb[0].mxu0
      %933 = vmatprep.mubr.f32.mxu0 0.0
      %934 = vmatmul.mubr.f32.gmra.mrb[0].mxu0 %v754
      %v935 = vpop.f32.mrb[0].mxu0
      %v936 = vadd.f32 0.0, %v935
      %v937 = vpop.f32.mrb[0].mxu0
      %938 = vmatprep.mubr.f32.mxu0 0.0
      %939 = vmatmul.mubr.f32.gmra.mrb[0].mxu0 %v757
      %v940 = vpop.f32.mrb[0].mxu0
      %v941 = vadd.f32 0.0, %v940
      %v942 = vpop.f32.mrb[0].mxu0
      %943 = vmatprep.mubr.f32.mxu0 0.0
      %944 = vmatmul.mubr.f32.gmra.mrb[0].mxu0 %v760
      %v945 = vpop.f32.mrb[0].mxu0
      %v946 = vadd.f32 0.0, %v945
      %v947 = vpop.f32.mrb[0].mxu0
      %948 = vmatprep.mubr.f32.mxu0 0.0
      %949 = vmatmul.mubr.f32.gmra.mrb[0].mxu0 %v763
      %v950 = vpop.f32.mrb[0].mxu0
      %v951 = vadd.f32 0.0, %v950
      %v952 = vpop.f32.mrb[0].mxu0
      %953 = vmatprep.mubr.f32.mxu0 0.0
      %954 = vmatmul.mubr.f32.gmra.mrb[0].mxu0 %v766
      %v955 = vpop.f32.mrb[0].mxu0
      %v956 = vadd.f32 0.0, %v955
      %v957 = vpop.f32.mrb[0].mxu0
      %958 = vmatprep.mubr.f32.mxu0 0.0
      %959 = vmatmul.mubr.f32.gmra.mrb[0].mxu0 %v769
      %v960 = vpop.f32.mrb[0].mxu0
      %v961 = vadd.f32 0.0, %v960
      %v962 = vpop.f32.mrb[0].mxu0
      %963 = vmatprep.mubr.f32.mxu0 0.0
      %964 = vmatmul.mubr.f32.gmra.mrb[0].mxu0 %v772
      %v965 = vpop.f32.mrb[0].mxu0
      %v966 = vadd.f32 0.0, %v965
      %v967 = vpop.f32.mrb[0].mxu0
      %968 = vmatprep.mubr.f32.mxu0 0.0
      %969 = vmatmul.mubr.f32.gmra.mrb[0].mxu0 %v775
      %v970 = vpop.f32.mrb[0].mxu0
      %v971 = vadd.f32 0.0, %v970
      %v972 = vpop.f32.mrb[0].mxu0
      %973 = vmatprep.mubr.f32.mxu0 0.0
      %974 = vmatmul.mubr.f32.gmra.mrb[0].mxu0 %v778
      %v975 = vpop.f32.mrb[0].mxu0
      %v976 = vadd.f32 0.0, %v975
      %v977 = vpop.f32.mrb[0].mxu0
      %978 = vmatprep.mubr.f32.mxu0 0.0
      %979 = vmatmul.mubr.f32.gmra.mrb[0].mxu0 %v781
      %v980 = vpop.f32.mrb[0].mxu0
      %v981 = vadd.f32 0.0, %v980
      %v982 = vpop.f32.mrb[0].mxu0
      %983 = vmatprep.mubr.f32.mxu0 0.0
      %984 = vmatmul.mubr.f32.gmra.mrb[0].mxu0 %v784
      %v985 = vpop.f32.mrb[0].mxu0
      %v986 = vadd.f32 0.0, %v985
      %v987 = vpop.f32.mrb[0].mxu0
      %988 = vmatprep.mubr.f32.mxu0 0.0
      %989 = vmatmul.mubr.f32.gmra.mrb[0].mxu0 %v787
      %v990 = vpop.f32.mrb[0].mxu0
      %v991 = vadd.f32 0.0, %v990
      %v992 = vpop.f32.mrb[0].mxu0
      %993 = vmatprep.mubr.f32.mxu0 0.0
      %994 = vmatmul.mubr.f32.gmra.mrb[0].mxu0 %v790
      %v995 = vpop.f32.mrb[0].mxu0
      %v996 = vadd.f32 0.0, %v995
      %v997 = vpop.f32.mrb[0].mxu0
      %998 = vmatprep.mubr.f32.mxu0 0.0
      %999 = vmatmul.mubr.f32.gmra.mrb[0].mxu0 %v793
      %v1000 = vpop.f32.mrb[0].mxu0
      %v1001 = vadd.f32 0.0, %v1000
      %v1002 = vpop.f32.mrb[0].mxu0
      %1003 = vmatprep.mubr.f32.mxu0 0.0
      %1004 = vmatmul.mubr.f32.gmra.mrb[0].mxu0 %v796
      %v1005 = vpop.f32.mrb[0].mxu0
      %v1006 = vadd.f32 0.0, %v1005
      %v1007 = vpop.f32.mrb[0].mxu0
      %1008 = vmatprep.mubr.f32.mxu0 0.0
      %1009 = vmatmul.mubr.f32.gmra.mrb[0].mxu0 %v799
      %v1010 = vpop.f32.mrb[0].mxu0
      %v1011 = vadd.f32 0.0, %v1010
      %v1012 = vpop.f32.mrb[0].mxu0
      %1013 = vmatprep.mubr.f32.mxu0 0.0
      %1014 = vmatmul.mubr.f32.gmra.mrb[0].mxu0 %v802
      %v1015 = vpop.f32.mrb[0].mxu0
      %v1016 = vadd.f32 0.0, %v1015
      %v1017 = vpop.f32.mrb[0].mxu0
      %1018 = vmatprep.mubr.f32.mxu0 0.0
      %1019 = vmatmul.mubr.f32.gmra.mrb[0].mxu0 %v805
      %v1020 = vpop.f32.mrb[0].mxu0
      %v1021 = vadd.f32 0.0, %v1020
      %v1022 = vpop.f32.mrb[0].mxu0
      %1023 = vmatprep.mubr.f32.mxu0 0.0
      %1024 = vmatmul.mubr.f32.gmra.mrb[0].mxu0 %v808
      %v1025 = vpop.f32.mrb[0].mxu0
      %v1026 = vadd.f32 0.0, %v1025
      %v1027 = vpop.f32.mrb[0].mxu0
      %1028 = vmatprep.mubr.f32.mxu0 0.0
      %1029 = vmatmul.mubr.f32.gmra.mrb[0].mxu0 %v811
      %v1030 = vpop.f32.mrb[0].mxu0
      %v1031 = vadd.f32 0.0, %v1030
      %v1032 = vpop.f32.mrb[0].mxu0
      %1033 = vmatprep.mubr.f32.mxu0 0.0
      %1034 = vmatmul.mubr.f32.gmra.mrb[0].mxu0 %v814
      %v1035 = vpop.f32.mrb[0].mxu0
      %v1036 = vadd.f32 0.0, %v1035
      %v1037 = vpop.f32.mrb[0].mxu0
      %1038 = vmatprep.mubr.f32.mxu0 0.0
      %1039 = vmatmul.mubr.f32.gmra.mrb[0].mxu0 %v817
      %v1040 = vpop.f32.mrb[0].mxu0
      %v1041 = vadd.f32 0.0, %v1040
      %v1042 = vpop.f32.mrb[0].mxu0
      %1043 = vmatprep.mubr.f32.mxu0 0.0
      %1044 = vmatmul.mubr.f32.gmra.mrb[0].mxu0 %v820
      %v1045 = vpop.f32.mrb[0].mxu0
      %v1046 = vadd.f32 0.0, %v1045
      %v1047 = vpop.f32.mrb[0].mxu0
      %1048 = vmatprep.mubr.f32.mxu0 0.0
      %1049 = vmatmul.mubr.f32.gmra.mrb[0].mxu0 %v823
      %v1050 = vpop.f32.mrb[0].mxu0
      %v1051 = vadd.f32 0.0, %v1050
      %v1052 = vpop.f32.mrb[0].mxu0
      %1053 = vdwg.mxu0
      %v1055 = vsel %vm728, %v896, 0
      %v1058 = vsel %vm728, %v901, 0
      %1060 = vmatprep.subr.mxu0 0.0
      %1061 = vmatpush1.xpose.msra.mxu0 %v730
      %1062 = vmatprep.subr.mxu0 0.0
      %1063 = vmatpush1.xpose.msra.mxu0 %v733
      %1064 = vmatprep.subr.mxu0 0.0
      %1065 = vmatpush1.xpose.msra.mxu0 0.0
      %1066 = vmatprep.subr.mxu0 0.0
      %1067 = vmatpush1.xpose.msra.mxu0 0.0
      %1068 = vmatprep.subr.mxu0 0.0
      %1069 = vmatpush1.xpose.msra.mxu0 0.0
      %1070 = vmatprep.subr.mxu0 0.0
      %1071 = vmatpush1.xpose.msra.mxu0 0.0
      %1072 = vmatprep.subr.mxu0 0.0
      %1073 = vmatpush1.xpose.msra.mxu0 0.0
      %1074 = vmatprep.subr.mxu0 0.0
      %1075 = vmatpush1.xpose.msra.mxu0 0.0
      %1076 = vmatprep.subr.mxu0 0.0
      %1077 = vmatpush1.xpose.msra.mxu0 0.0
      %1078 = vmatprep.subr.mxu0 0.0
      %1079 = vmatpush1.xpose.msra.mxu0 0.0
      %1080 = vmatprep.subr.mxu0 0.0
      %1081 = vmatpush1.xpose.msra.mxu0 0.0
      %1082 = vmatprep.subr.mxu0 0.0
      %1083 = vmatpush1.xpose.msra.mxu0 0.0
      %1084 = vmatprep.subr.mxu0 0.0
      %1085 = vmatpush1.xpose.msra.mxu0 0.0
      %1086 = vmatprep.subr.mxu0 0.0
      %1087 = vmatpush1.xpose.msra.mxu0 0.0
      %1088 = vmatprep.subr.mxu0 0.0
      %1089 = vmatpush1.xpose.msra.mxu0 0.0
      %1090 = vmatprep.subr.mxu0 0.0
      %1091 = vmatpush1.xpose.msra.mxu0 0.0
      %1092 = vmatprep.subr.mxu0 0.0
      %1093 = vmatpush1.xpose.msra.mxu0 0.0
      %1094 = vmatprep.subr.mxu0 0.0
      %1095 = vmatpush1.xpose.msra.mxu0 0.0
      %1096 = vmatprep.subr.mxu0 0.0
      %1097 = vmatpush1.xpose.msra.mxu0 0.0
      %1098 = vmatprep.subr.mxu0 0.0
      %1099 = vmatpush1.xpose.msra.mxu0 0.0
      %1100 = vmatprep.subr.mxu0 0.0
      %1101 = vmatpush1.xpose.msra.mxu0 0.0
      %1102 = vmatprep.subr.mxu0 0.0
      %1103 = vmatpush1.xpose.msra.mxu0 0.0
      %1104 = vmatprep.subr.mxu0 0.0
      %1105 = vmatpush1.xpose.msra.mxu0 0.0
      %1106 = vmatprep.subr.mxu0 0.0
      %1107 = vmatpush1.xpose.msra.mxu0 0.0
      %1108 = vmatprep.subr.mxu0 0.0
      %1109 = vmatpush1.xpose.msra.mxu0 0.0
      %1110 = vmatprep.subr.mxu0 0.0
      %1111 = vmatpush1.xpose.msra.mxu0 0.0
      %1112 = vmatprep.subr.mxu0 0.0
      %1113 = vmatpush1.xpose.msra.mxu0 0.0
      %1114 = vmatprep.subr.mxu0 0.0
      %1115 = vmatpush1.xpose.msra.mxu0 0.0
      %1116 = vmatprep.subr.mxu0 0.0
      %1117 = vmatpush1.xpose.msra.mxu0 0.0
      %1118 = vmatprep.subr.mxu0 0.0
      %1119 = vmatpush1.xpose.msra.mxu0 0.0
      %1120 = vmatprep.subr.mxu0 0.0
      %1121 = vmatpush1.xpose.msra.mxu0 0.0
      %1122 = vmatprep.subr.mxu0 0.0
      %1123 = vmatpush1.xpose.msra.mxu0 0.0
      %1124 = vmatprep.mubr.f32.mxu0 0.0
      %1125 = vmatmul.mubr.f32.gmra.mrb[0].mxu0 %v1055
      %v1126 = vpop.f32.mrb[0].mxu0
      %v1127 = vadd.f32 0.0, %v1126
      %v1128 = vpop.f32.mrb[0].mxu0
      %1129 = vmatprep.mubr.f32.mxu0 0.0
      %1130 = vmatmul.mubr.f32.gmra.mrb[0].mxu0 %v1058
      %v1131 = vpop.f32.mrb[0].mxu0
      %v1132 = vadd.f32 0.0, %v1131
      %v1133 = vpop.f32.mrb[0].mxu0
      %1134 = vdwg.mxu0
      %v1136 = vsel %vm728, %v906, 0
      %v1139 = vsel %vm728, %v911, 0
      %1141 = vmatprep.subr.mxu0 0.0
      %1142 = vmatpush1.xpose.msra.mxu0 %v736
      %1143 = vmatprep.subr.mxu0 0.0
      %1144 = vmatpush1.xpose.msra.mxu0 %v739
      %1145 = vmatprep.subr.mxu0 0.0
      %1146 = vmatpush1.xpose.msra.mxu0 0.0
      %1147 = vmatprep.subr.mxu0 0.0
      %1148 = vmatpush1.xpose.msra.mxu0 0.0
      %1149 = vmatprep.subr.mxu0 0.0
      %1150 = vmatpush1.xpose.msra.mxu0 0.0
      %1151 = vmatprep.subr.mxu0 0.0
      %1152 = vmatpush1.xpose.msra.mxu0 0.0
      %1153 = vmatprep.subr.mxu0 0.0
      %1154 = vmatpush1.xpose.msra.mxu0 0.0
      %1155 = vmatprep.subr.mxu0 0.0
      %1156 = vmatpush1.xpose.msra.mxu0 0.0
      %1157 = vmatprep.subr.mxu0 0.0
      %1158 = vmatpush1.xpose.msra.mxu0 0.0
      %1159 = vmatprep.subr.mxu0 0.0
      %1160 = vmatpush1.xpose.msra.mxu0 0.0
      %1161 = vmatprep.subr.mxu0 0.0
      %1162 = vmatpush1.xpose.msra.mxu0 0.0
      %1163 = vmatprep.subr.mxu0 0.0
      %1164 = vmatpush1.xpose.msra.mxu0 0.0
      %1165 = vmatprep.subr.mxu0 0.0
      %1166 = vmatpush1.xpose.msra.mxu0 0.0
      %1167 = vmatprep.subr.mxu0 0.0
      %1168 = vmatpush1.xpose.msra.mxu0 0.0
      %1169 = vmatprep.subr.mxu0 0.0
      %1170 = vmatpush1.xpose.msra.mxu0 0.0
      %1171 = vmatprep.subr.mxu0 0.0
      %1172 = vmatpush1.xpose.msra.mxu0 0.0
      %1173 = vmatprep.subr.mxu0 0.0
      %1174 = vmatpush1.xpose.msra.mxu0 0.0
      %1175 = vmatprep.subr.mxu0 0.0
      %1176 = vmatpush1.xpose.msra.mxu0 0.0
      %1177 = vmatprep.subr.mxu0 0.0
      %1178 = vmatpush1.xpose.msra.mxu0 0.0
      %1179 = vmatprep.subr.mxu0 0.0
      %1180 = vmatpush1.xpose.msra.mxu0 0.0
      %1181 = vmatprep.subr.mxu0 0.0
      %1182 = vmatpush1.xpose.msra.mxu0 0.0
      %1183 = vmatprep.subr.mxu0 0.0
      %1184 = vmatpush1.xpose.msra.mxu0 0.0
      %1185 = vmatprep.subr.mxu0 0.0
      %1186 = vmatpush1.xpose.msra.mxu0 0.0
      %1187 = vmatprep.subr.mxu0 0.0
      %1188 = vmatpush1.xpose.msra.mxu0 0.0
      %1189 = vmatprep.subr.mxu0 0.0
      %1190 = vmatpush1.xpose.msra.mxu0 0.0
      %1191 = vmatprep.subr.mxu0 0.0
      %1192 = vmatpush1.xpose.msra.mxu0 0.0
      %1193 = vmatprep.subr.mxu0 0.0
      %1194 = vmatpush1.xpose.msra.mxu0 0.0
      %1195 = vmatprep.subr.mxu0 0.0
      %1196 = vmatpush1.xpose.msra.mxu0 0.0
      %1197 = vmatprep.subr.mxu0 0.0
      %1198 = vmatpush1.xpose.msra.mxu0 0.0
      %1199 = vmatprep.subr.mxu0 0.0
      %1200 = vmatpush1.xpose.msra.mxu0 0.0
      %1201 = vmatprep.subr.mxu0 0.0
      %1202 = vmatpush1.xpose.msra.mxu0 0.0
      %1203 = vmatprep.subr.mxu0 0.0
      %1204 = vmatpush1.xpose.msra.mxu0 0.0
      %1205 = vmatprep.mubr.f32.mxu0 0.0
      %1206 = vmatmul.mubr.f32.gmra.mrb[0].mxu0 %v1136
      %v1207 = vpop.f32.mrb[0].mxu0
      %v1208 = vadd.f32 0.0, %v1207
      %v1209 = vpop.f32.mrb[0].mxu0
      %1210 = vmatprep.mubr.f32.mxu0 0.0
      %1211 = vmatmul.mubr.f32.gmra.mrb[0].mxu0 %v1139
      %v1212 = vpop.f32.mrb[0].mxu0
      %v1213 = vadd.f32 0.0, %v1212
      %v1214 = vpop.f32.mrb[0].mxu0
      %1215 = vdwg.mxu0
      %v1217 = vsel %vm728, %v916, 0
      %v1220 = vsel %vm728, %v921, 0
      %1222 = vmatprep.subr.mxu0 0.0
      %1223 = vmatpush1.xpose.msra.mxu0 %v742
      %1224 = vmatprep.subr.mxu0 0.0
      %1225 = vmatpush1.xpose.msra.mxu0 %v745
      %1226 = vmatprep.subr.mxu0 0.0
      %1227 = vmatpush1.xpose.msra.mxu0 0.0
      %1228 = vmatprep.subr.mxu0 0.0
      %1229 = vmatpush1.xpose.msra.mxu0 0.0
      %1230 = vmatprep.subr.mxu0 0.0
      %1231 = vmatpush1.xpose.msra.mxu0 0.0
      %1232 = vmatprep.subr.mxu0 0.0
      %1233 = vmatpush1.xpose.msra.mxu0 0.0
      %1234 = vmatprep.subr.mxu0 0.0
      %1235 = vmatpush1.xpose.msra.mxu0 0.0
      %1236 = vmatprep.subr.mxu0 0.0
      %1237 = vmatpush1.xpose.msra.mxu0 0.0
      %1238 = vmatprep.subr.mxu0 0.0
      %1239 = vmatpush1.xpose.msra.mxu0 0.0
      %1240 = vmatprep.subr.mxu0 0.0
      %1241 = vmatpush1.xpose.msra.mxu0 0.0
      %1242 = vmatprep.subr.mxu0 0.0
      %1243 = vmatpush1.xpose.msra.mxu0 0.0
      %1244 = vmatprep.subr.mxu0 0.0
      %1245 = vmatpush1.xpose.msra.mxu0 0.0
      %1246 = vmatprep.subr.mxu0 0.0
      %1247 = vmatpush1.xpose.msra.mxu0 0.0
      %1248 = vmatprep.subr.mxu0 0.0
      %1249 = vmatpush1.xpose.msra.mxu0 0.0
      %1250 = vmatprep.subr.mxu0 0.0
      %1251 = vmatpush1.xpose.msra.mxu0 0.0
      %1252 = vmatprep.subr.mxu0 0.0
      %1253 = vmatpush1.xpose.msra.mxu0 0.0
      %1254 = vmatprep.subr.mxu0 0.0
      %1255 = vmatpush1.xpose.msra.mxu0 0.0
      %1256 = vmatprep.subr.mxu0 0.0
      %1257 = vmatpush1.xpose.msra.mxu0 0.0
      %1258 = vmatprep.subr.mxu0 0.0
      %1259 = vmatpush1.xpose.msra.mxu0 0.0
      %1260 = vmatprep.subr.mxu0 0.0
      %1261 = vmatpush1.xpose.msra.mxu0 0.0
      %1262 = vmatprep.subr.mxu0 0.0
      %1263 = vmatpush1.xpose.msra.mxu0 0.0
      %1264 = vmatprep.subr.mxu0 0.0
      %1265 = vmatpush1.xpose.msra.mxu0 0.0
      %1266 = vmatprep.subr.mxu0 0.0
      %1267 = vmatpush1.xpose.msra.mxu0 0.0
      %1268 = vmatprep.subr.mxu0 0.0
      %1269 = vmatpush1.xpose.msra.mxu0 0.0
      %1270 = vmatprep.subr.mxu0 0.0
      %1271 = vmatpush1.xpose.msra.mxu0 0.0
      %1272 = vmatprep.subr.mxu0 0.0
      %1273 = vmatpush1.xpose.msra.mxu0 0.0
      %1274 = vmatprep.subr.mxu0 0.0
      %1275 = vmatpush1.xpose.msra.mxu0 0.0
      %1276 = vmatprep.subr.mxu0 0.0
      %1277 = vmatpush1.xpose.msra.mxu0 0.0
      %1278 = vmatprep.subr.mxu0 0.0
      %1279 = vmatpush1.xpose.msra.mxu0 0.0
      %1280 = vmatprep.subr.mxu0 0.0
      %1281 = vmatpush1.xpose.msra.mxu0 0.0
      %1282 = vmatprep.subr.mxu0 0.0
      %1283 = vmatpush1.xpose.msra.mxu0 0.0
      %1284 = vmatprep.subr.mxu0 0.0
      %1285 = vmatpush1.xpose.msra.mxu0 0.0
      %1286 = vmatprep.mubr.f32.mxu0 0.0
      %1287 = vmatmul.mubr.f32.gmra.mrb[0].mxu0 %v1217
      %v1288 = vpop.f32.mrb[0].mxu0
      %v1289 = vadd.f32 0.0, %v1288
      %v1290 = vpop.f32.mrb[0].mxu0
      %1291 = vmatprep.mubr.f32.mxu0 0.0
      %1292 = vmatmul.mubr.f32.gmra.mrb[0].mxu0 %v1220
      %v1293 = vpop.f32.mrb[0].mxu0
      %v1294 = vadd.f32 0.0, %v1293
      %v1295 = vpop.f32.mrb[0].mxu0
      %1296 = vdwg.mxu0
      %v1298 = vsel %vm728, %v926, 0
      %v1301 = vsel %vm728, %v931, 0
      %1303 = vmatprep.subr.mxu0 0.0
      %1304 = vmatpush1.xpose.msra.mxu0 %v748
      %1305 = vmatprep.subr.mxu0 0.0
      %1306 = vmatpush1.xpose.msra.mxu0 %v751
      %1307 = vmatprep.subr.mxu0 0.0
      %1308 = vmatpush1.xpose.msra.mxu0 0.0
      %1309 = vmatprep.subr.mxu0 0.0
      %1310 = vmatpush1.xpose.msra.mxu0 0.0
      %1311 = vmatprep.subr.mxu0 0.0
      %1312 = vmatpush1.xpose.msra.mxu0 0.0
      %1313 = vmatprep.subr.mxu0 0.0
      %1314 = vmatpush1.xpose.msra.mxu0 0.0
      %1315 = vmatprep.subr.mxu0 0.0
      %1316 = vmatpush1.xpose.msra.mxu0 0.0
      %1317 = vmatprep.subr.mxu0 0.0
      %1318 = vmatpush1.xpose.msra.mxu0 0.0
      %1319 = vmatprep.subr.mxu0 0.0
      %1320 = vmatpush1.xpose.msra.mxu0 0.0
      %1321 = vmatprep.subr.mxu0 0.0
      %1322 = vmatpush1.xpose.msra.mxu0 0.0
      %1323 = vmatprep.subr.mxu0 0.0
      %1324 = vmatpush1.xpose.msra.mxu0 0.0
      %1325 = vmatprep.subr.mxu0 0.0
      %1326 = vmatpush1.xpose.msra.mxu0 0.0
      %1327 = vmatprep.subr.mxu0 0.0
      %1328 = vmatpush1.xpose.msra.mxu0 0.0
      %1329 = vmatprep.subr.mxu0 0.0
      %1330 = vmatpush1.xpose.msra.mxu0 0.0
      %1331 = vmatprep.subr.mxu0 0.0
      %1332 = vmatpush1.xpose.msra.mxu0 0.0
      %1333 = vmatprep.subr.mxu0 0.0
      %1334 = vmatpush1.xpose.msra.mxu0 0.0
      %1335 = vmatprep.subr.mxu0 0.0
      %1336 = vmatpush1.xpose.msra.mxu0 0.0
      %1337 = vmatprep.subr.mxu0 0.0
      %1338 = vmatpush1.xpose.msra.mxu0 0.0
      %1339 = vmatprep.subr.mxu0 0.0
      %1340 = vmatpush1.xpose.msra.mxu0 0.0
      %1341 = vmatprep.subr.mxu0 0.0
      %1342 = vmatpush1.xpose.msra.mxu0 0.0
      %1343 = vmatprep.subr.mxu0 0.0
      %1344 = vmatpush1.xpose.msra.mxu0 0.0
      %1345 = vmatprep.subr.mxu0 0.0
      %1346 = vmatpush1.xpose.msra.mxu0 0.0
      %1347 = vmatprep.subr.mxu0 0.0
      %1348 = vmatpush1.xpose.msra.mxu0 0.0
      %1349 = vmatprep.subr.mxu0 0.0
      %1350 = vmatpush1.xpose.msra.mxu0 0.0
      %1351 = vmatprep.subr.mxu0 0.0
      %1352 = vmatpush1.xpose.msra.mxu0 0.0
      %1353 = vmatprep.subr.mxu0 0.0
      %1354 = vmatpush1.xpose.msra.mxu0 0.0
      %1355 = vmatprep.subr.mxu0 0.0
      %1356 = vmatpush1.xpose.msra.mxu0 0.0
      %1357 = vmatprep.subr.mxu0 0.0
      %1358 = vmatpush1.xpose.msra.mxu0 0.0
      %1359 = vmatprep.subr.mxu0 0.0
      %1360 = vmatpush1.xpose.msra.mxu0 0.0
      %1361 = vmatprep.subr.mxu0 0.0
      %1362 = vmatpush1.xpose.msra.mxu0 0.0
      %1363 = vmatprep.subr.mxu0 0.0
      %1364 = vmatpush1.xpose.msra.mxu0 0.0
      %1365 = vmatprep.subr.mxu0 0.0
      %1366 = vmatpush1.xpose.msra.mxu0 0.0
      %1367 = vmatprep.mubr.f32.mxu0 0.0
      %1368 = vmatmul.mubr.f32.gmra.mrb[0].mxu0 %v1298
      %v1369 = vpop.f32.mrb[0].mxu0
      %v1370 = vadd.f32 0.0, %v1369
      %v1371 = vpop.f32.mrb[0].mxu0
      %1372 = vmatprep.mubr.f32.mxu0 0.0
      %1373 = vmatmul.mubr.f32.gmra.mrb[0].mxu0 %v1301
      %v1374 = vpop.f32.mrb[0].mxu0
      %v1375 = vadd.f32 0.0, %v1374
      %v1376 = vpop.f32.mrb[0].mxu0
      %1377 = vdwg.mxu0
      %v1379 = vsel %vm728, %v936, 0
      %v1382 = vsel %vm728, %v941, 0
      %1384 = vmatprep.subr.mxu0 0.0
      %1385 = vmatpush1.xpose.msra.mxu0 %v754
      %1386 = vmatprep.subr.mxu0 0.0
      %1387 = vmatpush1.xpose.msra.mxu0 %v757
      %1388 = vmatprep.subr.mxu0 0.0
      %1389 = vmatpush1.xpose.msra.mxu0 0.0
      %1390 = vmatprep.subr.mxu0 0.0
      %1391 = vmatpush1.xpose.msra.mxu0 0.0
      %1392 = vmatprep.subr.mxu0 0.0
      %1393 = vmatpush1.xpose.msra.mxu0 0.0
      %1394 = vmatprep.subr.mxu0 0.0
      %1395 = vmatpush1.xpose.msra.mxu0 0.0
      %1396 = vmatprep.subr.mxu0 0.0
      %1397 = vmatpush1.xpose.msra.mxu0 0.0
      %1398 = vmatprep.subr.mxu0 0.0
      %1399 = vmatpush1.xpose.msra.mxu0 0.0
      %1400 = vmatprep.subr.mxu0 0.0
      %1401 = vmatpush1.xpose.msra.mxu0 0.0
      %1402 = vmatprep.subr.mxu0 0.0
      %1403 = vmatpush1.xpose.msra.mxu0 0.0
      %1404 = vmatprep.subr.mxu0 0.0
      %1405 = vmatpush1.xpose.msra.mxu0 0.0
      %1406 = vmatprep.subr.mxu0 0.0
      %1407 = vmatpush1.xpose.msra.mxu0 0.0
      %1408 = vmatprep.subr.mxu0 0.0
      %1409 = vmatpush1.xpose.msra.mxu0 0.0
      %1410 = vmatprep.subr.mxu0 0.0
      %1411 = vmatpush1.xpose.msra.mxu0 0.0
      %1412 = vmatprep.subr.mxu0 0.0
      %1413 = vmatpush1.xpose.msra.mxu0 0.0
      %1414 = vmatprep.subr.mxu0 0.0
      %1415 = vmatpush1.xpose.msra.mxu0 0.0
      %1416 = vmatprep.subr.mxu0 0.0
      %1417 = vmatpush1.xpose.msra.mxu0 0.0
      %1418 = vmatprep.subr.mxu0 0.0
      %1419 = vmatpush1.xpose.msra.mxu0 0.0
      %1420 = vmatprep.subr.mxu0 0.0
      %1421 = vmatpush1.xpose.msra.mxu0 0.0
      %1422 = vmatprep.subr.mxu0 0.0
      %1423 = vmatpush1.xpose.msra.mxu0 0.0
      %1424 = vmatprep.subr.mxu0 0.0
      %1425 = vmatpush1.xpose.msra.mxu0 0.0
      %1426 = vmatprep.subr.mxu0 0.0
      %1427 = vmatpush1.xpose.msra.mxu0 0.0
      %1428 = vmatprep.subr.mxu0 0.0
      %1429 = vmatpush1.xpose.msra.mxu0 0.0
      %1430 = vmatprep.subr.mxu0 0.0
      %1431 = vmatpush1.xpose.msra.mxu0 0.0
      %1432 = vmatprep.subr.mxu0 0.0
      %1433 = vmatpush1.xpose.msra.mxu0 0.0
      %1434 = vmatprep.subr.mxu0 0.0
      %1435 = vmatpush1.xpose.msra.mxu0 0.0
      %1436 = vmatprep.subr.mxu0 0.0
      %1437 = vmatpush1.xpose.msra.mxu0 0.0
      %1438 = vmatprep.subr.mxu0 0.0
      %1439 = vmatpush1.xpose.msra.mxu0 0.0
      %1440 = vmatprep.subr.mxu0 0.0
      %1441 = vmatpush1.xpose.msra.mxu0 0.0
      %1442 = vmatprep.subr.mxu0 0.0
      %1443 = vmatpush1.xpose.msra.mxu0 0.0
      %1444 = vmatprep.subr.mxu0 0.0
      %1445 = vmatpush1.xpose.msra.mxu0 0.0
      %1446 = vmatprep.subr.mxu0 0.0
      %1447 = vmatpush1.xpose.msra.mxu0 0.0
      %1448 = vmatprep.mubr.f32.mxu0 0.0
      %1449 = vmatmul.mubr.f32.gmra.mrb[0].mxu0 %v1379
      %v1450 = vpop.f32.mrb[0].mxu0
      %v1451 = vadd.f32 0.0, %v1450
      %v1452 = vpop.f32.mrb[0].mxu0
      %1453 = vmatprep.mubr.f32.mxu0 0.0
      %1454 = vmatmul.mubr.f32.gmra.mrb[0].mxu0 %v1382
      %v1455 = vpop.f32.mrb[0].mxu0
      %v1456 = vadd.f32 0.0, %v1455
      %v1457 = vpop.f32.mrb[0].mxu0
      %1458 = vdwg.mxu0
      %v1460 = vsel %vm728, %v946, 0
      %v1463 = vsel %vm728, %v951, 0
      %1465 = vmatprep.subr.mxu0 0.0
      %1466 = vmatpush1.xpose.msra.mxu0 %v760
      %1467 = vmatprep.subr.mxu0 0.0
      %1468 = vmatpush1.xpose.msra.mxu0 %v763
      %1469 = vmatprep.subr.mxu0 0.0
      %1470 = vmatpush1.xpose.msra.mxu0 0.0
      %1471 = vmatprep.subr.mxu0 0.0
      %1472 = vmatpush1.xpose.msra.mxu0 0.0
      %1473 = vmatprep.subr.mxu0 0.0
      %1474 = vmatpush1.xpose.msra.mxu0 0.0
      %1475 = vmatprep.subr.mxu0 0.0
      %1476 = vmatpush1.xpose.msra.mxu0 0.0
      %1477 = vmatprep.subr.mxu0 0.0
      %1478 = vmatpush1.xpose.msra.mxu0 0.0
      %1479 = vmatprep.subr.mxu0 0.0
      %1480 = vmatpush1.xpose.msra.mxu0 0.0
      %1481 = vmatprep.subr.mxu0 0.0
      %1482 = vmatpush1.xpose.msra.mxu0 0.0
      %1483 = vmatprep.subr.mxu0 0.0
      %1484 = vmatpush1.xpose.msra.mxu0 0.0
      %1485 = vmatprep.subr.mxu0 0.0
      %1486 = vmatpush1.xpose.msra.mxu0 0.0
      %1487 = vmatprep.subr.mxu0 0.0
      %1488 = vmatpush1.xpose.msra.mxu0 0.0
      %1489 = vmatprep.subr.mxu0 0.0
      %1490 = vmatpush1.xpose.msra.mxu0 0.0
      %1491 = vmatprep.subr.mxu0 0.0
      %1492 = vmatpush1.xpose.msra.mxu0 0.0
      %1493 = vmatprep.subr.mxu0 0.0
      %1494 = vmatpush1.xpose.msra.mxu0 0.0
      %1495 = vmatprep.subr.mxu0 0.0
      %1496 = vmatpush1.xpose.msra.mxu0 0.0
      %1497 = vmatprep.subr.mxu0 0.0
      %1498 = vmatpush1.xpose.msra.mxu0 0.0
      %1499 = vmatprep.subr.mxu0 0.0
      %1500 = vmatpush1.xpose.msra.mxu0 0.0
      %1501 = vmatprep.subr.mxu0 0.0
      %1502 = vmatpush1.xpose.msra.mxu0 0.0
      %1503 = vmatprep.subr.mxu0 0.0
      %1504 = vmatpush1.xpose.msra.mxu0 0.0
      %1505 = vmatprep.subr.mxu0 0.0
      %1506 = vmatpush1.xpose.msra.mxu0 0.0
      %1507 = vmatprep.subr.mxu0 0.0
      %1508 = vmatpush1.xpose.msra.mxu0 0.0
      %1509 = vmatprep.subr.mxu0 0.0
      %1510 = vmatpush1.xpose.msra.mxu0 0.0
      %1511 = vmatprep.subr.mxu0 0.0
      %1512 = vmatpush1.xpose.msra.mxu0 0.0
      %1513 = vmatprep.subr.mxu0 0.0
      %1514 = vmatpush1.xpose.msra.mxu0 0.0
      %1515 = vmatprep.subr.mxu0 0.0
      %1516 = vmatpush1.xpose.msra.mxu0 0.0
      %1517 = vmatprep.subr.mxu0 0.0
      %1518 = vmatpush1.xpose.msra.mxu0 0.0
      %1519 = vmatprep.subr.mxu0 0.0
      %1520 = vmatpush1.xpose.msra.mxu0 0.0
      %1521 = vmatprep.subr.mxu0 0.0
      %1522 = vmatpush1.xpose.msra.mxu0 0.0
      %1523 = vmatprep.subr.mxu0 0.0
      %1524 = vmatpush1.xpose.msra.mxu0 0.0
      %1525 = vmatprep.subr.mxu0 0.0
      %1526 = vmatpush1.xpose.msra.mxu0 0.0
      %1527 = vmatprep.subr.mxu0 0.0
      %1528 = vmatpush1.xpose.msra.mxu0 0.0
      %1529 = vmatprep.mubr.f32.mxu0 0.0
      %1530 = vmatmul.mubr.f32.gmra.mrb[0].mxu0 %v1460
      %v1531 = vpop.f32.mrb[0].mxu0
      %v1532 = vadd.f32 0.0, %v1531
      %v1533 = vpop.f32.mrb[0].mxu0
      %1534 = vmatprep.mubr.f32.mxu0 0.0
      %1535 = vmatmul.mubr.f32.gmra.mrb[0].mxu0 %v1463
      %v1536 = vpop.f32.mrb[0].mxu0
      %v1537 = vadd.f32 0.0, %v1536
      %v1538 = vpop.f32.mrb[0].mxu0
      %1539 = vdwg.mxu0
      %v1541 = vsel %vm728, %v956, 0
      %v1544 = vsel %vm728, %v961, 0
      %1546 = vmatprep.subr.mxu0 0.0
      %1547 = vmatpush1.xpose.msra.mxu0 %v766
      %1548 = vmatprep.subr.mxu0 0.0
      %1549 = vmatpush1.xpose.msra.mxu0 %v769
      %1550 = vmatprep.subr.mxu0 0.0
      %1551 = vmatpush1.xpose.msra.mxu0 0.0
      %1552 = vmatprep.subr.mxu0 0.0
      %1553 = vmatpush1.xpose.msra.mxu0 0.0
      %1554 = vmatprep.subr.mxu0 0.0
      %1555 = vmatpush1.xpose.msra.mxu0 0.0
      %1556 = vmatprep.subr.mxu0 0.0
      %1557 = vmatpush1.xpose.msra.mxu0 0.0
      %1558 = vmatprep.subr.mxu0 0.0
      %1559 = vmatpush1.xpose.msra.mxu0 0.0
      %1560 = vmatprep.subr.mxu0 0.0
      %1561 = vmatpush1.xpose.msra.mxu0 0.0
      %1562 = vmatprep.subr.mxu0 0.0
      %1563 = vmatpush1.xpose.msra.mxu0 0.0
      %1564 = vmatprep.subr.mxu0 0.0
      %1565 = vmatpush1.xpose.msra.mxu0 0.0
      %1566 = vmatprep.subr.mxu0 0.0
      %1567 = vmatpush1.xpose.msra.mxu0 0.0
      %1568 = vmatprep.subr.mxu0 0.0
      %1569 = vmatpush1.xpose.msra.mxu0 0.0
      %1570 = vmatprep.subr.mxu0 0.0
      %1571 = vmatpush1.xpose.msra.mxu0 0.0
      %1572 = vmatprep.subr.mxu0 0.0
      %1573 = vmatpush1.xpose.msra.mxu0 0.0
      %1574 = vmatprep.subr.mxu0 0.0
      %1575 = vmatpush1.xpose.msra.mxu0 0.0
      %1576 = vmatprep.subr.mxu0 0.0
      %1577 = vmatpush1.xpose.msra.mxu0 0.0
      %1578 = vmatprep.subr.mxu0 0.0
      %1579 = vmatpush1.xpose.msra.mxu0 0.0
      %1580 = vmatprep.subr.mxu0 0.0
      %1581 = vmatpush1.xpose.msra.mxu0 0.0
      %1582 = vmatprep.subr.mxu0 0.0
      %1583 = vmatpush1.xpose.msra.mxu0 0.0
      %1584 = vmatprep.subr.mxu0 0.0
      %1585 = vmatpush1.xpose.msra.mxu0 0.0
      %1586 = vmatprep.subr.mxu0 0.0
      %1587 = vmatpush1.xpose.msra.mxu0 0.0
      %1588 = vmatprep.subr.mxu0 0.0
      %1589 = vmatpush1.xpose.msra.mxu0 0.0
      %1590 = vmatprep.subr.mxu0 0.0
      %1591 = vmatpush1.xpose.msra.mxu0 0.0
      %1592 = vmatprep.subr.mxu0 0.0
      %1593 = vmatpush1.xpose.msra.mxu0 0.0
      %1594 = vmatprep.subr.mxu0 0.0
      %1595 = vmatpush1.xpose.msra.mxu0 0.0
      %1596 = vmatprep.subr.mxu0 0.0
      %1597 = vmatpush1.xpose.msra.mxu0 0.0
      %1598 = vmatprep.subr.mxu0 0.0
      %1599 = vmatpush1.xpose.msra.mxu0 0.0
      %1600 = vmatprep.subr.mxu0 0.0
      %1601 = vmatpush1.xpose.msra.mxu0 0.0
      %1602 = vmatprep.subr.mxu0 0.0
      %1603 = vmatpush1.xpose.msra.mxu0 0.0
      %1604 = vmatprep.subr.mxu0 0.0
      %1605 = vmatpush1.xpose.msra.mxu0 0.0
      %1606 = vmatprep.subr.mxu0 0.0
      %1607 = vmatpush1.xpose.msra.mxu0 0.0
      %1608 = vmatprep.subr.mxu0 0.0
      %1609 = vmatpush1.xpose.msra.mxu0 0.0
      %1610 = vmatprep.mubr.f32.mxu0 0.0
      %1611 = vmatmul.mubr.f32.gmra.mrb[0].mxu0 %v1541
      %v1612 = vpop.f32.mrb[0].mxu0
      %v1613 = vadd.f32 0.0, %v1612
      %v1614 = vpop.f32.mrb[0].mxu0
      %1615 = vmatprep.mubr.f32.mxu0 0.0
      %1616 = vmatmul.mubr.f32.gmra.mrb[0].mxu0 %v1544
      %v1617 = vpop.f32.mrb[0].mxu0
      %v1618 = vadd.f32 0.0, %v1617
      %v1619 = vpop.f32.mrb[0].mxu0
      %1620 = vdwg.mxu0
      %v1622 = vsel %vm728, %v966, 0
      %v1625 = vsel %vm728, %v971, 0
      %1627 = vmatprep.subr.mxu0 0.0
      %1628 = vmatpush1.xpose.msra.mxu0 %v772
      %1629 = vmatprep.subr.mxu0 0.0
      %1630 = vmatpush1.xpose.msra.mxu0 %v775
      %1631 = vmatprep.subr.mxu0 0.0
      %1632 = vmatpush1.xpose.msra.mxu0 0.0
      %1633 = vmatprep.subr.mxu0 0.0
      %1634 = vmatpush1.xpose.msra.mxu0 0.0
      %1635 = vmatprep.subr.mxu0 0.0
      %1636 = vmatpush1.xpose.msra.mxu0 0.0
      %1637 = vmatprep.subr.mxu0 0.0
      %1638 = vmatpush1.xpose.msra.mxu0 0.0
      %1639 = vmatprep.subr.mxu0 0.0
      %1640 = vmatpush1.xpose.msra.mxu0 0.0
      %1641 = vmatprep.subr.mxu0 0.0
      %1642 = vmatpush1.xpose.msra.mxu0 0.0
      %1643 = vmatprep.subr.mxu0 0.0
      %1644 = vmatpush1.xpose.msra.mxu0 0.0
      %1645 = vmatprep.subr.mxu0 0.0
      %1646 = vmatpush1.xpose.msra.mxu0 0.0
      %1647 = vmatprep.subr.mxu0 0.0
      %1648 = vmatpush1.xpose.msra.mxu0 0.0
      %1649 = vmatprep.subr.mxu0 0.0
      %1650 = vmatpush1.xpose.msra.mxu0 0.0
      %1651 = vmatprep.subr.mxu0 0.0
      %1652 = vmatpush1.xpose.msra.mxu0 0.0
      %1653 = vmatprep.subr.mxu0 0.0
      %1654 = vmatpush1.xpose.msra.mxu0 0.0
      %1655 = vmatprep.subr.mxu0 0.0
      %1656 = vmatpush1.xpose.msra.mxu0 0.0
      %1657 = vmatprep.subr.mxu0 0.0
      %1658 = vmatpush1.xpose.msra.mxu0 0.0
      %1659 = vmatprep.subr.mxu0 0.0
      %1660 = vmatpush1.xpose.msra.mxu0 0.0
      %1661 = vmatprep.subr.mxu0 0.0
      %1662 = vmatpush1.xpose.msra.mxu0 0.0
      %1663 = vmatprep.subr.mxu0 0.0
      %1664 = vmatpush1.xpose.msra.mxu0 0.0
      %1665 = vmatprep.subr.mxu0 0.0
      %1666 = vmatpush1.xpose.msra.mxu0 0.0
      %1667 = vmatprep.subr.mxu0 0.0
      %1668 = vmatpush1.xpose.msra.mxu0 0.0
      %1669 = vmatprep.subr.mxu0 0.0
      %1670 = vmatpush1.xpose.msra.mxu0 0.0
      %1671 = vmatprep.subr.mxu0 0.0
      %1672 = vmatpush1.xpose.msra.mxu0 0.0
      %1673 = vmatprep.subr.mxu0 0.0
      %1674 = vmatpush1.xpose.msra.mxu0 0.0
      %1675 = vmatprep.subr.mxu0 0.0
      %1676 = vmatpush1.xpose.msra.mxu0 0.0
      %1677 = vmatprep.subr.mxu0 0.0
      %1678 = vmatpush1.xpose.msra.mxu0 0.0
      %1679 = vmatprep.subr.mxu0 0.0
      %1680 = vmatpush1.xpose.msra.mxu0 0.0
      %1681 = vmatprep.subr.mxu0 0.0
      %1682 = vmatpush1.xpose.msra.mxu0 0.0
      %1683 = vmatprep.subr.mxu0 0.0
      %1684 = vmatpush1.xpose.msra.mxu0 0.0
      %1685 = vmatprep.subr.mxu0 0.0
      %1686 = vmatpush1.xpose.msra.mxu0 0.0
      %1687 = vmatprep.subr.mxu0 0.0
      %1688 = vmatpush1.xpose.msra.mxu0 0.0
      %1689 = vmatprep.subr.mxu0 0.0
      %1690 = vmatpush1.xpose.msra.mxu0 0.0
      %1691 = vmatprep.mubr.f32.mxu0 0.0
      %1692 = vmatmul.mubr.f32.gmra.mrb[0].mxu0 %v1622
      %v1693 = vpop.f32.mrb[0].mxu0
      %v1694 = vadd.f32 0.0, %v1693
      %v1695 = vpop.f32.mrb[0].mxu0
      %1696 = vmatprep.mubr.f32.mxu0 0.0
      %1697 = vmatmul.mubr.f32.gmra.mrb[0].mxu0 %v1625
      %v1698 = vpop.f32.mrb[0].mxu0
      %v1699 = vadd.f32 0.0, %v1698
      %v1700 = vpop.f32.mrb[0].mxu0
      %1701 = vdwg.mxu0
      %v1703 = vsel %vm728, %v976, 0
      %v1706 = vsel %vm728, %v981, 0
      %1708 = vmatprep.subr.mxu0 0.0
      %1709 = vmatpush1.xpose.msra.mxu0 %v778
      %1710 = vmatprep.subr.mxu0 0.0
      %1711 = vmatpush1.xpose.msra.mxu0 %v781
      %1712 = vmatprep.subr.mxu0 0.0
      %1713 = vmatpush1.xpose.msra.mxu0 0.0
      %1714 = vmatprep.subr.mxu0 0.0
      %1715 = vmatpush1.xpose.msra.mxu0 0.0
      %1716 = vmatprep.subr.mxu0 0.0
      %1717 = vmatpush1.xpose.msra.mxu0 0.0
      %1718 = vmatprep.subr.mxu0 0.0
      %1719 = vmatpush1.xpose.msra.mxu0 0.0
      %1720 = vmatprep.subr.mxu0 0.0
      %1721 = vmatpush1.xpose.msra.mxu0 0.0
      %1722 = vmatprep.subr.mxu0 0.0
      %1723 = vmatpush1.xpose.msra.mxu0 0.0
      %1724 = vmatprep.subr.mxu0 0.0
      %1725 = vmatpush1.xpose.msra.mxu0 0.0
      %1726 = vmatprep.subr.mxu0 0.0
      %1727 = vmatpush1.xpose.msra.mxu0 0.0
      %1728 = vmatprep.subr.mxu0 0.0
      %1729 = vmatpush1.xpose.msra.mxu0 0.0
      %1730 = vmatprep.subr.mxu0 0.0
      %1731 = vmatpush1.xpose.msra.mxu0 0.0
      %1732 = vmatprep.subr.mxu0 0.0
      %1733 = vmatpush1.xpose.msra.mxu0 0.0
      %1734 = vmatprep.subr.mxu0 0.0
      %1735 = vmatpush1.xpose.msra.mxu0 0.0
      %1736 = vmatprep.subr.mxu0 0.0
      %1737 = vmatpush1.xpose.msra.mxu0 0.0
      %1738 = vmatprep.subr.mxu0 0.0
      %1739 = vmatpush1.xpose.msra.mxu0 0.0
      %1740 = vmatprep.subr.mxu0 0.0
      %1741 = vmatpush1.xpose.msra.mxu0 0.0
      %1742 = vmatprep.subr.mxu0 0.0
      %1743 = vmatpush1.xpose.msra.mxu0 0.0
      %1744 = vmatprep.subr.mxu0 0.0
      %1745 = vmatpush1.xpose.msra.mxu0 0.0
      %1746 = vmatprep.subr.mxu0 0.0
      %1747 = vmatpush1.xpose.msra.mxu0 0.0
      %1748 = vmatprep.subr.mxu0 0.0
      %1749 = vmatpush1.xpose.msra.mxu0 0.0
      %1750 = vmatprep.subr.mxu0 0.0
      %1751 = vmatpush1.xpose.msra.mxu0 0.0
      %1752 = vmatprep.subr.mxu0 0.0
      %1753 = vmatpush1.xpose.msra.mxu0 0.0
      %1754 = vmatprep.subr.mxu0 0.0
      %1755 = vmatpush1.xpose.msra.mxu0 0.0
      %1756 = vmatprep.subr.mxu0 0.0
      %1757 = vmatpush1.xpose.msra.mxu0 0.0
      %1758 = vmatprep.subr.mxu0 0.0
      %1759 = vmatpush1.xpose.msra.mxu0 0.0
      %1760 = vmatprep.subr.mxu0 0.0
      %1761 = vmatpush1.xpose.msra.mxu0 0.0
      %1762 = vmatprep.subr.mxu0 0.0
      %1763 = vmatpush1.xpose.msra.mxu0 0.0
      %1764 = vmatprep.subr.mxu0 0.0
      %1765 = vmatpush1.xpose.msra.mxu0 0.0
      %1766 = vmatprep.subr.mxu0 0.0
      %1767 = vmatpush1.xpose.msra.mxu0 0.0
      %1768 = vmatprep.subr.mxu0 0.0
      %1769 = vmatpush1.xpose.msra.mxu0 0.0
      %1770 = vmatprep.subr.mxu0 0.0
      %1771 = vmatpush1.xpose.msra.mxu0 0.0
      %1772 = vmatprep.mubr.f32.mxu0 0.0
      %1773 = vmatmul.mubr.f32.gmra.mrb[0].mxu0 %v1703
      %v1774 = vpop.f32.mrb[0].mxu0
      %v1775 = vadd.f32 0.0, %v1774
      %v1776 = vpop.f32.mrb[0].mxu0
      %1777 = vmatprep.mubr.f32.mxu0 0.0
      %1778 = vmatmul.mubr.f32.gmra.mrb[0].mxu0 %v1706
      %v1779 = vpop.f32.mrb[0].mxu0
      %v1780 = vadd.f32 0.0, %v1779
      %v1781 = vpop.f32.mrb[0].mxu0
      %1782 = vdwg.mxu0
      %v1784 = vsel %vm728, %v986, 0
      %v1787 = vsel %vm728, %v991, 0
      %1789 = vmatprep.subr.mxu0 0.0
      %1790 = vmatpush1.xpose.msra.mxu0 %v784
      %1791 = vmatprep.subr.mxu0 0.0
      %1792 = vmatpush1.xpose.msra.mxu0 %v787
      %1793 = vmatprep.subr.mxu0 0.0
      %1794 = vmatpush1.xpose.msra.mxu0 0.0
      %1795 = vmatprep.subr.mxu0 0.0
      %1796 = vmatpush1.xpose.msra.mxu0 0.0
      %1797 = vmatprep.subr.mxu0 0.0
      %1798 = vmatpush1.xpose.msra.mxu0 0.0
      %1799 = vmatprep.subr.mxu0 0.0
      %1800 = vmatpush1.xpose.msra.mxu0 0.0
      %1801 = vmatprep.subr.mxu0 0.0
      %1802 = vmatpush1.xpose.msra.mxu0 0.0
      %1803 = vmatprep.subr.mxu0 0.0
      %1804 = vmatpush1.xpose.msra.mxu0 0.0
      %1805 = vmatprep.subr.mxu0 0.0
      %1806 = vmatpush1.xpose.msra.mxu0 0.0
      %1807 = vmatprep.subr.mxu0 0.0
      %1808 = vmatpush1.xpose.msra.mxu0 0.0
      %1809 = vmatprep.subr.mxu0 0.0
      %1810 = vmatpush1.xpose.msra.mxu0 0.0
      %1811 = vmatprep.subr.mxu0 0.0
      %1812 = vmatpush1.xpose.msra.mxu0 0.0
      %1813 = vmatprep.subr.mxu0 0.0
      %1814 = vmatpush1.xpose.msra.mxu0 0.0
      %1815 = vmatprep.subr.mxu0 0.0
      %1816 = vmatpush1.xpose.msra.mxu0 0.0
      %1817 = vmatprep.subr.mxu0 0.0
      %1818 = vmatpush1.xpose.msra.mxu0 0.0
      %1819 = vmatprep.subr.mxu0 0.0
      %1820 = vmatpush1.xpose.msra.mxu0 0.0
      %1821 = vmatprep.subr.mxu0 0.0
      %1822 = vmatpush1.xpose.msra.mxu0 0.0
      %1823 = vmatprep.subr.mxu0 0.0
      %1824 = vmatpush1.xpose.msra.mxu0 0.0
      %1825 = vmatprep.subr.mxu0 0.0
      %1826 = vmatpush1.xpose.msra.mxu0 0.0
      %1827 = vmatprep.subr.mxu0 0.0
      %1828 = vmatpush1.xpose.msra.mxu0 0.0
      %1829 = vmatprep.subr.mxu0 0.0
      %1830 = vmatpush1.xpose.msra.mxu0 0.0
      %1831 = vmatprep.subr.mxu0 0.0
      %1832 = vmatpush1.xpose.msra.mxu0 0.0
      %1833 = vmatprep.subr.mxu0 0.0
      %1834 = vmatpush1.xpose.msra.mxu0 0.0
      %1835 = vmatprep.subr.mxu0 0.0
      %1836 = vmatpush1.xpose.msra.mxu0 0.0
      %1837 = vmatprep.subr.mxu0 0.0
      %1838 = vmatpush1.xpose.msra.mxu0 0.0
      %1839 = vmatprep.subr.mxu0 0.0
      %1840 = vmatpush1.xpose.msra.mxu0 0.0
      %1841 = vmatprep.subr.mxu0 0.0
      %1842 = vmatpush1.xpose.msra.mxu0 0.0
      %1843 = vmatprep.subr.mxu0 0.0
      %1844 = vmatpush1.xpose.msra.mxu0 0.0
      %1845 = vmatprep.subr.mxu0 0.0
      %1846 = vmatpush1.xpose.msra.mxu0 0.0
      %1847 = vmatprep.subr.mxu0 0.0
      %1848 = vmatpush1.xpose.msra.mxu0 0.0
      %1849 = vmatprep.subr.mxu0 0.0
      %1850 = vmatpush1.xpose.msra.mxu0 0.0
      %1851 = vmatprep.subr.mxu0 0.0
      %1852 = vmatpush1.xpose.msra.mxu0 0.0
      %1853 = vmatprep.mubr.f32.mxu0 0.0
      %1854 = vmatmul.mubr.f32.gmra.mrb[0].mxu0 %v1784
      %v1855 = vpop.f32.mrb[0].mxu0
      %v1856 = vadd.f32 0.0, %v1855
      %v1857 = vpop.f32.mrb[0].mxu0
      %1858 = vmatprep.mubr.f32.mxu0 0.0
      %1859 = vmatmul.mubr.f32.gmra.mrb[0].mxu0 %v1787
      %v1860 = vpop.f32.mrb[0].mxu0
      %v1861 = vadd.f32 0.0, %v1860
      %v1862 = vpop.f32.mrb[0].mxu0
      %1863 = vdwg.mxu0
      %v1865 = vsel %vm728, %v996, 0
      %v1868 = vsel %vm728, %v1001, 0
      %1870 = vmatprep.subr.mxu0 0.0
      %1871 = vmatpush1.xpose.msra.mxu0 %v790
      %1872 = vmatprep.subr.mxu0 0.0
      %1873 = vmatpush1.xpose.msra.mxu0 %v793
      %1874 = vmatprep.subr.mxu0 0.0
      %1875 = vmatpush1.xpose.msra.mxu0 0.0
      %1876 = vmatprep.subr.mxu0 0.0
      %1877 = vmatpush1.xpose.msra.mxu0 0.0
      %1878 = vmatprep.subr.mxu0 0.0
      %1879 = vmatpush1.xpose.msra.mxu0 0.0
      %1880 = vmatprep.subr.mxu0 0.0
      %1881 = vmatpush1.xpose.msra.mxu0 0.0
      %1882 = vmatprep.subr.mxu0 0.0
      %1883 = vmatpush1.xpose.msra.mxu0 0.0
      %1884 = vmatprep.subr.mxu0 0.0
      %1885 = vmatpush1.xpose.msra.mxu0 0.0
      %1886 = vmatprep.subr.mxu0 0.0
      %1887 = vmatpush1.xpose.msra.mxu0 0.0
      %1888 = vmatprep.subr.mxu0 0.0
      %1889 = vmatpush1.xpose.msra.mxu0 0.0
      %1890 = vmatprep.subr.mxu0 0.0
      %1891 = vmatpush1.xpose.msra.mxu0 0.0
      %1892 = vmatprep.subr.mxu0 0.0
      %1893 = vmatpush1.xpose.msra.mxu0 0.0
      %1894 = vmatprep.subr.mxu0 0.0
      %1895 = vmatpush1.xpose.msra.mxu0 0.0
      %1896 = vmatprep.subr.mxu0 0.0
      %1897 = vmatpush1.xpose.msra.mxu0 0.0
      %1898 = vmatprep.subr.mxu0 0.0
      %1899 = vmatpush1.xpose.msra.mxu0 0.0
      %1900 = vmatprep.subr.mxu0 0.0
      %1901 = vmatpush1.xpose.msra.mxu0 0.0
      %1902 = vmatprep.subr.mxu0 0.0
      %1903 = vmatpush1.xpose.msra.mxu0 0.0
      %1904 = vmatprep.subr.mxu0 0.0
      %1905 = vmatpush1.xpose.msra.mxu0 0.0
      %1906 = vmatprep.subr.mxu0 0.0
      %1907 = vmatpush1.xpose.msra.mxu0 0.0
      %1908 = vmatprep.subr.mxu0 0.0
      %1909 = vmatpush1.xpose.msra.mxu0 0.0
      %1910 = vmatprep.subr.mxu0 0.0
      %1911 = vmatpush1.xpose.msra.mxu0 0.0
      %1912 = vmatprep.subr.mxu0 0.0
      %1913 = vmatpush1.xpose.msra.mxu0 0.0
      %1914 = vmatprep.subr.mxu0 0.0
      %1915 = vmatpush1.xpose.msra.mxu0 0.0
      %1916 = vmatprep.subr.mxu0 0.0
      %1917 = vmatpush1.xpose.msra.mxu0 0.0
      %1918 = vmatprep.subr.mxu0 0.0
      %1919 = vmatpush1.xpose.msra.mxu0 0.0
      %1920 = vmatprep.subr.mxu0 0.0
      %1921 = vmatpush1.xpose.msra.mxu0 0.0
      %1922 = vmatprep.subr.mxu0 0.0
      %1923 = vmatpush1.xpose.msra.mxu0 0.0
      %1924 = vmatprep.subr.mxu0 0.0
      %1925 = vmatpush1.xpose.msra.mxu0 0.0
      %1926 = vmatprep.subr.mxu0 0.0
      %1927 = vmatpush1.xpose.msra.mxu0 0.0
      %1928 = vmatprep.subr.mxu0 0.0
      %1929 = vmatpush1.xpose.msra.mxu0 0.0
      %1930 = vmatprep.subr.mxu0 0.0
      %1931 = vmatpush1.xpose.msra.mxu0 0.0
      %1932 = vmatprep.subr.mxu0 0.0
      %1933 = vmatpush1.xpose.msra.mxu0 0.0
      %1934 = vmatprep.mubr.f32.mxu0 0.0
      %1935 = vmatmul.mubr.f32.gmra.mrb[0].mxu0 %v1865
      %v1936 = vpop.f32.mrb[0].mxu0
      %v1937 = vadd.f32 0.0, %v1936
      %v1938 = vpop.f32.mrb[0].mxu0
      %1939 = vmatprep.mubr.f32.mxu0 0.0
      %1940 = vmatmul.mubr.f32.gmra.mrb[0].mxu0 %v1868
      %v1941 = vpop.f32.mrb[0].mxu0
      %v1942 = vadd.f32 0.0, %v1941
      %v1943 = vpop.f32.mrb[0].mxu0
      %1944 = vdwg.mxu0
      %v1946 = vsel %vm728, %v1006, 0
      %v1949 = vsel %vm728, %v1011, 0
      %1951 = vmatprep.subr.mxu0 0.0
      %1952 = vmatpush1.xpose.msra.mxu0 %v796
      %1953 = vmatprep.subr.mxu0 0.0
      %1954 = vmatpush1.xpose.msra.mxu0 %v799
      %1955 = vmatprep.subr.mxu0 0.0
      %1956 = vmatpush1.xpose.msra.mxu0 0.0
      %1957 = vmatprep.subr.mxu0 0.0
      %1958 = vmatpush1.xpose.msra.mxu0 0.0
      %1959 = vmatprep.subr.mxu0 0.0
      %1960 = vmatpush1.xpose.msra.mxu0 0.0
      %1961 = vmatprep.subr.mxu0 0.0
      %1962 = vmatpush1.xpose.msra.mxu0 0.0
      %1963 = vmatprep.subr.mxu0 0.0
      %1964 = vmatpush1.xpose.msra.mxu0 0.0
      %1965 = vmatprep.subr.mxu0 0.0
      %1966 = vmatpush1.xpose.msra.mxu0 0.0
      %1967 = vmatprep.subr.mxu0 0.0
      %1968 = vmatpush1.xpose.msra.mxu0 0.0
      %1969 = vmatprep.subr.mxu0 0.0
      %1970 = vmatpush1.xpose.msra.mxu0 0.0
      %1971 = vmatprep.subr.mxu0 0.0
      %1972 = vmatpush1.xpose.msra.mxu0 0.0
      %1973 = vmatprep.subr.mxu0 0.0
      %1974 = vmatpush1.xpose.msra.mxu0 0.0
      %1975 = vmatprep.subr.mxu0 0.0
      %1976 = vmatpush1.xpose.msra.mxu0 0.0
      %1977 = vmatprep.subr.mxu0 0.0
      %1978 = vmatpush1.xpose.msra.mxu0 0.0
      %1979 = vmatprep.subr.mxu0 0.0
      %1980 = vmatpush1.xpose.msra.mxu0 0.0
      %1981 = vmatprep.subr.mxu0 0.0
      %1982 = vmatpush1.xpose.msra.mxu0 0.0
      %1983 = vmatprep.subr.mxu0 0.0
      %1984 = vmatpush1.xpose.msra.mxu0 0.0
      %1985 = vmatprep.subr.mxu0 0.0
      %1986 = vmatpush1.xpose.msra.mxu0 0.0
      %1987 = vmatprep.subr.mxu0 0.0
      %1988 = vmatpush1.xpose.msra.mxu0 0.0
      %1989 = vmatprep.subr.mxu0 0.0
      %1990 = vmatpush1.xpose.msra.mxu0 0.0
      %1991 = vmatprep.subr.mxu0 0.0
      %1992 = vmatpush1.xpose.msra.mxu0 0.0
      %1993 = vmatprep.subr.mxu0 0.0
      %1994 = vmatpush1.xpose.msra.mxu0 0.0
      %1995 = vmatprep.subr.mxu0 0.0
      %1996 = vmatpush1.xpose.msra.mxu0 0.0
      %1997 = vmatprep.subr.mxu0 0.0
      %1998 = vmatpush1.xpose.msra.mxu0 0.0
      %1999 = vmatprep.subr.mxu0 0.0
      %2000 = vmatpush1.xpose.msra.mxu0 0.0
      %2001 = vmatprep.subr.mxu0 0.0
      %2002 = vmatpush1.xpose.msra.mxu0 0.0
      %2003 = vmatprep.subr.mxu0 0.0
      %2004 = vmatpush1.xpose.msra.mxu0 0.0
      %2005 = vmatprep.subr.mxu0 0.0
      %2006 = vmatpush1.xpose.msra.mxu0 0.0
      %2007 = vmatprep.subr.mxu0 0.0
      %2008 = vmatpush1.xpose.msra.mxu0 0.0
      %2009 = vmatprep.subr.mxu0 0.0
      %2010 = vmatpush1.xpose.msra.mxu0 0.0
      %2011 = vmatprep.subr.mxu0 0.0
      %2012 = vmatpush1.xpose.msra.mxu0 0.0
      %2013 = vmatprep.subr.mxu0 0.0
      %2014 = vmatpush1.xpose.msra.mxu0 0.0
      %2015 = vmatprep.mubr.f32.mxu0 0.0
      %2016 = vmatmul.mubr.f32.gmra.mrb[0].mxu0 %v1946
      %v2017 = vpop.f32.mrb[0].mxu0
      %v2018 = vadd.f32 0.0, %v2017
      %v2019 = vpop.f32.mrb[0].mxu0
      %2020 = vmatprep.mubr.f32.mxu0 0.0
      %2021 = vmatmul.mubr.f32.gmra.mrb[0].mxu0 %v1949
      %v2022 = vpop.f32.mrb[0].mxu0
      %v2023 = vadd.f32 0.0, %v2022
      %v2024 = vpop.f32.mrb[0].mxu0
      %2025 = vdwg.mxu0
      %v2027 = vsel %vm728, %v1016, 0
      %v2030 = vsel %vm728, %v1021, 0
      %2032 = vmatprep.subr.mxu0 0.0
      %2033 = vmatpush1.xpose.msra.mxu0 %v802
      %2034 = vmatprep.subr.mxu0 0.0
      %2035 = vmatpush1.xpose.msra.mxu0 %v805
      %2036 = vmatprep.subr.mxu0 0.0
      %2037 = vmatpush1.xpose.msra.mxu0 0.0
      %2038 = vmatprep.subr.mxu0 0.0
      %2039 = vmatpush1.xpose.msra.mxu0 0.0
      %2040 = vmatprep.subr.mxu0 0.0
      %2041 = vmatpush1.xpose.msra.mxu0 0.0
      %2042 = vmatprep.subr.mxu0 0.0
      %2043 = vmatpush1.xpose.msra.mxu0 0.0
      %2044 = vmatprep.subr.mxu0 0.0
      %2045 = vmatpush1.xpose.msra.mxu0 0.0
      %2046 = vmatprep.subr.mxu0 0.0
      %2047 = vmatpush1.xpose.msra.mxu0 0.0
      %2048 = vmatprep.subr.mxu0 0.0
      %2049 = vmatpush1.xpose.msra.mxu0 0.0
      %2050 = vmatprep.subr.mxu0 0.0
      %2051 = vmatpush1.xpose.msra.mxu0 0.0
      %2052 = vmatprep.subr.mxu0 0.0
      %2053 = vmatpush1.xpose.msra.mxu0 0.0
      %2054 = vmatprep.subr.mxu0 0.0
      %2055 = vmatpush1.xpose.msra.mxu0 0.0
      %2056 = vmatprep.subr.mxu0 0.0
      %2057 = vmatpush1.xpose.msra.mxu0 0.0
      %2058 = vmatprep.subr.mxu0 0.0
      %2059 = vmatpush1.xpose.msra.mxu0 0.0
      %2060 = vmatprep.subr.mxu0 0.0
      %2061 = vmatpush1.xpose.msra.mxu0 0.0
      %2062 = vmatprep.subr.mxu0 0.0
      %2063 = vmatpush1.xpose.msra.mxu0 0.0
      %2064 = vmatprep.subr.mxu0 0.0
      %2065 = vmatpush1.xpose.msra.mxu0 0.0
      %2066 = vmatprep.subr.mxu0 0.0
      %2067 = vmatpush1.xpose.msra.mxu0 0.0
      %2068 = vmatprep.subr.mxu0 0.0
      %2069 = vmatpush1.xpose.msra.mxu0 0.0
      %2070 = vmatprep.subr.mxu0 0.0
      %2071 = vmatpush1.xpose.msra.mxu0 0.0
      %2072 = vmatprep.subr.mxu0 0.0
      %2073 = vmatpush1.xpose.msra.mxu0 0.0
      %2074 = vmatprep.subr.mxu0 0.0
      %2075 = vmatpush1.xpose.msra.mxu0 0.0
      %2076 = vmatprep.subr.mxu0 0.0
      %2077 = vmatpush1.xpose.msra.mxu0 0.0
      %2078 = vmatprep.subr.mxu0 0.0
      %2079 = vmatpush1.xpose.msra.mxu0 0.0
      %2080 = vmatprep.subr.mxu0 0.0
      %2081 = vmatpush1.xpose.msra.mxu0 0.0
      %2082 = vmatprep.subr.mxu0 0.0
      %2083 = vmatpush1.xpose.msra.mxu0 0.0
      %2084 = vmatprep.subr.mxu0 0.0
      %2085 = vmatpush1.xpose.msra.mxu0 0.0
      %2086 = vmatprep.subr.mxu0 0.0
      %2087 = vmatpush1.xpose.msra.mxu0 0.0
      %2088 = vmatprep.subr.mxu0 0.0
      %2089 = vmatpush1.xpose.msra.mxu0 0.0
      %2090 = vmatprep.subr.mxu0 0.0
      %2091 = vmatpush1.xpose.msra.mxu0 0.0
      %2092 = vmatprep.subr.mxu0 0.0
      %2093 = vmatpush1.xpose.msra.mxu0 0.0
      %2094 = vmatprep.subr.mxu0 0.0
      %2095 = vmatpush1.xpose.msra.mxu0 0.0
      %2096 = vmatprep.mubr.f32.mxu0 0.0
      %2097 = vmatmul.mubr.f32.gmra.mrb[0].mxu0 %v2027
      %v2098 = vpop.f32.mrb[0].mxu0
      %v2099 = vadd.f32 0.0, %v2098
      %v2100 = vpop.f32.mrb[0].mxu0
      %2101 = vmatprep.mubr.f32.mxu0 0.0
      %2102 = vmatmul.mubr.f32.gmra.mrb[0].mxu0 %v2030
      %v2103 = vpop.f32.mrb[0].mxu0
      %v2104 = vadd.f32 0.0, %v2103
      %v2105 = vpop.f32.mrb[0].mxu0
      %2106 = vdwg.mxu0
      %v2108 = vsel %vm728, %v1026, 0
      %v2111 = vsel %vm728, %v1031, 0
      %2113 = vmatprep.subr.mxu0 0.0
      %2114 = vmatpush1.xpose.msra.mxu0 %v808
      %2115 = vmatprep.subr.mxu0 0.0
      %2116 = vmatpush1.xpose.msra.mxu0 %v811
      %2117 = vmatprep.subr.mxu0 0.0
      %2118 = vmatpush1.xpose.msra.mxu0 0.0
      %2119 = vmatprep.subr.mxu0 0.0
      %2120 = vmatpush1.xpose.msra.mxu0 0.0
      %2121 = vmatprep.subr.mxu0 0.0
      %2122 = vmatpush1.xpose.msra.mxu0 0.0
      %2123 = vmatprep.subr.mxu0 0.0
      %2124 = vmatpush1.xpose.msra.mxu0 0.0
      %2125 = vmatprep.subr.mxu0 0.0
      %2126 = vmatpush1.xpose.msra.mxu0 0.0
      %2127 = vmatprep.subr.mxu0 0.0
      %2128 = vmatpush1.xpose.msra.mxu0 0.0
      %2129 = vmatprep.subr.mxu0 0.0
      %2130 = vmatpush1.xpose.msra.mxu0 0.0
      %2131 = vmatprep.subr.mxu0 0.0
      %2132 = vmatpush1.xpose.msra.mxu0 0.0
      %2133 = vmatprep.subr.mxu0 0.0
      %2134 = vmatpush1.xpose.msra.mxu0 0.0
      %2135 = vmatprep.subr.mxu0 0.0
      %2136 = vmatpush1.xpose.msra.mxu0 0.0
      %2137 = vmatprep.subr.mxu0 0.0
      %2138 = vmatpush1.xpose.msra.mxu0 0.0
      %2139 = vmatprep.subr.mxu0 0.0
      %2140 = vmatpush1.xpose.msra.mxu0 0.0
      %2141 = vmatprep.subr.mxu0 0.0
      %2142 = vmatpush1.xpose.msra.mxu0 0.0
      %2143 = vmatprep.subr.mxu0 0.0
      %2144 = vmatpush1.xpose.msra.mxu0 0.0
      %2145 = vmatprep.subr.mxu0 0.0
      %2146 = vmatpush1.xpose.msra.mxu0 0.0
      %2147 = vmatprep.subr.mxu0 0.0
      %2148 = vmatpush1.xpose.msra.mxu0 0.0
      %2149 = vmatprep.subr.mxu0 0.0
      %2150 = vmatpush1.xpose.msra.mxu0 0.0
      %2151 = vmatprep.subr.mxu0 0.0
      %2152 = vmatpush1.xpose.msra.mxu0 0.0
      %2153 = vmatprep.subr.mxu0 0.0
      %2154 = vmatpush1.xpose.msra.mxu0 0.0
      %2155 = vmatprep.subr.mxu0 0.0
      %2156 = vmatpush1.xpose.msra.mxu0 0.0
      %2157 = vmatprep.subr.mxu0 0.0
      %2158 = vmatpush1.xpose.msra.mxu0 0.0
      %2159 = vmatprep.subr.mxu0 0.0
      %2160 = vmatpush1.xpose.msra.mxu0 0.0
      %2161 = vmatprep.subr.mxu0 0.0
      %2162 = vmatpush1.xpose.msra.mxu0 0.0
      %2163 = vmatprep.subr.mxu0 0.0
      %2164 = vmatpush1.xpose.msra.mxu0 0.0
      %2165 = vmatprep.subr.mxu0 0.0
      %2166 = vmatpush1.xpose.msra.mxu0 0.0
      %2167 = vmatprep.subr.mxu0 0.0
      %2168 = vmatpush1.xpose.msra.mxu0 0.0
      %2169 = vmatprep.subr.mxu0 0.0
      %2170 = vmatpush1.xpose.msra.mxu0 0.0
      %2171 = vmatprep.subr.mxu0 0.0
      %2172 = vmatpush1.xpose.msra.mxu0 0.0
      %2173 = vmatprep.subr.mxu0 0.0
      %2174 = vmatpush1.xpose.msra.mxu0 0.0
      %2175 = vmatprep.subr.mxu0 0.0
      %2176 = vmatpush1.xpose.msra.mxu0 0.0
      %2177 = vmatprep.mubr.f32.mxu0 0.0
      %2178 = vmatmul.mubr.f32.gmra.mrb[0].mxu0 %v2108
      %v2179 = vpop.f32.mrb[0].mxu0
      %v2180 = vadd.f32 0.0, %v2179
      %v2181 = vpop.f32.mrb[0].mxu0
      %2182 = vmatprep.mubr.f32.mxu0 0.0
      %2183 = vmatmul.mubr.f32.gmra.mrb[0].mxu0 %v2111
      %v2184 = vpop.f32.mrb[0].mxu0
      %v2185 = vadd.f32 0.0, %v2184
      %v2186 = vpop.f32.mrb[0].mxu0
      %2187 = vdwg.mxu0
      %v2189 = vsel %vm728, %v1036, 0
      %v2192 = vsel %vm728, %v1041, 0
      %2194 = vmatprep.subr.mxu0 0.0
      %2195 = vmatpush1.xpose.msra.mxu0 %v814
      %2196 = vmatprep.subr.mxu0 0.0
      %2197 = vmatpush1.xpose.msra.mxu0 %v817
      %2198 = vmatprep.subr.mxu0 0.0
      %2199 = vmatpush1.xpose.msra.mxu0 0.0
      %2200 = vmatprep.subr.mxu0 0.0
      %2201 = vmatpush1.xpose.msra.mxu0 0.0
      %2202 = vmatprep.subr.mxu0 0.0
      %2203 = vmatpush1.xpose.msra.mxu0 0.0
      %2204 = vmatprep.subr.mxu0 0.0
      %2205 = vmatpush1.xpose.msra.mxu0 0.0
      %2206 = vmatprep.subr.mxu0 0.0
      %2207 = vmatpush1.xpose.msra.mxu0 0.0
      %2208 = vmatprep.subr.mxu0 0.0
      %2209 = vmatpush1.xpose.msra.mxu0 0.0
      %2210 = vmatprep.subr.mxu0 0.0
      %2211 = vmatpush1.xpose.msra.mxu0 0.0
      %2212 = vmatprep.subr.mxu0 0.0
      %2213 = vmatpush1.xpose.msra.mxu0 0.0
      %2214 = vmatprep.subr.mxu0 0.0
      %2215 = vmatpush1.xpose.msra.mxu0 0.0
      %2216 = vmatprep.subr.mxu0 0.0
      %2217 = vmatpush1.xpose.msra.mxu0 0.0
      %2218 = vmatprep.subr.mxu0 0.0
      %2219 = vmatpush1.xpose.msra.mxu0 0.0
      %2220 = vmatprep.subr.mxu0 0.0
      %2221 = vmatpush1.xpose.msra.mxu0 0.0
      %2222 = vmatprep.subr.mxu0 0.0
      %2223 = vmatpush1.xpose.msra.mxu0 0.0
      %2224 = vmatprep.subr.mxu0 0.0
      %2225 = vmatpush1.xpose.msra.mxu0 0.0
      %2226 = vmatprep.subr.mxu0 0.0
      %2227 = vmatpush1.xpose.msra.mxu0 0.0
      %2228 = vmatprep.subr.mxu0 0.0
      %2229 = vmatpush1.xpose.msra.mxu0 0.0
      %2230 = vmatprep.subr.mxu0 0.0
      %2231 = vmatpush1.xpose.msra.mxu0 0.0
      %2232 = vmatprep.subr.mxu0 0.0
      %2233 = vmatpush1.xpose.msra.mxu0 0.0
      %2234 = vmatprep.subr.mxu0 0.0
      %2235 = vmatpush1.xpose.msra.mxu0 0.0
      %2236 = vmatprep.subr.mxu0 0.0
      %2237 = vmatpush1.xpose.msra.mxu0 0.0
      %2238 = vmatprep.subr.mxu0 0.0
      %2239 = vmatpush1.xpose.msra.mxu0 0.0
      %2240 = vmatprep.subr.mxu0 0.0
      %2241 = vmatpush1.xpose.msra.mxu0 0.0
      %2242 = vmatprep.subr.mxu0 0.0
      %2243 = vmatpush1.xpose.msra.mxu0 0.0
      %2244 = vmatprep.subr.mxu0 0.0
      %2245 = vmatpush1.xpose.msra.mxu0 0.0
      %2246 = vmatprep.subr.mxu0 0.0
      %2247 = vmatpush1.xpose.msra.mxu0 0.0
      %2248 = vmatprep.subr.mxu0 0.0
      %2249 = vmatpush1.xpose.msra.mxu0 0.0
      %2250 = vmatprep.subr.mxu0 0.0
      %2251 = vmatpush1.xpose.msra.mxu0 0.0
      %2252 = vmatprep.subr.mxu0 0.0
      %2253 = vmatpush1.xpose.msra.mxu0 0.0
      %2254 = vmatprep.subr.mxu0 0.0
      %2255 = vmatpush1.xpose.msra.mxu0 0.0
      %2256 = vmatprep.subr.mxu0 0.0
      %2257 = vmatpush1.xpose.msra.mxu0 0.0
      %2258 = vmatprep.mubr.f32.mxu0 0.0
      %2259 = vmatmul.mubr.f32.gmra.mrb[0].mxu0 %v2189
      %v2260 = vpop.f32.mrb[0].mxu0
      %v2261 = vadd.f32 0.0, %v2260
      %v2262 = vpop.f32.mrb[0].mxu0
      %2263 = vmatprep.mubr.f32.mxu0 0.0
      %2264 = vmatmul.mubr.f32.gmra.mrb[0].mxu0 %v2192
      %v2265 = vpop.f32.mrb[0].mxu0
      %v2266 = vadd.f32 0.0, %v2265
      %v2267 = vpop.f32.mrb[0].mxu0
      %2268 = vdwg.mxu0
      %v2270 = vsel %vm728, %v1046, 0
      %v2273 = vsel %vm728, %v1051, 0
      %2275 = vmatprep.subr.mxu0 0.0
      %2276 = vmatpush1.xpose.msra.mxu0 %v820
      %2277 = vmatprep.subr.mxu0 0.0
      %2278 = vmatpush1.xpose.msra.mxu0 %v823
      %2279 = vmatprep.subr.mxu0 0.0
      %2280 = vmatpush1.xpose.msra.mxu0 0.0
      %2281 = vmatprep.subr.mxu0 0.0
      %2282 = vmatpush1.xpose.msra.mxu0 0.0
      %2283 = vmatprep.subr.mxu0 0.0
      %2284 = vmatpush1.xpose.msra.mxu0 0.0
      %2285 = vmatprep.subr.mxu0 0.0
      %2286 = vmatpush1.xpose.msra.mxu0 0.0
      %2287 = vmatprep.subr.mxu0 0.0
      %2288 = vmatpush1.xpose.msra.mxu0 0.0
      %2289 = vmatprep.subr.mxu0 0.0
      %2290 = vmatpush1.xpose.msra.mxu0 0.0
      %2291 = vmatprep.subr.mxu0 0.0
      %2292 = vmatpush1.xpose.msra.mxu0 0.0
      %2293 = vmatprep.subr.mxu0 0.0
      %2294 = vmatpush1.xpose.msra.mxu0 0.0
      %2295 = vmatprep.subr.mxu0 0.0
      %2296 = vmatpush1.xpose.msra.mxu0 0.0
      %2297 = vmatprep.subr.mxu0 0.0
      %2298 = vmatpush1.xpose.msra.mxu0 0.0
      %2299 = vmatprep.subr.mxu0 0.0
      %2300 = vmatpush1.xpose.msra.mxu0 0.0
      %2301 = vmatprep.subr.mxu0 0.0
      %2302 = vmatpush1.xpose.msra.mxu0 0.0
      %2303 = vmatprep.subr.mxu0 0.0
      %2304 = vmatpush1.xpose.msra.mxu0 0.0
      %2305 = vmatprep.subr.mxu0 0.0
      %2306 = vmatpush1.xpose.msra.mxu0 0.0
      %2307 = vmatprep.subr.mxu0 0.0
      %2308 = vmatpush1.xpose.msra.mxu0 0.0
      %2309 = vmatprep.subr.mxu0 0.0
      %2310 = vmatpush1.xpose.msra.mxu0 0.0
      %2311 = vmatprep.subr.mxu0 0.0
      %2312 = vmatpush1.xpose.msra.mxu0 0.0
      %2313 = vmatprep.subr.mxu0 0.0
      %2314 = vmatpush1.xpose.msra.mxu0 0.0
      %2315 = vmatprep.subr.mxu0 0.0
      %2316 = vmatpush1.xpose.msra.mxu0 0.0
      %2317 = vmatprep.subr.mxu0 0.0
      %2318 = vmatpush1.xpose.msra.mxu0 0.0
      %2319 = vmatprep.subr.mxu0 0.0
      %2320 = vmatpush1.xpose.msra.mxu0 0.0
      %2321 = vmatprep.subr.mxu0 0.0
      %2322 = vmatpush1.xpose.msra.mxu0 0.0
      %2323 = vmatprep.subr.mxu0 0.0
      %2324 = vmatpush1.xpose.msra.mxu0 0.0
      %2325 = vmatprep.subr.mxu0 0.0
      %2326 = vmatpush1.xpose.msra.mxu0 0.0
      %2327 = vmatprep.subr.mxu0 0.0
      %2328 = vmatpush1.xpose.msra.mxu0 0.0
      %2329 = vmatprep.subr.mxu0 0.0
      %2330 = vmatpush1.xpose.msra.mxu0 0.0
      %2331 = vmatprep.subr.mxu0 0.0
      %2332 = vmatpush1.xpose.msra.mxu0 0.0
      %2333 = vmatprep.subr.mxu0 0.0
      %2334 = vmatpush1.xpose.msra.mxu0 0.0
      %2335 = vmatprep.subr.mxu0 0.0
      %2336 = vmatpush1.xpose.msra.mxu0 0.0
      %2337 = vmatprep.subr.mxu0 0.0
      %2338 = vmatpush1.xpose.msra.mxu0 0.0
      %2339 = vmatprep.mubr.f32.mxu0 0.0
      %2340 = vmatmul.mubr.f32.gmra.mrb[0].mxu0 %v2270
      %v2341 = vpop.f32.mrb[0].mxu0
      %v2342 = vadd.f32 0.0, %v2341
      %v2343 = vpop.f32.mrb[0].mxu0
      %2344 = vmatprep.mubr.f32.mxu0 0.0
      %2345 = vmatmul.mubr.f32.gmra.mrb[0].mxu0 %v2273
      %v2346 = vpop.f32.mrb[0].mxu0
      %v2347 = vadd.f32 0.0, %v2346
      %v2348 = vpop.f32.mrb[0].mxu0
      %2349 = vdwg.mxu0
      %vm2350 = vcmask 130048
      %v2351 = vsel %vm2350, %v1127, -inf
      %2352 = vmax.xlane.f32.xlu0 %v2351
      %v2353 = vpop.xlane.xlu0 %2352
      %v2354 = vsel %vm2350, %v1132, -inf
      %2355 = vmax.xlane.f32.xlu0 %v2354
      %v2356 = vpop.xlane.xlu0 %2355
      %v2357 = vsel %vm2350, %v1208, -inf
      %2358 = vmax.xlane.f32.xlu0 %v2357
      %v2359 = vpop.xlane.xlu0 %2358
      %v2360 = vsel %vm2350, %v1213, -inf
      %2361 = vmax.xlane.f32.xlu0 %v2360
      %v2362 = vpop.xlane.xlu0 %2361
      %v2363 = vsel %vm2350, %v1289, -inf
      %2364 = vmax.xlane.f32.xlu0 %v2363
      %v2365 = vpop.xlane.xlu0 %2364
      %v2366 = vsel %vm2350, %v1294, -inf
      %2367 = vmax.xlane.f32.xlu0 %v2366
      %v2368 = vpop.xlane.xlu0 %2367
      %v2369 = vsel %vm2350, %v1370, -inf
      %2370 = vmax.xlane.f32.xlu0 %v2369
      %v2371 = vpop.xlane.xlu0 %2370
      %v2372 = vsel %vm2350, %v1375, -inf
      %2373 = vmax.xlane.f32.xlu0 %v2372
      %v2374 = vpop.xlane.xlu0 %2373
      %v2375 = vsel %vm2350, %v1451, -inf
      %2376 = vmax.xlane.f32.xlu0 %v2375
      %v2377 = vpop.xlane.xlu0 %2376
      %v2378 = vsel %vm2350, %v1456, -inf
      %2379 = vmax.xlane.f32.xlu0 %v2378
      %v2380 = vpop.xlane.xlu0 %2379
      %v2381 = vsel %vm2350, %v1532, -inf
      %2382 = vmax.xlane.f32.xlu0 %v2381
      %v2383 = vpop.xlane.xlu0 %2382
      %v2384 = vsel %vm2350, %v1537, -inf
      %2385 = vmax.xlane.f32.xlu0 %v2384
      %v2386 = vpop.xlane.xlu0 %2385
      %v2387 = vsel %vm2350, %v1613, -inf
      %2388 = vmax.xlane.f32.xlu0 %v2387
      %v2389 = vpop.xlane.xlu0 %2388
      %v2390 = vsel %vm2350, %v1618, -inf
      %2391 = vmax.xlane.f32.xlu0 %v2390
      %v2392 = vpop.xlane.xlu0 %2391
      %v2393 = vsel %vm2350, %v1694, -inf
      %2394 = vmax.xlane.f32.xlu0 %v2393
      %v2395 = vpop.xlane.xlu0 %2394
      %v2396 = vsel %vm2350, %v1699, -inf
      %2397 = vmax.xlane.f32.xlu0 %v2396
      %v2398 = vpop.xlane.xlu0 %2397
      %v2399 = vsel %vm2350, %v1775, -inf
      %2400 = vmax.xlane.f32.xlu0 %v2399
      %v2401 = vpop.xlane.xlu0 %2400
      %v2402 = vsel %vm2350, %v1780, -inf
      %2403 = vmax.xlane.f32.xlu0 %v2402
      %v2404 = vpop.xlane.xlu0 %2403
      %v2405 = vsel %vm2350, %v1856, -inf
      %2406 = vmax.xlane.f32.xlu0 %v2405
      %v2407 = vpop.xlane.xlu0 %2406
      %v2408 = vsel %vm2350, %v1861, -inf
      %2409 = vmax.xlane.f32.xlu0 %v2408
      %v2410 = vpop.xlane.xlu0 %2409
      %v2411 = vsel %vm2350, %v1937, -inf
      %2412 = vmax.xlane.f32.xlu0 %v2411
      %v2413 = vpop.xlane.xlu0 %2412
      %v2414 = vsel %vm2350, %v1942, -inf
      %2415 = vmax.xlane.f32.xlu0 %v2414
      %v2416 = vpop.xlane.xlu0 %2415
      %v2417 = vsel %vm2350, %v2018, -inf
      %2418 = vmax.xlane.f32.xlu0 %v2417
      %v2419 = vpop.xlane.xlu0 %2418
      %v2420 = vsel %vm2350, %v2023, -inf
      %2421 = vmax.xlane.f32.xlu0 %v2420
      %v2422 = vpop.xlane.xlu0 %2421
      %v2423 = vsel %vm2350, %v2099, -inf
      %2424 = vmax.xlane.f32.xlu0 %v2423
      %v2425 = vpop.xlane.xlu0 %2424
      %v2426 = vsel %vm2350, %v2104, -inf
      %2427 = vmax.xlane.f32.xlu0 %v2426
      %v2428 = vpop.xlane.xlu0 %2427
      %v2429 = vsel %vm2350, %v2180, -inf
      %2430 = vmax.xlane.f32.xlu0 %v2429
      %v2431 = vpop.xlane.xlu0 %2430
      %v2432 = vsel %vm2350, %v2185, -inf
      %2433 = vmax.xlane.f32.xlu0 %v2432
      %v2434 = vpop.xlane.xlu0 %2433
      %v2435 = vsel %vm2350, %v2261, -inf
      %2436 = vmax.xlane.f32.xlu0 %v2435
      %v2437 = vpop.xlane.xlu0 %2436
      %v2438 = vsel %vm2350, %v2266, -inf
      %2439 = vmax.xlane.f32.xlu0 %v2438
      %v2440 = vpop.xlane.xlu0 %2439
      %v2441 = vsel %vm2350, %v2342, -inf
      %2442 = vmax.xlane.f32.xlu0 %v2441
      %v2443 = vpop.xlane.xlu0 %2442
      %v2444 = vsel %vm2350, %v2347, -inf
      %2445 = vmax.xlane.f32.xlu0 %v2444
      %v2446 = vpop.xlane.xlu0 %2445
      %v2447 = vsub.f32 %v1127, %v2353
      %v2448 = vsub.f32 %v1132, %v2356
      %v2449 = vsub.f32 %v1208, %v2359
      %v2450 = vsub.f32 %v1213, %v2362
      %v2451 = vsub.f32 %v1289, %v2365
      %v2452 = vsub.f32 %v1294, %v2368
      %v2453 = vsub.f32 %v1370, %v2371
      %v2454 = vsub.f32 %v1375, %v2374
      %v2455 = vsub.f32 %v1451, %v2377
      %v2456 = vsub.f32 %v1456, %v2380
      %v2457 = vsub.f32 %v1532, %v2383
      %v2458 = vsub.f32 %v1537, %v2386
      %v2459 = vsub.f32 %v1613, %v2389
      %v2460 = vsub.f32 %v1618, %v2392
      %v2461 = vsub.f32 %v1694, %v2395
      %v2462 = vsub.f32 %v1699, %v2398
      %v2463 = vsub.f32 %v1775, %v2401
      %v2464 = vsub.f32 %v1780, %v2404
      %v2465 = vsub.f32 %v1856, %v2407
      %v2466 = vsub.f32 %v1861, %v2410
      %v2467 = vsub.f32 %v1937, %v2413
      %v2468 = vsub.f32 %v1942, %v2416
      %v2469 = vsub.f32 %v2018, %v2419
      %v2470 = vsub.f32 %v2023, %v2422
      %v2471 = vsub.f32 %v2099, %v2425
      %v2472 = vsub.f32 %v2104, %v2428
      %v2473 = vsub.f32 %v2180, %v2431
      %v2474 = vsub.f32 %v2185, %v2434
      %v2475 = vsub.f32 %v2261, %v2437
      %v2476 = vsub.f32 %v2266, %v2440
      %v2477 = vsub.f32 %v2342, %v2443
      %v2478 = vsub.f32 %v2347, %v2446
      %v2479 = vmul.f32 %v2447, 1.442695
      %v2480 = vpow.pop %v2479
      %v2481 = vmul.f32 %v2448, 1.442695
      %v2482 = vpow.pop %v2481
      %v2483 = vmul.f32 %v2449, 1.442695
      %v2484 = vpow.pop %v2483
      %v2485 = vmul.f32 %v2450, 1.442695
      %v2486 = vpow.pop %v2485
      %v2487 = vmul.f32 %v2451, 1.442695
      %v2488 = vpow.pop %v2487
      %v2489 = vmul.f32 %v2452, 1.442695
      %v2490 = vpow.pop %v2489
      %v2491 = vmul.f32 %v2453, 1.442695
      %v2492 = vpow.pop %v2491
      %v2493 = vmul.f32 %v2454, 1.442695
      %v2494 = vpow.pop %v2493
      %v2495 = vmul.f32 %v2455, 1.442695
      %v2496 = vpow.pop %v2495
      %v2497 = vmul.f32 %v2456, 1.442695
      %v2498 = vpow.pop %v2497
      %v2499 = vmul.f32 %v2457, 1.442695
      %v2500 = vpow.pop %v2499
      %v2501 = vmul.f32 %v2458, 1.442695
      %v2502 = vpow.pop %v2501
      %v2503 = vmul.f32 %v2459, 1.442695
      %v2504 = vpow.pop %v2503
      %v2505 = vmul.f32 %v2460, 1.442695
      %v2506 = vpow.pop %v2505
      %v2507 = vmul.f32 %v2461, 1.442695
      %v2508 = vpow.pop %v2507
      %v2509 = vmul.f32 %v2462, 1.442695
      %v2510 = vpow.pop %v2509
      %v2511 = vmul.f32 %v2463, 1.442695
      %v2512 = vpow.pop %v2511
      %v2513 = vmul.f32 %v2464, 1.442695
      %v2514 = vpow.pop %v2513
      %v2515 = vmul.f32 %v2465, 1.442695
      %v2516 = vpow.pop %v2515
      %v2517 = vmul.f32 %v2466, 1.442695
      %v2518 = vpow.pop %v2517
      %v2519 = vmul.f32 %v2467, 1.442695
      %v2520 = vpow.pop %v2519
      %v2521 = vmul.f32 %v2468, 1.442695
      %v2522 = vpow.pop %v2521
      %v2523 = vmul.f32 %v2469, 1.442695
      %v2524 = vpow.pop %v2523
      %v2525 = vmul.f32 %v2470, 1.442695
      %v2526 = vpow.pop %v2525
      %v2527 = vmul.f32 %v2471, 1.442695
      %v2528 = vpow.pop %v2527
      %v2529 = vmul.f32 %v2472, 1.442695
      %v2530 = vpow.pop %v2529
      %v2531 = vmul.f32 %v2473, 1.442695
      %v2532 = vpow.pop %v2531
      %v2533 = vmul.f32 %v2474, 1.442695
      %v2534 = vpow.pop %v2533
      %v2535 = vmul.f32 %v2475, 1.442695
      %v2536 = vpow.pop %v2535
      %v2537 = vmul.f32 %v2476, 1.442695
      %v2538 = vpow.pop %v2537
      %v2539 = vmul.f32 %v2477, 1.442695
      %v2540 = vpow.pop %v2539
      %v2541 = vmul.f32 %v2478, 1.442695
      %v2542 = vpow.pop %v2541
      %v2543 = vsel %vm2350, %v2480, 0.0
      %2544 = vadd.xlane.f32.xlu0 %v2543
      %v2545 = vpop.xlane.xlu0 %2544
      %v2546 = vsel %vm2350, %v2482, 0.0
      %2547 = vadd.xlane.f32.xlu0 %v2546
      %v2548 = vpop.xlane.xlu0 %2547
      %v2549 = vsel %vm2350, %v2484, 0.0
      %2550 = vadd.xlane.f32.xlu0 %v2549
      %v2551 = vpop.xlane.xlu0 %2550
      %v2552 = vsel %vm2350, %v2486, 0.0
      %2553 = vadd.xlane.f32.xlu0 %v2552
      %v2554 = vpop.xlane.xlu0 %2553
      %v2555 = vsel %vm2350, %v2488, 0.0
      %2556 = vadd.xlane.f32.xlu0 %v2555
      %v2557 = vpop.xlane.xlu0 %2556
      %v2558 = vsel %vm2350, %v2490, 0.0
      %2559 = vadd.xlane.f32.xlu0 %v2558
      %v2560 = vpop.xlane.xlu0 %2559
      %v2561 = vsel %vm2350, %v2492, 0.0
      %2562 = vadd.xlane.f32.xlu0 %v2561
      %v2563 = vpop.xlane.xlu0 %2562
      %v2564 = vsel %vm2350, %v2494, 0.0
      %2565 = vadd.xlane.f32.xlu0 %v2564
      %v2566 = vpop.xlane.xlu0 %2565
      %v2567 = vsel %vm2350, %v2496, 0.0
      %2568 = vadd.xlane.f32.xlu0 %v2567
      %v2569 = vpop.xlane.xlu0 %2568
      %v2570 = vsel %vm2350, %v2498, 0.0
      %2571 = vadd.xlane.f32.xlu0 %v2570
      %v2572 = vpop.xlane.xlu0 %2571
      %v2573 = vsel %vm2350, %v2500, 0.0
      %2574 = vadd.xlane.f32.xlu0 %v2573
      %v2575 = vpop.xlane.xlu0 %2574
      %v2576 = vsel %vm2350, %v2502, 0.0
      %2577 = vadd.xlane.f32.xlu0 %v2576
      %v2578 = vpop.xlane.xlu0 %2577
      %v2579 = vsel %vm2350, %v2504, 0.0
      %2580 = vadd.xlane.f32.xlu0 %v2579
      %v2581 = vpop.xlane.xlu0 %2580
      %v2582 = vsel %vm2350, %v2506, 0.0
      %2583 = vadd.xlane.f32.xlu0 %v2582
      %v2584 = vpop.xlane.xlu0 %2583
      %v2585 = vsel %vm2350, %v2508, 0.0
      %2586 = vadd.xlane.f32.xlu0 %v2585
      %v2587 = vpop.xlane.xlu0 %2586
      %v2588 = vsel %vm2350, %v2510, 0.0
      %2589 = vadd.xlane.f32.xlu0 %v2588
      %v2590 = vpop.xlane.xlu0 %2589
      %v2591 = vsel %vm2350, %v2512, 0.0
      %2592 = vadd.xlane.f32.xlu0 %v2591
      %v2593 = vpop.xlane.xlu0 %2592
      %v2594 = vsel %vm2350, %v2514, 0.0
      %2595 = vadd.xlane.f32.xlu0 %v2594
      %v2596 = vpop.xlane.xlu0 %2595
      %v2597 = vsel %vm2350, %v2516, 0.0
      %2598 = vadd.xlane.f32.xlu0 %v2597
      %v2599 = vpop.xlane.xlu0 %2598
      %v2600 = vsel %vm2350, %v2518, 0.0
      %2601 = vadd.xlane.f32.xlu0 %v2600
      %v2602 = vpop.xlane.xlu0 %2601
      %v2603 = vsel %vm2350, %v2520, 0.0
      %2604 = vadd.xlane.f32.xlu0 %v2603
      %v2605 = vpop.xlane.xlu0 %2604
      %v2606 = vsel %vm2350, %v2522, 0.0
      %2607 = vadd.xlane.f32.xlu0 %v2606
      %v2608 = vpop.xlane.xlu0 %2607
      %v2609 = vsel %vm2350, %v2524, 0.0
      %2610 = vadd.xlane.f32.xlu0 %v2609
      %v2611 = vpop.xlane.xlu0 %2610
      %v2612 = vsel %vm2350, %v2526, 0.0
      %2613 = vadd.xlane.f32.xlu0 %v2612
      %v2614 = vpop.xlane.xlu0 %2613
      %v2615 = vsel %vm2350, %v2528, 0.0
      %2616 = vadd.xlane.f32.xlu0 %v2615
      %v2617 = vpop.xlane.xlu0 %2616
      %v2618 = vsel %vm2350, %v2530, 0.0
      %2619 = vadd.xlane.f32.xlu0 %v2618
      %v2620 = vpop.xlane.xlu0 %2619
      %v2621 = vsel %vm2350, %v2532, 0.0
      %2622 = vadd.xlane.f32.xlu0 %v2621
      %v2623 = vpop.xlane.xlu0 %2622
      %v2624 = vsel %vm2350, %v2534, 0.0
      %2625 = vadd.xlane.f32.xlu0 %v2624
      %v2626 = vpop.xlane.xlu0 %2625
      %v2627 = vsel %vm2350, %v2536, 0.0
      %2628 = vadd.xlane.f32.xlu0 %v2627
      %v2629 = vpop.xlane.xlu0 %2628
      %v2630 = vsel %vm2350, %v2538, 0.0
      %2631 = vadd.xlane.f32.xlu0 %v2630
      %v2632 = vpop.xlane.xlu0 %2631
      %v2633 = vsel %vm2350, %v2540, 0.0
      %2634 = vadd.xlane.f32.xlu0 %v2633
      %v2635 = vpop.xlane.xlu0 %2634
      %v2636 = vsel %vm2350, %v2542, 0.0
      %2637 = vadd.xlane.f32.xlu0 %v2636
      %v2638 = vpop.xlane.xlu0 %2637
      %v2639 = vrcp.pop %v2545
      %v2640 = vrcp.pop %v2548
      %v2641 = vrcp.pop %v2551
      %v2642 = vrcp.pop %v2554
      %v2643 = vrcp.pop %v2557
      %v2644 = vrcp.pop %v2560
      %v2645 = vrcp.pop %v2563
      %v2646 = vrcp.pop %v2566
      %v2647 = vrcp.pop %v2569
      %v2648 = vrcp.pop %v2572
      %v2649 = vrcp.pop %v2575
      %v2650 = vrcp.pop %v2578
      %v2651 = vrcp.pop %v2581
      %v2652 = vrcp.pop %v2584
      %v2653 = vrcp.pop %v2587
      %v2654 = vrcp.pop %v2590
      %v2655 = vrcp.pop %v2593
      %v2656 = vrcp.pop %v2596
      %v2657 = vrcp.pop %v2599
      %v2658 = vrcp.pop %v2602
      %v2659 = vrcp.pop %v2605
      %v2660 = vrcp.pop %v2608
      %v2661 = vrcp.pop %v2611
      %v2662 = vrcp.pop %v2614
      %v2663 = vrcp.pop %v2617
      %v2664 = vrcp.pop %v2620
      %v2665 = vrcp.pop %v2623
      %v2666 = vrcp.pop %v2626
      %v2667 = vrcp.pop %v2629
      %v2668 = vrcp.pop %v2632
      %v2669 = vrcp.pop %v2635
      %v2670 = vrcp.pop %v2638
      %v2671 = vmul.f32 %v2480, %v2639
      %v2672 = vmul.f32 %v2482, %v2640
      %v2673 = vmul.f32 %v2484, %v2641
      %v2674 = vmul.f32 %v2486, %v2642
      %v2675 = vmul.f32 %v2488, %v2643
      %v2676 = vmul.f32 %v2490, %v2644
      %v2677 = vmul.f32 %v2492, %v2645
      %v2678 = vmul.f32 %v2494, %v2646
      %v2679 = vmul.f32 %v2496, %v2647
      %v2680 = vmul.f32 %v2498, %v2648
      %v2681 = vmul.f32 %v2500, %v2649
      %v2682 = vmul.f32 %v2502, %v2650
      %v2683 = vmul.f32 %v2504, %v2651
      %v2684 = vmul.f32 %v2506, %v2652
      %v2685 = vmul.f32 %v2508, %v2653
      %v2686 = vmul.f32 %v2510, %v2654
      %v2687 = vmul.f32 %v2512, %v2655
      %v2688 = vmul.f32 %v2514, %v2656
      %v2689 = vmul.f32 %v2516, %v2657
      %v2690 = vmul.f32 %v2518, %v2658
      %v2691 = vmul.f32 %v2520, %v2659
      %v2692 = vmul.f32 %v2522, %v2660
      %v2693 = vmul.f32 %v2524, %v2661
      %v2694 = vmul.f32 %v2526, %v2662
      %v2695 = vmul.f32 %v2528, %v2663
      %v2696 = vmul.f32 %v2530, %v2664
      %v2697 = vmul.f32 %v2532, %v2665
      %v2698 = vmul.f32 %v2534, %v2666
      %v2699 = vmul.f32 %v2536, %v2667
      %v2700 = vmul.f32 %v2538, %v2668
      %v2701 = vmul.f32 %v2540, %v2669
      %v2702 = vmul.f32 %v2542, %v2670
      %v2704 = vsel %vm2350, %v2671, 0
      %v2707 = vsel %vm2350, %v2672, 0
      %2709 = vmatprep.subr.mxu0 0.0
      %2710 = vmatpush1.msra.mxu0 %v312
      %2711 = vmatprep.subr.mxu0 0.0
      %2712 = vmatpush1.msra.mxu0 %v448
      %2713 = vmatprep.subr.mxu0 0.0
      %2714 = vmatpush1.msra.mxu0 0.0
      %2715 = vmatprep.subr.mxu0 0.0
      %2716 = vmatpush1.msra.mxu0 0.0
      %2717 = vmatprep.subr.mxu0 0.0
      %2718 = vmatpush1.msra.mxu0 0.0
      %2719 = vmatprep.subr.mxu0 0.0
      %2720 = vmatpush1.msra.mxu0 0.0
      %2721 = vmatprep.subr.mxu0 0.0
      %2722 = vmatpush1.msra.mxu0 0.0
      %2723 = vmatprep.subr.mxu0 0.0
      %2724 = vmatpush1.msra.mxu0 0.0
      %2725 = vmatprep.subr.mxu0 0.0
      %2726 = vmatpush1.msra.mxu0 0.0
      %2727 = vmatprep.subr.mxu0 0.0
      %2728 = vmatpush1.msra.mxu0 0.0
      %2729 = vmatprep.subr.mxu0 0.0
      %2730 = vmatpush1.msra.mxu0 0.0
      %2731 = vmatprep.subr.mxu0 0.0
      %2732 = vmatpush1.msra.mxu0 0.0
      %2733 = vmatprep.subr.mxu0 0.0
      %2734 = vmatpush1.msra.mxu0 0.0
      %2735 = vmatprep.subr.mxu0 0.0
      %2736 = vmatpush1.msra.mxu0 0.0
      %2737 = vmatprep.subr.mxu0 0.0
      %2738 = vmatpush1.msra.mxu0 0.0
      %2739 = vmatprep.subr.mxu0 0.0
      %2740 = vmatpush1.msra.mxu0 0.0
      %2741 = vmatprep.subr.mxu0 0.0
      %2742 = vmatpush1.msra.mxu0 0.0
      %2743 = vmatprep.subr.mxu0 0.0
      %2744 = vmatpush1.msra.mxu0 0.0
      %2745 = vmatprep.subr.mxu0 0.0
      %2746 = vmatpush1.msra.mxu0 0.0
      %2747 = vmatprep.subr.mxu0 0.0
      %2748 = vmatpush1.msra.mxu0 0.0
      %2749 = vmatprep.subr.mxu0 0.0
      %2750 = vmatpush1.msra.mxu0 0.0
      %2751 = vmatprep.subr.mxu0 0.0
      %2752 = vmatpush1.msra.mxu0 0.0
      %2753 = vmatprep.subr.mxu0 0.0
      %2754 = vmatpush1.msra.mxu0 0.0
      %2755 = vmatprep.subr.mxu0 0.0
      %2756 = vmatpush1.msra.mxu0 0.0
      %2757 = vmatprep.subr.mxu0 0.0
      %2758 = vmatpush1.msra.mxu0 0.0
      %2759 = vmatprep.subr.mxu0 0.0
      %2760 = vmatpush1.msra.mxu0 0.0
      %2761 = vmatprep.subr.mxu0 0.0
      %2762 = vmatpush1.msra.mxu0 0.0
      %2763 = vmatprep.subr.mxu0 0.0
      %2764 = vmatpush1.msra.mxu0 0.0
      %2765 = vmatprep.subr.mxu0 0.0
      %2766 = vmatpush1.msra.mxu0 0.0
      %2767 = vmatprep.subr.mxu0 0.0
      %2768 = vmatpush1.msra.mxu0 0.0
      %2769 = vmatprep.subr.mxu0 0.0
      %2770 = vmatpush1.msra.mxu0 0.0
      %2771 = vmatprep.subr.mxu0 0.0
      %2772 = vmatpush1.msra.mxu0 0.0
      %2773 = vmatprep.mubr.f32.mxu0 0.0
      %2774 = vmatmul.mubr.f32.gmra.mrb[0].mxu0 %v2704
      %v2775 = vpop.f32.mrb[0].mxu0
      %v2776 = vadd.f32 0.0, %v2775
      %v2777 = vpop.f32.mrb[0].mxu0
      %2778 = vmatprep.mubr.f32.mxu0 0.0
      %2779 = vmatmul.mubr.f32.gmra.mrb[0].mxu0 %v2707
      %v2780 = vpop.f32.mrb[0].mxu0
      %v2781 = vadd.f32 0.0, %v2780
      %v2782 = vpop.f32.mrb[0].mxu0
      %2783 = vdwg.mxu0
      %v2785 = vsel %vm2350, %v2673, 0
      %v2788 = vsel %vm2350, %v2674, 0
      %2790 = vmatprep.subr.mxu0 0.0
      %2791 = vmatpush1.msra.mxu0 %v313
      %2792 = vmatprep.subr.mxu0 0.0
      %2793 = vmatpush1.msra.mxu0 %v449
      %2794 = vmatprep.subr.mxu0 0.0
      %2795 = vmatpush1.msra.mxu0 0.0
      %2796 = vmatprep.subr.mxu0 0.0
      %2797 = vmatpush1.msra.mxu0 0.0
      %2798 = vmatprep.subr.mxu0 0.0
      %2799 = vmatpush1.msra.mxu0 0.0
      %2800 = vmatprep.subr.mxu0 0.0
      %2801 = vmatpush1.msra.mxu0 0.0
      %2802 = vmatprep.subr.mxu0 0.0
      %2803 = vmatpush1.msra.mxu0 0.0
      %2804 = vmatprep.subr.mxu0 0.0
      %2805 = vmatpush1.msra.mxu0 0.0
      %2806 = vmatprep.subr.mxu0 0.0
      %2807 = vmatpush1.msra.mxu0 0.0
      %2808 = vmatprep.subr.mxu0 0.0
      %2809 = vmatpush1.msra.mxu0 0.0
      %2810 = vmatprep.subr.mxu0 0.0
      %2811 = vmatpush1.msra.mxu0 0.0
      %2812 = vmatprep.subr.mxu0 0.0
      %2813 = vmatpush1.msra.mxu0 0.0
      %2814 = vmatprep.subr.mxu0 0.0
      %2815 = vmatpush1.msra.mxu0 0.0
      %2816 = vmatprep.subr.mxu0 0.0
      %2817 = vmatpush1.msra.mxu0 0.0
      %2818 = vmatprep.subr.mxu0 0.0
      %2819 = vmatpush1.msra.mxu0 0.0
      %2820 = vmatprep.subr.mxu0 0.0
      %2821 = vmatpush1.msra.mxu0 0.0
      %2822 = vmatprep.subr.mxu0 0.0
      %2823 = vmatpush1.msra.mxu0 0.0
      %2824 = vmatprep.subr.mxu0 0.0
      %2825 = vmatpush1.msra.mxu0 0.0
      %2826 = vmatprep.subr.mxu0 0.0
      %2827 = vmatpush1.msra.mxu0 0.0
      %2828 = vmatprep.subr.mxu0 0.0
      %2829 = vmatpush1.msra.mxu0 0.0
      %2830 = vmatprep.subr.mxu0 0.0
      %2831 = vmatpush1.msra.mxu0 0.0
      %2832 = vmatprep.subr.mxu0 0.0
      %2833 = vmatpush1.msra.mxu0 0.0
      %2834 = vmatprep.subr.mxu0 0.0
      %2835 = vmatpush1.msra.mxu0 0.0
      %2836 = vmatprep.subr.mxu0 0.0
      %2837 = vmatpush1.msra.mxu0 0.0
      %2838 = vmatprep.subr.mxu0 0.0
      %2839 = vmatpush1.msra.mxu0 0.0
      %2840 = vmatprep.subr.mxu0 0.0
      %2841 = vmatpush1.msra.mxu0 0.0
      %2842 = vmatprep.subr.mxu0 0.0
      %2843 = vmatpush1.msra.mxu0 0.0
      %2844 = vmatprep.subr.mxu0 0.0
      %2845 = vmatpush1.msra.mxu0 0.0
      %2846 = vmatprep.subr.mxu0 0.0
      %2847 = vmatpush1.msra.mxu0 0.0
      %2848 = vmatprep.subr.mxu0 0.0
      %2849 = vmatpush1.msra.mxu0 0.0
      %2850 = vmatprep.subr.mxu0 0.0
      %2851 = vmatpush1.msra.mxu0 0.0
      %2852 = vmatprep.subr.mxu0 0.0
      %2853 = vmatpush1.msra.mxu0 0.0
      %2854 = vmatprep.mubr.f32.mxu0 0.0
      %2855 = vmatmul.mubr.f32.gmra.mrb[0].mxu0 %v2785
      %v2856 = vpop.f32.mrb[0].mxu0
      %v2857 = vadd.f32 0.0, %v2856
      %v2858 = vpop.f32.mrb[0].mxu0
      %2859 = vmatprep.mubr.f32.mxu0 0.0
      %2860 = vmatmul.mubr.f32.gmra.mrb[0].mxu0 %v2788
      %v2861 = vpop.f32.mrb[0].mxu0
      %v2862 = vadd.f32 0.0, %v2861
      %v2863 = vpop.f32.mrb[0].mxu0
      %2864 = vdwg.mxu0
      %v2866 = vsel %vm2350, %v2675, 0
      %v2869 = vsel %vm2350, %v2676, 0
      %2871 = vmatprep.subr.mxu0 0.0
      %2872 = vmatpush1.msra.mxu0 %v314
      %2873 = vmatprep.subr.mxu0 0.0
      %2874 = vmatpush1.msra.mxu0 %v450
      %2875 = vmatprep.subr.mxu0 0.0
      %2876 = vmatpush1.msra.mxu0 0.0
      %2877 = vmatprep.subr.mxu0 0.0
      %2878 = vmatpush1.msra.mxu0 0.0
      %2879 = vmatprep.subr.mxu0 0.0
      %2880 = vmatpush1.msra.mxu0 0.0
      %2881 = vmatprep.subr.mxu0 0.0
      %2882 = vmatpush1.msra.mxu0 0.0
      %2883 = vmatprep.subr.mxu0 0.0
      %2884 = vmatpush1.msra.mxu0 0.0
      %2885 = vmatprep.subr.mxu0 0.0
      %2886 = vmatpush1.msra.mxu0 0.0
      %2887 = vmatprep.subr.mxu0 0.0
      %2888 = vmatpush1.msra.mxu0 0.0
      %2889 = vmatprep.subr.mxu0 0.0
      %2890 = vmatpush1.msra.mxu0 0.0
      %2891 = vmatprep.subr.mxu0 0.0
      %2892 = vmatpush1.msra.mxu0 0.0
      %2893 = vmatprep.subr.mxu0 0.0
      %2894 = vmatpush1.msra.mxu0 0.0
      %2895 = vmatprep.subr.mxu0 0.0
      %2896 = vmatpush1.msra.mxu0 0.0
      %2897 = vmatprep.subr.mxu0 0.0
      %2898 = vmatpush1.msra.mxu0 0.0
      %2899 = vmatprep.subr.mxu0 0.0
      %2900 = vmatpush1.msra.mxu0 0.0
      %2901 = vmatprep.subr.mxu0 0.0
      %2902 = vmatpush1.msra.mxu0 0.0
      %2903 = vmatprep.subr.mxu0 0.0
      %2904 = vmatpush1.msra.mxu0 0.0
      %2905 = vmatprep.subr.mxu0 0.0
      %2906 = vmatpush1.msra.mxu0 0.0
      %2907 = vmatprep.subr.mxu0 0.0
      %2908 = vmatpush1.msra.mxu0 0.0
      %2909 = vmatprep.subr.mxu0 0.0
      %2910 = vmatpush1.msra.mxu0 0.0
      %2911 = vmatprep.subr.mxu0 0.0
      %2912 = vmatpush1.msra.mxu0 0.0
      %2913 = vmatprep.subr.mxu0 0.0
      %2914 = vmatpush1.msra.mxu0 0.0
      %2915 = vmatprep.subr.mxu0 0.0
      %2916 = vmatpush1.msra.mxu0 0.0
      %2917 = vmatprep.subr.mxu0 0.0
      %2918 = vmatpush1.msra.mxu0 0.0
      %2919 = vmatprep.subr.mxu0 0.0
      %2920 = vmatpush1.msra.mxu0 0.0
      %2921 = vmatprep.subr.mxu0 0.0
      %2922 = vmatpush1.msra.mxu0 0.0
      %2923 = vmatprep.subr.mxu0 0.0
      %2924 = vmatpush1.msra.mxu0 0.0
      %2925 = vmatprep.subr.mxu0 0.0
      %2926 = vmatpush1.msra.mxu0 0.0
      %2927 = vmatprep.subr.mxu0 0.0
      %2928 = vmatpush1.msra.mxu0 0.0
      %2929 = vmatprep.subr.mxu0 0.0
      %2930 = vmatpush1.msra.mxu0 0.0
      %2931 = vmatprep.subr.mxu0 0.0
      %2932 = vmatpush1.msra.mxu0 0.0
      %2933 = vmatprep.subr.mxu0 0.0
      %2934 = vmatpush1.msra.mxu0 0.0
      %2935 = vmatprep.mubr.f32.mxu0 0.0
      %2936 = vmatmul.mubr.f32.gmra.mrb[0].mxu0 %v2866
      %v2937 = vpop.f32.mrb[0].mxu0
      %v2938 = vadd.f32 0.0, %v2937
      %v2939 = vpop.f32.mrb[0].mxu0
      %2940 = vmatprep.mubr.f32.mxu0 0.0
      %2941 = vmatmul.mubr.f32.gmra.mrb[0].mxu0 %v2869
      %v2942 = vpop.f32.mrb[0].mxu0
      %v2943 = vadd.f32 0.0, %v2942
      %v2944 = vpop.f32.mrb[0].mxu0
      %2945 = vdwg.mxu0
      %v2947 = vsel %vm2350, %v2677, 0
      %v2950 = vsel %vm2350, %v2678, 0
      %2952 = vmatprep.subr.mxu0 0.0
      %2953 = vmatpush1.msra.mxu0 %v315
      %2954 = vmatprep.subr.mxu0 0.0
      %2955 = vmatpush1.msra.mxu0 %v451
      %2956 = vmatprep.subr.mxu0 0.0
      %2957 = vmatpush1.msra.mxu0 0.0
      %2958 = vmatprep.subr.mxu0 0.0
      %2959 = vmatpush1.msra.mxu0 0.0
      %2960 = vmatprep.subr.mxu0 0.0
      %2961 = vmatpush1.msra.mxu0 0.0
      %2962 = vmatprep.subr.mxu0 0.0
      %2963 = vmatpush1.msra.mxu0 0.0
      %2964 = vmatprep.subr.mxu0 0.0
      %2965 = vmatpush1.msra.mxu0 0.0
      %2966 = vmatprep.subr.mxu0 0.0
      %2967 = vmatpush1.msra.mxu0 0.0
      %2968 = vmatprep.subr.mxu0 0.0
      %2969 = vmatpush1.msra.mxu0 0.0
      %2970 = vmatprep.subr.mxu0 0.0
      %2971 = vmatpush1.msra.mxu0 0.0
      %2972 = vmatprep.subr.mxu0 0.0
      %2973 = vmatpush1.msra.mxu0 0.0
      %2974 = vmatprep.subr.mxu0 0.0
      %2975 = vmatpush1.msra.mxu0 0.0
      %2976 = vmatprep.subr.mxu0 0.0
      %2977 = vmatpush1.msra.mxu0 0.0
      %2978 = vmatprep.subr.mxu0 0.0
      %2979 = vmatpush1.msra.mxu0 0.0
      %2980 = vmatprep.subr.mxu0 0.0
      %2981 = vmatpush1.msra.mxu0 0.0
      %2982 = vmatprep.subr.mxu0 0.0
      %2983 = vmatpush1.msra.mxu0 0.0
      %2984 = vmatprep.subr.mxu0 0.0
      %2985 = vmatpush1.msra.mxu0 0.0
      %2986 = vmatprep.subr.mxu0 0.0
      %2987 = vmatpush1.msra.mxu0 0.0
      %2988 = vmatprep.subr.mxu0 0.0
      %2989 = vmatpush1.msra.mxu0 0.0
      %2990 = vmatprep.subr.mxu0 0.0
      %2991 = vmatpush1.msra.mxu0 0.0
      %2992 = vmatprep.subr.mxu0 0.0
      %2993 = vmatpush1.msra.mxu0 0.0
      %2994 = vmatprep.subr.mxu0 0.0
      %2995 = vmatpush1.msra.mxu0 0.0
      %2996 = vmatprep.subr.mxu0 0.0
      %2997 = vmatpush1.msra.mxu0 0.0
      %2998 = vmatprep.subr.mxu0 0.0
      %2999 = vmatpush1.msra.mxu0 0.0
      %3000 = vmatprep.subr.mxu0 0.0
      %3001 = vmatpush1.msra.mxu0 0.0
      %3002 = vmatprep.subr.mxu0 0.0
      %3003 = vmatpush1.msra.mxu0 0.0
      %3004 = vmatprep.subr.mxu0 0.0
      %3005 = vmatpush1.msra.mxu0 0.0
      %3006 = vmatprep.subr.mxu0 0.0
      %3007 = vmatpush1.msra.mxu0 0.0
      %3008 = vmatprep.subr.mxu0 0.0
      %3009 = vmatpush1.msra.mxu0 0.0
      %3010 = vmatprep.subr.mxu0 0.0
      %3011 = vmatpush1.msra.mxu0 0.0
      %3012 = vmatprep.subr.mxu0 0.0
      %3013 = vmatpush1.msra.mxu0 0.0
      %3014 = vmatprep.subr.mxu0 0.0
      %3015 = vmatpush1.msra.mxu0 0.0
      %3016 = vmatprep.mubr.f32.mxu0 0.0
      %3017 = vmatmul.mubr.f32.gmra.mrb[0].mxu0 %v2947
      %v3018 = vpop.f32.mrb[0].mxu0
      %v3019 = vadd.f32 0.0, %v3018
      %v3020 = vpop.f32.mrb[0].mxu0
      %3021 = vmatprep.mubr.f32.mxu0 0.0
      %3022 = vmatmul.mubr.f32.gmra.mrb[0].mxu0 %v2950
      %v3023 = vpop.f32.mrb[0].mxu0
      %v3024 = vadd.f32 0.0, %v3023
      %v3025 = vpop.f32.mrb[0].mxu0
      %3026 = vdwg.mxu0
      %v3028 = vsel %vm2350, %v2679, 0
      %v3031 = vsel %vm2350, %v2680, 0
      %3033 = vmatprep.subr.mxu0 0.0
      %3034 = vmatpush1.msra.mxu0 %v316
      %3035 = vmatprep.subr.mxu0 0.0
      %3036 = vmatpush1.msra.mxu0 %v452
      %3037 = vmatprep.subr.mxu0 0.0
      %3038 = vmatpush1.msra.mxu0 0.0
      %3039 = vmatprep.subr.mxu0 0.0
      %3040 = vmatpush1.msra.mxu0 0.0
      %3041 = vmatprep.subr.mxu0 0.0
      %3042 = vmatpush1.msra.mxu0 0.0
      %3043 = vmatprep.subr.mxu0 0.0
      %3044 = vmatpush1.msra.mxu0 0.0
      %3045 = vmatprep.subr.mxu0 0.0
      %3046 = vmatpush1.msra.mxu0 0.0
      %3047 = vmatprep.subr.mxu0 0.0
      %3048 = vmatpush1.msra.mxu0 0.0
      %3049 = vmatprep.subr.mxu0 0.0
      %3050 = vmatpush1.msra.mxu0 0.0
      %3051 = vmatprep.subr.mxu0 0.0
      %3052 = vmatpush1.msra.mxu0 0.0
      %3053 = vmatprep.subr.mxu0 0.0
      %3054 = vmatpush1.msra.mxu0 0.0
      %3055 = vmatprep.subr.mxu0 0.0
      %3056 = vmatpush1.msra.mxu0 0.0
      %3057 = vmatprep.subr.mxu0 0.0
      %3058 = vmatpush1.msra.mxu0 0.0
      %3059 = vmatprep.subr.mxu0 0.0
      %3060 = vmatpush1.msra.mxu0 0.0
      %3061 = vmatprep.subr.mxu0 0.0
      %3062 = vmatpush1.msra.mxu0 0.0
      %3063 = vmatprep.subr.mxu0 0.0
      %3064 = vmatpush1.msra.mxu0 0.0
      %3065 = vmatprep.subr.mxu0 0.0
      %3066 = vmatpush1.msra.mxu0 0.0
      %3067 = vmatprep.subr.mxu0 0.0
      %3068 = vmatpush1.msra.mxu0 0.0
      %3069 = vmatprep.subr.mxu0 0.0
      %3070 = vmatpush1.msra.mxu0 0.0
      %3071 = vmatprep.subr.mxu0 0.0
      %3072 = vmatpush1.msra.mxu0 0.0
      %3073 = vmatprep.subr.mxu0 0.0
      %3074 = vmatpush1.msra.mxu0 0.0
      %3075 = vmatprep.subr.mxu0 0.0
      %3076 = vmatpush1.msra.mxu0 0.0
      %3077 = vmatprep.subr.mxu0 0.0
      %3078 = vmatpush1.msra.mxu0 0.0
      %3079 = vmatprep.subr.mxu0 0.0
      %3080 = vmatpush1.msra.mxu0 0.0
      %3081 = vmatprep.subr.mxu0 0.0
      %3082 = vmatpush1.msra.mxu0 0.0
      %3083 = vmatprep.subr.mxu0 0.0
      %3084 = vmatpush1.msra.mxu0 0.0
      %3085 = vmatprep.subr.mxu0 0.0
      %3086 = vmatpush1.msra.mxu0 0.0
      %3087 = vmatprep.subr.mxu0 0.0
      %3088 = vmatpush1.msra.mxu0 0.0
      %3089 = vmatprep.subr.mxu0 0.0
      %3090 = vmatpush1.msra.mxu0 0.0
      %3091 = vmatprep.subr.mxu0 0.0
      %3092 = vmatpush1.msra.mxu0 0.0
      %3093 = vmatprep.subr.mxu0 0.0
      %3094 = vmatpush1.msra.mxu0 0.0
      %3095 = vmatprep.subr.mxu0 0.0
      %3096 = vmatpush1.msra.mxu0 0.0
      %3097 = vmatprep.mubr.f32.mxu0 0.0
      %3098 = vmatmul.mubr.f32.gmra.mrb[0].mxu0 %v3028
      %v3099 = vpop.f32.mrb[0].mxu0
      %v3100 = vadd.f32 0.0, %v3099
      %v3101 = vpop.f32.mrb[0].mxu0
      %3102 = vmatprep.mubr.f32.mxu0 0.0
      %3103 = vmatmul.mubr.f32.gmra.mrb[0].mxu0 %v3031
      %v3104 = vpop.f32.mrb[0].mxu0
      %v3105 = vadd.f32 0.0, %v3104
      %v3106 = vpop.f32.mrb[0].mxu0
      %3107 = vdwg.mxu0
      %v3109 = vsel %vm2350, %v2681, 0
      %v3112 = vsel %vm2350, %v2682, 0
      %3114 = vmatprep.subr.mxu0 0.0
      %3115 = vmatpush1.msra.mxu0 %v317
      %3116 = vmatprep.subr.mxu0 0.0
      %3117 = vmatpush1.msra.mxu0 %v453
      %3118 = vmatprep.subr.mxu0 0.0
      %3119 = vmatpush1.msra.mxu0 0.0
      %3120 = vmatprep.subr.mxu0 0.0
      %3121 = vmatpush1.msra.mxu0 0.0
      %3122 = vmatprep.subr.mxu0 0.0
      %3123 = vmatpush1.msra.mxu0 0.0
      %3124 = vmatprep.subr.mxu0 0.0
      %3125 = vmatpush1.msra.mxu0 0.0
      %3126 = vmatprep.subr.mxu0 0.0
      %3127 = vmatpush1.msra.mxu0 0.0
      %3128 = vmatprep.subr.mxu0 0.0
      %3129 = vmatpush1.msra.mxu0 0.0
      %3130 = vmatprep.subr.mxu0 0.0
      %3131 = vmatpush1.msra.mxu0 0.0
      %3132 = vmatprep.subr.mxu0 0.0
      %3133 = vmatpush1.msra.mxu0 0.0
      %3134 = vmatprep.subr.mxu0 0.0
      %3135 = vmatpush1.msra.mxu0 0.0
      %3136 = vmatprep.subr.mxu0 0.0
      %3137 = vmatpush1.msra.mxu0 0.0
      %3138 = vmatprep.subr.mxu0 0.0
      %3139 = vmatpush1.msra.mxu0 0.0
      %3140 = vmatprep.subr.mxu0 0.0
      %3141 = vmatpush1.msra.mxu0 0.0
      %3142 = vmatprep.subr.mxu0 0.0
      %3143 = vmatpush1.msra.mxu0 0.0
      %3144 = vmatprep.subr.mxu0 0.0
      %3145 = vmatpush1.msra.mxu0 0.0
      %3146 = vmatprep.subr.mxu0 0.0
      %3147 = vmatpush1.msra.mxu0 0.0
      %3148 = vmatprep.subr.mxu0 0.0
      %3149 = vmatpush1.msra.mxu0 0.0
      %3150 = vmatprep.subr.mxu0 0.0
      %3151 = vmatpush1.msra.mxu0 0.0
      %3152 = vmatprep.subr.mxu0 0.0
      %3153 = vmatpush1.msra.mxu0 0.0
      %3154 = vmatprep.subr.mxu0 0.0
      %3155 = vmatpush1.msra.mxu0 0.0
      %3156 = vmatprep.subr.mxu0 0.0
      %3157 = vmatpush1.msra.mxu0 0.0
      %3158 = vmatprep.subr.mxu0 0.0
      %3159 = vmatpush1.msra.mxu0 0.0
      %3160 = vmatprep.subr.mxu0 0.0
      %3161 = vmatpush1.msra.mxu0 0.0
      %3162 = vmatprep.subr.mxu0 0.0
      %3163 = vmatpush1.msra.mxu0 0.0
      %3164 = vmatprep.subr.mxu0 0.0
      %3165 = vmatpush1.msra.mxu0 0.0
      %3166 = vmatprep.subr.mxu0 0.0
      %3167 = vmatpush1.msra.mxu0 0.0
      %3168 = vmatprep.subr.mxu0 0.0
      %3169 = vmatpush1.msra.mxu0 0.0
      %3170 = vmatprep.subr.mxu0 0.0
      %3171 = vmatpush1.msra.mxu0 0.0
      %3172 = vmatprep.subr.mxu0 0.0
      %3173 = vmatpush1.msra.mxu0 0.0
      %3174 = vmatprep.subr.mxu0 0.0
      %3175 = vmatpush1.msra.mxu0 0.0
      %3176 = vmatprep.subr.mxu0 0.0
      %3177 = vmatpush1.msra.mxu0 0.0
      %3178 = vmatprep.mubr.f32.mxu0 0.0
      %3179 = vmatmul.mubr.f32.gmra.mrb[0].mxu0 %v3109
      %v3180 = vpop.f32.mrb[0].mxu0
      %v3181 = vadd.f32 0.0, %v3180
      %v3182 = vpop.f32.mrb[0].mxu0
      %3183 = vmatprep.mubr.f32.mxu0 0.0
      %3184 = vmatmul.mubr.f32.gmra.mrb[0].mxu0 %v3112
      %v3185 = vpop.f32.mrb[0].mxu0
      %v3186 = vadd.f32 0.0, %v3185
      %v3187 = vpop.f32.mrb[0].mxu0
      %3188 = vdwg.mxu0
      %v3190 = vsel %vm2350, %v2683, 0
      %v3193 = vsel %vm2350, %v2684, 0
      %3195 = vmatprep.subr.mxu0 0.0
      %3196 = vmatpush1.msra.mxu0 %v318
      %3197 = vmatprep.subr.mxu0 0.0
      %3198 = vmatpush1.msra.mxu0 %v454
      %3199 = vmatprep.subr.mxu0 0.0
      %3200 = vmatpush1.msra.mxu0 0.0
      %3201 = vmatprep.subr.mxu0 0.0
      %3202 = vmatpush1.msra.mxu0 0.0
      %3203 = vmatprep.subr.mxu0 0.0
      %3204 = vmatpush1.msra.mxu0 0.0
      %3205 = vmatprep.subr.mxu0 0.0
      %3206 = vmatpush1.msra.mxu0 0.0
      %3207 = vmatprep.subr.mxu0 0.0
      %3208 = vmatpush1.msra.mxu0 0.0
      %3209 = vmatprep.subr.mxu0 0.0
      %3210 = vmatpush1.msra.mxu0 0.0
      %3211 = vmatprep.subr.mxu0 0.0
      %3212 = vmatpush1.msra.mxu0 0.0
      %3213 = vmatprep.subr.mxu0 0.0
      %3214 = vmatpush1.msra.mxu0 0.0
      %3215 = vmatprep.subr.mxu0 0.0
      %3216 = vmatpush1.msra.mxu0 0.0
      %3217 = vmatprep.subr.mxu0 0.0
      %3218 = vmatpush1.msra.mxu0 0.0
      %3219 = vmatprep.subr.mxu0 0.0
      %3220 = vmatpush1.msra.mxu0 0.0
      %3221 = vmatprep.subr.mxu0 0.0
      %3222 = vmatpush1.msra.mxu0 0.0
      %3223 = vmatprep.subr.mxu0 0.0
      %3224 = vmatpush1.msra.mxu0 0.0
      %3225 = vmatprep.subr.mxu0 0.0
      %3226 = vmatpush1.msra.mxu0 0.0
      %3227 = vmatprep.subr.mxu0 0.0
      %3228 = vmatpush1.msra.mxu0 0.0
      %3229 = vmatprep.subr.mxu0 0.0
      %3230 = vmatpush1.msra.mxu0 0.0
      %3231 = vmatprep.subr.mxu0 0.0
      %3232 = vmatpush1.msra.mxu0 0.0
      %3233 = vmatprep.subr.mxu0 0.0
      %3234 = vmatpush1.msra.mxu0 0.0
      %3235 = vmatprep.subr.mxu0 0.0
      %3236 = vmatpush1.msra.mxu0 0.0
      %3237 = vmatprep.subr.mxu0 0.0
      %3238 = vmatpush1.msra.mxu0 0.0
      %3239 = vmatprep.subr.mxu0 0.0
      %3240 = vmatpush1.msra.mxu0 0.0
      %3241 = vmatprep.subr.mxu0 0.0
      %3242 = vmatpush1.msra.mxu0 0.0
      %3243 = vmatprep.subr.mxu0 0.0
      %3244 = vmatpush1.msra.mxu0 0.0
      %3245 = vmatprep.subr.mxu0 0.0
      %3246 = vmatpush1.msra.mxu0 0.0
      %3247 = vmatprep.subr.mxu0 0.0
      %3248 = vmatpush1.msra.mxu0 0.0
      %3249 = vmatprep.subr.mxu0 0.0
      %3250 = vmatpush1.msra.mxu0 0.0
      %3251 = vmatprep.subr.mxu0 0.0
      %3252 = vmatpush1.msra.mxu0 0.0
      %3253 = vmatprep.subr.mxu0 0.0
      %3254 = vmatpush1.msra.mxu0 0.0
      %3255 = vmatprep.subr.mxu0 0.0
      %3256 = vmatpush1.msra.mxu0 0.0
      %3257 = vmatprep.subr.mxu0 0.0
      %3258 = vmatpush1.msra.mxu0 0.0
      %3259 = vmatprep.mubr.f32.mxu0 0.0
      %3260 = vmatmul.mubr.f32.gmra.mrb[0].mxu0 %v3190
      %v3261 = vpop.f32.mrb[0].mxu0
      %v3262 = vadd.f32 0.0, %v3261
      %v3263 = vpop.f32.mrb[0].mxu0
      %3264 = vmatprep.mubr.f32.mxu0 0.0
      %3265 = vmatmul.mubr.f32.gmra.mrb[0].mxu0 %v3193
      %v3266 = vpop.f32.mrb[0].mxu0
      %v3267 = vadd.f32 0.0, %v3266
      %v3268 = vpop.f32.mrb[0].mxu0
      %3269 = vdwg.mxu0
      %v3271 = vsel %vm2350, %v2685, 0
      %v3274 = vsel %vm2350, %v2686, 0
      %3276 = vmatprep.subr.mxu0 0.0
      %3277 = vmatpush1.msra.mxu0 %v319
      %3278 = vmatprep.subr.mxu0 0.0
      %3279 = vmatpush1.msra.mxu0 %v455
      %3280 = vmatprep.subr.mxu0 0.0
      %3281 = vmatpush1.msra.mxu0 0.0
      %3282 = vmatprep.subr.mxu0 0.0
      %3283 = vmatpush1.msra.mxu0 0.0
      %3284 = vmatprep.subr.mxu0 0.0
      %3285 = vmatpush1.msra.mxu0 0.0
      %3286 = vmatprep.subr.mxu0 0.0
      %3287 = vmatpush1.msra.mxu0 0.0
      %3288 = vmatprep.subr.mxu0 0.0
      %3289 = vmatpush1.msra.mxu0 0.0
      %3290 = vmatprep.subr.mxu0 0.0
      %3291 = vmatpush1.msra.mxu0 0.0
      %3292 = vmatprep.subr.mxu0 0.0
      %3293 = vmatpush1.msra.mxu0 0.0
      %3294 = vmatprep.subr.mxu0 0.0
      %3295 = vmatpush1.msra.mxu0 0.0
      %3296 = vmatprep.subr.mxu0 0.0
      %3297 = vmatpush1.msra.mxu0 0.0
      %3298 = vmatprep.subr.mxu0 0.0
      %3299 = vmatpush1.msra.mxu0 0.0
      %3300 = vmatprep.subr.mxu0 0.0
      %3301 = vmatpush1.msra.mxu0 0.0
      %3302 = vmatprep.subr.mxu0 0.0
      %3303 = vmatpush1.msra.mxu0 0.0
      %3304 = vmatprep.subr.mxu0 0.0
      %3305 = vmatpush1.msra.mxu0 0.0
      %3306 = vmatprep.subr.mxu0 0.0
      %3307 = vmatpush1.msra.mxu0 0.0
      %3308 = vmatprep.subr.mxu0 0.0
      %3309 = vmatpush1.msra.mxu0 0.0
      %3310 = vmatprep.subr.mxu0 0.0
      %3311 = vmatpush1.msra.mxu0 0.0
      %3312 = vmatprep.subr.mxu0 0.0
      %3313 = vmatpush1.msra.mxu0 0.0
      %3314 = vmatprep.subr.mxu0 0.0
      %3315 = vmatpush1.msra.mxu0 0.0
      %3316 = vmatprep.subr.mxu0 0.0
      %3317 = vmatpush1.msra.mxu0 0.0
      %3318 = vmatprep.subr.mxu0 0.0
      %3319 = vmatpush1.msra.mxu0 0.0
      %3320 = vmatprep.subr.mxu0 0.0
      %3321 = vmatpush1.msra.mxu0 0.0
      %3322 = vmatprep.subr.mxu0 0.0
      %3323 = vmatpush1.msra.mxu0 0.0
      %3324 = vmatprep.subr.mxu0 0.0
      %3325 = vmatpush1.msra.mxu0 0.0
      %3326 = vmatprep.subr.mxu0 0.0
      %3327 = vmatpush1.msra.mxu0 0.0
      %3328 = vmatprep.subr.mxu0 0.0
      %3329 = vmatpush1.msra.mxu0 0.0
      %3330 = vmatprep.subr.mxu0 0.0
      %3331 = vmatpush1.msra.mxu0 0.0
      %3332 = vmatprep.subr.mxu0 0.0
      %3333 = vmatpush1.msra.mxu0 0.0
      %3334 = vmatprep.subr.mxu0 0.0
      %3335 = vmatpush1.msra.mxu0 0.0
      %3336 = vmatprep.subr.mxu0 0.0
      %3337 = vmatpush1.msra.mxu0 0.0
      %3338 = vmatprep.subr.mxu0 0.0
      %3339 = vmatpush1.msra.mxu0 0.0
      %3340 = vmatprep.mubr.f32.mxu0 0.0
      %3341 = vmatmul.mubr.f32.gmra.mrb[0].mxu0 %v3271
      %v3342 = vpop.f32.mrb[0].mxu0
      %v3343 = vadd.f32 0.0, %v3342
      %v3344 = vpop.f32.mrb[0].mxu0
      %3345 = vmatprep.mubr.f32.mxu0 0.0
      %3346 = vmatmul.mubr.f32.gmra.mrb[0].mxu0 %v3274
      %v3347 = vpop.f32.mrb[0].mxu0
      %v3348 = vadd.f32 0.0, %v3347
      %v3349 = vpop.f32.mrb[0].mxu0
      %3350 = vdwg.mxu0
      %v3352 = vsel %vm2350, %v2687, 0
      %v3355 = vsel %vm2350, %v2688, 0
      %3357 = vmatprep.subr.mxu0 0.0
      %3358 = vmatpush1.msra.mxu0 %v584
      %3359 = vmatprep.subr.mxu0 0.0
      %3360 = vmatpush1.msra.mxu0 %v720
      %3361 = vmatprep.subr.mxu0 0.0
      %3362 = vmatpush1.msra.mxu0 0.0
      %3363 = vmatprep.subr.mxu0 0.0
      %3364 = vmatpush1.msra.mxu0 0.0
      %3365 = vmatprep.subr.mxu0 0.0
      %3366 = vmatpush1.msra.mxu0 0.0
      %3367 = vmatprep.subr.mxu0 0.0
      %3368 = vmatpush1.msra.mxu0 0.0
      %3369 = vmatprep.subr.mxu0 0.0
      %3370 = vmatpush1.msra.mxu0 0.0
      %3371 = vmatprep.subr.mxu0 0.0
      %3372 = vmatpush1.msra.mxu0 0.0
      %3373 = vmatprep.subr.mxu0 0.0
      %3374 = vmatpush1.msra.mxu0 0.0
      %3375 = vmatprep.subr.mxu0 0.0
      %3376 = vmatpush1.msra.mxu0 0.0
      %3377 = vmatprep.subr.mxu0 0.0
      %3378 = vmatpush1.msra.mxu0 0.0
      %3379 = vmatprep.subr.mxu0 0.0
      %3380 = vmatpush1.msra.mxu0 0.0
      %3381 = vmatprep.subr.mxu0 0.0
      %3382 = vmatpush1.msra.mxu0 0.0
      %3383 = vmatprep.subr.mxu0 0.0
      %3384 = vmatpush1.msra.mxu0 0.0
      %3385 = vmatprep.subr.mxu0 0.0
      %3386 = vmatpush1.msra.mxu0 0.0
      %3387 = vmatprep.subr.mxu0 0.0
      %3388 = vmatpush1.msra.mxu0 0.0
      %3389 = vmatprep.subr.mxu0 0.0
      %3390 = vmatpush1.msra.mxu0 0.0
      %3391 = vmatprep.subr.mxu0 0.0
      %3392 = vmatpush1.msra.mxu0 0.0
      %3393 = vmatprep.subr.mxu0 0.0
      %3394 = vmatpush1.msra.mxu0 0.0
      %3395 = vmatprep.subr.mxu0 0.0
      %3396 = vmatpush1.msra.mxu0 0.0
      %3397 = vmatprep.subr.mxu0 0.0
      %3398 = vmatpush1.msra.mxu0 0.0
      %3399 = vmatprep.subr.mxu0 0.0
      %3400 = vmatpush1.msra.mxu0 0.0
      %3401 = vmatprep.subr.mxu0 0.0
      %3402 = vmatpush1.msra.mxu0 0.0
      %3403 = vmatprep.subr.mxu0 0.0
      %3404 = vmatpush1.msra.mxu0 0.0
      %3405 = vmatprep.subr.mxu0 0.0
      %3406 = vmatpush1.msra.mxu0 0.0
      %3407 = vmatprep.subr.mxu0 0.0
      %3408 = vmatpush1.msra.mxu0 0.0
      %3409 = vmatprep.subr.mxu0 0.0
      %3410 = vmatpush1.msra.mxu0 0.0
      %3411 = vmatprep.subr.mxu0 0.0
      %3412 = vmatpush1.msra.mxu0 0.0
      %3413 = vmatprep.subr.mxu0 0.0
      %3414 = vmatpush1.msra.mxu0 0.0
      %3415 = vmatprep.subr.mxu0 0.0
      %3416 = vmatpush1.msra.mxu0 0.0
      %3417 = vmatprep.subr.mxu0 0.0
      %3418 = vmatpush1.msra.mxu0 0.0
      %3419 = vmatprep.subr.mxu0 0.0
      %3420 = vmatpush1.msra.mxu0 0.0
      %3421 = vmatprep.mubr.f32.mxu0 0.0
      %3422 = vmatmul.mubr.f32.gmra.mrb[0].mxu0 %v3352
      %v3423 = vpop.f32.mrb[0].mxu0
      %v3424 = vadd.f32 0.0, %v3423
      %v3425 = vpop.f32.mrb[0].mxu0
      %3426 = vmatprep.mubr.f32.mxu0 0.0
      %3427 = vmatmul.mubr.f32.gmra.mrb[0].mxu0 %v3355
      %v3428 = vpop.f32.mrb[0].mxu0
      %v3429 = vadd.f32 0.0, %v3428
      %v3430 = vpop.f32.mrb[0].mxu0
      %3431 = vdwg.mxu0
      %v3433 = vsel %vm2350, %v2689, 0
      %v3436 = vsel %vm2350, %v2690, 0
      %3438 = vmatprep.subr.mxu0 0.0
      %3439 = vmatpush1.msra.mxu0 %v585
      %3440 = vmatprep.subr.mxu0 0.0
      %3441 = vmatpush1.msra.mxu0 %v721
      %3442 = vmatprep.subr.mxu0 0.0
      %3443 = vmatpush1.msra.mxu0 0.0
      %3444 = vmatprep.subr.mxu0 0.0
      %3445 = vmatpush1.msra.mxu0 0.0
      %3446 = vmatprep.subr.mxu0 0.0
      %3447 = vmatpush1.msra.mxu0 0.0
      %3448 = vmatprep.subr.mxu0 0.0
      %3449 = vmatpush1.msra.mxu0 0.0
      %3450 = vmatprep.subr.mxu0 0.0
      %3451 = vmatpush1.msra.mxu0 0.0
      %3452 = vmatprep.subr.mxu0 0.0
      %3453 = vmatpush1.msra.mxu0 0.0
      %3454 = vmatprep.subr.mxu0 0.0
      %3455 = vmatpush1.msra.mxu0 0.0
      %3456 = vmatprep.subr.mxu0 0.0
      %3457 = vmatpush1.msra.mxu0 0.0
      %3458 = vmatprep.subr.mxu0 0.0
      %3459 = vmatpush1.msra.mxu0 0.0
      %3460 = vmatprep.subr.mxu0 0.0
      %3461 = vmatpush1.msra.mxu0 0.0
      %3462 = vmatprep.subr.mxu0 0.0
      %3463 = vmatpush1.msra.mxu0 0.0
      %3464 = vmatprep.subr.mxu0 0.0
      %3465 = vmatpush1.msra.mxu0 0.0
      %3466 = vmatprep.subr.mxu0 0.0
      %3467 = vmatpush1.msra.mxu0 0.0
      %3468 = vmatprep.subr.mxu0 0.0
      %3469 = vmatpush1.msra.mxu0 0.0
      %3470 = vmatprep.subr.mxu0 0.0
      %3471 = vmatpush1.msra.mxu0 0.0
      %3472 = vmatprep.subr.mxu0 0.0
      %3473 = vmatpush1.msra.mxu0 0.0
      %3474 = vmatprep.subr.mxu0 0.0
      %3475 = vmatpush1.msra.mxu0 0.0
      %3476 = vmatprep.subr.mxu0 0.0
      %3477 = vmatpush1.msra.mxu0 0.0
      %3478 = vmatprep.subr.mxu0 0.0
      %3479 = vmatpush1.msra.mxu0 0.0
      %3480 = vmatprep.subr.mxu0 0.0
      %3481 = vmatpush1.msra.mxu0 0.0
      %3482 = vmatprep.subr.mxu0 0.0
      %3483 = vmatpush1.msra.mxu0 0.0
      %3484 = vmatprep.subr.mxu0 0.0
      %3485 = vmatpush1.msra.mxu0 0.0
      %3486 = vmatprep.subr.mxu0 0.0
      %3487 = vmatpush1.msra.mxu0 0.0
      %3488 = vmatprep.subr.mxu0 0.0
      %3489 = vmatpush1.msra.mxu0 0.0
      %3490 = vmatprep.subr.mxu0 0.0
      %3491 = vmatpush1.msra.mxu0 0.0
      %3492 = vmatprep.subr.mxu0 0.0
      %3493 = vmatpush1.msra.mxu0 0.0
      %3494 = vmatprep.subr.mxu0 0.0
      %3495 = vmatpush1.msra.mxu0 0.0
      %3496 = vmatprep.subr.mxu0 0.0
      %3497 = vmatpush1.msra.mxu0 0.0
      %3498 = vmatprep.subr.mxu0 0.0
      %3499 = vmatpush1.msra.mxu0 0.0
      %3500 = vmatprep.subr.mxu0 0.0
      %3501 = vmatpush1.msra.mxu0 0.0
      %3502 = vmatprep.mubr.f32.mxu0 0.0
      %3503 = vmatmul.mubr.f32.gmra.mrb[0].mxu0 %v3433
      %v3504 = vpop.f32.mrb[0].mxu0
      %v3505 = vadd.f32 0.0, %v3504
      %v3506 = vpop.f32.mrb[0].mxu0
      %3507 = vmatprep.mubr.f32.mxu0 0.0
      %3508 = vmatmul.mubr.f32.gmra.mrb[0].mxu0 %v3436
      %v3509 = vpop.f32.mrb[0].mxu0
      %v3510 = vadd.f32 0.0, %v3509
      %v3511 = vpop.f32.mrb[0].mxu0
      %3512 = vdwg.mxu0
      %v3514 = vsel %vm2350, %v2691, 0
      %v3517 = vsel %vm2350, %v2692, 0
      %3519 = vmatprep.subr.mxu0 0.0
      %3520 = vmatpush1.msra.mxu0 %v586
      %3521 = vmatprep.subr.mxu0 0.0
      %3522 = vmatpush1.msra.mxu0 %v722
      %3523 = vmatprep.subr.mxu0 0.0
      %3524 = vmatpush1.msra.mxu0 0.0
      %3525 = vmatprep.subr.mxu0 0.0
      %3526 = vmatpush1.msra.mxu0 0.0
      %3527 = vmatprep.subr.mxu0 0.0
      %3528 = vmatpush1.msra.mxu0 0.0
      %3529 = vmatprep.subr.mxu0 0.0
      %3530 = vmatpush1.msra.mxu0 0.0
      %3531 = vmatprep.subr.mxu0 0.0
      %3532 = vmatpush1.msra.mxu0 0.0
      %3533 = vmatprep.subr.mxu0 0.0
      %3534 = vmatpush1.msra.mxu0 0.0
      %3535 = vmatprep.subr.mxu0 0.0
      %3536 = vmatpush1.msra.mxu0 0.0
      %3537 = vmatprep.subr.mxu0 0.0
      %3538 = vmatpush1.msra.mxu0 0.0
      %3539 = vmatprep.subr.mxu0 0.0
      %3540 = vmatpush1.msra.mxu0 0.0
      %3541 = vmatprep.subr.mxu0 0.0
      %3542 = vmatpush1.msra.mxu0 0.0
      %3543 = vmatprep.subr.mxu0 0.0
      %3544 = vmatpush1.msra.mxu0 0.0
      %3545 = vmatprep.subr.mxu0 0.0
      %3546 = vmatpush1.msra.mxu0 0.0
      %3547 = vmatprep.subr.mxu0 0.0
      %3548 = vmatpush1.msra.mxu0 0.0
      %3549 = vmatprep.subr.mxu0 0.0
      %3550 = vmatpush1.msra.mxu0 0.0
      %3551 = vmatprep.subr.mxu0 0.0
      %3552 = vmatpush1.msra.mxu0 0.0
      %3553 = vmatprep.subr.mxu0 0.0
      %3554 = vmatpush1.msra.mxu0 0.0
      %3555 = vmatprep.subr.mxu0 0.0
      %3556 = vmatpush1.msra.mxu0 0.0
      %3557 = vmatprep.subr.mxu0 0.0
      %3558 = vmatpush1.msra.mxu0 0.0
      %3559 = vmatprep.subr.mxu0 0.0
      %3560 = vmatpush1.msra.mxu0 0.0
      %3561 = vmatprep.subr.mxu0 0.0
      %3562 = vmatpush1.msra.mxu0 0.0
      %3563 = vmatprep.subr.mxu0 0.0
      %3564 = vmatpush1.msra.mxu0 0.0
      %3565 = vmatprep.subr.mxu0 0.0
      %3566 = vmatpush1.msra.mxu0 0.0
      %3567 = vmatprep.subr.mxu0 0.0
      %3568 = vmatpush1.msra.mxu0 0.0
      %3569 = vmatprep.subr.mxu0 0.0
      %3570 = vmatpush1.msra.mxu0 0.0
      %3571 = vmatprep.subr.mxu0 0.0
      %3572 = vmatpush1.msra.mxu0 0.0
      %3573 = vmatprep.subr.mxu0 0.0
      %3574 = vmatpush1.msra.mxu0 0.0
      %3575 = vmatprep.subr.mxu0 0.0
      %3576 = vmatpush1.msra.mxu0 0.0
      %3577 = vmatprep.subr.mxu0 0.0
      %3578 = vmatpush1.msra.mxu0 0.0
      %3579 = vmatprep.subr.mxu0 0.0
      %3580 = vmatpush1.msra.mxu0 0.0
      %3581 = vmatprep.subr.mxu0 0.0
      %3582 = vmatpush1.msra.mxu0 0.0
      %3583 = vmatprep.mubr.f32.mxu0 0.0
      %3584 = vmatmul.mubr.f32.gmra.mrb[0].mxu0 %v3514
      %v3585 = vpop.f32.mrb[0].mxu0
      %v3586 = vadd.f32 0.0, %v3585
      %v3587 = vpop.f32.mrb[0].mxu0
      %3588 = vmatprep.mubr.f32.mxu0 0.0
      %3589 = vmatmul.mubr.f32.gmra.mrb[0].mxu0 %v3517
      %v3590 = vpop.f32.mrb[0].mxu0
      %v3591 = vadd.f32 0.0, %v3590
      %v3592 = vpop.f32.mrb[0].mxu0
      %3593 = vdwg.mxu0
      %v3595 = vsel %vm2350, %v2693, 0
      %v3598 = vsel %vm2350, %v2694, 0
      %3600 = vmatprep.subr.mxu0 0.0
      %3601 = vmatpush1.msra.mxu0 %v587
      %3602 = vmatprep.subr.mxu0 0.0
      %3603 = vmatpush1.msra.mxu0 %v723
      %3604 = vmatprep.subr.mxu0 0.0
      %3605 = vmatpush1.msra.mxu0 0.0
      %3606 = vmatprep.subr.mxu0 0.0
      %3607 = vmatpush1.msra.mxu0 0.0
      %3608 = vmatprep.subr.mxu0 0.0
      %3609 = vmatpush1.msra.mxu0 0.0
      %3610 = vmatprep.subr.mxu0 0.0
      %3611 = vmatpush1.msra.mxu0 0.0
      %3612 = vmatprep.subr.mxu0 0.0
      %3613 = vmatpush1.msra.mxu0 0.0
      %3614 = vmatprep.subr.mxu0 0.0
      %3615 = vmatpush1.msra.mxu0 0.0
      %3616 = vmatprep.subr.mxu0 0.0
      %3617 = vmatpush1.msra.mxu0 0.0
      %3618 = vmatprep.subr.mxu0 0.0
      %3619 = vmatpush1.msra.mxu0 0.0
      %3620 = vmatprep.subr.mxu0 0.0
      %3621 = vmatpush1.msra.mxu0 0.0
      %3622 = vmatprep.subr.mxu0 0.0
      %3623 = vmatpush1.msra.mxu0 0.0
      %3624 = vmatprep.subr.mxu0 0.0
      %3625 = vmatpush1.msra.mxu0 0.0
      %3626 = vmatprep.subr.mxu0 0.0
      %3627 = vmatpush1.msra.mxu0 0.0
      %3628 = vmatprep.subr.mxu0 0.0
      %3629 = vmatpush1.msra.mxu0 0.0
      %3630 = vmatprep.subr.mxu0 0.0
      %3631 = vmatpush1.msra.mxu0 0.0
      %3632 = vmatprep.subr.mxu0 0.0
      %3633 = vmatpush1.msra.mxu0 0.0
      %3634 = vmatprep.subr.mxu0 0.0
      %3635 = vmatpush1.msra.mxu0 0.0
      %3636 = vmatprep.subr.mxu0 0.0
      %3637 = vmatpush1.msra.mxu0 0.0
      %3638 = vmatprep.subr.mxu0 0.0
      %3639 = vmatpush1.msra.mxu0 0.0
      %3640 = vmatprep.subr.mxu0 0.0
      %3641 = vmatpush1.msra.mxu0 0.0
      %3642 = vmatprep.subr.mxu0 0.0
      %3643 = vmatpush1.msra.mxu0 0.0
      %3644 = vmatprep.subr.mxu0 0.0
      %3645 = vmatpush1.msra.mxu0 0.0
      %3646 = vmatprep.subr.mxu0 0.0
      %3647 = vmatpush1.msra.mxu0 0.0
      %3648 = vmatprep.subr.mxu0 0.0
      %3649 = vmatpush1.msra.mxu0 0.0
      %3650 = vmatprep.subr.mxu0 0.0
      %3651 = vmatpush1.msra.mxu0 0.0
      %3652 = vmatprep.subr.mxu0 0.0
      %3653 = vmatpush1.msra.mxu0 0.0
      %3654 = vmatprep.subr.mxu0 0.0
      %3655 = vmatpush1.msra.mxu0 0.0
      %3656 = vmatprep.subr.mxu0 0.0
      %3657 = vmatpush1.msra.mxu0 0.0
      %3658 = vmatprep.subr.mxu0 0.0
      %3659 = vmatpush1.msra.mxu0 0.0
      %3660 = vmatprep.subr.mxu0 0.0
      %3661 = vmatpush1.msra.mxu0 0.0
      %3662 = vmatprep.subr.mxu0 0.0
      %3663 = vmatpush1.msra.mxu0 0.0
      %3664 = vmatprep.mubr.f32.mxu0 0.0
      %3665 = vmatmul.mubr.f32.gmra.mrb[0].mxu0 %v3595
      %v3666 = vpop.f32.mrb[0].mxu0
      %v3667 = vadd.f32 0.0, %v3666
      %v3668 = vpop.f32.mrb[0].mxu0
      %3669 = vmatprep.mubr.f32.mxu0 0.0
      %3670 = vmatmul.mubr.f32.gmra.mrb[0].mxu0 %v3598
      %v3671 = vpop.f32.mrb[0].mxu0
      %v3672 = vadd.f32 0.0, %v3671
      %v3673 = vpop.f32.mrb[0].mxu0
      %3674 = vdwg.mxu0
      %v3676 = vsel %vm2350, %v2695, 0
      %v3679 = vsel %vm2350, %v2696, 0
      %3681 = vmatprep.subr.mxu0 0.0
      %3682 = vmatpush1.msra.mxu0 %v588
      %3683 = vmatprep.subr.mxu0 0.0
      %3684 = vmatpush1.msra.mxu0 %v724
      %3685 = vmatprep.subr.mxu0 0.0
      %3686 = vmatpush1.msra.mxu0 0.0
      %3687 = vmatprep.subr.mxu0 0.0
      %3688 = vmatpush1.msra.mxu0 0.0
      %3689 = vmatprep.subr.mxu0 0.0
      %3690 = vmatpush1.msra.mxu0 0.0
      %3691 = vmatprep.subr.mxu0 0.0
      %3692 = vmatpush1.msra.mxu0 0.0
      %3693 = vmatprep.subr.mxu0 0.0
      %3694 = vmatpush1.msra.mxu0 0.0
      %3695 = vmatprep.subr.mxu0 0.0
      %3696 = vmatpush1.msra.mxu0 0.0
      %3697 = vmatprep.subr.mxu0 0.0
      %3698 = vmatpush1.msra.mxu0 0.0
      %3699 = vmatprep.subr.mxu0 0.0
      %3700 = vmatpush1.msra.mxu0 0.0
      %3701 = vmatprep.subr.mxu0 0.0
      %3702 = vmatpush1.msra.mxu0 0.0
      %3703 = vmatprep.subr.mxu0 0.0
      %3704 = vmatpush1.msra.mxu0 0.0
      %3705 = vmatprep.subr.mxu0 0.0
      %3706 = vmatpush1.msra.mxu0 0.0
      %3707 = vmatprep.subr.mxu0 0.0
      %3708 = vmatpush1.msra.mxu0 0.0
      %3709 = vmatprep.subr.mxu0 0.0
      %3710 = vmatpush1.msra.mxu0 0.0
      %3711 = vmatprep.subr.mxu0 0.0
      %3712 = vmatpush1.msra.mxu0 0.0
      %3713 = vmatprep.subr.mxu0 0.0
      %3714 = vmatpush1.msra.mxu0 0.0
      %3715 = vmatprep.subr.mxu0 0.0
      %3716 = vmatpush1.msra.mxu0 0.0
      %3717 = vmatprep.subr.mxu0 0.0
      %3718 = vmatpush1.msra.mxu0 0.0
      %3719 = vmatprep.subr.mxu0 0.0
      %3720 = vmatpush1.msra.mxu0 0.0
      %3721 = vmatprep.subr.mxu0 0.0
      %3722 = vmatpush1.msra.mxu0 0.0
      %3723 = vmatprep.subr.mxu0 0.0
      %3724 = vmatpush1.msra.mxu0 0.0
      %3725 = vmatprep.subr.mxu0 0.0
      %3726 = vmatpush1.msra.mxu0 0.0
      %3727 = vmatprep.subr.mxu0 0.0
      %3728 = vmatpush1.msra.mxu0 0.0
      %3729 = vmatprep.subr.mxu0 0.0
      %3730 = vmatpush1.msra.mxu0 0.0
      %3731 = vmatprep.subr.mxu0 0.0
      %3732 = vmatpush1.msra.mxu0 0.0
      %3733 = vmatprep.subr.mxu0 0.0
      %3734 = vmatpush1.msra.mxu0 0.0
      %3735 = vmatprep.subr.mxu0 0.0
      %3736 = vmatpush1.msra.mxu0 0.0
      %3737 = vmatprep.subr.mxu0 0.0
      %3738 = vmatpush1.msra.mxu0 0.0
      %3739 = vmatprep.subr.mxu0 0.0
      %3740 = vmatpush1.msra.mxu0 0.0
      %3741 = vmatprep.subr.mxu0 0.0
      %3742 = vmatpush1.msra.mxu0 0.0
      %3743 = vmatprep.subr.mxu0 0.0
      %3744 = vmatpush1.msra.mxu0 0.0
      %3745 = vmatprep.mubr.f32.mxu0 0.0
      %3746 = vmatmul.mubr.f32.gmra.mrb[0].mxu0 %v3676
      %v3747 = vpop.f32.mrb[0].mxu0
      %v3748 = vadd.f32 0.0, %v3747
      %v3749 = vpop.f32.mrb[0].mxu0
      %3750 = vmatprep.mubr.f32.mxu0 0.0
      %3751 = vmatmul.mubr.f32.gmra.mrb[0].mxu0 %v3679
      %v3752 = vpop.f32.mrb[0].mxu0
      %v3753 = vadd.f32 0.0, %v3752
      %v3754 = vpop.f32.mrb[0].mxu0
      %3755 = vdwg.mxu0
      %v3757 = vsel %vm2350, %v2697, 0
      %v3760 = vsel %vm2350, %v2698, 0
      %3762 = vmatprep.subr.mxu0 0.0
      %3763 = vmatpush1.msra.mxu0 %v589
      %3764 = vmatprep.subr.mxu0 0.0
      %3765 = vmatpush1.msra.mxu0 %v725
      %3766 = vmatprep.subr.mxu0 0.0
      %3767 = vmatpush1.msra.mxu0 0.0
      %3768 = vmatprep.subr.mxu0 0.0
      %3769 = vmatpush1.msra.mxu0 0.0
      %3770 = vmatprep.subr.mxu0 0.0
      %3771 = vmatpush1.msra.mxu0 0.0
      %3772 = vmatprep.subr.mxu0 0.0
      %3773 = vmatpush1.msra.mxu0 0.0
      %3774 = vmatprep.subr.mxu0 0.0
      %3775 = vmatpush1.msra.mxu0 0.0
      %3776 = vmatprep.subr.mxu0 0.0
      %3777 = vmatpush1.msra.mxu0 0.0
      %3778 = vmatprep.subr.mxu0 0.0
      %3779 = vmatpush1.msra.mxu0 0.0
      %3780 = vmatprep.subr.mxu0 0.0
      %3781 = vmatpush1.msra.mxu0 0.0
      %3782 = vmatprep.subr.mxu0 0.0
      %3783 = vmatpush1.msra.mxu0 0.0
      %3784 = vmatprep.subr.mxu0 0.0
      %3785 = vmatpush1.msra.mxu0 0.0
      %3786 = vmatprep.subr.mxu0 0.0
      %3787 = vmatpush1.msra.mxu0 0.0
      %3788 = vmatprep.subr.mxu0 0.0
      %3789 = vmatpush1.msra.mxu0 0.0
      %3790 = vmatprep.subr.mxu0 0.0
      %3791 = vmatpush1.msra.mxu0 0.0
      %3792 = vmatprep.subr.mxu0 0.0
      %3793 = vmatpush1.msra.mxu0 0.0
      %3794 = vmatprep.subr.mxu0 0.0
      %3795 = vmatpush1.msra.mxu0 0.0
      %3796 = vmatprep.subr.mxu0 0.0
      %3797 = vmatpush1.msra.mxu0 0.0
      %3798 = vmatprep.subr.mxu0 0.0
      %3799 = vmatpush1.msra.mxu0 0.0
      %3800 = vmatprep.subr.mxu0 0.0
      %3801 = vmatpush1.msra.mxu0 0.0
      %3802 = vmatprep.subr.mxu0 0.0
      %3803 = vmatpush1.msra.mxu0 0.0
      %3804 = vmatprep.subr.mxu0 0.0
      %3805 = vmatpush1.msra.mxu0 0.0
      %3806 = vmatprep.subr.mxu0 0.0
      %3807 = vmatpush1.msra.mxu0 0.0
      %3808 = vmatprep.subr.mxu0 0.0
      %3809 = vmatpush1.msra.mxu0 0.0
      %3810 = vmatprep.subr.mxu0 0.0
      %3811 = vmatpush1.msra.mxu0 0.0
      %3812 = vmatprep.subr.mxu0 0.0
      %3813 = vmatpush1.msra.mxu0 0.0
      %3814 = vmatprep.subr.mxu0 0.0
      %3815 = vmatpush1.msra.mxu0 0.0
      %3816 = vmatprep.subr.mxu0 0.0
      %3817 = vmatpush1.msra.mxu0 0.0
      %3818 = vmatprep.subr.mxu0 0.0
      %3819 = vmatpush1.msra.mxu0 0.0
      %3820 = vmatprep.subr.mxu0 0.0
      %3821 = vmatpush1.msra.mxu0 0.0
      %3822 = vmatprep.subr.mxu0 0.0
      %3823 = vmatpush1.msra.mxu0 0.0
      %3824 = vmatprep.subr.mxu0 0.0
      %3825 = vmatpush1.msra.mxu0 0.0
      %3826 = vmatprep.mubr.f32.mxu0 0.0
      %3827 = vmatmul.mubr.f32.gmra.mrb[0].mxu0 %v3757
      %v3828 = vpop.f32.mrb[0].mxu0
      %v3829 = vadd.f32 0.0, %v3828
      %v3830 = vpop.f32.mrb[0].mxu0
      %3831 = vmatprep.mubr.f32.mxu0 0.0
      %3832 = vmatmul.mubr.f32.gmra.mrb[0].mxu0 %v3760
      %v3833 = vpop.f32.mrb[0].mxu0
      %v3834 = vadd.f32 0.0, %v3833
      %v3835 = vpop.f32.mrb[0].mxu0
      %3836 = vdwg.mxu0
      %v3838 = vsel %vm2350, %v2699, 0
      %v3841 = vsel %vm2350, %v2700, 0
      %3843 = vmatprep.subr.mxu0 0.0
      %3844 = vmatpush1.msra.mxu0 %v590
      %3845 = vmatprep.subr.mxu0 0.0
      %3846 = vmatpush1.msra.mxu0 %v726
      %3847 = vmatprep.subr.mxu0 0.0
      %3848 = vmatpush1.msra.mxu0 0.0
      %3849 = vmatprep.subr.mxu0 0.0
      %3850 = vmatpush1.msra.mxu0 0.0
      %3851 = vmatprep.subr.mxu0 0.0
      %3852 = vmatpush1.msra.mxu0 0.0
      %3853 = vmatprep.subr.mxu0 0.0
      %3854 = vmatpush1.msra.mxu0 0.0
      %3855 = vmatprep.subr.mxu0 0.0
      %3856 = vmatpush1.msra.mxu0 0.0
      %3857 = vmatprep.subr.mxu0 0.0
      %3858 = vmatpush1.msra.mxu0 0.0
      %3859 = vmatprep.subr.mxu0 0.0
      %3860 = vmatpush1.msra.mxu0 0.0
      %3861 = vmatprep.subr.mxu0 0.0
      %3862 = vmatpush1.msra.mxu0 0.0
      %3863 = vmatprep.subr.mxu0 0.0
      %3864 = vmatpush1.msra.mxu0 0.0
      %3865 = vmatprep.subr.mxu0 0.0
      %3866 = vmatpush1.msra.mxu0 0.0
      %3867 = vmatprep.subr.mxu0 0.0
      %3868 = vmatpush1.msra.mxu0 0.0
      %3869 = vmatprep.subr.mxu0 0.0
      %3870 = vmatpush1.msra.mxu0 0.0
      %3871 = vmatprep.subr.mxu0 0.0
      %3872 = vmatpush1.msra.mxu0 0.0
      %3873 = vmatprep.subr.mxu0 0.0
      %3874 = vmatpush1.msra.mxu0 0.0
      %3875 = vmatprep.subr.mxu0 0.0
      %3876 = vmatpush1.msra.mxu0 0.0
      %3877 = vmatprep.subr.mxu0 0.0
      %3878 = vmatpush1.msra.mxu0 0.0
      %3879 = vmatprep.subr.mxu0 0.0
      %3880 = vmatpush1.msra.mxu0 0.0
      %3881 = vmatprep.subr.mxu0 0.0
      %3882 = vmatpush1.msra.mxu0 0.0
      %3883 = vmatprep.subr.mxu0 0.0
      %3884 = vmatpush1.msra.mxu0 0.0
      %3885 = vmatprep.subr.mxu0 0.0
      %3886 = vmatpush1.msra.mxu0 0.0
      %3887 = vmatprep.subr.mxu0 0.0
      %3888 = vmatpush1.msra.mxu0 0.0
      %3889 = vmatprep.subr.mxu0 0.0
      %3890 = vmatpush1.msra.mxu0 0.0
      %3891 = vmatprep.subr.mxu0 0.0
      %3892 = vmatpush1.msra.mxu0 0.0
      %3893 = vmatprep.subr.mxu0 0.0
      %3894 = vmatpush1.msra.mxu0 0.0
      %3895 = vmatprep.subr.mxu0 0.0
      %3896 = vmatpush1.msra.mxu0 0.0
      %3897 = vmatprep.subr.mxu0 0.0
      %3898 = vmatpush1.msra.mxu0 0.0
      %3899 = vmatprep.subr.mxu0 0.0
      %3900 = vmatpush1.msra.mxu0 0.0
      %3901 = vmatprep.subr.mxu0 0.0
      %3902 = vmatpush1.msra.mxu0 0.0
      %3903 = vmatprep.subr.mxu0 0.0
      %3904 = vmatpush1.msra.mxu0 0.0
      %3905 = vmatprep.subr.mxu0 0.0
      %3906 = vmatpush1.msra.mxu0 0.0
      %3907 = vmatprep.mubr.f32.mxu0 0.0
      %3908 = vmatmul.mubr.f32.gmra.mrb[0].mxu0 %v3838
      %v3909 = vpop.f32.mrb[0].mxu0
      %v3910 = vadd.f32 0.0, %v3909
      %v3911 = vpop.f32.mrb[0].mxu0
      %3912 = vmatprep.mubr.f32.mxu0 0.0
      %3913 = vmatmul.mubr.f32.gmra.mrb[0].mxu0 %v3841
      %v3914 = vpop.f32.mrb[0].mxu0
      %v3915 = vadd.f32 0.0, %v3914
      %v3916 = vpop.f32.mrb[0].mxu0
      %3917 = vdwg.mxu0
      %v3919 = vsel %vm2350, %v2701, 0
      %v3922 = vsel %vm2350, %v2702, 0
      %3924 = vmatprep.subr.mxu0 0.0
      %3925 = vmatpush1.msra.mxu0 %v591
      %3926 = vmatprep.subr.mxu0 0.0
      %3927 = vmatpush1.msra.mxu0 %v727
      %3928 = vmatprep.subr.mxu0 0.0
      %3929 = vmatpush1.msra.mxu0 0.0
      %3930 = vmatprep.subr.mxu0 0.0
      %3931 = vmatpush1.msra.mxu0 0.0
      %3932 = vmatprep.subr.mxu0 0.0
      %3933 = vmatpush1.msra.mxu0 0.0
      %3934 = vmatprep.subr.mxu0 0.0
      %3935 = vmatpush1.msra.mxu0 0.0
      %3936 = vmatprep.subr.mxu0 0.0
      %3937 = vmatpush1.msra.mxu0 0.0
      %3938 = vmatprep.subr.mxu0 0.0
      %3939 = vmatpush1.msra.mxu0 0.0
      %3940 = vmatprep.subr.mxu0 0.0
      %3941 = vmatpush1.msra.mxu0 0.0
      %3942 = vmatprep.subr.mxu0 0.0
      %3943 = vmatpush1.msra.mxu0 0.0
      %3944 = vmatprep.subr.mxu0 0.0
      %3945 = vmatpush1.msra.mxu0 0.0
      %3946 = vmatprep.subr.mxu0 0.0
      %3947 = vmatpush1.msra.mxu0 0.0
      %3948 = vmatprep.subr.mxu0 0.0
      %3949 = vmatpush1.msra.mxu0 0.0
      %3950 = vmatprep.subr.mxu0 0.0
      %3951 = vmatpush1.msra.mxu0 0.0
      %3952 = vmatprep.subr.mxu0 0.0
      %3953 = vmatpush1.msra.mxu0 0.0
      %3954 = vmatprep.subr.mxu0 0.0
      %3955 = vmatpush1.msra.mxu0 0.0
      %3956 = vmatprep.subr.mxu0 0.0
      %3957 = vmatpush1.msra.mxu0 0.0
      %3958 = vmatprep.subr.mxu0 0.0
      %3959 = vmatpush1.msra.mxu0 0.0
      %3960 = vmatprep.subr.mxu0 0.0
      %3961 = vmatpush1.msra.mxu0 0.0
      %3962 = vmatprep.subr.mxu0 0.0
      %3963 = vmatpush1.msra.mxu0 0.0
      %3964 = vmatprep.subr.mxu0 0.0
      %3965 = vmatpush1.msra.mxu0 0.0
      %3966 = vmatprep.subr.mxu0 0.0
      %3967 = vmatpush1.msra.mxu0 0.0
      %3968 = vmatprep.subr.mxu0 0.0
      %3969 = vmatpush1.msra.mxu0 0.0
      %3970 = vmatprep.subr.mxu0 0.0
      %3971 = vmatpush1.msra.mxu0 0.0
      %3972 = vmatprep.subr.mxu0 0.0
      %3973 = vmatpush1.msra.mxu0 0.0
      %3974 = vmatprep.subr.mxu0 0.0
      %3975 = vmatpush1.msra.mxu0 0.0
      %3976 = vmatprep.subr.mxu0 0.0
      %3977 = vmatpush1.msra.mxu0 0.0
      %3978 = vmatprep.subr.mxu0 0.0
      %3979 = vmatpush1.msra.mxu0 0.0
      %3980 = vmatprep.subr.mxu0 0.0
      %3981 = vmatpush1.msra.mxu0 0.0
      %3982 = vmatprep.subr.mxu0 0.0
      %3983 = vmatpush1.msra.mxu0 0.0
      %3984 = vmatprep.subr.mxu0 0.0
      %3985 = vmatpush1.msra.mxu0 0.0
      %3986 = vmatprep.subr.mxu0 0.0
      %3987 = vmatpush1.msra.mxu0 0.0
      %3988 = vmatprep.mubr.f32.mxu0 0.0
      %3989 = vmatmul.mubr.f32.gmra.mrb[0].mxu0 %v3919
      %v3990 = vpop.f32.mrb[0].mxu0
      %v3991 = vadd.f32 0.0, %v3990
      %v3992 = vpop.f32.mrb[0].mxu0
      %3993 = vmatprep.mubr.f32.mxu0 0.0
      %3994 = vmatmul.mubr.f32.gmra.mrb[0].mxu0 %v3922
      %v3995 = vpop.f32.mrb[0].mxu0
      %v3996 = vadd.f32 0.0, %v3995
      %v3997 = vpop.f32.mrb[0].mxu0
      %3998 = vdwg.mxu0
      %v4000 = vsel %vm728, %v2776, 0
      %v4003 = vsel %vm728, %v2781, 0
      %v4006 = vsel %vm728, %v2857, 0
      %v4009 = vsel %vm728, %v2862, 0
      %v4012 = vsel %vm728, %v2938, 0
      %v4015 = vsel %vm728, %v2943, 0
      %v4018 = vsel %vm728, %v3019, 0
      %v4021 = vsel %vm728, %v3024, 0
      %v4024 = vsel %vm728, %v3100, 0
      %v4027 = vsel %vm728, %v3105, 0
      %v4030 = vsel %vm728, %v3181, 0
      %v4033 = vsel %vm728, %v3186, 0
      %v4036 = vsel %vm728, %v3262, 0
      %v4039 = vsel %vm728, %v3267, 0
      %v4042 = vsel %vm728, %v3343, 0
      %v4045 = vsel %vm728, %v3348, 0
      %v4048 = vsel %vm728, %v3424, 0
      %v4051 = vsel %vm728, %v3429, 0
      %v4054 = vsel %vm728, %v3505, 0
      %v4057 = vsel %vm728, %v3510, 0
      %v4060 = vsel %vm728, %v3586, 0
      %v4063 = vsel %vm728, %v3591, 0
      %v4066 = vsel %vm728, %v3667, 0
      %v4069 = vsel %vm728, %v3672, 0
      %v4072 = vsel %vm728, %v3748, 0
      %v4075 = vsel %vm728, %v3753, 0
      %v4078 = vsel %vm728, %v3829, 0
      %v4081 = vsel %vm728, %v3834, 0
      %v4084 = vsel %vm728, %v3910, 0
      %v4087 = vsel %vm728, %v3915, 0
      %v4090 = vsel %vm728, %v3991, 0
      %v4093 = vsel %vm728, %v3996, 0
      %v4096 = vsel %vm825, %v177, 0
      %4098 = vmatprep.subr.mxu0 0.0
      %4099 = vmatpush1.msra.mxu0 %v4096
      %4100 = vmatprep.subr.mxu0 0.0
      %4101 = vmatpush1.msra.mxu0 0.0
      %4102 = vmatprep.subr.mxu0 0.0
      %4103 = vmatpush1.msra.mxu0 0.0
      %4104 = vmatprep.subr.mxu0 0.0
      %4105 = vmatpush1.msra.mxu0 0.0
      %4106 = vmatprep.subr.mxu0 0.0
      %4107 = vmatpush1.msra.mxu0 0.0
      %4108 = vmatprep.subr.mxu0 0.0
      %4109 = vmatpush1.msra.mxu0 0.0
      %4110 = vmatprep.subr.mxu0 0.0
      %4111 = vmatpush1.msra.mxu0 0.0
      %4112 = vmatprep.subr.mxu0 0.0
      %4113 = vmatpush1.msra.mxu0 0.0
      %4114 = vmatprep.subr.mxu0 0.0
      %4115 = vmatpush1.msra.mxu0 0.0
      %4116 = vmatprep.subr.mxu0 0.0
      %4117 = vmatpush1.msra.mxu0 0.0
      %4118 = vmatprep.subr.mxu0 0.0
      %4119 = vmatpush1.msra.mxu0 0.0
      %4120 = vmatprep.subr.mxu0 0.0
      %4121 = vmatpush1.msra.mxu0 0.0
      %4122 = vmatprep.subr.mxu0 0.0
      %4123 = vmatpush1.msra.mxu0 0.0
      %4124 = vmatprep.subr.mxu0 0.0
      %4125 = vmatpush1.msra.mxu0 0.0
      %4126 = vmatprep.subr.mxu0 0.0
      %4127 = vmatpush1.msra.mxu0 0.0
      %4128 = vmatprep.subr.mxu0 0.0
      %4129 = vmatpush1.msra.mxu0 0.0
      %4130 = vmatprep.subr.mxu0 0.0
      %4131 = vmatpush1.msra.mxu0 0.0
      %4132 = vmatprep.subr.mxu0 0.0
      %4133 = vmatpush1.msra.mxu0 0.0
      %4134 = vmatprep.subr.mxu0 0.0
      %4135 = vmatpush1.msra.mxu0 0.0
      %4136 = vmatprep.subr.mxu0 0.0
      %4137 = vmatpush1.msra.mxu0 0.0
      %4138 = vmatprep.subr.mxu0 0.0
      %4139 = vmatpush1.msra.mxu0 0.0
      %4140 = vmatprep.subr.mxu0 0.0
      %4141 = vmatpush1.msra.mxu0 0.0
      %4142 = vmatprep.subr.mxu0 0.0
      %4143 = vmatpush1.msra.mxu0 0.0
      %4144 = vmatprep.subr.mxu0 0.0
      %4145 = vmatpush1.msra.mxu0 0.0
      %4146 = vmatprep.subr.mxu0 0.0
      %4147 = vmatpush1.msra.mxu0 0.0
      %4148 = vmatprep.subr.mxu0 0.0
      %4149 = vmatpush1.msra.mxu0 0.0
      %4150 = vmatprep.subr.mxu0 0.0
      %4151 = vmatpush1.msra.mxu0 0.0
      %4152 = vmatprep.subr.mxu0 0.0
      %4153 = vmatpush1.msra.mxu0 0.0
      %4154 = vmatprep.subr.mxu0 0.0
      %4155 = vmatpush1.msra.mxu0 0.0
      %4156 = vmatprep.subr.mxu0 0.0
      %4157 = vmatpush1.msra.mxu0 0.0
      %4158 = vmatprep.subr.mxu0 0.0
      %4159 = vmatpush1.msra.mxu0 0.0
      %4160 = vmatprep.subr.mxu0 0.0
      %4161 = vmatpush1.msra.mxu0 0.0
      %4162 = vmatprep.mubr.f32.mxu0 0.0
      %4163 = vmatmul.mubr.f32.gmra.mrb[0].mxu0 %v4000
      %v4164 = vpop.f32.mrb[0].mxu0
      %v4165 = vadd.f32 0.0, %v4164
      %v4166 = vpop.f32.mrb[0].mxu0
      %4167 = vmatprep.mubr.f32.mxu0 0.0
      %4168 = vmatmul.mubr.f32.gmra.mrb[0].mxu0 %v4003
      %v4169 = vpop.f32.mrb[0].mxu0
      %v4170 = vadd.f32 0.0, %v4169
      %v4171 = vpop.f32.mrb[0].mxu0
      %4172 = vmatprep.mubr.f32.mxu0 0.0
      %4173 = vmatmul.mubr.f32.gmra.mrb[0].mxu0 %v4006
      %v4174 = vpop.f32.mrb[0].mxu0
      %v4175 = vadd.f32 0.0, %v4174
      %v4176 = vpop.f32.mrb[0].mxu0
      %4177 = vmatprep.mubr.f32.mxu0 0.0
      %4178 = vmatmul.mubr.f32.gmra.mrb[0].mxu0 %v4009
      %v4179 = vpop.f32.mrb[0].mxu0
      %v4180 = vadd.f32 0.0, %v4179
      %v4181 = vpop.f32.mrb[0].mxu0
      %4182 = vmatprep.mubr.f32.mxu0 0.0
      %4183 = vmatmul.mubr.f32.gmra.mrb[0].mxu0 %v4012
      %v4184 = vpop.f32.mrb[0].mxu0
      %v4185 = vadd.f32 0.0, %v4184
      %v4186 = vpop.f32.mrb[0].mxu0
      %4187 = vmatprep.mubr.f32.mxu0 0.0
      %4188 = vmatmul.mubr.f32.gmra.mrb[0].mxu0 %v4015
      %v4189 = vpop.f32.mrb[0].mxu0
      %v4190 = vadd.f32 0.0, %v4189
      %v4191 = vpop.f32.mrb[0].mxu0
      %4192 = vmatprep.mubr.f32.mxu0 0.0
      %4193 = vmatmul.mubr.f32.gmra.mrb[0].mxu0 %v4018
      %v4194 = vpop.f32.mrb[0].mxu0
      %v4195 = vadd.f32 0.0, %v4194
      %v4196 = vpop.f32.mrb[0].mxu0
      %4197 = vmatprep.mubr.f32.mxu0 0.0
      %4198 = vmatmul.mubr.f32.gmra.mrb[0].mxu0 %v4021
      %v4199 = vpop.f32.mrb[0].mxu0
      %v4200 = vadd.f32 0.0, %v4199
      %v4201 = vpop.f32.mrb[0].mxu0
      %4202 = vmatprep.mubr.f32.mxu0 0.0
      %4203 = vmatmul.mubr.f32.gmra.mrb[0].mxu0 %v4024
      %v4204 = vpop.f32.mrb[0].mxu0
      %v4205 = vadd.f32 0.0, %v4204
      %v4206 = vpop.f32.mrb[0].mxu0
      %4207 = vmatprep.mubr.f32.mxu0 0.0
      %4208 = vmatmul.mubr.f32.gmra.mrb[0].mxu0 %v4027
      %v4209 = vpop.f32.mrb[0].mxu0
      %v4210 = vadd.f32 0.0, %v4209
      %v4211 = vpop.f32.mrb[0].mxu0
      %4212 = vmatprep.mubr.f32.mxu0 0.0
      %4213 = vmatmul.mubr.f32.gmra.mrb[0].mxu0 %v4030
      %v4214 = vpop.f32.mrb[0].mxu0
      %v4215 = vadd.f32 0.0, %v4214
      %v4216 = vpop.f32.mrb[0].mxu0
      %4217 = vmatprep.mubr.f32.mxu0 0.0
      %4218 = vmatmul.mubr.f32.gmra.mrb[0].mxu0 %v4033
      %v4219 = vpop.f32.mrb[0].mxu0
      %v4220 = vadd.f32 0.0, %v4219
      %v4221 = vpop.f32.mrb[0].mxu0
      %4222 = vmatprep.mubr.f32.mxu0 0.0
      %4223 = vmatmul.mubr.f32.gmra.mrb[0].mxu0 %v4036
      %v4224 = vpop.f32.mrb[0].mxu0
      %v4225 = vadd.f32 0.0, %v4224
      %v4226 = vpop.f32.mrb[0].mxu0
      %4227 = vmatprep.mubr.f32.mxu0 0.0
      %4228 = vmatmul.mubr.f32.gmra.mrb[0].mxu0 %v4039
      %v4229 = vpop.f32.mrb[0].mxu0
      %v4230 = vadd.f32 0.0, %v4229
      %v4231 = vpop.f32.mrb[0].mxu0
      %4232 = vmatprep.mubr.f32.mxu0 0.0
      %4233 = vmatmul.mubr.f32.gmra.mrb[0].mxu0 %v4042
      %v4234 = vpop.f32.mrb[0].mxu0
      %v4235 = vadd.f32 0.0, %v4234
      %v4236 = vpop.f32.mrb[0].mxu0
      %4237 = vmatprep.mubr.f32.mxu0 0.0
      %4238 = vmatmul.mubr.f32.gmra.mrb[0].mxu0 %v4045
      %v4239 = vpop.f32.mrb[0].mxu0
      %v4240 = vadd.f32 0.0, %v4239
      %v4241 = vpop.f32.mrb[0].mxu0
      %4242 = vmatprep.mubr.f32.mxu0 0.0
      %4243 = vmatmul.mubr.f32.gmra.mrb[0].mxu0 %v4048
      %v4244 = vpop.f32.mrb[0].mxu0
      %v4245 = vadd.f32 0.0, %v4244
      %v4246 = vpop.f32.mrb[0].mxu0
      %4247 = vmatprep.mubr.f32.mxu0 0.0
      %4248 = vmatmul.mubr.f32.gmra.mrb[0].mxu0 %v4051
      %v4249 = vpop.f32.mrb[0].mxu0
      %v4250 = vadd.f32 0.0, %v4249
      %v4251 = vpop.f32.mrb[0].mxu0
      %4252 = vmatprep.mubr.f32.mxu0 0.0
      %4253 = vmatmul.mubr.f32.gmra.mrb[0].mxu0 %v4054
      %v4254 = vpop.f32.mrb[0].mxu0
      %v4255 = vadd.f32 0.0, %v4254
      %v4256 = vpop.f32.mrb[0].mxu0
      %4257 = vmatprep.mubr.f32.mxu0 0.0
      %4258 = vmatmul.mubr.f32.gmra.mrb[0].mxu0 %v4057
      %v4259 = vpop.f32.mrb[0].mxu0
      %v4260 = vadd.f32 0.0, %v4259
      %v4261 = vpop.f32.mrb[0].mxu0
      %4262 = vmatprep.mubr.f32.mxu0 0.0
      %4263 = vmatmul.mubr.f32.gmra.mrb[0].mxu0 %v4060
      %v4264 = vpop.f32.mrb[0].mxu0
      %v4265 = vadd.f32 0.0, %v4264
      %v4266 = vpop.f32.mrb[0].mxu0
      %4267 = vmatprep.mubr.f32.mxu0 0.0
      %4268 = vmatmul.mubr.f32.gmra.mrb[0].mxu0 %v4063
      %v4269 = vpop.f32.mrb[0].mxu0
      %v4270 = vadd.f32 0.0, %v4269
      %v4271 = vpop.f32.mrb[0].mxu0
      %4272 = vmatprep.mubr.f32.mxu0 0.0
      %4273 = vmatmul.mubr.f32.gmra.mrb[0].mxu0 %v4066
      %v4274 = vpop.f32.mrb[0].mxu0
      %v4275 = vadd.f32 0.0, %v4274
      %v4276 = vpop.f32.mrb[0].mxu0
      %4277 = vmatprep.mubr.f32.mxu0 0.0
      %4278 = vmatmul.mubr.f32.gmra.mrb[0].mxu0 %v4069
      %v4279 = vpop.f32.mrb[0].mxu0
      %v4280 = vadd.f32 0.0, %v4279
      %v4281 = vpop.f32.mrb[0].mxu0
      %4282 = vmatprep.mubr.f32.mxu0 0.0
      %4283 = vmatmul.mubr.f32.gmra.mrb[0].mxu0 %v4072
      %v4284 = vpop.f32.mrb[0].mxu0
      %v4285 = vadd.f32 0.0, %v4284
      %v4286 = vpop.f32.mrb[0].mxu0
      %4287 = vmatprep.mubr.f32.mxu0 0.0
      %4288 = vmatmul.mubr.f32.gmra.mrb[0].mxu0 %v4075
      %v4289 = vpop.f32.mrb[0].mxu0
      %v4290 = vadd.f32 0.0, %v4289
      %v4291 = vpop.f32.mrb[0].mxu0
      %4292 = vmatprep.mubr.f32.mxu0 0.0
      %4293 = vmatmul.mubr.f32.gmra.mrb[0].mxu0 %v4078
      %v4294 = vpop.f32.mrb[0].mxu0
      %v4295 = vadd.f32 0.0, %v4294
      %v4296 = vpop.f32.mrb[0].mxu0
      %4297 = vmatprep.mubr.f32.mxu0 0.0
      %4298 = vmatmul.mubr.f32.gmra.mrb[0].mxu0 %v4081
      %v4299 = vpop.f32.mrb[0].mxu0
      %v4300 = vadd.f32 0.0, %v4299
      %v4301 = vpop.f32.mrb[0].mxu0
      %4302 = vmatprep.mubr.f32.mxu0 0.0
      %4303 = vmatmul.mubr.f32.gmra.mrb[0].mxu0 %v4084
      %v4304 = vpop.f32.mrb[0].mxu0
      %v4305 = vadd.f32 0.0, %v4304
      %v4306 = vpop.f32.mrb[0].mxu0
      %4307 = vmatprep.mubr.f32.mxu0 0.0
      %4308 = vmatmul.mubr.f32.gmra.mrb[0].mxu0 %v4087
      %v4309 = vpop.f32.mrb[0].mxu0
      %v4310 = vadd.f32 0.0, %v4309
      %v4311 = vpop.f32.mrb[0].mxu0
      %4312 = vmatprep.mubr.f32.mxu0 0.0
      %4313 = vmatmul.mubr.f32.gmra.mrb[0].mxu0 %v4090
      %v4314 = vpop.f32.mrb[0].mxu0
      %v4315 = vadd.f32 0.0, %v4314
      %v4316 = vpop.f32.mrb[0].mxu0
      %4317 = vmatprep.mubr.f32.mxu0 0.0
      %4318 = vmatmul.mubr.f32.gmra.mrb[0].mxu0 %v4093
      %v4319 = vpop.f32.mrb[0].mxu0
      %v4320 = vadd.f32 0.0, %v4319
      %v4321 = vpop.f32.mrb[0].mxu0
      %4322 = vdwg.mxu0
      %v4323 = vcombine.low %v4165, %v4185
      %v4324 = vcombine.high %v4165, %v4185
      %v4326 = vunpack.c.l.s4 1983009808
      %v4327 = vunpack.c.0.s8 %v4326
      %v4328 = vlaneseq
      %v4329 = vshrl.u32 %v4328, 7
      %v4330 = vsub.s32 %v4327, %v4329
      %v4331 = vrot.slane %v4323, %v4330
      %v4333 = vunpack.c.l.s4 1983009808
      %v4334 = vunpack.c.0.s8 %v4333
      %v4335 = vlaneseq
      %v4336 = vshrl.u32 %v4335, 7
      %v4337 = vsub.s32 %v4334, %v4336
      %v4338 = vrot.slane %v4324, %v4337
      %v4339 = vcombine.low %v4175, %v4195
      %v4340 = vcombine.high %v4175, %v4195
      %v4342 = vunpack.c.l.s4 1983009808
      %v4343 = vunpack.c.0.s8 %v4342
      %v4344 = vlaneseq
      %v4345 = vshrl.u32 %v4344, 7
      %v4346 = vsub.s32 %v4343, %v4345
      %v4347 = vrot.slane %v4339, %v4346
      %v4349 = vunpack.c.l.s4 1983009808
      %v4350 = vunpack.c.0.s8 %v4349
      %v4351 = vlaneseq
      %v4352 = vshrl.u32 %v4351, 7
      %v4353 = vsub.s32 %v4350, %v4352
      %v4354 = vrot.slane %v4340, %v4353
      %v4355 = vcombine.low %v4205, %v4225
      %v4356 = vcombine.high %v4205, %v4225
      %v4358 = vunpack.c.l.s4 1983009808
      %v4359 = vunpack.c.0.s8 %v4358
      %v4360 = vlaneseq
      %v4361 = vshrl.u32 %v4360, 7
      %v4362 = vsub.s32 %v4359, %v4361
      %v4363 = vrot.slane %v4355, %v4362
      %v4365 = vunpack.c.l.s4 1983009808
      %v4366 = vunpack.c.0.s8 %v4365
      %v4367 = vlaneseq
      %v4368 = vshrl.u32 %v4367, 7
      %v4369 = vsub.s32 %v4366, %v4368
      %v4370 = vrot.slane %v4356, %v4369
      %v4371 = vcombine.low %v4215, %v4235
      %v4372 = vcombine.high %v4215, %v4235
      %v4374 = vunpack.c.l.s4 1983009808
      %v4375 = vunpack.c.0.s8 %v4374
      %v4376 = vlaneseq
      %v4377 = vshrl.u32 %v4376, 7
      %v4378 = vsub.s32 %v4375, %v4377
      %v4379 = vrot.slane %v4371, %v4378
      %v4381 = vunpack.c.l.s4 1983009808
      %v4382 = vunpack.c.0.s8 %v4381
      %v4383 = vlaneseq
      %v4384 = vshrl.u32 %v4383, 7
      %v4385 = vsub.s32 %v4382, %v4384
      %v4386 = vrot.slane %v4372, %v4385
      %v4387 = vcombine.low %v4331, %v4347
      %v4388 = vcombine.high %v4331, %v4347
      %v4390 = vunpack.c.l.s4 1934713408
      %v4391 = vunpack.c.0.s8 %v4390
      %v4392 = vlaneseq
      %v4393 = vshrl.u32 %v4392, 7
      %v4394 = vsub.s32 %v4391, %v4393
      %v4395 = vrot.slane %v4387, %v4394
      %v4397 = vunpack.c.l.s4 1934713408
      %v4398 = vunpack.c.0.s8 %v4397
      %v4399 = vlaneseq
      %v4400 = vshrl.u32 %v4399, 7
      %v4401 = vsub.s32 %v4398, %v4400
      %v4402 = vrot.slane %v4388, %v4401
      %v4403 = vcombine.low %v4338, %v4354
      %v4404 = vcombine.high %v4338, %v4354
      %v4406 = vunpack.c.l.s4 1934713408
      %v4407 = vunpack.c.0.s8 %v4406
      %v4408 = vlaneseq
      %v4409 = vshrl.u32 %v4408, 7
      %v4410 = vsub.s32 %v4407, %v4409
      %v4411 = vrot.slane %v4403, %v4410
      %v4413 = vunpack.c.l.s4 1934713408
      %v4414 = vunpack.c.0.s8 %v4413
      %v4415 = vlaneseq
      %v4416 = vshrl.u32 %v4415, 7
      %v4417 = vsub.s32 %v4414, %v4416
      %v4418 = vrot.slane %v4404, %v4417
      %v4419 = vcombine.low %v4363, %v4379
      %v4420 = vcombine.high %v4363, %v4379
      %v4422 = vunpack.c.l.s4 1934713408
      %v4423 = vunpack.c.0.s8 %v4422
      %v4424 = vlaneseq
      %v4425 = vshrl.u32 %v4424, 7
      %v4426 = vsub.s32 %v4423, %v4425
      %v4427 = vrot.slane %v4419, %v4426
      %v4429 = vunpack.c.l.s4 1934713408
      %v4430 = vunpack.c.0.s8 %v4429
      %v4431 = vlaneseq
      %v4432 = vshrl.u32 %v4431, 7
      %v4433 = vsub.s32 %v4430, %v4432
      %v4434 = vrot.slane %v4420, %v4433
      %v4435 = vcombine.low %v4370, %v4386
      %v4436 = vcombine.high %v4370, %v4386
      %v4438 = vunpack.c.l.s4 1934713408
      %v4439 = vunpack.c.0.s8 %v4438
      %v4440 = vlaneseq
      %v4441 = vshrl.u32 %v4440, 7
      %v4442 = vsub.s32 %v4439, %v4441
      %v4443 = vrot.slane %v4435, %v4442
      %v4445 = vunpack.c.l.s4 1934713408
      %v4446 = vunpack.c.0.s8 %v4445
      %v4447 = vlaneseq
      %v4448 = vshrl.u32 %v4447, 7
      %v4449 = vsub.s32 %v4446, %v4448
      %v4450 = vrot.slane %v4436, %v4449
      %v4451 = vcombine.low %v4395, %v4427
      %v4452 = vcombine.high %v4395, %v4427
      %v4453 = vcombine.low %v4402, %v4434
      %v4454 = vcombine.high %v4402, %v4434
      %v4455 = vcombine.low %v4411, %v4443
      %v4456 = vcombine.high %v4411, %v4443
      %v4457 = vcombine.low %v4418, %v4450
      %v4458 = vcombine.high %v4418, %v4450
      %v4459 = vcombine.low %v4245, %v4265
      %v4460 = vcombine.high %v4245, %v4265
      %v4462 = vunpack.c.l.s4 1983009808
      %v4463 = vunpack.c.0.s8 %v4462
      %v4464 = vlaneseq
      %v4465 = vshrl.u32 %v4464, 7
      %v4466 = vsub.s32 %v4463, %v4465
      %v4467 = vrot.slane %v4459, %v4466
      %v4469 = vunpack.c.l.s4 1983009808
      %v4470 = vunpack.c.0.s8 %v4469
      %v4471 = vlaneseq
      %v4472 = vshrl.u32 %v4471, 7
      %v4473 = vsub.s32 %v4470, %v4472
      %v4474 = vrot.slane %v4460, %v4473
      %v4475 = vcombine.low %v4255, %v4275
      %v4476 = vcombine.high %v4255, %v4275
      %v4478 = vunpack.c.l.s4 1983009808
      %v4479 = vunpack.c.0.s8 %v4478
      %v4480 = vlaneseq
      %v4481 = vshrl.u32 %v4480, 7
      %v4482 = vsub.s32 %v4479, %v4481
      %v4483 = vrot.slane %v4475, %v4482
      %v4485 = vunpack.c.l.s4 1983009808
      %v4486 = vunpack.c.0.s8 %v4485
      %v4487 = vlaneseq
      %v4488 = vshrl.u32 %v4487, 7
      %v4489 = vsub.s32 %v4486, %v4488
      %v4490 = vrot.slane %v4476, %v4489
      %v4491 = vcombine.low %v4285, %v4305
      %v4492 = vcombine.high %v4285, %v4305
      %v4494 = vunpack.c.l.s4 1983009808
      %v4495 = vunpack.c.0.s8 %v4494
      %v4496 = vlaneseq
      %v4497 = vshrl.u32 %v4496, 7
      %v4498 = vsub.s32 %v4495, %v4497
      %v4499 = vrot.slane %v4491, %v4498
      %v4501 = vunpack.c.l.s4 1983009808
      %v4502 = vunpack.c.0.s8 %v4501
      %v4503 = vlaneseq
      %v4504 = vshrl.u32 %v4503, 7
      %v4505 = vsub.s32 %v4502, %v4504
      %v4506 = vrot.slane %v4492, %v4505
      %v4507 = vcombine.low %v4295, %v4315
      %v4508 = vcombine.high %v4295, %v4315
      %v4510 = vunpack.c.l.s4 1983009808
      %v4511 = vunpack.c.0.s8 %v4510
      %v4512 = vlaneseq
      %v4513 = vshrl.u32 %v4512, 7
      %v4514 = vsub.s32 %v4511, %v4513
      %v4515 = vrot.slane %v4507, %v4514
      %v4517 = vunpack.c.l.s4 1983009808
      %v4518 = vunpack.c.0.s8 %v4517
      %v4519 = vlaneseq
      %v4520 = vshrl.u32 %v4519, 7
      %v4521 = vsub.s32 %v4518, %v4520
      %v4522 = vrot.slane %v4508, %v4521
      %v4523 = vcombine.low %v4467, %v4483
      %v4524 = vcombine.high %v4467, %v4483
      %v4526 = vunpack.c.l.s4 1934713408
      %v4527 = vunpack.c.0.s8 %v4526
      %v4528 = vlaneseq
      %v4529 = vshrl.u32 %v4528, 7
      %v4530 = vsub.s32 %v4527, %v4529
      %v4531 = vrot.slane %v4523, %v4530
      %v4533 = vunpack.c.l.s4 1934713408
      %v4534 = vunpack.c.0.s8 %v4533
      %v4535 = vlaneseq
      %v4536 = vshrl.u32 %v4535, 7
      %v4537 = vsub.s32 %v4534, %v4536
      %v4538 = vrot.slane %v4524, %v4537
      %v4539 = vcombine.low %v4474, %v4490
      %v4540 = vcombine.high %v4474, %v4490
      %v4542 = vunpack.c.l.s4 1934713408
      %v4543 = vunpack.c.0.s8 %v4542
      %v4544 = vlaneseq
      %v4545 = vshrl.u32 %v4544, 7
      %v4546 = vsub.s32 %v4543, %v4545
      %v4547 = vrot.slane %v4539, %v4546
      %v4549 = vunpack.c.l.s4 1934713408
      %v4550 = vunpack.c.0.s8 %v4549
      %v4551 = vlaneseq
      %v4552 = vshrl.u32 %v4551, 7
      %v4553 = vsub.s32 %v4550, %v4552
      %v4554 = vrot.slane %v4540, %v4553
      %v4555 = vcombine.low %v4499, %v4515
      %v4556 = vcombine.high %v4499, %v4515
      %v4558 = vunpack.c.l.s4 1934713408
      %v4559 = vunpack.c.0.s8 %v4558
      %v4560 = vlaneseq
      %v4561 = vshrl.u32 %v4560, 7
      %v4562 = vsub.s32 %v4559, %v4561
      %v4563 = vrot.slane %v4555, %v4562
      %v4565 = vunpack.c.l.s4 1934713408
      %v4566 = vunpack.c.0.s8 %v4565
      %v4567 = vlaneseq
      %v4568 = vshrl.u32 %v4567, 7
      %v4569 = vsub.s32 %v4566, %v4568
      %v4570 = vrot.slane %v4556, %v4569
      %v4571 = vcombine.low %v4506, %v4522
      %v4572 = vcombine.high %v4506, %v4522
      %v4574 = vunpack.c.l.s4 1934713408
      %v4575 = vunpack.c.0.s8 %v4574
      %v4576 = vlaneseq
      %v4577 = vshrl.u32 %v4576, 7
      %v4578 = vsub.s32 %v4575, %v4577
      %v4579 = vrot.slane %v4571, %v4578
      %v4581 = vunpack.c.l.s4 1934713408
      %v4582 = vunpack.c.0.s8 %v4581
      %v4583 = vlaneseq
      %v4584 = vshrl.u32 %v4583, 7
      %v4585 = vsub.s32 %v4582, %v4584
      %v4586 = vrot.slane %v4572, %v4585
      %v4587 = vcombine.low %v4531, %v4563
      %v4588 = vcombine.high %v4531, %v4563
      %v4589 = vcombine.low %v4538, %v4570
      %v4590 = vcombine.high %v4538, %v4570
      %v4591 = vcombine.low %v4547, %v4579
      %v4592 = vcombine.high %v4547, %v4579
      %v4593 = vcombine.low %v4554, %v4586
      %v4594 = vcombine.high %v4554, %v4586
      %v4595 = vcombine.low %v4170, %v4190
      %v4596 = vcombine.high %v4170, %v4190
      %v4598 = vunpack.c.l.s4 1983009808
      %v4599 = vunpack.c.0.s8 %v4598
      %v4600 = vlaneseq
      %v4601 = vshrl.u32 %v4600, 7
      %v4602 = vsub.s32 %v4599, %v4601
      %v4603 = vrot.slane %v4595, %v4602
      %v4605 = vunpack.c.l.s4 1983009808
      %v4606 = vunpack.c.0.s8 %v4605
      %v4607 = vlaneseq
      %v4608 = vshrl.u32 %v4607, 7
      %v4609 = vsub.s32 %v4606, %v4608
      %v4610 = vrot.slane %v4596, %v4609
      %v4611 = vcombine.low %v4180, %v4200
      %v4612 = vcombine.high %v4180, %v4200
      %v4614 = vunpack.c.l.s4 1983009808
      %v4615 = vunpack.c.0.s8 %v4614
      %v4616 = vlaneseq
      %v4617 = vshrl.u32 %v4616, 7
      %v4618 = vsub.s32 %v4615, %v4617
      %v4619 = vrot.slane %v4611, %v4618
      %v4621 = vunpack.c.l.s4 1983009808
      %v4622 = vunpack.c.0.s8 %v4621
      %v4623 = vlaneseq
      %v4624 = vshrl.u32 %v4623, 7
      %v4625 = vsub.s32 %v4622, %v4624
      %v4626 = vrot.slane %v4612, %v4625
      %v4627 = vcombine.low %v4210, %v4230
      %v4628 = vcombine.high %v4210, %v4230
      %v4630 = vunpack.c.l.s4 1983009808
      %v4631 = vunpack.c.0.s8 %v4630
      %v4632 = vlaneseq
      %v4633 = vshrl.u32 %v4632, 7
      %v4634 = vsub.s32 %v4631, %v4633
      %v4635 = vrot.slane %v4627, %v4634
      %v4637 = vunpack.c.l.s4 1983009808
      %v4638 = vunpack.c.0.s8 %v4637
      %v4639 = vlaneseq
      %v4640 = vshrl.u32 %v4639, 7
      %v4641 = vsub.s32 %v4638, %v4640
      %v4642 = vrot.slane %v4628, %v4641
      %v4643 = vcombine.low %v4220, %v4240
      %v4644 = vcombine.high %v4220, %v4240
      %v4646 = vunpack.c.l.s4 1983009808
      %v4647 = vunpack.c.0.s8 %v4646
      %v4648 = vlaneseq
      %v4649 = vshrl.u32 %v4648, 7
      %v4650 = vsub.s32 %v4647, %v4649
      %v4651 = vrot.slane %v4643, %v4650
      %v4653 = vunpack.c.l.s4 1983009808
      %v4654 = vunpack.c.0.s8 %v4653
      %v4655 = vlaneseq
      %v4656 = vshrl.u32 %v4655, 7
      %v4657 = vsub.s32 %v4654, %v4656
      %v4658 = vrot.slane %v4644, %v4657
      %v4659 = vcombine.low %v4603, %v4619
      %v4660 = vcombine.high %v4603, %v4619
      %v4662 = vunpack.c.l.s4 1934713408
      %v4663 = vunpack.c.0.s8 %v4662
      %v4664 = vlaneseq
      %v4665 = vshrl.u32 %v4664, 7
      %v4666 = vsub.s32 %v4663, %v4665
      %v4667 = vrot.slane %v4659, %v4666
      %v4669 = vunpack.c.l.s4 1934713408
      %v4670 = vunpack.c.0.s8 %v4669
      %v4671 = vlaneseq
      %v4672 = vshrl.u32 %v4671, 7
      %v4673 = vsub.s32 %v4670, %v4672
      %v4674 = vrot.slane %v4660, %v4673
      %v4675 = vcombine.low %v4610, %v4626
      %v4676 = vcombine.high %v4610, %v4626
      %v4678 = vunpack.c.l.s4 1934713408
      %v4679 = vunpack.c.0.s8 %v4678
      %v4680 = vlaneseq
      %v4681 = vshrl.u32 %v4680, 7
      %v4682 = vsub.s32 %v4679, %v4681
      %v4683 = vrot.slane %v4675, %v4682
      %v4685 = vunpack.c.l.s4 1934713408
      %v4686 = vunpack.c.0.s8 %v4685
      %v4687 = vlaneseq
      %v4688 = vshrl.u32 %v4687, 7
      %v4689 = vsub.s32 %v4686, %v4688
      %v4690 = vrot.slane %v4676, %v4689
      %v4691 = vcombine.low %v4635, %v4651
      %v4692 = vcombine.high %v4635, %v4651
      %v4694 = vunpack.c.l.s4 1934713408
      %v4695 = vunpack.c.0.s8 %v4694
      %v4696 = vlaneseq
      %v4697 = vshrl.u32 %v4696, 7
      %v4698 = vsub.s32 %v4695, %v4697
      %v4699 = vrot.slane %v4691, %v4698
      %v4701 = vunpack.c.l.s4 1934713408
      %v4702 = vunpack.c.0.s8 %v4701
      %v4703 = vlaneseq
      %v4704 = vshrl.u32 %v4703, 7
      %v4705 = vsub.s32 %v4702, %v4704
      %v4706 = vrot.slane %v4692, %v4705
      %v4707 = vcombine.low %v4642, %v4658
      %v4708 = vcombine.high %v4642, %v4658
      %v4710 = vunpack.c.l.s4 1934713408
      %v4711 = vunpack.c.0.s8 %v4710
      %v4712 = vlaneseq
      %v4713 = vshrl.u32 %v4712, 7
      %v4714 = vsub.s32 %v4711, %v4713
      %v4715 = vrot.slane %v4707, %v4714
      %v4717 = vunpack.c.l.s4 1934713408
      %v4718 = vunpack.c.0.s8 %v4717
      %v4719 = vlaneseq
      %v4720 = vshrl.u32 %v4719, 7
      %v4721 = vsub.s32 %v4718, %v4720
      %v4722 = vrot.slane %v4708, %v4721
      %v4723 = vcombine.low %v4667, %v4699
      %v4724 = vcombine.high %v4667, %v4699
      %v4725 = vcombine.low %v4674, %v4706
      %v4726 = vcombine.high %v4674, %v4706
      %v4727 = vcombine.low %v4683, %v4715
      %v4728 = vcombine.high %v4683, %v4715
      %v4729 = vcombine.low %v4690, %v4722
      %v4730 = vcombine.high %v4690, %v4722
      %v4731 = vcombine.low %v4250, %v4270
      %v4732 = vcombine.high %v4250, %v4270
      %v4734 = vunpack.c.l.s4 1983009808
      %v4735 = vunpack.c.0.s8 %v4734
      %v4736 = vlaneseq
      %v4737 = vshrl.u32 %v4736, 7
      %v4738 = vsub.s32 %v4735, %v4737
      %v4739 = vrot.slane %v4731, %v4738
      %v4741 = vunpack.c.l.s4 1983009808
      %v4742 = vunpack.c.0.s8 %v4741
      %v4743 = vlaneseq
      %v4744 = vshrl.u32 %v4743, 7
      %v4745 = vsub.s32 %v4742, %v4744
      %v4746 = vrot.slane %v4732, %v4745
      %v4747 = vcombine.low %v4260, %v4280
      %v4748 = vcombine.high %v4260, %v4280
      %v4750 = vunpack.c.l.s4 1983009808
      %v4751 = vunpack.c.0.s8 %v4750
      %v4752 = vlaneseq
      %v4753 = vshrl.u32 %v4752, 7
      %v4754 = vsub.s32 %v4751, %v4753
      %v4755 = vrot.slane %v4747, %v4754
      %v4757 = vunpack.c.l.s4 1983009808
      %v4758 = vunpack.c.0.s8 %v4757
      %v4759 = vlaneseq
      %v4760 = vshrl.u32 %v4759, 7
      %v4761 = vsub.s32 %v4758, %v4760
      %v4762 = vrot.slane %v4748, %v4761
      %v4763 = vcombine.low %v4290, %v4310
      %v4764 = vcombine.high %v4290, %v4310
      %v4766 = vunpack.c.l.s4 1983009808
      %v4767 = vunpack.c.0.s8 %v4766
      %v4768 = vlaneseq
      %v4769 = vshrl.u32 %v4768, 7
      %v4770 = vsub.s32 %v4767, %v4769
      %v4771 = vrot.slane %v4763, %v4770
      %v4773 = vunpack.c.l.s4 1983009808
      %v4774 = vunpack.c.0.s8 %v4773
      %v4775 = vlaneseq
      %v4776 = vshrl.u32 %v4775, 7
      %v4777 = vsub.s32 %v4774, %v4776
      %v4778 = vrot.slane %v4764, %v4777
      %v4779 = vcombine.low %v4300, %v4320
      %v4780 = vcombine.high %v4300, %v4320
      %v4782 = vunpack.c.l.s4 1983009808
      %v4783 = vunpack.c.0.s8 %v4782
      %v4784 = vlaneseq
      %v4785 = vshrl.u32 %v4784, 7
      %v4786 = vsub.s32 %v4783, %v4785
      %v4787 = vrot.slane %v4779, %v4786
      %v4789 = vunpack.c.l.s4 1983009808
      %v4790 = vunpack.c.0.s8 %v4789
      %v4791 = vlaneseq
      %v4792 = vshrl.u32 %v4791, 7
      %v4793 = vsub.s32 %v4790, %v4792
      %v4794 = vrot.slane %v4780, %v4793
      %v4795 = vcombine.low %v4739, %v4755
      %v4796 = vcombine.high %v4739, %v4755
      %v4798 = vunpack.c.l.s4 1934713408
      %v4799 = vunpack.c.0.s8 %v4798
      %v4800 = vlaneseq
      %v4801 = vshrl.u32 %v4800, 7
      %v4802 = vsub.s32 %v4799, %v4801
      %v4803 = vrot.slane %v4795, %v4802
      %v4805 = vunpack.c.l.s4 1934713408
      %v4806 = vunpack.c.0.s8 %v4805
      %v4807 = vlaneseq
      %v4808 = vshrl.u32 %v4807, 7
      %v4809 = vsub.s32 %v4806, %v4808
      %v4810 = vrot.slane %v4796, %v4809
      %v4811 = vcombine.low %v4746, %v4762
      %v4812 = vcombine.high %v4746, %v4762
      %v4814 = vunpack.c.l.s4 1934713408
      %v4815 = vunpack.c.0.s8 %v4814
      %v4816 = vlaneseq
      %v4817 = vshrl.u32 %v4816, 7
      %v4818 = vsub.s32 %v4815, %v4817
      %v4819 = vrot.slane %v4811, %v4818
      %v4821 = vunpack.c.l.s4 1934713408
      %v4822 = vunpack.c.0.s8 %v4821
      %v4823 = vlaneseq
      %v4824 = vshrl.u32 %v4823, 7
      %v4825 = vsub.s32 %v4822, %v4824
      %v4826 = vrot.slane %v4812, %v4825
      %v4827 = vcombine.low %v4771, %v4787
      %v4828 = vcombine.high %v4771, %v4787
      %v4830 = vunpack.c.l.s4 1934713408
      %v4831 = vunpack.c.0.s8 %v4830
      %v4832 = vlaneseq
      %v4833 = vshrl.u32 %v4832, 7
      %v4834 = vsub.s32 %v4831, %v4833
      %v4835 = vrot.slane %v4827, %v4834
      %v4837 = vunpack.c.l.s4 1934713408
      %v4838 = vunpack.c.0.s8 %v4837
      %v4839 = vlaneseq
      %v4840 = vshrl.u32 %v4839, 7
      %v4841 = vsub.s32 %v4838, %v4840
      %v4842 = vrot.slane %v4828, %v4841
      %v4843 = vcombine.low %v4778, %v4794
      %v4844 = vcombine.high %v4778, %v4794
      %v4846 = vunpack.c.l.s4 1934713408
      %v4847 = vunpack.c.0.s8 %v4846
      %v4848 = vlaneseq
      %v4849 = vshrl.u32 %v4848, 7
      %v4850 = vsub.s32 %v4847, %v4849
      %v4851 = vrot.slane %v4843, %v4850
      %v4853 = vunpack.c.l.s4 1934713408
      %v4854 = vunpack.c.0.s8 %v4853
      %v4855 = vlaneseq
      %v4856 = vshrl.u32 %v4855, 7
      %v4857 = vsub.s32 %v4854, %v4856
      %v4858 = vrot.slane %v4844, %v4857
      %v4859 = vcombine.low %v4803, %v4835
      %v4860 = vcombine.high %v4803, %v4835
      %v4861 = vcombine.low %v4810, %v4842
      %v4862 = vcombine.high %v4810, %v4842
      %v4863 = vcombine.low %v4819, %v4851
      %v4864 = vcombine.high %v4819, %v4851
      %v4865 = vcombine.low %v4826, %v4858
      %v4866 = vcombine.high %v4826, %v4858
      %v4867 = vadd.f32 %v4451, %v144
      %v4868 = vadd.f32 %v4587, %v145
      %v4869 = vadd.f32 %v4452, %v146
      %v4870 = vadd.f32 %v4588, %v147
      %v4871 = vadd.f32 %v4453, %v148
      %v4872 = vadd.f32 %v4589, %v149
      %v4873 = vadd.f32 %v4454, %v150
      %v4874 = vadd.f32 %v4590, %v151
      %v4875 = vadd.f32 %v4455, %v152
      %v4876 = vadd.f32 %v4591, %v153
      %v4877 = vadd.f32 %v4456, %v154
      %v4878 = vadd.f32 %v4592, %v155
      %v4879 = vadd.f32 %v4457, %v156
      %v4880 = vadd.f32 %v4593, %v157
      %v4881 = vadd.f32 %v4458, %v158
      %v4882 = vadd.f32 %v4594, %v159
      %v4883 = vadd.f32 %v4723, %v160
      %v4884 = vadd.f32 %v4859, %v161
      %v4885 = vadd.f32 %v4724, %v162
      %v4886 = vadd.f32 %v4860, %v163
      %v4887 = vadd.f32 %v4725, %v164
      %v4888 = vadd.f32 %v4861, %v165
      %v4889 = vadd.f32 %v4726, %v166
      %v4890 = vadd.f32 %v4862, %v167
      %v4891 = vadd.f32 %v4727, %v168
      %v4892 = vadd.f32 %v4863, %v169
      %v4893 = vadd.f32 %v4728, %v170
      %v4894 = vadd.f32 %v4864, %v171
      %v4895 = vadd.f32 %v4729, %v172
      %v4896 = vadd.f32 %v4865, %v173
      %v4897 = vadd.f32 %v4730, %v174
      %v4898 = vadd.f32 %v4866, %v175
      %vm4931 = vcmask 1040384
      %v4932 = vrot.slane %v4867, 7
      %v4933 = vrot.slane %v4868, 7
      %v4934 = vsel %vm4931, %v4932, %v4933
      %v4935 = vrot.slane %v4869, 7
      %v4936 = vrot.slane %v4870, 7
      %v4937 = vsel %vm4931, %v4935, %v4936
      %v4938 = vrot.slane %v4871, 7
      %v4939 = vrot.slane %v4872, 7
      %v4940 = vsel %vm4931, %v4938, %v4939
      %v4941 = vrot.slane %v4873, 7
      %v4942 = vrot.slane %v4874, 7
      %v4943 = vsel %vm4931, %v4941, %v4942
      %v4944 = vrot.slane %v4875, 7
      %v4945 = vrot.slane %v4876, 7
      %v4946 = vsel %vm4931, %v4944, %v4945
      %v4947 = vrot.slane %v4877, 7
      %v4948 = vrot.slane %v4878, 7
      %v4949 = vsel %vm4931, %v4947, %v4948
      %v4950 = vrot.slane %v4879, 7
      %v4951 = vrot.slane %v4880, 7
      %v4952 = vsel %vm4931, %v4950, %v4951
      %v4953 = vrot.slane %v4881, 7
      %v4954 = vrot.slane %v4882, 7
      %v4955 = vsel %vm4931, %v4953, %v4954
      %v4956 = vrot.slane %v4883, 7
      %v4957 = vrot.slane %v4884, 7
      %v4958 = vsel %vm4931, %v4956, %v4957
      %v4959 = vrot.slane %v4885, 7
      %v4960 = vrot.slane %v4886, 7
      %v4961 = vsel %vm4931, %v4959, %v4960
      %v4962 = vrot.slane %v4887, 7
      %v4963 = vrot.slane %v4888, 7
      %v4964 = vsel %vm4931, %v4962, %v4963
      %v4965 = vrot.slane %v4889, 7
      %v4966 = vrot.slane %v4890, 7
      %v4967 = vsel %vm4931, %v4965, %v4966
      %v4968 = vrot.slane %v4891, 7
      %v4969 = vrot.slane %v4892, 7
      %v4970 = vsel %vm4931, %v4968, %v4969
      %v4971 = vrot.slane %v4893, 7
      %v4972 = vrot.slane %v4894, 7
      %v4973 = vsel %vm4931, %v4971, %v4972
      %v4974 = vrot.slane %v4895, 7
      %v4975 = vrot.slane %v4896, 7
      %v4976 = vsel %vm4931, %v4974, %v4975
      %v4977 = vrot.slane %v4897, 7
      %v4978 = vrot.slane %v4898, 7
      %v4979 = vsel %vm4931, %v4977, %v4978
      %v5027 = vsel %vm4931, 0.0, %v4932
      %v5028 = vsel %vm4931, 0.0, %v4935
      %v5029 = vsel %vm4931, 0.0, %v4938
      %v5030 = vsel %vm4931, 0.0, %v4941
      %v5031 = vsel %vm4931, 0.0, %v4944
      %v5032 = vsel %vm4931, 0.0, %v4947
      %v5033 = vsel %vm4931, 0.0, %v4950
      %v5034 = vsel %vm4931, 0.0, %v4953
      %v5035 = vsel %vm4931, 0.0, %v4956
      %v5036 = vsel %vm4931, 0.0, %v4959
      %v5037 = vsel %vm4931, 0.0, %v4962
      %v5038 = vsel %vm4931, 0.0, %v4965
      %v5039 = vsel %vm4931, 0.0, %v4968
      %v5040 = vsel %vm4931, 0.0, %v4971
      %v5041 = vsel %vm4931, 0.0, %v4974
      %v5042 = vsel %vm4931, 0.0, %v4977
      %v5043 = vsel %vm4931, %v4933, 0.0
      %v5044 = vsel %vm4931, %v4936, 0.0
      %v5045 = vsel %vm4931, %v4939, 0.0
      %v5046 = vsel %vm4931, %v4942, 0.0
      %v5047 = vsel %vm4931, %v4945, 0.0
      %v5048 = vsel %vm4931, %v4948, 0.0
      %v5049 = vsel %vm4931, %v4951, 0.0
      %v5050 = vsel %vm4931, %v4954, 0.0
      %v5051 = vsel %vm4931, %v4957, 0.0
      %v5052 = vsel %vm4931, %v4960, 0.0
      %v5053 = vsel %vm4931, %v4963, 0.0
      %v5054 = vsel %vm4931, %v4966, 0.0
      %v5055 = vsel %vm4931, %v4969, 0.0
      %v5056 = vsel %vm4931, %v4972, 0.0
      %v5057 = vsel %vm4931, %v4975, 0.0
      %v5058 = vsel %vm4931, %v4978, 0.0
      %vm5090 = vcmask 1046528
      %v5091 = vrot.slane 0.0, 1
      %v5092 = vsel %vm5090, %v5091, %v5091
      %v5093 = vrot.slane %v5027, 1
      %v5094 = vrot.slane %v4934, 1
      %v5095 = vsel %vm5090, %v5093, %v5094
      %v5096 = vrot.slane %v5043, 1
      %v5097 = vsel %vm5090, %v5094, %v5096
      %v5098 = vrot.slane %v5028, 1
      %v5099 = vrot.slane %v4937, 1
      %v5100 = vsel %vm5090, %v5098, %v5099
      %v5101 = vrot.slane %v5044, 1
      %v5102 = vsel %vm5090, %v5099, %v5101
      %v5103 = vrot.slane %v5029, 1
      %v5104 = vrot.slane %v4940, 1
      %v5105 = vsel %vm5090, %v5103, %v5104
      %v5106 = vrot.slane %v5045, 1
      %v5107 = vsel %vm5090, %v5104, %v5106
      %v5108 = vrot.slane %v5030, 1
      %v5109 = vrot.slane %v4943, 1
      %v5110 = vsel %vm5090, %v5108, %v5109
      %v5111 = vrot.slane %v5046, 1
      %v5112 = vsel %vm5090, %v5109, %v5111
      %v5113 = vrot.slane %v5031, 1
      %v5114 = vrot.slane %v4946, 1
      %v5115 = vsel %vm5090, %v5113, %v5114
      %v5116 = vrot.slane %v5047, 1
      %v5117 = vsel %vm5090, %v5114, %v5116
      %v5118 = vrot.slane %v5032, 1
      %v5119 = vrot.slane %v4949, 1
      %v5120 = vsel %vm5090, %v5118, %v5119
      %v5121 = vrot.slane %v5048, 1
      %v5122 = vsel %vm5090, %v5119, %v5121
      %v5123 = vrot.slane %v5033, 1
      %v5124 = vrot.slane %v4952, 1
      %v5125 = vsel %vm5090, %v5123, %v5124
      %v5126 = vrot.slane %v5049, 1
      %v5127 = vsel %vm5090, %v5124, %v5126
      %v5128 = vrot.slane %v5034, 1
      %v5129 = vrot.slane %v4955, 1
      %v5130 = vsel %vm5090, %v5128, %v5129
      %v5131 = vrot.slane %v5050, 1
      %v5132 = vsel %vm5090, %v5129, %v5131
      %v5133 = vrot.slane %v5035, 1
      %v5134 = vrot.slane %v4958, 1
      %v5135 = vsel %vm5090, %v5133, %v5134
      %v5136 = vrot.slane %v5051, 1
      %v5137 = vsel %vm5090, %v5134, %v5136
      %v5138 = vrot.slane %v5036, 1
      %v5139 = vrot.slane %v4961, 1
      %v5140 = vsel %vm5090, %v5138, %v5139
      %v5141 = vrot.slane %v5052, 1
      %v5142 = vsel %vm5090, %v5139, %v5141
      %v5143 = vrot.slane %v5037, 1
      %v5144 = vrot.slane %v4964, 1
      %v5145 = vsel %vm5090, %v5143, %v5144
      %v5146 = vrot.slane %v5053, 1
      %v5147 = vsel %vm5090, %v5144, %v5146
      %v5148 = vrot.slane %v5038, 1
      %v5149 = vrot.slane %v4967, 1
      %v5150 = vsel %vm5090, %v5148, %v5149
      %v5151 = vrot.slane %v5054, 1
      %v5152 = vsel %vm5090, %v5149, %v5151
      %v5153 = vrot.slane %v5039, 1
      %v5154 = vrot.slane %v4970, 1
      %v5155 = vsel %vm5090, %v5153, %v5154
      %v5156 = vrot.slane %v5055, 1
      %v5157 = vsel %vm5090, %v5154, %v5156
      %v5158 = vrot.slane %v5040, 1
      %v5159 = vrot.slane %v4973, 1
      %v5160 = vsel %vm5090, %v5158, %v5159
      %v5161 = vrot.slane %v5056, 1
      %v5162 = vsel %vm5090, %v5159, %v5161
      %v5163 = vrot.slane %v5041, 1
      %v5164 = vrot.slane %v4976, 1
      %v5165 = vsel %vm5090, %v5163, %v5164
      %v5166 = vrot.slane %v5057, 1
      %v5167 = vsel %vm5090, %v5164, %v5166
      %5168 = vrot.lane.b32.xlu0 %v5092, 4
      %v5169 = vpop.permute.xlu0 %5168
      %5170 = vrot.lane.b32.xlu0 %v5095, 4
      %v5171 = vpop.permute.xlu0 %5170
      %5172 = vrot.lane.b32.xlu0 %v5097, 4
      %v5173 = vpop.permute.xlu0 %5172
      %5174 = vrot.lane.b32.xlu0 %v5100, 4
      %v5175 = vpop.permute.xlu0 %5174
      %5176 = vrot.lane.b32.xlu0 %v5102, 4
      %v5177 = vpop.permute.xlu0 %5176
      %5178 = vrot.lane.b32.xlu0 %v5105, 4
      %v5179 = vpop.permute.xlu0 %5178
      %5180 = vrot.lane.b32.xlu0 %v5107, 4
      %v5181 = vpop.permute.xlu0 %5180
      %5182 = vrot.lane.b32.xlu0 %v5110, 4
      %v5183 = vpop.permute.xlu0 %5182
      %5184 = vrot.lane.b32.xlu0 %v5112, 4
      %v5185 = vpop.permute.xlu0 %5184
      %5186 = vrot.lane.b32.xlu0 %v5115, 4
      %v5187 = vpop.permute.xlu0 %5186
      %5188 = vrot.lane.b32.xlu0 %v5117, 4
      %v5189 = vpop.permute.xlu0 %5188
      %5190 = vrot.lane.b32.xlu0 %v5120, 4
      %v5191 = vpop.permute.xlu0 %5190
      %5192 = vrot.lane.b32.xlu0 %v5122, 4
      %v5193 = vpop.permute.xlu0 %5192
      %5194 = vrot.lane.b32.xlu0 %v5125, 4
      %v5195 = vpop.permute.xlu0 %5194
      %5196 = vrot.lane.b32.xlu0 %v5127, 4
      %v5197 = vpop.permute.xlu0 %5196
      %5198 = vrot.lane.b32.xlu0 %v5130, 4
      %v5199 = vpop.permute.xlu0 %5198
      %5200 = vrot.lane.b32.xlu0 %v5132, 4
      %v5201 = vpop.permute.xlu0 %5200
      %5202 = vrot.lane.b32.xlu0 %v5135, 4
      %v5203 = vpop.permute.xlu0 %5202
      %5204 = vrot.lane.b32.xlu0 %v5137, 4
      %v5205 = vpop.permute.xlu0 %5204
      %5206 = vrot.lane.b32.xlu0 %v5140, 4
      %v5207 = vpop.permute.xlu0 %5206
      %5208 = vrot.lane.b32.xlu0 %v5142, 4
      %v5209 = vpop.permute.xlu0 %5208
      %5210 = vrot.lane.b32.xlu0 %v5145, 4
      %v5211 = vpop.permute.xlu0 %5210
      %5212 = vrot.lane.b32.xlu0 %v5147, 4
      %v5213 = vpop.permute.xlu0 %5212
      %5214 = vrot.lane.b32.xlu0 %v5150, 4
      %v5215 = vpop.permute.xlu0 %5214
      %5216 = vrot.lane.b32.xlu0 %v5152, 4
      %v5217 = vpop.permute.xlu0 %5216
      %5218 = vrot.lane.b32.xlu0 %v5155, 4
      %v5219 = vpop.permute.xlu0 %5218
      %5220 = vrot.lane.b32.xlu0 %v5157, 4
      %v5221 = vpop.permute.xlu0 %5220
      %5222 = vrot.lane.b32.xlu0 %v5160, 4
      %v5223 = vpop.permute.xlu0 %5222
      %5224 = vrot.lane.b32.xlu0 %v5162, 4
      %v5225 = vpop.permute.xlu0 %5224
      %5226 = vrot.lane.b32.xlu0 %v5165, 4
      %v5227 = vpop.permute.xlu0 %5226
      %5228 = vrot.lane.b32.xlu0 %v5167, 4
      %v5229 = vpop.permute.xlu0 %5228
      %vm5261 = vcmask 1045504
      %v5262 = vrot.slane 0.0, 2
      %v5263 = vsel %vm5261, %v5262, %v5262
      %v5264 = vrot.slane %v5027, 2
      %v5265 = vrot.slane %v4934, 2
      %v5266 = vsel %vm5261, %v5264, %v5265
      %v5267 = vrot.slane %v5043, 2
      %v5268 = vsel %vm5261, %v5265, %v5267
      %v5269 = vrot.slane %v5028, 2
      %v5270 = vrot.slane %v4937, 2
      %v5271 = vsel %vm5261, %v5269, %v5270
      %v5272 = vrot.slane %v5044, 2
      %v5273 = vsel %vm5261, %v5270, %v5272
      %v5274 = vrot.slane %v5029, 2
      %v5275 = vrot.slane %v4940, 2
      %v5276 = vsel %vm5261, %v5274, %v5275
      %v5277 = vrot.slane %v5045, 2
      %v5278 = vsel %vm5261, %v5275, %v5277
      %v5279 = vrot.slane %v5030, 2
      %v5280 = vrot.slane %v4943, 2
      %v5281 = vsel %vm5261, %v5279, %v5280
      %v5282 = vrot.slane %v5046, 2
      %v5283 = vsel %vm5261, %v5280, %v5282
      %v5284 = vrot.slane %v5031, 2
      %v5285 = vrot.slane %v4946, 2
      %v5286 = vsel %vm5261, %v5284, %v5285
      %v5287 = vrot.slane %v5047, 2
      %v5288 = vsel %vm5261, %v5285, %v5287
      %v5289 = vrot.slane %v5032, 2
      %v5290 = vrot.slane %v4949, 2
      %v5291 = vsel %vm5261, %v5289, %v5290
      %v5292 = vrot.slane %v5048, 2
      %v5293 = vsel %vm5261, %v5290, %v5292
      %v5294 = vrot.slane %v5033, 2
      %v5295 = vrot.slane %v4952, 2
      %v5296 = vsel %vm5261, %v5294, %v5295
      %v5297 = vrot.slane %v5049, 2
      %v5298 = vsel %vm5261, %v5295, %v5297
      %v5299 = vrot.slane %v5034, 2
      %v5300 = vrot.slane %v4955, 2
      %v5301 = vsel %vm5261, %v5299, %v5300
      %v5302 = vrot.slane %v5050, 2
      %v5303 = vsel %vm5261, %v5300, %v5302
      %v5304 = vrot.slane %v5035, 2
      %v5305 = vrot.slane %v4958, 2
      %v5306 = vsel %vm5261, %v5304, %v5305
      %v5307 = vrot.slane %v5051, 2
      %v5308 = vsel %vm5261, %v5305, %v5307
      %v5309 = vrot.slane %v5036, 2
      %v5310 = vrot.slane %v4961, 2
      %v5311 = vsel %vm5261, %v5309, %v5310
      %v5312 = vrot.slane %v5052, 2
      %v5313 = vsel %vm5261, %v5310, %v5312
      %v5314 = vrot.slane %v5037, 2
      %v5315 = vrot.slane %v4964, 2
      %v5316 = vsel %vm5261, %v5314, %v5315
      %v5317 = vrot.slane %v5053, 2
      %v5318 = vsel %vm5261, %v5315, %v5317
      %v5319 = vrot.slane %v5038, 2
      %v5320 = vrot.slane %v4967, 2
      %v5321 = vsel %vm5261, %v5319, %v5320
      %v5322 = vrot.slane %v5054, 2
      %v5323 = vsel %vm5261, %v5320, %v5322
      %v5324 = vrot.slane %v5039, 2
      %v5325 = vrot.slane %v4970, 2
      %v5326 = vsel %vm5261, %v5324, %v5325
      %v5327 = vrot.slane %v5055, 2
      %v5328 = vsel %vm5261, %v5325, %v5327
      %v5329 = vrot.slane %v5040, 2
      %v5330 = vrot.slane %v4973, 2
      %v5331 = vsel %vm5261, %v5329, %v5330
      %v5332 = vrot.slane %v5056, 2
      %v5333 = vsel %vm5261, %v5330, %v5332
      %v5334 = vrot.slane %v5041, 2
      %v5335 = vrot.slane %v4976, 2
      %v5336 = vsel %vm5261, %v5334, %v5335
      %v5337 = vrot.slane %v5057, 2
      %v5338 = vsel %vm5261, %v5335, %v5337
      %5339 = vrot.lane.b32.xlu0 %v5263, 8
      %v5340 = vpop.permute.xlu0 %5339
      %5341 = vrot.lane.b32.xlu0 %v5266, 8
      %v5342 = vpop.permute.xlu0 %5341
      %5343 = vrot.lane.b32.xlu0 %v5268, 8
      %v5344 = vpop.permute.xlu0 %5343
      %5345 = vrot.lane.b32.xlu0 %v5271, 8
      %v5346 = vpop.permute.xlu0 %5345
      %5347 = vrot.lane.b32.xlu0 %v5273, 8
      %v5348 = vpop.permute.xlu0 %5347
      %5349 = vrot.lane.b32.xlu0 %v5276, 8
      %v5350 = vpop.permute.xlu0 %5349
      %5351 = vrot.lane.b32.xlu0 %v5278, 8
      %v5352 = vpop.permute.xlu0 %5351
      %5353 = vrot.lane.b32.xlu0 %v5281, 8
      %v5354 = vpop.permute.xlu0 %5353
      %5355 = vrot.lane.b32.xlu0 %v5283, 8
      %v5356 = vpop.permute.xlu0 %5355
      %5357 = vrot.lane.b32.xlu0 %v5286, 8
      %v5358 = vpop.permute.xlu0 %5357
      %5359 = vrot.lane.b32.xlu0 %v5288, 8
      %v5360 = vpop.permute.xlu0 %5359
      %5361 = vrot.lane.b32.xlu0 %v5291, 8
      %v5362 = vpop.permute.xlu0 %5361
      %5363 = vrot.lane.b32.xlu0 %v5293, 8
      %v5364 = vpop.permute.xlu0 %5363
      %5365 = vrot.lane.b32.xlu0 %v5296, 8
      %v5366 = vpop.permute.xlu0 %5365
      %5367 = vrot.lane.b32.xlu0 %v5298, 8
      %v5368 = vpop.permute.xlu0 %5367
      %5369 = vrot.lane.b32.xlu0 %v5301, 8
      %v5370 = vpop.permute.xlu0 %5369
      %5371 = vrot.lane.b32.xlu0 %v5303, 8
      %v5372 = vpop.permute.xlu0 %5371
      %5373 = vrot.lane.b32.xlu0 %v5306, 8
      %v5374 = vpop.permute.xlu0 %5373
      %5375 = vrot.lane.b32.xlu0 %v5308, 8
      %v5376 = vpop.permute.xlu0 %5375
      %5377 = vrot.lane.b32.xlu0 %v5311, 8
      %v5378 = vpop.permute.xlu0 %5377
      %5379 = vrot.lane.b32.xlu0 %v5313, 8
      %v5380 = vpop.permute.xlu0 %5379
      %5381 = vrot.lane.b32.xlu0 %v5316, 8
      %v5382 = vpop.permute.xlu0 %5381
      %5383 = vrot.lane.b32.xlu0 %v5318, 8
      %v5384 = vpop.permute.xlu0 %5383
      %5385 = vrot.lane.b32.xlu0 %v5321, 8
      %v5386 = vpop.permute.xlu0 %5385
      %5387 = vrot.lane.b32.xlu0 %v5323, 8
      %v5388 = vpop.permute.xlu0 %5387
      %5389 = vrot.lane.b32.xlu0 %v5326, 8
      %v5390 = vpop.permute.xlu0 %5389
      %5391 = vrot.lane.b32.xlu0 %v5328, 8
      %v5392 = vpop.permute.xlu0 %5391
      %5393 = vrot.lane.b32.xlu0 %v5331, 8
      %v5394 = vpop.permute.xlu0 %5393
      %5395 = vrot.lane.b32.xlu0 %v5333, 8
      %v5396 = vpop.permute.xlu0 %5395
      %5397 = vrot.lane.b32.xlu0 %v5336, 8
      %v5398 = vpop.permute.xlu0 %5397
      %5399 = vrot.lane.b32.xlu0 %v5338, 8
      %v5400 = vpop.permute.xlu0 %5399
      %5433 = vrot.lane.b32.xlu0 %v5027, 12
      %v5434 = vpop.permute.xlu0 %5433
      %5435 = vrot.lane.b32.xlu0 %v4934, 12
      %v5436 = vpop.permute.xlu0 %5435
      %5437 = vrot.lane.b32.xlu0 %v5028, 12
      %v5438 = vpop.permute.xlu0 %5437
      %5439 = vrot.lane.b32.xlu0 %v4937, 12
      %v5440 = vpop.permute.xlu0 %5439
      %5441 = vrot.lane.b32.xlu0 %v5029, 12
      %v5442 = vpop.permute.xlu0 %5441
      %5443 = vrot.lane.b32.xlu0 %v4940, 12
      %v5444 = vpop.permute.xlu0 %5443
      %5445 = vrot.lane.b32.xlu0 %v5030, 12
      %v5446 = vpop.permute.xlu0 %5445
      %5447 = vrot.lane.b32.xlu0 %v4943, 12
      %v5448 = vpop.permute.xlu0 %5447
      %5449 = vrot.lane.b32.xlu0 %v5031, 12
      %v5450 = vpop.permute.xlu0 %5449
      %5451 = vrot.lane.b32.xlu0 %v4946, 12
      %v5452 = vpop.permute.xlu0 %5451
      %5453 = vrot.lane.b32.xlu0 %v5032, 12
      %v5454 = vpop.permute.xlu0 %5453
      %5455 = vrot.lane.b32.xlu0 %v4949, 12
      %v5456 = vpop.permute.xlu0 %5455
      %5457 = vrot.lane.b32.xlu0 %v5033, 12
      %v5458 = vpop.permute.xlu0 %5457
      %5459 = vrot.lane.b32.xlu0 %v4952, 12
      %v5460 = vpop.permute.xlu0 %5459
      %5461 = vrot.lane.b32.xlu0 %v5034, 12
      %v5462 = vpop.permute.xlu0 %5461
      %5463 = vrot.lane.b32.xlu0 %v4955, 12
      %v5464 = vpop.permute.xlu0 %5463
      %5465 = vrot.lane.b32.xlu0 %v5035, 12
      %v5466 = vpop.permute.xlu0 %5465
      %5467 = vrot.lane.b32.xlu0 %v4958, 12
      %v5468 = vpop.permute.xlu0 %5467
      %5469 = vrot.lane.b32.xlu0 %v5036, 12
      %v5470 = vpop.permute.xlu0 %5469
      %5471 = vrot.lane.b32.xlu0 %v4961, 12
      %v5472 = vpop.permute.xlu0 %5471
      %5473 = vrot.lane.b32.xlu0 %v5037, 12
      %v5474 = vpop.permute.xlu0 %5473
      %5475 = vrot.lane.b32.xlu0 %v4964, 12
      %v5476 = vpop.permute.xlu0 %5475
      %5477 = vrot.lane.b32.xlu0 %v5038, 12
      %v5478 = vpop.permute.xlu0 %5477
      %5479 = vrot.lane.b32.xlu0 %v4967, 12
      %v5480 = vpop.permute.xlu0 %5479
      %5481 = vrot.lane.b32.xlu0 %v5039, 12
      %v5482 = vpop.permute.xlu0 %5481
      %5483 = vrot.lane.b32.xlu0 %v4970, 12
      %v5484 = vpop.permute.xlu0 %5483
      %5485 = vrot.lane.b32.xlu0 %v5040, 12
      %v5486 = vpop.permute.xlu0 %5485
      %5487 = vrot.lane.b32.xlu0 %v4973, 12
      %v5488 = vpop.permute.xlu0 %5487
      %5489 = vrot.lane.b32.xlu0 %v5041, 12
      %v5490 = vpop.permute.xlu0 %5489
      %5491 = vrot.lane.b32.xlu0 %v4976, 12
      %v5492 = vpop.permute.xlu0 %5491
      %5493 = vrot.lane.b32.xlu0 %v5042, 12
      %v5494 = vpop.permute.xlu0 %5493
      %5495 = vrot.lane.b32.xlu0 %v4979, 12
      %v5496 = vpop.permute.xlu0 %5495
      %v5530 = vrot.slane %v5042, 1
      %v5531 = vrot.slane %v4979, 1
      %v5532 = vsel %vm5090, %v5530, %v5531
      %v5533 = vrot.slane %v5058, 1
      %v5534 = vsel %vm5090, %v5531, %v5533
      %5535 = vrot.lane.b32.xlu0 %v5095, 16
      %v5536 = vpop.permute.xlu0 %5535
      %5537 = vrot.lane.b32.xlu0 %v5097, 16
      %v5538 = vpop.permute.xlu0 %5537
      %5539 = vrot.lane.b32.xlu0 %v5100, 16
      %v5540 = vpop.permute.xlu0 %5539
      %5541 = vrot.lane.b32.xlu0 %v5102, 16
      %v5542 = vpop.permute.xlu0 %5541
      %5543 = vrot.lane.b32.xlu0 %v5105, 16
      %v5544 = vpop.permute.xlu0 %5543
      %5545 = vrot.lane.b32.xlu0 %v5107, 16
      %v5546 = vpop.permute.xlu0 %5545
      %5547 = vrot.lane.b32.xlu0 %v5110, 16
      %v5548 = vpop.permute.xlu0 %5547
      %5549 = vrot.lane.b32.xlu0 %v5112, 16
      %v5550 = vpop.permute.xlu0 %5549
      %5551 = vrot.lane.b32.xlu0 %v5115, 16
      %v5552 = vpop.permute.xlu0 %5551
      %5553 = vrot.lane.b32.xlu0 %v5117, 16
      %v5554 = vpop.permute.xlu0 %5553
      %5555 = vrot.lane.b32.xlu0 %v5120, 16
      %v5556 = vpop.permute.xlu0 %5555
      %5557 = vrot.lane.b32.xlu0 %v5122, 16
      %v5558 = vpop.permute.xlu0 %5557
      %5559 = vrot.lane.b32.xlu0 %v5125, 16
      %v5560 = vpop.permute.xlu0 %5559
      %5561 = vrot.lane.b32.xlu0 %v5127, 16
      %v5562 = vpop.permute.xlu0 %5561
      %5563 = vrot.lane.b32.xlu0 %v5130, 16
      %v5564 = vpop.permute.xlu0 %5563
      %5565 = vrot.lane.b32.xlu0 %v5132, 16
      %v5566 = vpop.permute.xlu0 %5565
      %5567 = vrot.lane.b32.xlu0 %v5135, 16
      %v5568 = vpop.permute.xlu0 %5567
      %5569 = vrot.lane.b32.xlu0 %v5137, 16
      %v5570 = vpop.permute.xlu0 %5569
      %5571 = vrot.lane.b32.xlu0 %v5140, 16
      %v5572 = vpop.permute.xlu0 %5571
      %5573 = vrot.lane.b32.xlu0 %v5142, 16
      %v5574 = vpop.permute.xlu0 %5573
      %5575 = vrot.lane.b32.xlu0 %v5145, 16
      %v5576 = vpop.permute.xlu0 %5575
      %5577 = vrot.lane.b32.xlu0 %v5147, 16
      %v5578 = vpop.permute.xlu0 %5577
      %5579 = vrot.lane.b32.xlu0 %v5150, 16
      %v5580 = vpop.permute.xlu0 %5579
      %5581 = vrot.lane.b32.xlu0 %v5152, 16
      %v5582 = vpop.permute.xlu0 %5581
      %5583 = vrot.lane.b32.xlu0 %v5155, 16
      %v5584 = vpop.permute.xlu0 %5583
      %5585 = vrot.lane.b32.xlu0 %v5157, 16
      %v5586 = vpop.permute.xlu0 %5585
      %5587 = vrot.lane.b32.xlu0 %v5160, 16
      %v5588 = vpop.permute.xlu0 %5587
      %5589 = vrot.lane.b32.xlu0 %v5162, 16
      %v5590 = vpop.permute.xlu0 %5589
      %5591 = vrot.lane.b32.xlu0 %v5165, 16
      %v5592 = vpop.permute.xlu0 %5591
      %5593 = vrot.lane.b32.xlu0 %v5167, 16
      %v5594 = vpop.permute.xlu0 %5593
      %5595 = vrot.lane.b32.xlu0 %v5532, 16
      %v5596 = vpop.permute.xlu0 %5595
      %5597 = vrot.lane.b32.xlu0 %v5534, 16
      %v5598 = vpop.permute.xlu0 %5597
      %v5631 = vrot.slane %v5042, 2
      %v5632 = vrot.slane %v4979, 2
      %v5633 = vsel %vm5261, %v5631, %v5632
      %v5634 = vrot.slane %v5058, 2
      %v5635 = vsel %vm5261, %v5632, %v5634
      %5636 = vrot.lane.b32.xlu0 %v5266, 20
      %v5637 = vpop.permute.xlu0 %5636
      %5638 = vrot.lane.b32.xlu0 %v5268, 20
      %v5639 = vpop.permute.xlu0 %5638
      %5640 = vrot.lane.b32.xlu0 %v5271, 20
      %v5641 = vpop.permute.xlu0 %5640
      %5642 = vrot.lane.b32.xlu0 %v5273, 20
      %v5643 = vpop.permute.xlu0 %5642
      %5644 = vrot.lane.b32.xlu0 %v5276, 20
      %v5645 = vpop.permute.xlu0 %5644
      %5646 = vrot.lane.b32.xlu0 %v5278, 20
      %v5647 = vpop.permute.xlu0 %5646
      %5648 = vrot.lane.b32.xlu0 %v5281, 20
      %v5649 = vpop.permute.xlu0 %5648
      %5650 = vrot.lane.b32.xlu0 %v5283, 20
      %v5651 = vpop.permute.xlu0 %5650
      %5652 = vrot.lane.b32.xlu0 %v5286, 20
      %v5653 = vpop.permute.xlu0 %5652
      %5654 = vrot.lane.b32.xlu0 %v5288, 20
      %v5655 = vpop.permute.xlu0 %5654
      %5656 = vrot.lane.b32.xlu0 %v5291, 20
      %v5657 = vpop.permute.xlu0 %5656
      %5658 = vrot.lane.b32.xlu0 %v5293, 20
      %v5659 = vpop.permute.xlu0 %5658
      %5660 = vrot.lane.b32.xlu0 %v5296, 20
      %v5661 = vpop.permute.xlu0 %5660
      %5662 = vrot.lane.b32.xlu0 %v5298, 20
      %v5663 = vpop.permute.xlu0 %5662
      %5664 = vrot.lane.b32.xlu0 %v5301, 20
      %v5665 = vpop.permute.xlu0 %5664
      %5666 = vrot.lane.b32.xlu0 %v5303, 20
      %v5667 = vpop.permute.xlu0 %5666
      %5668 = vrot.lane.b32.xlu0 %v5306, 20
      %v5669 = vpop.permute.xlu0 %5668
      %5670 = vrot.lane.b32.xlu0 %v5308, 20
      %v5671 = vpop.permute.xlu0 %5670
      %5672 = vrot.lane.b32.xlu0 %v5311, 20
      %v5673 = vpop.permute.xlu0 %5672
      %5674 = vrot.lane.b32.xlu0 %v5313, 20
      %v5675 = vpop.permute.xlu0 %5674
      %5676 = vrot.lane.b32.xlu0 %v5316, 20
      %v5677 = vpop.permute.xlu0 %5676
      %5678 = vrot.lane.b32.xlu0 %v5318, 20
      %v5679 = vpop.permute.xlu0 %5678
      %5680 = vrot.lane.b32.xlu0 %v5321, 20
      %v5681 = vpop.permute.xlu0 %5680
      %5682 = vrot.lane.b32.xlu0 %v5323, 20
      %v5683 = vpop.permute.xlu0 %5682
      %5684 = vrot.lane.b32.xlu0 %v5326, 20
      %v5685 = vpop.permute.xlu0 %5684
      %5686 = vrot.lane.b32.xlu0 %v5328, 20
      %v5687 = vpop.permute.xlu0 %5686
      %5688 = vrot.lane.b32.xlu0 %v5331, 20
      %v5689 = vpop.permute.xlu0 %5688
      %5690 = vrot.lane.b32.xlu0 %v5333, 20
      %v5691 = vpop.permute.xlu0 %5690
      %5692 = vrot.lane.b32.xlu0 %v5336, 20
      %v5693 = vpop.permute.xlu0 %5692
      %5694 = vrot.lane.b32.xlu0 %v5338, 20
      %v5695 = vpop.permute.xlu0 %5694
      %5696 = vrot.lane.b32.xlu0 %v5633, 20
      %v5697 = vpop.permute.xlu0 %5696
      %5698 = vrot.lane.b32.xlu0 %v5635, 20
      %v5699 = vpop.permute.xlu0 %5698
      %5732 = vrot.lane.b32.xlu0 %v5028, 24
      %v5733 = vpop.permute.xlu0 %5732
      %5734 = vrot.lane.b32.xlu0 %v4937, 24
      %v5735 = vpop.permute.xlu0 %5734
      %5736 = vrot.lane.b32.xlu0 %v5029, 24
      %v5737 = vpop.permute.xlu0 %5736
      %5738 = vrot.lane.b32.xlu0 %v4940, 24
      %v5739 = vpop.permute.xlu0 %5738
      %5740 = vrot.lane.b32.xlu0 %v5030, 24
      %v5741 = vpop.permute.xlu0 %5740
      %5742 = vrot.lane.b32.xlu0 %v4943, 24
      %v5743 = vpop.permute.xlu0 %5742
      %5744 = vrot.lane.b32.xlu0 %v5031, 24
      %v5745 = vpop.permute.xlu0 %5744
      %5746 = vrot.lane.b32.xlu0 %v4946, 24
      %v5747 = vpop.permute.xlu0 %5746
      %5748 = vrot.lane.b32.xlu0 %v5032, 24
      %v5749 = vpop.permute.xlu0 %5748
      %5750 = vrot.lane.b32.xlu0 %v4949, 24
      %v5751 = vpop.permute.xlu0 %5750
      %5752 = vrot.lane.b32.xlu0 %v5033, 24
      %v5753 = vpop.permute.xlu0 %5752
      %5754 = vrot.lane.b32.xlu0 %v4952, 24
      %v5755 = vpop.permute.xlu0 %5754
      %5756 = vrot.lane.b32.xlu0 %v5034, 24
      %v5757 = vpop.permute.xlu0 %5756
      %5758 = vrot.lane.b32.xlu0 %v4955, 24
      %v5759 = vpop.permute.xlu0 %5758
      %5760 = vrot.lane.b32.xlu0 %v5035, 24
      %v5761 = vpop.permute.xlu0 %5760
      %5762 = vrot.lane.b32.xlu0 %v4958, 24
      %v5763 = vpop.permute.xlu0 %5762
      %5764 = vrot.lane.b32.xlu0 %v5036, 24
      %v5765 = vpop.permute.xlu0 %5764
      %5766 = vrot.lane.b32.xlu0 %v4961, 24
      %v5767 = vpop.permute.xlu0 %5766
      %5768 = vrot.lane.b32.xlu0 %v5037, 24
      %v5769 = vpop.permute.xlu0 %5768
      %5770 = vrot.lane.b32.xlu0 %v4964, 24
      %v5771 = vpop.permute.xlu0 %5770
      %5772 = vrot.lane.b32.xlu0 %v5038, 24
      %v5773 = vpop.permute.xlu0 %5772
      %5774 = vrot.lane.b32.xlu0 %v4967, 24
      %v5775 = vpop.permute.xlu0 %5774
      %5776 = vrot.lane.b32.xlu0 %v5039, 24
      %v5777 = vpop.permute.xlu0 %5776
      %5778 = vrot.lane.b32.xlu0 %v4970, 24
      %v5779 = vpop.permute.xlu0 %5778
      %5780 = vrot.lane.b32.xlu0 %v5040, 24
      %v5781 = vpop.permute.xlu0 %5780
      %5782 = vrot.lane.b32.xlu0 %v4973, 24
      %v5783 = vpop.permute.xlu0 %5782
      %5784 = vrot.lane.b32.xlu0 %v5041, 24
      %v5785 = vpop.permute.xlu0 %5784
      %5786 = vrot.lane.b32.xlu0 %v4976, 24
      %v5787 = vpop.permute.xlu0 %5786
      %5788 = vrot.lane.b32.xlu0 %v5042, 24
      %v5789 = vpop.permute.xlu0 %5788
      %5790 = vrot.lane.b32.xlu0 %v4979, 24
      %v5791 = vpop.permute.xlu0 %5790
      %5792 = vrot.lane.b32.xlu0 0.0, 24
      %v5793 = vpop.permute.xlu0 %5792
      %5825 = vrot.lane.b32.xlu0 %v5100, 28
      %v5826 = vpop.permute.xlu0 %5825
      %5827 = vrot.lane.b32.xlu0 %v5102, 28
      %v5828 = vpop.permute.xlu0 %5827
      %5829 = vrot.lane.b32.xlu0 %v5105, 28
      %v5830 = vpop.permute.xlu0 %5829
      %5831 = vrot.lane.b32.xlu0 %v5107, 28
      %v5832 = vpop.permute.xlu0 %5831
      %5833 = vrot.lane.b32.xlu0 %v5110, 28
      %v5834 = vpop.permute.xlu0 %5833
      %5835 = vrot.lane.b32.xlu0 %v5112, 28
      %v5836 = vpop.permute.xlu0 %5835
      %5837 = vrot.lane.b32.xlu0 %v5115, 28
      %v5838 = vpop.permute.xlu0 %5837
      %5839 = vrot.lane.b32.xlu0 %v5117, 28
      %v5840 = vpop.permute.xlu0 %5839
      %5841 = vrot.lane.b32.xlu0 %v5120, 28
      %v5842 = vpop.permute.xlu0 %5841
      %5843 = vrot.lane.b32.xlu0 %v5122, 28
      %v5844 = vpop.permute.xlu0 %5843
      %5845 = vrot.lane.b32.xlu0 %v5125, 28
      %v5846 = vpop.permute.xlu0 %5845
      %5847 = vrot.lane.b32.xlu0 %v5127, 28
      %v5848 = vpop.permute.xlu0 %5847
      %5849 = vrot.lane.b32.xlu0 %v5130, 28
      %v5850 = vpop.permute.xlu0 %5849
      %5851 = vrot.lane.b32.xlu0 %v5132, 28
      %v5852 = vpop.permute.xlu0 %5851
      %5853 = vrot.lane.b32.xlu0 %v5135, 28
      %v5854 = vpop.permute.xlu0 %5853
      %5855 = vrot.lane.b32.xlu0 %v5137, 28
      %v5856 = vpop.permute.xlu0 %5855
      %5857 = vrot.lane.b32.xlu0 %v5140, 28
      %v5858 = vpop.permute.xlu0 %5857
      %5859 = vrot.lane.b32.xlu0 %v5142, 28
      %v5860 = vpop.permute.xlu0 %5859
      %5861 = vrot.lane.b32.xlu0 %v5145, 28
      %v5862 = vpop.permute.xlu0 %5861
      %5863 = vrot.lane.b32.xlu0 %v5147, 28
      %v5864 = vpop.permute.xlu0 %5863
      %5865 = vrot.lane.b32.xlu0 %v5150, 28
      %v5866 = vpop.permute.xlu0 %5865
      %5867 = vrot.lane.b32.xlu0 %v5152, 28
      %v5868 = vpop.permute.xlu0 %5867
      %5869 = vrot.lane.b32.xlu0 %v5155, 28
      %v5870 = vpop.permute.xlu0 %5869
      %5871 = vrot.lane.b32.xlu0 %v5157, 28
      %v5872 = vpop.permute.xlu0 %5871
      %5873 = vrot.lane.b32.xlu0 %v5160, 28
      %v5874 = vpop.permute.xlu0 %5873
      %5875 = vrot.lane.b32.xlu0 %v5162, 28
      %v5876 = vpop.permute.xlu0 %5875
      %5877 = vrot.lane.b32.xlu0 %v5165, 28
      %v5878 = vpop.permute.xlu0 %5877
      %5879 = vrot.lane.b32.xlu0 %v5167, 28
      %v5880 = vpop.permute.xlu0 %5879
      %5881 = vrot.lane.b32.xlu0 %v5532, 28
      %v5882 = vpop.permute.xlu0 %5881
      %5883 = vrot.lane.b32.xlu0 %v5534, 28
      %v5884 = vpop.permute.xlu0 %5883
      %5885 = vrot.lane.b32.xlu0 %v5092, 28
      %v5886 = vpop.permute.xlu0 %5885
      %5918 = vrot.lane.b32.xlu0 %v5271, 32
      %v5919 = vpop.permute.xlu0 %5918
      %5920 = vrot.lane.b32.xlu0 %v5273, 32
      %v5921 = vpop.permute.xlu0 %5920
      %5922 = vrot.lane.b32.xlu0 %v5276, 32
      %v5923 = vpop.permute.xlu0 %5922
      %5924 = vrot.lane.b32.xlu0 %v5278, 32
      %v5925 = vpop.permute.xlu0 %5924
      %5926 = vrot.lane.b32.xlu0 %v5281, 32
      %v5927 = vpop.permute.xlu0 %5926
      %5928 = vrot.lane.b32.xlu0 %v5283, 32
      %v5929 = vpop.permute.xlu0 %5928
      %5930 = vrot.lane.b32.xlu0 %v5286, 32
      %v5931 = vpop.permute.xlu0 %5930
      %5932 = vrot.lane.b32.xlu0 %v5288, 32
      %v5933 = vpop.permute.xlu0 %5932
      %5934 = vrot.lane.b32.xlu0 %v5291, 32
      %v5935 = vpop.permute.xlu0 %5934
      %5936 = vrot.lane.b32.xlu0 %v5293, 32
      %v5937 = vpop.permute.xlu0 %5936
      %5938 = vrot.lane.b32.xlu0 %v5296, 32
      %v5939 = vpop.permute.xlu0 %5938
      %5940 = vrot.lane.b32.xlu0 %v5298, 32
      %v5941 = vpop.permute.xlu0 %5940
      %5942 = vrot.lane.b32.xlu0 %v5301, 32
      %v5943 = vpop.permute.xlu0 %5942
      %5944 = vrot.lane.b32.xlu0 %v5303, 32
      %v5945 = vpop.permute.xlu0 %5944
      %5946 = vrot.lane.b32.xlu0 %v5306, 32
      %v5947 = vpop.permute.xlu0 %5946
      %5948 = vrot.lane.b32.xlu0 %v5308, 32
      %v5949 = vpop.permute.xlu0 %5948
      %5950 = vrot.lane.b32.xlu0 %v5311, 32
      %v5951 = vpop.permute.xlu0 %5950
      %5952 = vrot.lane.b32.xlu0 %v5313, 32
      %v5953 = vpop.permute.xlu0 %5952
      %5954 = vrot.lane.b32.xlu0 %v5316, 32
      %v5955 = vpop.permute.xlu0 %5954
      %5956 = vrot.lane.b32.xlu0 %v5318, 32
      %v5957 = vpop.permute.xlu0 %5956
      %5958 = vrot.lane.b32.xlu0 %v5321, 32
      %v5959 = vpop.permute.xlu0 %5958
      %5960 = vrot.lane.b32.xlu0 %v5323, 32
      %v5961 = vpop.permute.xlu0 %5960
      %5962 = vrot.lane.b32.xlu0 %v5326, 32
      %v5963 = vpop.permute.xlu0 %5962
      %5964 = vrot.lane.b32.xlu0 %v5328, 32
      %v5965 = vpop.permute.xlu0 %5964
      %5966 = vrot.lane.b32.xlu0 %v5331, 32
      %v5967 = vpop.permute.xlu0 %5966
      %5968 = vrot.lane.b32.xlu0 %v5333, 32
      %v5969 = vpop.permute.xlu0 %5968
      %5970 = vrot.lane.b32.xlu0 %v5336, 32
      %v5971 = vpop.permute.xlu0 %5970
      %5972 = vrot.lane.b32.xlu0 %v5338, 32
      %v5973 = vpop.permute.xlu0 %5972
      %5974 = vrot.lane.b32.xlu0 %v5633, 32
      %v5975 = vpop.permute.xlu0 %5974
      %5976 = vrot.lane.b32.xlu0 %v5635, 32
      %v5977 = vpop.permute.xlu0 %5976
      %5978 = vrot.lane.b32.xlu0 %v5263, 32
      %v5979 = vpop.permute.xlu0 %5978
      %v6011 = vsel %vm728, 0.0, %v5169
      %v6012 = vsel %vm728, %v5027, %v5171
      %v6013 = vsel %vm728, %v4934, %v5173
      %v6014 = vsel %vm728, %v5028, %v5175
      %v6015 = vsel %vm728, %v4937, %v5177
      %v6016 = vsel %vm728, %v5029, %v5179
      %v6017 = vsel %vm728, %v4940, %v5181
      %v6018 = vsel %vm728, %v5030, %v5183
      %v6019 = vsel %vm728, %v4943, %v5185
      %v6020 = vsel %vm728, %v5031, %v5187
      %v6021 = vsel %vm728, %v4946, %v5189
      %v6022 = vsel %vm728, %v5032, %v5191
      %v6023 = vsel %vm728, %v4949, %v5193
      %v6024 = vsel %vm728, %v5033, %v5195
      %v6025 = vsel %vm728, %v4952, %v5197
      %v6026 = vsel %vm728, %v5034, %v5199
      %v6027 = vsel %vm728, %v4955, %v5201
      %v6028 = vsel %vm728, %v5035, %v5203
      %v6029 = vsel %vm728, %v4958, %v5205
      %v6030 = vsel %vm728, %v5036, %v5207
      %v6031 = vsel %vm728, %v4961, %v5209
      %v6032 = vsel %vm728, %v5037, %v5211
      %v6033 = vsel %vm728, %v4964, %v5213
      %v6034 = vsel %vm728, %v5038, %v5215
      %v6035 = vsel %vm728, %v4967, %v5217
      %v6036 = vsel %vm728, %v5039, %v5219
      %v6037 = vsel %vm728, %v4970, %v5221
      %v6038 = vsel %vm728, %v5040, %v5223
      %v6039 = vsel %vm728, %v4973, %v5225
      %v6040 = vsel %vm728, %v5041, %v5227
      %v6041 = vsel %vm728, %v4976, %v5229
      %vm6042 = vcmask 64512
      %v6043 = vsel %vm6042, %v6011, %v5340
      %v6044 = vsel %vm6042, %v6012, %v5342
      %v6045 = vsel %vm6042, %v6013, %v5344
      %v6046 = vsel %vm6042, %v6014, %v5346
      %v6047 = vsel %vm6042, %v6015, %v5348
      %v6048 = vsel %vm6042, %v6016, %v5350
      %v6049 = vsel %vm6042, %v6017, %v5352
      %v6050 = vsel %vm6042, %v6018, %v5354
      %v6051 = vsel %vm6042, %v6019, %v5356
      %v6052 = vsel %vm6042, %v6020, %v5358
      %v6053 = vsel %vm6042, %v6021, %v5360
      %v6054 = vsel %vm6042, %v6022, %v5362
      %v6055 = vsel %vm6042, %v6023, %v5364
      %v6056 = vsel %vm6042, %v6024, %v5366
      %v6057 = vsel %vm6042, %v6025, %v5368
      %v6058 = vsel %vm6042, %v6026, %v5370
      %v6059 = vsel %vm6042, %v6027, %v5372
      %v6060 = vsel %vm6042, %v6028, %v5374
      %v6061 = vsel %vm6042, %v6029, %v5376
      %v6062 = vsel %vm6042, %v6030, %v5378
      %v6063 = vsel %vm6042, %v6031, %v5380
      %v6064 = vsel %vm6042, %v6032, %v5382
      %v6065 = vsel %vm6042, %v6033, %v5384
      %v6066 = vsel %vm6042, %v6034, %v5386
      %v6067 = vsel %vm6042, %v6035, %v5388
      %v6068 = vsel %vm6042, %v6036, %v5390
      %v6069 = vsel %vm6042, %v6037, %v5392
      %v6070 = vsel %vm6042, %v6038, %v5394
      %v6071 = vsel %vm6042, %v6039, %v5396
      %v6072 = vsel %vm6042, %v6040, %v5398
      %v6073 = vsel %vm6042, %v6041, %v5400
      %vm6074 = vcmask 97280
      %v6075 = vsel %vm6074, %v6043, %v5434
      %v6076 = vsel %vm6074, %v6043, %v5436
      %v6077 = vsel %vm6074, %v6044, %v5438
      %v6078 = vsel %vm6074, %v6045, %v5440
      %v6079 = vsel %vm6074, %v6046, %v5442
      %v6080 = vsel %vm6074, %v6047, %v5444
      %v6081 = vsel %vm6074, %v6048, %v5446
      %v6082 = vsel %vm6074, %v6049, %v5448
      %v6083 = vsel %vm6074, %v6050, %v5450
      %v6084 = vsel %vm6074, %v6051, %v5452
      %v6085 = vsel %vm6074, %v6052, %v5454
      %v6086 = vsel %vm6074, %v6053, %v5456
      %v6087 = vsel %vm6074, %v6054, %v5458
      %v6088 = vsel %vm6074, %v6055, %v5460
      %v6089 = vsel %vm6074, %v6056, %v5462
      %v6090 = vsel %vm6074, %v6057, %v5464
      %v6091 = vsel %vm6074, %v6058, %v5466
      %v6092 = vsel %vm6074, %v6059, %v5468
      %v6093 = vsel %vm6074, %v6060, %v5470
      %v6094 = vsel %vm6074, %v6061, %v5472
      %v6095 = vsel %vm6074, %v6062, %v5474
      %v6096 = vsel %vm6074, %v6063, %v5476
      %v6097 = vsel %vm6074, %v6064, %v5478
      %v6098 = vsel %vm6074, %v6065, %v5480
      %v6099 = vsel %vm6074, %v6066, %v5482
      %v6100 = vsel %vm6074, %v6067, %v5484
      %v6101 = vsel %vm6074, %v6068, %v5486
      %v6102 = vsel %vm6074, %v6069, %v5488
      %v6103 = vsel %vm6074, %v6070, %v5490
      %v6104 = vsel %vm6074, %v6071, %v5492
      %v6105 = vsel %vm6074, %v6072, %v5494
      %v6106 = vsel %vm6074, %v6073, %v5496
      %v6107 = vsel %vm2350, %v6075, %v5536
      %v6108 = vsel %vm2350, %v6076, %v5538
      %v6109 = vsel %vm2350, %v6077, %v5540
      %v6110 = vsel %vm2350, %v6078, %v5542
      %v6111 = vsel %vm2350, %v6079, %v5544
      %v6112 = vsel %vm2350, %v6080, %v5546
      %v6113 = vsel %vm2350, %v6081, %v5548
      %v6114 = vsel %vm2350, %v6082, %v5550
      %v6115 = vsel %vm2350, %v6083, %v5552
      %v6116 = vsel %vm2350, %v6084, %v5554
      %v6117 = vsel %vm2350, %v6085, %v5556
      %v6118 = vsel %vm2350, %v6086, %v5558
      %v6119 = vsel %vm2350, %v6087, %v5560
      %v6120 = vsel %vm2350, %v6088, %v5562
      %v6121 = vsel %vm2350, %v6089, %v5564
      %v6122 = vsel %vm2350, %v6090, %v5566
      %v6123 = vsel %vm2350, %v6091, %v5568
      %v6124 = vsel %vm2350, %v6092, %v5570
      %v6125 = vsel %vm2350, %v6093, %v5572
      %v6126 = vsel %vm2350, %v6094, %v5574
      %v6127 = vsel %vm2350, %v6095, %v5576
      %v6128 = vsel %vm2350, %v6096, %v5578
      %v6129 = vsel %vm2350, %v6097, %v5580
      %v6130 = vsel %vm2350, %v6098, %v5582
      %v6131 = vsel %vm2350, %v6099, %v5584
      %v6132 = vsel %vm2350, %v6100, %v5586
      %v6133 = vsel %vm2350, %v6101, %v5588
      %v6134 = vsel %vm2350, %v6102, %v5590
      %v6135 = vsel %vm2350, %v6103, %v5592
      %v6136 = vsel %vm2350, %v6104, %v5594
      %v6137 = vsel %vm2350, %v6105, %v5596
      %v6138 = vsel %vm2350, %v6106, %v5598
      %vm6139 = vcmask 162816
      %v6140 = vsel %vm6139, %v6107, %v5637
      %v6141 = vsel %vm6139, %v6108, %v5639
      %v6142 = vsel %vm6139, %v6109, %v5641
      %v6143 = vsel %vm6139, %v6110, %v5643
      %v6144 = vsel %vm6139, %v6111, %v5645
      %v6145 = vsel %vm6139, %v6112, %v5647
      %v6146 = vsel %vm6139, %v6113, %v5649
      %v6147 = vsel %vm6139, %v6114, %v5651
      %v6148 = vsel %vm6139, %v6115, %v5653
      %v6149 = vsel %vm6139, %v6116, %v5655
      %v6150 = vsel %vm6139, %v6117, %v5657
      %v6151 = vsel %vm6139, %v6118, %v5659
      %v6152 = vsel %vm6139, %v6119, %v5661
      %v6153 = vsel %vm6139, %v6120, %v5663
      %v6154 = vsel %vm6139, %v6121, %v5665
      %v6155 = vsel %vm6139, %v6122, %v5667
      %v6156 = vsel %vm6139, %v6123, %v5669
      %v6157 = vsel %vm6139, %v6124, %v5671
      %v6158 = vsel %vm6139, %v6125, %v5673
      %v6159 = vsel %vm6139, %v6126, %v5675
      %v6160 = vsel %vm6139, %v6127, %v5677
      %v6161 = vsel %vm6139, %v6128, %v5679
      %v6162 = vsel %vm6139, %v6129, %v5681
      %v6163 = vsel %vm6139, %v6130, %v5683
      %v6164 = vsel %vm6139, %v6131, %v5685
      %v6165 = vsel %vm6139, %v6132, %v5687
      %v6166 = vsel %vm6139, %v6133, %v5689
      %v6167 = vsel %vm6139, %v6134, %v5691
      %v6168 = vsel %vm6139, %v6135, %v5693
      %v6169 = vsel %vm6139, %v6136, %v5695
      %v6170 = vsel %vm6139, %v6137, %v5697
      %v6171 = vsel %vm6139, %v6138, %v5699
      %vm6172 = vcmask 195584
      %v6173 = vsel %vm6172, %v6140, %v5733
      %v6174 = vsel %vm6172, %v6141, %v5735
      %v6175 = vsel %vm6172, %v6142, %v5737
      %v6176 = vsel %vm6172, %v6143, %v5739
      %v6177 = vsel %vm6172, %v6144, %v5741
      %v6178 = vsel %vm6172, %v6145, %v5743
      %v6179 = vsel %vm6172, %v6146, %v5745
      %v6180 = vsel %vm6172, %v6147, %v5747
      %v6181 = vsel %vm6172, %v6148, %v5749
      %v6182 = vsel %vm6172, %v6149, %v5751
      %v6183 = vsel %vm6172, %v6150, %v5753
      %v6184 = vsel %vm6172, %v6151, %v5755
      %v6185 = vsel %vm6172, %v6152, %v5757
      %v6186 = vsel %vm6172, %v6153, %v5759
      %v6187 = vsel %vm6172, %v6154, %v5761
      %v6188 = vsel %vm6172, %v6155, %v5763
      %v6189 = vsel %vm6172, %v6156, %v5765
      %v6190 = vsel %vm6172, %v6157, %v5767
      %v6191 = vsel %vm6172, %v6158, %v5769
      %v6192 = vsel %vm6172, %v6159, %v5771
      %v6193 = vsel %vm6172, %v6160, %v5773
      %v6194 = vsel %vm6172, %v6161, %v5775
      %v6195 = vsel %vm6172, %v6162, %v5777
      %v6196 = vsel %vm6172, %v6163, %v5779
      %v6197 = vsel %vm6172, %v6164, %v5781
      %v6198 = vsel %vm6172, %v6165, %v5783
      %v6199 = vsel %vm6172, %v6166, %v5785
      %v6200 = vsel %vm6172, %v6167, %v5787
      %v6201 = vsel %vm6172, %v6168, %v5789
      %v6202 = vsel %vm6172, %v6169, %v5791
      %v6203 = vsel %vm6172, %v6170, %v5793
      %v6204 = vsel %vm6172, %v6171, %v5793
      %vm6205 = vcmask 228352
      %v6206 = vsel %vm6205, %v6173, %v5826
      %v6207 = vsel %vm6205, %v6174, %v5828
      %v6208 = vsel %vm6205, %v6175, %v5830
      %v6209 = vsel %vm6205, %v6176, %v5832
      %v6210 = vsel %vm6205, %v6177, %v5834
      %v6211 = vsel %vm6205, %v6178, %v5836
      %v6212 = vsel %vm6205, %v6179, %v5838
      %v6213 = vsel %vm6205, %v6180, %v5840
      %v6214 = vsel %vm6205, %v6181, %v5842
      %v6215 = vsel %vm6205, %v6182, %v5844
      %v6216 = vsel %vm6205, %v6183, %v5846
      %v6217 = vsel %vm6205, %v6184, %v5848
      %v6218 = vsel %vm6205, %v6185, %v5850
      %v6219 = vsel %vm6205, %v6186, %v5852
      %v6220 = vsel %vm6205, %v6187, %v5854
      %v6221 = vsel %vm6205, %v6188, %v5856
      %v6222 = vsel %vm6205, %v6189, %v5858
      %v6223 = vsel %vm6205, %v6190, %v5860
      %v6224 = vsel %vm6205, %v6191, %v5862
      %v6225 = vsel %vm6205, %v6192, %v5864
      %v6226 = vsel %vm6205, %v6193, %v5866
      %v6227 = vsel %vm6205, %v6194, %v5868
      %v6228 = vsel %vm6205, %v6195, %v5870
      %v6229 = vsel %vm6205, %v6196, %v5872
      %v6230 = vsel %vm6205, %v6197, %v5874
      %v6231 = vsel %vm6205, %v6198, %v5876
      %v6232 = vsel %vm6205, %v6199, %v5878
      %v6233 = vsel %vm6205, %v6200, %v5880
      %v6234 = vsel %vm6205, %v6201, %v5882
      %v6235 = vsel %vm6205, %v6202, %v5884
      %v6236 = vsel %vm6205, %v6203, %v5886
      %v6237 = vsel %vm6205, %v6204, %v5886
      %vm6238 = vcmask 261120
      %v6239 = vsel %vm6238, %v6206, %v5919
      %v6240 = vsel %vm6238, %v6207, %v5921
      %v6241 = vsel %vm6238, %v6208, %v5923
      %v6242 = vsel %vm6238, %v6209, %v5925
      %v6243 = vsel %vm6238, %v6210, %v5927
      %v6244 = vsel %vm6238, %v6211, %v5929
      %v6245 = vsel %vm6238, %v6212, %v5931
      %v6246 = vsel %vm6238, %v6213, %v5933
      %v6247 = vsel %vm6238, %v6214, %v5935
      %v6248 = vsel %vm6238, %v6215, %v5937
      %v6249 = vsel %vm6238, %v6216, %v5939
      %v6250 = vsel %vm6238, %v6217, %v5941
      %v6251 = vsel %vm6238, %v6218, %v5943
      %v6252 = vsel %vm6238, %v6219, %v5945
      %v6253 = vsel %vm6238, %v6220, %v5947
      %v6254 = vsel %vm6238, %v6221, %v5949
      %v6255 = vsel %vm6238, %v6222, %v5951
      %v6256 = vsel %vm6238, %v6223, %v5953
      %v6257 = vsel %vm6238, %v6224, %v5955
      %v6258 = vsel %vm6238, %v6225, %v5957
      %v6259 = vsel %vm6238, %v6226, %v5959
      %v6260 = vsel %vm6238, %v6227, %v5961
      %v6261 = vsel %vm6238, %v6228, %v5963
      %v6262 = vsel %vm6238, %v6229, %v5965
      %v6263 = vsel %vm6238, %v6230, %v5967
      %v6264 = vsel %vm6238, %v6231, %v5969
      %v6265 = vsel %vm6238, %v6232, %v5971
      %v6266 = vsel %vm6238, %v6233, %v5973
      %v6267 = vsel %vm6238, %v6234, %v5975
      %v6268 = vsel %vm6238, %v6235, %v5977
      %v6269 = vsel %vm6238, %v6236, %v5979
      %v6270 = vsel %vm6238, %v6237, %v5979
      %v6271 = vlaneseq
      %v6272 = vshrl.u32 %v6271, 7
      %v6273 = vsub.s32 0, %v6272
      %v6274 = vrot.slane %v183, %v6273
      %vm6275 = vcmask 293888
      %v6277 = vsel %vm6275, %v6239, 0
      %v6280 = vsel %vm6275, %v6240, 0
      %v6283 = vsel %vm6275, %v6241, 0
      %v6286 = vsel %vm6275, %v6242, 0
      %v6289 = vsel %vm6275, %v6243, 0
      %v6292 = vsel %vm6275, %v6244, 0
      %v6295 = vsel %vm6275, %v6245, 0
      %v6298 = vsel %vm6275, %v6246, 0
      %v6301 = vsel %vm6275, %v6247, 0
      %v6304 = vsel %vm6275, %v6248, 0
      %v6307 = vsel %vm6275, %v6249, 0
      %v6310 = vsel %vm6275, %v6250, 0
      %v6313 = vsel %vm6275, %v6251, 0
      %v6316 = vsel %vm6275, %v6252, 0
      %v6319 = vsel %vm6275, %v6253, 0
      %v6322 = vsel %vm6275, %v6254, 0
      %v6325 = vsel %vm6275, %v6255, 0
      %v6328 = vsel %vm6275, %v6256, 0
      %v6331 = vsel %vm6275, %v6257, 0
      %v6334 = vsel %vm6275, %v6258, 0
      %v6337 = vsel %vm6275, %v6259, 0
      %v6340 = vsel %vm6275, %v6260, 0
      %v6343 = vsel %vm6275, %v6261, 0
      %v6346 = vsel %vm6275, %v6262, 0
      %v6349 = vsel %vm6275, %v6263, 0
      %v6352 = vsel %vm6275, %v6264, 0
      %v6355 = vsel %vm6275, %v6265, 0
      %v6358 = vsel %vm6275, %v6266, 0
      %v6361 = vsel %vm6275, %v6267, 0
      %v6364 = vsel %vm6275, %v6268, 0
      %v6367 = vsel %vm6275, %v6269, 0
      %v6370 = vsel %vm6275, %v6270, 0
      %v6373 = vsel %vm825, %v182, 0
      %6375 = vmatprep.subr.mxu0 0.0
      %6376 = vmatpush1.msra.mxu0 %v178
      %6377 = vmatprep.subr.mxu0 0.0
      %6378 = vmatpush1.msra.mxu0 %v179
      %6379 = vmatprep.subr.mxu0 0.0
      %6380 = vmatpush1.msra.mxu0 %v180
      %6381 = vmatprep.subr.mxu0 0.0
      %6382 = vmatpush1.msra.mxu0 %v181
      %6383 = vmatprep.subr.mxu0 0.0
      %6384 = vmatpush1.msra.mxu0 %v6373
      %6385 = vmatprep.subr.mxu0 0.0
      %6386 = vmatpush1.msra.mxu0 0.0
      %6387 = vmatprep.subr.mxu0 0.0
      %6388 = vmatpush1.msra.mxu0 0.0
      %6389 = vmatprep.subr.mxu0 0.0
      %6390 = vmatpush1.msra.mxu0 0.0
      %6391 = vmatprep.subr.mxu0 0.0
      %6392 = vmatpush1.msra.mxu0 0.0
      %6393 = vmatprep.subr.mxu0 0.0
      %6394 = vmatpush1.msra.mxu0 0.0
      %6395 = vmatprep.subr.mxu0 0.0
      %6396 = vmatpush1.msra.mxu0 0.0
      %6397 = vmatprep.subr.mxu0 0.0
      %6398 = vmatpush1.msra.mxu0 0.0
      %6399 = vmatprep.subr.mxu0 0.0
      %6400 = vmatpush1.msra.mxu0 0.0
      %6401 = vmatprep.subr.mxu0 0.0
      %6402 = vmatpush1.msra.mxu0 0.0
      %6403 = vmatprep.subr.mxu0 0.0
      %6404 = vmatpush1.msra.mxu0 0.0
      %6405 = vmatprep.subr.mxu0 0.0
      %6406 = vmatpush1.msra.mxu0 0.0
      %6407 = vmatprep.subr.mxu0 0.0
      %6408 = vmatpush1.msra.mxu0 0.0
      %6409 = vmatprep.subr.mxu0 0.0
      %6410 = vmatpush1.msra.mxu0 0.0
      %6411 = vmatprep.subr.mxu0 0.0
      %6412 = vmatpush1.msra.mxu0 0.0
      %6413 = vmatprep.subr.mxu0 0.0
      %6414 = vmatpush1.msra.mxu0 0.0
      %6415 = vmatprep.subr.mxu0 0.0
      %6416 = vmatpush1.msra.mxu0 0.0
      %6417 = vmatprep.subr.mxu0 0.0
      %6418 = vmatpush1.msra.mxu0 0.0
      %6419 = vmatprep.subr.mxu0 0.0
      %6420 = vmatpush1.msra.mxu0 0.0
      %6421 = vmatprep.subr.mxu0 0.0
      %6422 = vmatpush1.msra.mxu0 0.0
      %6423 = vmatprep.subr.mxu0 0.0
      %6424 = vmatpush1.msra.mxu0 0.0
      %6425 = vmatprep.subr.mxu0 0.0
      %6426 = vmatpush1.msra.mxu0 0.0
      %6427 = vmatprep.subr.mxu0 0.0
      %6428 = vmatpush1.msra.mxu0 0.0
      %6429 = vmatprep.subr.mxu0 0.0
      %6430 = vmatpush1.msra.mxu0 0.0
      %6431 = vmatprep.subr.mxu0 0.0
      %6432 = vmatpush1.msra.mxu0 0.0
      %6433 = vmatprep.subr.mxu0 0.0
      %6434 = vmatpush1.msra.mxu0 0.0
      %6435 = vmatprep.subr.mxu0 0.0
      %6436 = vmatpush1.msra.mxu0 0.0
      %6437 = vmatprep.subr.mxu0 0.0
      %6438 = vmatpush1.msra.mxu0 0.0
      %6439 = vmatprep.mubr.f32.mxu0 0.0
      %6440 = vmatmul.mubr.f32.gmra.mrb[0].mxu0 %v6277
      %v6441 = vpop.f32.mrb[0].mxu0
      %v6442 = vadd.f32 %v6274, %v6441
      %v6443 = vpop.f32.mrb[0].mxu0
      %6444 = vmatprep.mubr.f32.mxu0 0.0
      %6445 = vmatmul.mubr.f32.gmra.mrb[0].mxu0 %v6280
      %v6446 = vpop.f32.mrb[0].mxu0
      %v6447 = vadd.f32 %v6274, %v6446
      %v6448 = vpop.f32.mrb[0].mxu0
      %6449 = vmatprep.mubr.f32.mxu0 0.0
      %6450 = vmatmul.mubr.f32.gmra.mrb[0].mxu0 %v6283
      %v6451 = vpop.f32.mrb[0].mxu0
      %v6452 = vadd.f32 %v6274, %v6451
      %v6453 = vpop.f32.mrb[0].mxu0
      %6454 = vmatprep.mubr.f32.mxu0 0.0
      %6455 = vmatmul.mubr.f32.gmra.mrb[0].mxu0 %v6286
      %v6456 = vpop.f32.mrb[0].mxu0
      %v6457 = vadd.f32 %v6274, %v6456
      %v6458 = vpop.f32.mrb[0].mxu0
      %6459 = vmatprep.mubr.f32.mxu0 0.0
      %6460 = vmatmul.mubr.f32.gmra.mrb[0].mxu0 %v6289
      %v6461 = vpop.f32.mrb[0].mxu0
      %v6462 = vadd.f32 %v6274, %v6461
      %v6463 = vpop.f32.mrb[0].mxu0
      %6464 = vmatprep.mubr.f32.mxu0 0.0
      %6465 = vmatmul.mubr.f32.gmra.mrb[0].mxu0 %v6292
      %v6466 = vpop.f32.mrb[0].mxu0
      %v6467 = vadd.f32 %v6274, %v6466
      %v6468 = vpop.f32.mrb[0].mxu0
      %6469 = vmatprep.mubr.f32.mxu0 0.0
      %6470 = vmatmul.mubr.f32.gmra.mrb[0].mxu0 %v6295
      %v6471 = vpop.f32.mrb[0].mxu0
      %v6472 = vadd.f32 %v6274, %v6471
      %v6473 = vpop.f32.mrb[0].mxu0
      %6474 = vmatprep.mubr.f32.mxu0 0.0
      %6475 = vmatmul.mubr.f32.gmra.mrb[0].mxu0 %v6298
      %v6476 = vpop.f32.mrb[0].mxu0
      %v6477 = vadd.f32 %v6274, %v6476
      %v6478 = vpop.f32.mrb[0].mxu0
      %6479 = vmatprep.mubr.f32.mxu0 0.0
      %6480 = vmatmul.mubr.f32.gmra.mrb[0].mxu0 %v6301
      %v6481 = vpop.f32.mrb[0].mxu0
      %v6482 = vadd.f32 %v6274, %v6481
      %v6483 = vpop.f32.mrb[0].mxu0
      %6484 = vmatprep.mubr.f32.mxu0 0.0
      %6485 = vmatmul.mubr.f32.gmra.mrb[0].mxu0 %v6304
      %v6486 = vpop.f32.mrb[0].mxu0
      %v6487 = vadd.f32 %v6274, %v6486
      %v6488 = vpop.f32.mrb[0].mxu0
      %6489 = vmatprep.mubr.f32.mxu0 0.0
      %6490 = vmatmul.mubr.f32.gmra.mrb[0].mxu0 %v6307
      %v6491 = vpop.f32.mrb[0].mxu0
      %v6492 = vadd.f32 %v6274, %v6491
      %v6493 = vpop.f32.mrb[0].mxu0
      %6494 = vmatprep.mubr.f32.mxu0 0.0
      %6495 = vmatmul.mubr.f32.gmra.mrb[0].mxu0 %v6310
      %v6496 = vpop.f32.mrb[0].mxu0
      %v6497 = vadd.f32 %v6274, %v6496
      %v6498 = vpop.f32.mrb[0].mxu0
      %6499 = vmatprep.mubr.f32.mxu0 0.0
      %6500 = vmatmul.mubr.f32.gmra.mrb[0].mxu0 %v6313
      %v6501 = vpop.f32.mrb[0].mxu0
      %v6502 = vadd.f32 %v6274, %v6501
      %v6503 = vpop.f32.mrb[0].mxu0
      %6504 = vmatprep.mubr.f32.mxu0 0.0
      %6505 = vmatmul.mubr.f32.gmra.mrb[0].mxu0 %v6316
      %v6506 = vpop.f32.mrb[0].mxu0
      %v6507 = vadd.f32 %v6274, %v6506
      %v6508 = vpop.f32.mrb[0].mxu0
      %6509 = vmatprep.mubr.f32.mxu0 0.0
      %6510 = vmatmul.mubr.f32.gmra.mrb[0].mxu0 %v6319
      %v6511 = vpop.f32.mrb[0].mxu0
      %v6512 = vadd.f32 %v6274, %v6511
      %v6513 = vpop.f32.mrb[0].mxu0
      %6514 = vmatprep.mubr.f32.mxu0 0.0
      %6515 = vmatmul.mubr.f32.gmra.mrb[0].mxu0 %v6322
      %v6516 = vpop.f32.mrb[0].mxu0
      %v6517 = vadd.f32 %v6274, %v6516
      %v6518 = vpop.f32.mrb[0].mxu0
      %6519 = vmatprep.mubr.f32.mxu0 0.0
      %6520 = vmatmul.mubr.f32.gmra.mrb[0].mxu0 %v6325
      %v6521 = vpop.f32.mrb[0].mxu0
      %v6522 = vadd.f32 %v6274, %v6521
      %v6523 = vpop.f32.mrb[0].mxu0
      %6524 = vmatprep.mubr.f32.mxu0 0.0
      %6525 = vmatmul.mubr.f32.gmra.mrb[0].mxu0 %v6328
      %v6526 = vpop.f32.mrb[0].mxu0
      %v6527 = vadd.f32 %v6274, %v6526
      %v6528 = vpop.f32.mrb[0].mxu0
      %6529 = vmatprep.mubr.f32.mxu0 0.0
      %6530 = vmatmul.mubr.f32.gmra.mrb[0].mxu0 %v6331
      %v6531 = vpop.f32.mrb[0].mxu0
      %v6532 = vadd.f32 %v6274, %v6531
      %v6533 = vpop.f32.mrb[0].mxu0
      %6534 = vmatprep.mubr.f32.mxu0 0.0
      %6535 = vmatmul.mubr.f32.gmra.mrb[0].mxu0 %v6334
      %v6536 = vpop.f32.mrb[0].mxu0
      %v6537 = vadd.f32 %v6274, %v6536
      %v6538 = vpop.f32.mrb[0].mxu0
      %6539 = vmatprep.mubr.f32.mxu0 0.0
      %6540 = vmatmul.mubr.f32.gmra.mrb[0].mxu0 %v6337
      %v6541 = vpop.f32.mrb[0].mxu0
      %v6542 = vadd.f32 %v6274, %v6541
      %v6543 = vpop.f32.mrb[0].mxu0
      %6544 = vmatprep.mubr.f32.mxu0 0.0
      %6545 = vmatmul.mubr.f32.gmra.mrb[0].mxu0 %v6340
      %v6546 = vpop.f32.mrb[0].mxu0
      %v6547 = vadd.f32 %v6274, %v6546
      %v6548 = vpop.f32.mrb[0].mxu0
      %6549 = vmatprep.mubr.f32.mxu0 0.0
      %6550 = vmatmul.mubr.f32.gmra.mrb[0].mxu0 %v6343
      %v6551 = vpop.f32.mrb[0].mxu0
      %v6552 = vadd.f32 %v6274, %v6551
      %v6553 = vpop.f32.mrb[0].mxu0
      %6554 = vmatprep.mubr.f32.mxu0 0.0
      %6555 = vmatmul.mubr.f32.gmra.mrb[0].mxu0 %v6346
      %v6556 = vpop.f32.mrb[0].mxu0
      %v6557 = vadd.f32 %v6274, %v6556
      %v6558 = vpop.f32.mrb[0].mxu0
      %6559 = vmatprep.mubr.f32.mxu0 0.0
      %6560 = vmatmul.mubr.f32.gmra.mrb[0].mxu0 %v6349
      %v6561 = vpop.f32.mrb[0].mxu0
      %v6562 = vadd.f32 %v6274, %v6561
      %v6563 = vpop.f32.mrb[0].mxu0
      %6564 = vmatprep.mubr.f32.mxu0 0.0
      %6565 = vmatmul.mubr.f32.gmra.mrb[0].mxu0 %v6352
      %v6566 = vpop.f32.mrb[0].mxu0
      %v6567 = vadd.f32 %v6274, %v6566
      %v6568 = vpop.f32.mrb[0].mxu0
      %6569 = vmatprep.mubr.f32.mxu0 0.0
      %6570 = vmatmul.mubr.f32.gmra.mrb[0].mxu0 %v6355
      %v6571 = vpop.f32.mrb[0].mxu0
      %v6572 = vadd.f32 %v6274, %v6571
      %v6573 = vpop.f32.mrb[0].mxu0
      %6574 = vmatprep.mubr.f32.mxu0 0.0
      %6575 = vmatmul.mubr.f32.gmra.mrb[0].mxu0 %v6358
      %v6576 = vpop.f32.mrb[0].mxu0
      %v6577 = vadd.f32 %v6274, %v6576
      %v6578 = vpop.f32.mrb[0].mxu0
      %6579 = vmatprep.mubr.f32.mxu0 0.0
      %6580 = vmatmul.mubr.f32.gmra.mrb[0].mxu0 %v6361
      %v6581 = vpop.f32.mrb[0].mxu0
      %v6582 = vadd.f32 %v6274, %v6581
      %v6583 = vpop.f32.mrb[0].mxu0
      %6584 = vmatprep.mubr.f32.mxu0 0.0
      %6585 = vmatmul.mubr.f32.gmra.mrb[0].mxu0 %v6364
      %v6586 = vpop.f32.mrb[0].mxu0
      %v6587 = vadd.f32 %v6274, %v6586
      %v6588 = vpop.f32.mrb[0].mxu0
      %6589 = vmatprep.mubr.f32.mxu0 0.0
      %6590 = vmatmul.mubr.f32.gmra.mrb[0].mxu0 %v6367
      %v6591 = vpop.f32.mrb[0].mxu0
      %v6592 = vadd.f32 %v6274, %v6591
      %v6593 = vpop.f32.mrb[0].mxu0
      %6594 = vmatprep.mubr.f32.mxu0 0.0
      %6595 = vmatmul.mubr.f32.gmra.mrb[0].mxu0 %v6370
      %v6596 = vpop.f32.mrb[0].mxu0
      %v6597 = vadd.f32 %v6274, %v6596
      %v6598 = vpop.f32.mrb[0].mxu0
      %6599 = vdwg.mxu0
      %v6600 = vmax.f32 %v6442, 0.0
      %v6601 = vmax.f32 %v6447, 0.0
      %v6602 = vmax.f32 %v6452, 0.0
      %v6603 = vmax.f32 %v6457, 0.0
      %v6604 = vmax.f32 %v6462, 0.0
      %v6605 = vmax.f32 %v6467, 0.0
      %v6606 = vmax.f32 %v6472, 0.0
      %v6607 = vmax.f32 %v6477, 0.0
      %v6608 = vmax.f32 %v6482, 0.0
      %v6609 = vmax.f32 %v6487, 0.0
      %v6610 = vmax.f32 %v6492, 0.0
      %v6611 = vmax.f32 %v6497, 0.0
      %v6612 = vmax.f32 %v6502, 0.0
      %v6613 = vmax.f32 %v6507, 0.0
      %v6614 = vmax.f32 %v6512, 0.0
      %v6615 = vmax.f32 %v6517, 0.0
      %v6616 = vmax.f32 %v6522, 0.0
      %v6617 = vmax.f32 %v6527, 0.0
      %v6618 = vmax.f32 %v6532, 0.0
      %v6619 = vmax.f32 %v6537, 0.0
      %v6620 = vmax.f32 %v6542, 0.0
      %v6621 = vmax.f32 %v6547, 0.0
      %v6622 = vmax.f32 %v6552, 0.0
      %v6623 = vmax.f32 %v6557, 0.0
      %v6624 = vmax.f32 %v6562, 0.0
      %v6625 = vmax.f32 %v6567, 0.0
      %v6626 = vmax.f32 %v6572, 0.0
      %v6627 = vmax.f32 %v6577, 0.0
      %v6628 = vmax.f32 %v6582, 0.0
      %v6629 = vmax.f32 %v6587, 0.0
      %v6630 = vmax.f32 %v6592, 0.0
      %v6631 = vmax.f32 %v6597, 0.0
      %s6632 = scalar_lea.vmem %s1, 64
      %v6633 = vld [vmem:[%s6632] sm:$0xff]
      %v6634 = vld [vmem:[%s6632 + $0x8] sm:$0xff]
      %v6635 = vld [vmem:[%s6632 + $0x10] sm:$0xff]
      %v6636 = vld [vmem:[%s6632 + $0x18] sm:$0xff]
      %v6637 = vld [vmem:[%s6632 + $0x20] sm:$0xff]
      %v6638 = vld [vmem:[%s6632 + $0x28] sm:$0xff]
      %v6639 = vld [vmem:[%s6632 + $0x30] sm:$0xff]
      %v6640 = vld [vmem:[%s6632 + $0x38] sm:$0xff]
      %v6642 = vsel %vm728, %v6600, 0
      %v6645 = vsel %vm728, %v6601, 0
      %v6648 = vsel %vm728, %v6602, 0
      %v6651 = vsel %vm728, %v6603, 0
      %v6654 = vsel %vm728, %v6604, 0
      %v6657 = vsel %vm728, %v6605, 0
      %v6660 = vsel %vm728, %v6606, 0
      %v6663 = vsel %vm728, %v6607, 0
      %v6666 = vsel %vm728, %v6608, 0
      %v6669 = vsel %vm728, %v6609, 0
      %v6672 = vsel %vm728, %v6610, 0
      %v6675 = vsel %vm728, %v6611, 0
      %v6678 = vsel %vm728, %v6612, 0
      %v6681 = vsel %vm728, %v6613, 0
      %v6684 = vsel %vm728, %v6614, 0
      %v6687 = vsel %vm728, %v6615, 0
      %v6690 = vsel %vm728, %v6616, 0
      %v6693 = vsel %vm728, %v6617, 0
      %v6696 = vsel %vm728, %v6618, 0
      %v6699 = vsel %vm728, %v6619, 0
      %v6702 = vsel %vm728, %v6620, 0
      %v6705 = vsel %vm728, %v6621, 0
      %v6708 = vsel %vm728, %v6622, 0
      %v6711 = vsel %vm728, %v6623, 0
      %v6714 = vsel %vm728, %v6624, 0
      %v6717 = vsel %vm728, %v6625, 0
      %v6720 = vsel %vm728, %v6626, 0
      %v6723 = vsel %vm728, %v6627, 0
      %v6726 = vsel %vm728, %v6628, 0
      %v6729 = vsel %vm728, %v6629, 0
      %v6732 = vsel %vm728, %v6630, 0
      %v6735 = vsel %vm728, %v6631, 0
      %v6738 = vsel %vm825, %v6633, 0
      %6740 = vmatprep.subr.mxu0 0.0
      %6741 = vmatpush1.msra.mxu0 %v6738
      %6742 = vmatprep.subr.mxu0 0.0
      %6743 = vmatpush1.msra.mxu0 0.0
      %6744 = vmatprep.subr.mxu0 0.0
      %6745 = vmatpush1.msra.mxu0 0.0
      %6746 = vmatprep.subr.mxu0 0.0
      %6747 = vmatpush1.msra.mxu0 0.0
      %6748 = vmatprep.subr.mxu0 0.0
      %6749 = vmatpush1.msra.mxu0 0.0
      %6750 = vmatprep.subr.mxu0 0.0
      %6751 = vmatpush1.msra.mxu0 0.0
      %6752 = vmatprep.subr.mxu0 0.0
      %6753 = vmatpush1.msra.mxu0 0.0
      %6754 = vmatprep.subr.mxu0 0.0
      %6755 = vmatpush1.msra.mxu0 0.0
      %6756 = vmatprep.subr.mxu0 0.0
      %6757 = vmatpush1.msra.mxu0 0.0
      %6758 = vmatprep.subr.mxu0 0.0
      %6759 = vmatpush1.msra.mxu0 0.0
      %6760 = vmatprep.subr.mxu0 0.0
      %6761 = vmatpush1.msra.mxu0 0.0
      %6762 = vmatprep.subr.mxu0 0.0
      %6763 = vmatpush1.msra.mxu0 0.0
      %6764 = vmatprep.subr.mxu0 0.0
      %6765 = vmatpush1.msra.mxu0 0.0
      %6766 = vmatprep.subr.mxu0 0.0
      %6767 = vmatpush1.msra.mxu0 0.0
      %6768 = vmatprep.subr.mxu0 0.0
      %6769 = vmatpush1.msra.mxu0 0.0
      %6770 = vmatprep.subr.mxu0 0.0
      %6771 = vmatpush1.msra.mxu0 0.0
      %6772 = vmatprep.subr.mxu0 0.0
      %6773 = vmatpush1.msra.mxu0 0.0
      %6774 = vmatprep.subr.mxu0 0.0
      %6775 = vmatpush1.msra.mxu0 0.0
      %6776 = vmatprep.subr.mxu0 0.0
      %6777 = vmatpush1.msra.mxu0 0.0
      %6778 = vmatprep.subr.mxu0 0.0
      %6779 = vmatpush1.msra.mxu0 0.0
      %6780 = vmatprep.subr.mxu0 0.0
      %6781 = vmatpush1.msra.mxu0 0.0
      %6782 = vmatprep.subr.mxu0 0.0
      %6783 = vmatpush1.msra.mxu0 0.0
      %6784 = vmatprep.subr.mxu0 0.0
      %6785 = vmatpush1.msra.mxu0 0.0
      %6786 = vmatprep.subr.mxu0 0.0
      %6787 = vmatpush1.msra.mxu0 0.0
      %6788 = vmatprep.subr.mxu0 0.0
      %6789 = vmatpush1.msra.mxu0 0.0
      %6790 = vmatprep.subr.mxu0 0.0
      %6791 = vmatpush1.msra.mxu0 0.0
      %6792 = vmatprep.subr.mxu0 0.0
      %6793 = vmatpush1.msra.mxu0 0.0
      %6794 = vmatprep.subr.mxu0 0.0
      %6795 = vmatpush1.msra.mxu0 0.0
      %6796 = vmatprep.subr.mxu0 0.0
      %6797 = vmatpush1.msra.mxu0 0.0
      %6798 = vmatprep.subr.mxu0 0.0
      %6799 = vmatpush1.msra.mxu0 0.0
      %6800 = vmatprep.subr.mxu0 0.0
      %6801 = vmatpush1.msra.mxu0 0.0
      %6802 = vmatprep.subr.mxu0 0.0
      %6803 = vmatpush1.msra.mxu0 0.0
      %6804 = vmatprep.mubr.f32.mxu0 0.0
      %6805 = vmatmul.mubr.f32.gmra.mrb[0].mxu0 %v6642
      %v6806 = vpop.f32.mrb[0].mxu0
      %v6807 = vadd.f32 0.0, %v6806
      %v6808 = vpop.f32.mrb[0].mxu0
      %6809 = vmatprep.mubr.f32.mxu0 0.0
      %6810 = vmatmul.mubr.f32.gmra.mrb[0].mxu0 %v6645
      %v6811 = vpop.f32.mrb[0].mxu0
      %v6812 = vadd.f32 0.0, %v6811
      %v6813 = vpop.f32.mrb[0].mxu0
      %6814 = vmatprep.mubr.f32.mxu0 0.0
      %6815 = vmatmul.mubr.f32.gmra.mrb[0].mxu0 %v6648
      %v6816 = vpop.f32.mrb[0].mxu0
      %v6817 = vadd.f32 0.0, %v6816
      %v6818 = vpop.f32.mrb[0].mxu0
      %6819 = vmatprep.mubr.f32.mxu0 0.0
      %6820 = vmatmul.mubr.f32.gmra.mrb[0].mxu0 %v6651
      %v6821 = vpop.f32.mrb[0].mxu0
      %v6822 = vadd.f32 0.0, %v6821
      %v6823 = vpop.f32.mrb[0].mxu0
      %6824 = vmatprep.mubr.f32.mxu0 0.0
      %6825 = vmatmul.mubr.f32.gmra.mrb[0].mxu0 %v6654
      %v6826 = vpop.f32.mrb[0].mxu0
      %v6827 = vadd.f32 0.0, %v6826
      %v6828 = vpop.f32.mrb[0].mxu0
      %6829 = vmatprep.mubr.f32.mxu0 0.0
      %6830 = vmatmul.mubr.f32.gmra.mrb[0].mxu0 %v6657
      %v6831 = vpop.f32.mrb[0].mxu0
      %v6832 = vadd.f32 0.0, %v6831
      %v6833 = vpop.f32.mrb[0].mxu0
      %6834 = vmatprep.mubr.f32.mxu0 0.0
      %6835 = vmatmul.mubr.f32.gmra.mrb[0].mxu0 %v6660
      %v6836 = vpop.f32.mrb[0].mxu0
      %v6837 = vadd.f32 0.0, %v6836
      %v6838 = vpop.f32.mrb[0].mxu0
      %6839 = vmatprep.mubr.f32.mxu0 0.0
      %6840 = vmatmul.mubr.f32.gmra.mrb[0].mxu0 %v6663
      %v6841 = vpop.f32.mrb[0].mxu0
      %v6842 = vadd.f32 0.0, %v6841
      %v6843 = vpop.f32.mrb[0].mxu0
      %6844 = vmatprep.mubr.f32.mxu0 0.0
      %6845 = vmatmul.mubr.f32.gmra.mrb[0].mxu0 %v6666
      %v6846 = vpop.f32.mrb[0].mxu0
      %v6847 = vadd.f32 0.0, %v6846
      %v6848 = vpop.f32.mrb[0].mxu0
      %6849 = vmatprep.mubr.f32.mxu0 0.0
      %6850 = vmatmul.mubr.f32.gmra.mrb[0].mxu0 %v6669
      %v6851 = vpop.f32.mrb[0].mxu0
      %v6852 = vadd.f32 0.0, %v6851
      %v6853 = vpop.f32.mrb[0].mxu0
      %6854 = vmatprep.mubr.f32.mxu0 0.0
      %6855 = vmatmul.mubr.f32.gmra.mrb[0].mxu0 %v6672
      %v6856 = vpop.f32.mrb[0].mxu0
      %v6857 = vadd.f32 0.0, %v6856
      %v6858 = vpop.f32.mrb[0].mxu0
      %6859 = vmatprep.mubr.f32.mxu0 0.0
      %6860 = vmatmul.mubr.f32.gmra.mrb[0].mxu0 %v6675
      %v6861 = vpop.f32.mrb[0].mxu0
      %v6862 = vadd.f32 0.0, %v6861
      %v6863 = vpop.f32.mrb[0].mxu0
      %6864 = vmatprep.mubr.f32.mxu0 0.0
      %6865 = vmatmul.mubr.f32.gmra.mrb[0].mxu0 %v6678
      %v6866 = vpop.f32.mrb[0].mxu0
      %v6867 = vadd.f32 0.0, %v6866
      %v6868 = vpop.f32.mrb[0].mxu0
      %6869 = vmatprep.mubr.f32.mxu0 0.0
      %6870 = vmatmul.mubr.f32.gmra.mrb[0].mxu0 %v6681
      %v6871 = vpop.f32.mrb[0].mxu0
      %v6872 = vadd.f32 0.0, %v6871
      %v6873 = vpop.f32.mrb[0].mxu0
      %6874 = vmatprep.mubr.f32.mxu0 0.0
      %6875 = vmatmul.mubr.f32.gmra.mrb[0].mxu0 %v6684
      %v6876 = vpop.f32.mrb[0].mxu0
      %v6877 = vadd.f32 0.0, %v6876
      %v6878 = vpop.f32.mrb[0].mxu0
      %6879 = vmatprep.mubr.f32.mxu0 0.0
      %6880 = vmatmul.mubr.f32.gmra.mrb[0].mxu0 %v6687
      %v6881 = vpop.f32.mrb[0].mxu0
      %v6882 = vadd.f32 0.0, %v6881
      %v6883 = vpop.f32.mrb[0].mxu0
      %6884 = vmatprep.mubr.f32.mxu0 0.0
      %6885 = vmatmul.mubr.f32.gmra.mrb[0].mxu0 %v6690
      %v6886 = vpop.f32.mrb[0].mxu0
      %v6887 = vadd.f32 0.0, %v6886
      %v6888 = vpop.f32.mrb[0].mxu0
      %6889 = vmatprep.mubr.f32.mxu0 0.0
      %6890 = vmatmul.mubr.f32.gmra.mrb[0].mxu0 %v6693
      %v6891 = vpop.f32.mrb[0].mxu0
      %v6892 = vadd.f32 0.0, %v6891
      %v6893 = vpop.f32.mrb[0].mxu0
      %6894 = vmatprep.mubr.f32.mxu0 0.0
      %6895 = vmatmul.mubr.f32.gmra.mrb[0].mxu0 %v6696
      %v6896 = vpop.f32.mrb[0].mxu0
      %v6897 = vadd.f32 0.0, %v6896
      %v6898 = vpop.f32.mrb[0].mxu0
      %6899 = vmatprep.mubr.f32.mxu0 0.0
      %6900 = vmatmul.mubr.f32.gmra.mrb[0].mxu0 %v6699
      %v6901 = vpop.f32.mrb[0].mxu0
      %v6902 = vadd.f32 0.0, %v6901
      %v6903 = vpop.f32.mrb[0].mxu0
      %6904 = vmatprep.mubr.f32.mxu0 0.0
      %6905 = vmatmul.mubr.f32.gmra.mrb[0].mxu0 %v6702
      %v6906 = vpop.f32.mrb[0].mxu0
      %v6907 = vadd.f32 0.0, %v6906
      %v6908 = vpop.f32.mrb[0].mxu0
      %6909 = vmatprep.mubr.f32.mxu0 0.0
      %6910 = vmatmul.mubr.f32.gmra.mrb[0].mxu0 %v6705
      %v6911 = vpop.f32.mrb[0].mxu0
      %v6912 = vadd.f32 0.0, %v6911
      %v6913 = vpop.f32.mrb[0].mxu0
      %6914 = vmatprep.mubr.f32.mxu0 0.0
      %6915 = vmatmul.mubr.f32.gmra.mrb[0].mxu0 %v6708
      %v6916 = vpop.f32.mrb[0].mxu0
      %v6917 = vadd.f32 0.0, %v6916
      %v6918 = vpop.f32.mrb[0].mxu0
      %6919 = vmatprep.mubr.f32.mxu0 0.0
      %6920 = vmatmul.mubr.f32.gmra.mrb[0].mxu0 %v6711
      %v6921 = vpop.f32.mrb[0].mxu0
      %v6922 = vadd.f32 0.0, %v6921
      %v6923 = vpop.f32.mrb[0].mxu0
      %6924 = vmatprep.mubr.f32.mxu0 0.0
      %6925 = vmatmul.mubr.f32.gmra.mrb[0].mxu0 %v6714
      %v6926 = vpop.f32.mrb[0].mxu0
      %v6927 = vadd.f32 0.0, %v6926
      %v6928 = vpop.f32.mrb[0].mxu0
      %6929 = vmatprep.mubr.f32.mxu0 0.0
      %6930 = vmatmul.mubr.f32.gmra.mrb[0].mxu0 %v6717
      %v6931 = vpop.f32.mrb[0].mxu0
      %v6932 = vadd.f32 0.0, %v6931
      %v6933 = vpop.f32.mrb[0].mxu0
      %6934 = vmatprep.mubr.f32.mxu0 0.0
      %6935 = vmatmul.mubr.f32.gmra.mrb[0].mxu0 %v6720
      %v6936 = vpop.f32.mrb[0].mxu0
      %v6937 = vadd.f32 0.0, %v6936
      %v6938 = vpop.f32.mrb[0].mxu0
      %6939 = vmatprep.mubr.f32.mxu0 0.0
      %6940 = vmatmul.mubr.f32.gmra.mrb[0].mxu0 %v6723
      %v6941 = vpop.f32.mrb[0].mxu0
      %v6942 = vadd.f32 0.0, %v6941
      %v6943 = vpop.f32.mrb[0].mxu0
      %6944 = vmatprep.mubr.f32.mxu0 0.0
      %6945 = vmatmul.mubr.f32.gmra.mrb[0].mxu0 %v6726
      %v6946 = vpop.f32.mrb[0].mxu0
      %v6947 = vadd.f32 0.0, %v6946
      %v6948 = vpop.f32.mrb[0].mxu0
      %6949 = vmatprep.mubr.f32.mxu0 0.0
      %6950 = vmatmul.mubr.f32.gmra.mrb[0].mxu0 %v6729
      %v6951 = vpop.f32.mrb[0].mxu0
      %v6952 = vadd.f32 0.0, %v6951
      %v6953 = vpop.f32.mrb[0].mxu0
      %6954 = vmatprep.mubr.f32.mxu0 0.0
      %6955 = vmatmul.mubr.f32.gmra.mrb[0].mxu0 %v6732
      %v6956 = vpop.f32.mrb[0].mxu0
      %v6957 = vadd.f32 0.0, %v6956
      %v6958 = vpop.f32.mrb[0].mxu0
      %6959 = vmatprep.mubr.f32.mxu0 0.0
      %6960 = vmatmul.mubr.f32.gmra.mrb[0].mxu0 %v6735
      %v6961 = vpop.f32.mrb[0].mxu0
      %v6962 = vadd.f32 0.0, %v6961
      %v6963 = vpop.f32.mrb[0].mxu0
      %6964 = vdwg.mxu0
      %v6966 = vsel %vm728, %v6807, 0
      %v6969 = vsel %vm728, %v6812, 0
      %6971 = vmatprep.subr.mxu0 0.0
      %6972 = vmatpush1.xpose.msra.mxu0 %v6642
      %6973 = vmatprep.subr.mxu0 0.0
      %6974 = vmatpush1.xpose.msra.mxu0 %v6645
      %6975 = vmatprep.subr.mxu0 0.0
      %6976 = vmatpush1.xpose.msra.mxu0 0.0
      %6977 = vmatprep.subr.mxu0 0.0
      %6978 = vmatpush1.xpose.msra.mxu0 0.0
      %6979 = vmatprep.subr.mxu0 0.0
      %6980 = vmatpush1.xpose.msra.mxu0 0.0
      %6981 = vmatprep.subr.mxu0 0.0
      %6982 = vmatpush1.xpose.msra.mxu0 0.0
      %6983 = vmatprep.subr.mxu0 0.0
      %6984 = vmatpush1.xpose.msra.mxu0 0.0
      %6985 = vmatprep.subr.mxu0 0.0
      %6986 = vmatpush1.xpose.msra.mxu0 0.0
      %6987 = vmatprep.subr.mxu0 0.0
      %6988 = vmatpush1.xpose.msra.mxu0 0.0
      %6989 = vmatprep.subr.mxu0 0.0
      %6990 = vmatpush1.xpose.msra.mxu0 0.0
      %6991 = vmatprep.subr.mxu0 0.0
      %6992 = vmatpush1.xpose.msra.mxu0 0.0
      %6993 = vmatprep.subr.mxu0 0.0
      %6994 = vmatpush1.xpose.msra.mxu0 0.0
      %6995 = vmatprep.subr.mxu0 0.0
      %6996 = vmatpush1.xpose.msra.mxu0 0.0
      %6997 = vmatprep.subr.mxu0 0.0
      %6998 = vmatpush1.xpose.msra.mxu0 0.0
      %6999 = vmatprep.subr.mxu0 0.0
      %7000 = vmatpush1.xpose.msra.mxu0 0.0
      %7001 = vmatprep.subr.mxu0 0.0
      %7002 = vmatpush1.xpose.msra.mxu0 0.0
      %7003 = vmatprep.subr.mxu0 0.0
      %7004 = vmatpush1.xpose.msra.mxu0 0.0
      %7005 = vmatprep.subr.mxu0 0.0
      %7006 = vmatpush1.xpose.msra.mxu0 0.0
      %7007 = vmatprep.subr.mxu0 0.0
      %7008 = vmatpush1.xpose.msra.mxu0 0.0
      %7009 = vmatprep.subr.mxu0 0.0
      %7010 = vmatpush1.xpose.msra.mxu0 0.0
      %7011 = vmatprep.subr.mxu0 0.0
      %7012 = vmatpush1.xpose.msra.mxu0 0.0
      %7013 = vmatprep.subr.mxu0 0.0
      %7014 = vmatpush1.xpose.msra.mxu0 0.0
      %7015 = vmatprep.subr.mxu0 0.0
      %7016 = vmatpush1.xpose.msra.mxu0 0.0
      %7017 = vmatprep.subr.mxu0 0.0
      %7018 = vmatpush1.xpose.msra.mxu0 0.0
      %7019 = vmatprep.subr.mxu0 0.0
      %7020 = vmatpush1.xpose.msra.mxu0 0.0
      %7021 = vmatprep.subr.mxu0 0.0
      %7022 = vmatpush1.xpose.msra.mxu0 0.0
      %7023 = vmatprep.subr.mxu0 0.0
      %7024 = vmatpush1.xpose.msra.mxu0 0.0
      %7025 = vmatprep.subr.mxu0 0.0
      %7026 = vmatpush1.xpose.msra.mxu0 0.0
      %7027 = vmatprep.subr.mxu0 0.0
      %7028 = vmatpush1.xpose.msra.mxu0 0.0
      %7029 = vmatprep.subr.mxu0 0.0
      %7030 = vmatpush1.xpose.msra.mxu0 0.0
      %7031 = vmatprep.subr.mxu0 0.0
      %7032 = vmatpush1.xpose.msra.mxu0 0.0
      %7033 = vmatprep.subr.mxu0 0.0
      %7034 = vmatpush1.xpose.msra.mxu0 0.0
      %7035 = vmatprep.mubr.f32.mxu0 0.0
      %7036 = vmatmul.mubr.f32.gmra.mrb[0].mxu0 %v6966
      %v7037 = vpop.f32.mrb[0].mxu0
      %v7038 = vadd.f32 0.0, %v7037
      %v7039 = vpop.f32.mrb[0].mxu0
      %7040 = vmatprep.mubr.f32.mxu0 0.0
      %7041 = vmatmul.mubr.f32.gmra.mrb[0].mxu0 %v6969
      %v7042 = vpop.f32.mrb[0].mxu0
      %v7043 = vadd.f32 0.0, %v7042
      %v7044 = vpop.f32.mrb[0].mxu0
      %7045 = vdwg.mxu0
      %v7047 = vsel %vm728, %v6817, 0
      %v7050 = vsel %vm728, %v6822, 0
      %7052 = vmatprep.subr.mxu0 0.0
      %7053 = vmatpush1.xpose.msra.mxu0 %v6648
      %7054 = vmatprep.subr.mxu0 0.0
      %7055 = vmatpush1.xpose.msra.mxu0 %v6651
      %7056 = vmatprep.subr.mxu0 0.0
      %7057 = vmatpush1.xpose.msra.mxu0 0.0
      %7058 = vmatprep.subr.mxu0 0.0
      %7059 = vmatpush1.xpose.msra.mxu0 0.0
      %7060 = vmatprep.subr.mxu0 0.0
      %7061 = vmatpush1.xpose.msra.mxu0 0.0
      %7062 = vmatprep.subr.mxu0 0.0
      %7063 = vmatpush1.xpose.msra.mxu0 0.0
      %7064 = vmatprep.subr.mxu0 0.0
      %7065 = vmatpush1.xpose.msra.mxu0 0.0
      %7066 = vmatprep.subr.mxu0 0.0
      %7067 = vmatpush1.xpose.msra.mxu0 0.0
      %7068 = vmatprep.subr.mxu0 0.0
      %7069 = vmatpush1.xpose.msra.mxu0 0.0
      %7070 = vmatprep.subr.mxu0 0.0
      %7071 = vmatpush1.xpose.msra.mxu0 0.0
      %7072 = vmatprep.subr.mxu0 0.0
      %7073 = vmatpush1.xpose.msra.mxu0 0.0
      %7074 = vmatprep.subr.mxu0 0.0
      %7075 = vmatpush1.xpose.msra.mxu0 0.0
      %7076 = vmatprep.subr.mxu0 0.0
      %7077 = vmatpush1.xpose.msra.mxu0 0.0
      %7078 = vmatprep.subr.mxu0 0.0
      %7079 = vmatpush1.xpose.msra.mxu0 0.0
      %7080 = vmatprep.subr.mxu0 0.0
      %7081 = vmatpush1.xpose.msra.mxu0 0.0
      %7082 = vmatprep.subr.mxu0 0.0
      %7083 = vmatpush1.xpose.msra.mxu0 0.0
      %7084 = vmatprep.subr.mxu0 0.0
      %7085 = vmatpush1.xpose.msra.mxu0 0.0
      %7086 = vmatprep.subr.mxu0 0.0
      %7087 = vmatpush1.xpose.msra.mxu0 0.0
      %7088 = vmatprep.subr.mxu0 0.0
      %7089 = vmatpush1.xpose.msra.mxu0 0.0
      %7090 = vmatprep.subr.mxu0 0.0
      %7091 = vmatpush1.xpose.msra.mxu0 0.0
      %7092 = vmatprep.subr.mxu0 0.0
      %7093 = vmatpush1.xpose.msra.mxu0 0.0
      %7094 = vmatprep.subr.mxu0 0.0
      %7095 = vmatpush1.xpose.msra.mxu0 0.0
      %7096 = vmatprep.subr.mxu0 0.0
      %7097 = vmatpush1.xpose.msra.mxu0 0.0
      %7098 = vmatprep.subr.mxu0 0.0
      %7099 = vmatpush1.xpose.msra.mxu0 0.0
      %7100 = vmatprep.subr.mxu0 0.0
      %7101 = vmatpush1.xpose.msra.mxu0 0.0
      %7102 = vmatprep.subr.mxu0 0.0
      %7103 = vmatpush1.xpose.msra.mxu0 0.0
      %7104 = vmatprep.subr.mxu0 0.0
      %7105 = vmatpush1.xpose.msra.mxu0 0.0
      %7106 = vmatprep.subr.mxu0 0.0
      %7107 = vmatpush1.xpose.msra.mxu0 0.0
      %7108 = vmatprep.subr.mxu0 0.0
      %7109 = vmatpush1.xpose.msra.mxu0 0.0
      %7110 = vmatprep.subr.mxu0 0.0
      %7111 = vmatpush1.xpose.msra.mxu0 0.0
      %7112 = vmatprep.subr.mxu0 0.0
      %7113 = vmatpush1.xpose.msra.mxu0 0.0
      %7114 = vmatprep.subr.mxu0 0.0
      %7115 = vmatpush1.xpose.msra.mxu0 0.0
      %7116 = vmatprep.mubr.f32.mxu0 0.0
      %7117 = vmatmul.mubr.f32.gmra.mrb[0].mxu0 %v7047
      %v7118 = vpop.f32.mrb[0].mxu0
      %v7119 = vadd.f32 0.0, %v7118
      %v7120 = vpop.f32.mrb[0].mxu0
      %7121 = vmatprep.mubr.f32.mxu0 0.0
      %7122 = vmatmul.mubr.f32.gmra.mrb[0].mxu0 %v7050
      %v7123 = vpop.f32.mrb[0].mxu0
      %v7124 = vadd.f32 0.0, %v7123
      %v7125 = vpop.f32.mrb[0].mxu0
      %7126 = vdwg.mxu0
      %v7128 = vsel %vm728, %v6827, 0
      %v7131 = vsel %vm728, %v6832, 0
      %7133 = vmatprep.subr.mxu0 0.0
      %7134 = vmatpush1.xpose.msra.mxu0 %v6654
      %7135 = vmatprep.subr.mxu0 0.0
      %7136 = vmatpush1.xpose.msra.mxu0 %v6657
      %7137 = vmatprep.subr.mxu0 0.0
      %7138 = vmatpush1.xpose.msra.mxu0 0.0
      %7139 = vmatprep.subr.mxu0 0.0
      %7140 = vmatpush1.xpose.msra.mxu0 0.0
      %7141 = vmatprep.subr.mxu0 0.0
      %7142 = vmatpush1.xpose.msra.mxu0 0.0
      %7143 = vmatprep.subr.mxu0 0.0
      %7144 = vmatpush1.xpose.msra.mxu0 0.0
      %7145 = vmatprep.subr.mxu0 0.0
      %7146 = vmatpush1.xpose.msra.mxu0 0.0
      %7147 = vmatprep.subr.mxu0 0.0
      %7148 = vmatpush1.xpose.msra.mxu0 0.0
      %7149 = vmatprep.subr.mxu0 0.0
      %7150 = vmatpush1.xpose.msra.mxu0 0.0
      %7151 = vmatprep.subr.mxu0 0.0
      %7152 = vmatpush1.xpose.msra.mxu0 0.0
      %7153 = vmatprep.subr.mxu0 0.0
      %7154 = vmatpush1.xpose.msra.mxu0 0.0
      %7155 = vmatprep.subr.mxu0 0.0
      %7156 = vmatpush1.xpose.msra.mxu0 0.0
      %7157 = vmatprep.subr.mxu0 0.0
      %7158 = vmatpush1.xpose.msra.mxu0 0.0
      %7159 = vmatprep.subr.mxu0 0.0
      %7160 = vmatpush1.xpose.msra.mxu0 0.0
      %7161 = vmatprep.subr.mxu0 0.0
      %7162 = vmatpush1.xpose.msra.mxu0 0.0
      %7163 = vmatprep.subr.mxu0 0.0
      %7164 = vmatpush1.xpose.msra.mxu0 0.0
      %7165 = vmatprep.subr.mxu0 0.0
      %7166 = vmatpush1.xpose.msra.mxu0 0.0
      %7167 = vmatprep.subr.mxu0 0.0
      %7168 = vmatpush1.xpose.msra.mxu0 0.0
      %7169 = vmatprep.subr.mxu0 0.0
      %7170 = vmatpush1.xpose.msra.mxu0 0.0
      %7171 = vmatprep.subr.mxu0 0.0
      %7172 = vmatpush1.xpose.msra.mxu0 0.0
      %7173 = vmatprep.subr.mxu0 0.0
      %7174 = vmatpush1.xpose.msra.mxu0 0.0
      %7175 = vmatprep.subr.mxu0 0.0
      %7176 = vmatpush1.xpose.msra.mxu0 0.0
      %7177 = vmatprep.subr.mxu0 0.0
      %7178 = vmatpush1.xpose.msra.mxu0 0.0
      %7179 = vmatprep.subr.mxu0 0.0
      %7180 = vmatpush1.xpose.msra.mxu0 0.0
      %7181 = vmatprep.subr.mxu0 0.0
      %7182 = vmatpush1.xpose.msra.mxu0 0.0
      %7183 = vmatprep.subr.mxu0 0.0
      %7184 = vmatpush1.xpose.msra.mxu0 0.0
      %7185 = vmatprep.subr.mxu0 0.0
      %7186 = vmatpush1.xpose.msra.mxu0 0.0
      %7187 = vmatprep.subr.mxu0 0.0
      %7188 = vmatpush1.xpose.msra.mxu0 0.0
      %7189 = vmatprep.subr.mxu0 0.0
      %7190 = vmatpush1.xpose.msra.mxu0 0.0
      %7191 = vmatprep.subr.mxu0 0.0
      %7192 = vmatpush1.xpose.msra.mxu0 0.0
      %7193 = vmatprep.subr.mxu0 0.0
      %7194 = vmatpush1.xpose.msra.mxu0 0.0
      %7195 = vmatprep.subr.mxu0 0.0
      %7196 = vmatpush1.xpose.msra.mxu0 0.0
      %7197 = vmatprep.mubr.f32.mxu0 0.0
      %7198 = vmatmul.mubr.f32.gmra.mrb[0].mxu0 %v7128
      %v7199 = vpop.f32.mrb[0].mxu0
      %v7200 = vadd.f32 0.0, %v7199
      %v7201 = vpop.f32.mrb[0].mxu0
      %7202 = vmatprep.mubr.f32.mxu0 0.0
      %7203 = vmatmul.mubr.f32.gmra.mrb[0].mxu0 %v7131
      %v7204 = vpop.f32.mrb[0].mxu0
      %v7205 = vadd.f32 0.0, %v7204
      %v7206 = vpop.f32.mrb[0].mxu0
      %7207 = vdwg.mxu0
      %v7209 = vsel %vm728, %v6837, 0
      %v7212 = vsel %vm728, %v6842, 0
      %7214 = vmatprep.subr.mxu0 0.0
      %7215 = vmatpush1.xpose.msra.mxu0 %v6660
      %7216 = vmatprep.subr.mxu0 0.0
      %7217 = vmatpush1.xpose.msra.mxu0 %v6663
      %7218 = vmatprep.subr.mxu0 0.0
      %7219 = vmatpush1.xpose.msra.mxu0 0.0
      %7220 = vmatprep.subr.mxu0 0.0
      %7221 = vmatpush1.xpose.msra.mxu0 0.0
      %7222 = vmatprep.subr.mxu0 0.0
      %7223 = vmatpush1.xpose.msra.mxu0 0.0
      %7224 = vmatprep.subr.mxu0 0.0
      %7225 = vmatpush1.xpose.msra.mxu0 0.0
      %7226 = vmatprep.subr.mxu0 0.0
      %7227 = vmatpush1.xpose.msra.mxu0 0.0
      %7228 = vmatprep.subr.mxu0 0.0
      %7229 = vmatpush1.xpose.msra.mxu0 0.0
      %7230 = vmatprep.subr.mxu0 0.0
      %7231 = vmatpush1.xpose.msra.mxu0 0.0
      %7232 = vmatprep.subr.mxu0 0.0
      %7233 = vmatpush1.xpose.msra.mxu0 0.0
      %7234 = vmatprep.subr.mxu0 0.0
      %7235 = vmatpush1.xpose.msra.mxu0 0.0
      %7236 = vmatprep.subr.mxu0 0.0
      %7237 = vmatpush1.xpose.msra.mxu0 0.0
      %7238 = vmatprep.subr.mxu0 0.0
      %7239 = vmatpush1.xpose.msra.mxu0 0.0
      %7240 = vmatprep.subr.mxu0 0.0
      %7241 = vmatpush1.xpose.msra.mxu0 0.0
      %7242 = vmatprep.subr.mxu0 0.0
      %7243 = vmatpush1.xpose.msra.mxu0 0.0
      %7244 = vmatprep.subr.mxu0 0.0
      %7245 = vmatpush1.xpose.msra.mxu0 0.0
      %7246 = vmatprep.subr.mxu0 0.0
      %7247 = vmatpush1.xpose.msra.mxu0 0.0
      %7248 = vmatprep.subr.mxu0 0.0
      %7249 = vmatpush1.xpose.msra.mxu0 0.0
      %7250 = vmatprep.subr.mxu0 0.0
      %7251 = vmatpush1.xpose.msra.mxu0 0.0
      %7252 = vmatprep.subr.mxu0 0.0
      %7253 = vmatpush1.xpose.msra.mxu0 0.0
      %7254 = vmatprep.subr.mxu0 0.0
      %7255 = vmatpush1.xpose.msra.mxu0 0.0
      %7256 = vmatprep.subr.mxu0 0.0
      %7257 = vmatpush1.xpose.msra.mxu0 0.0
      %7258 = vmatprep.subr.mxu0 0.0
      %7259 = vmatpush1.xpose.msra.mxu0 0.0
      %7260 = vmatprep.subr.mxu0 0.0
      %7261 = vmatpush1.xpose.msra.mxu0 0.0
      %7262 = vmatprep.subr.mxu0 0.0
      %7263 = vmatpush1.xpose.msra.mxu0 0.0
      %7264 = vmatprep.subr.mxu0 0.0
      %7265 = vmatpush1.xpose.msra.mxu0 0.0
      %7266 = vmatprep.subr.mxu0 0.0
      %7267 = vmatpush1.xpose.msra.mxu0 0.0
      %7268 = vmatprep.subr.mxu0 0.0
      %7269 = vmatpush1.xpose.msra.mxu0 0.0
      %7270 = vmatprep.subr.mxu0 0.0
      %7271 = vmatpush1.xpose.msra.mxu0 0.0
      %7272 = vmatprep.subr.mxu0 0.0
      %7273 = vmatpush1.xpose.msra.mxu0 0.0
      %7274 = vmatprep.subr.mxu0 0.0
      %7275 = vmatpush1.xpose.msra.mxu0 0.0
      %7276 = vmatprep.subr.mxu0 0.0
      %7277 = vmatpush1.xpose.msra.mxu0 0.0
      %7278 = vmatprep.mubr.f32.mxu0 0.0
      %7279 = vmatmul.mubr.f32.gmra.mrb[0].mxu0 %v7209
      %v7280 = vpop.f32.mrb[0].mxu0
      %v7281 = vadd.f32 0.0, %v7280
      %v7282 = vpop.f32.mrb[0].mxu0
      %7283 = vmatprep.mubr.f32.mxu0 0.0
      %7284 = vmatmul.mubr.f32.gmra.mrb[0].mxu0 %v7212
      %v7285 = vpop.f32.mrb[0].mxu0
      %v7286 = vadd.f32 0.0, %v7285
      %v7287 = vpop.f32.mrb[0].mxu0
      %7288 = vdwg.mxu0
      %v7290 = vsel %vm728, %v6847, 0
      %v7293 = vsel %vm728, %v6852, 0
      %7295 = vmatprep.subr.mxu0 0.0
      %7296 = vmatpush1.xpose.msra.mxu0 %v6666
      %7297 = vmatprep.subr.mxu0 0.0
      %7298 = vmatpush1.xpose.msra.mxu0 %v6669
      %7299 = vmatprep.subr.mxu0 0.0
      %7300 = vmatpush1.xpose.msra.mxu0 0.0
      %7301 = vmatprep.subr.mxu0 0.0
      %7302 = vmatpush1.xpose.msra.mxu0 0.0
      %7303 = vmatprep.subr.mxu0 0.0
      %7304 = vmatpush1.xpose.msra.mxu0 0.0
      %7305 = vmatprep.subr.mxu0 0.0
      %7306 = vmatpush1.xpose.msra.mxu0 0.0
      %7307 = vmatprep.subr.mxu0 0.0
      %7308 = vmatpush1.xpose.msra.mxu0 0.0
      %7309 = vmatprep.subr.mxu0 0.0
      %7310 = vmatpush1.xpose.msra.mxu0 0.0
      %7311 = vmatprep.subr.mxu0 0.0
      %7312 = vmatpush1.xpose.msra.mxu0 0.0
      %7313 = vmatprep.subr.mxu0 0.0
      %7314 = vmatpush1.xpose.msra.mxu0 0.0
      %7315 = vmatprep.subr.mxu0 0.0
      %7316 = vmatpush1.xpose.msra.mxu0 0.0
      %7317 = vmatprep.subr.mxu0 0.0
      %7318 = vmatpush1.xpose.msra.mxu0 0.0
      %7319 = vmatprep.subr.mxu0 0.0
      %7320 = vmatpush1.xpose.msra.mxu0 0.0
      %7321 = vmatprep.subr.mxu0 0.0
      %7322 = vmatpush1.xpose.msra.mxu0 0.0
      %7323 = vmatprep.subr.mxu0 0.0
      %7324 = vmatpush1.xpose.msra.mxu0 0.0
      %7325 = vmatprep.subr.mxu0 0.0
      %7326 = vmatpush1.xpose.msra.mxu0 0.0
      %7327 = vmatprep.subr.mxu0 0.0
      %7328 = vmatpush1.xpose.msra.mxu0 0.0
      %7329 = vmatprep.subr.mxu0 0.0
      %7330 = vmatpush1.xpose.msra.mxu0 0.0
      %7331 = vmatprep.subr.mxu0 0.0
      %7332 = vmatpush1.xpose.msra.mxu0 0.0
      %7333 = vmatprep.subr.mxu0 0.0
      %7334 = vmatpush1.xpose.msra.mxu0 0.0
      %7335 = vmatprep.subr.mxu0 0.0
      %7336 = vmatpush1.xpose.msra.mxu0 0.0
      %7337 = vmatprep.subr.mxu0 0.0
      %7338 = vmatpush1.xpose.msra.mxu0 0.0
      %7339 = vmatprep.subr.mxu0 0.0
      %7340 = vmatpush1.xpose.msra.mxu0 0.0
      %7341 = vmatprep.subr.mxu0 0.0
      %7342 = vmatpush1.xpose.msra.mxu0 0.0
      %7343 = vmatprep.subr.mxu0 0.0
      %7344 = vmatpush1.xpose.msra.mxu0 0.0
      %7345 = vmatprep.subr.mxu0 0.0
      %7346 = vmatpush1.xpose.msra.mxu0 0.0
      %7347 = vmatprep.subr.mxu0 0.0
      %7348 = vmatpush1.xpose.msra.mxu0 0.0
      %7349 = vmatprep.subr.mxu0 0.0
      %7350 = vmatpush1.xpose.msra.mxu0 0.0
      %7351 = vmatprep.subr.mxu0 0.0
      %7352 = vmatpush1.xpose.msra.mxu0 0.0
      %7353 = vmatprep.subr.mxu0 0.0
      %7354 = vmatpush1.xpose.msra.mxu0 0.0
      %7355 = vmatprep.subr.mxu0 0.0
      %7356 = vmatpush1.xpose.msra.mxu0 0.0
      %7357 = vmatprep.subr.mxu0 0.0
      %7358 = vmatpush1.xpose.msra.mxu0 0.0
      %7359 = vmatprep.mubr.f32.mxu0 0.0
      %7360 = vmatmul.mubr.f32.gmra.mrb[0].mxu0 %v7290
      %v7361 = vpop.f32.mrb[0].mxu0
      %v7362 = vadd.f32 0.0, %v7361
      %v7363 = vpop.f32.mrb[0].mxu0
      %7364 = vmatprep.mubr.f32.mxu0 0.0
      %7365 = vmatmul.mubr.f32.gmra.mrb[0].mxu0 %v7293
      %v7366 = vpop.f32.mrb[0].mxu0
      %v7367 = vadd.f32 0.0, %v7366
      %v7368 = vpop.f32.mrb[0].mxu0
      %7369 = vdwg.mxu0
      %v7371 = vsel %vm728, %v6857, 0
      %v7374 = vsel %vm728, %v6862, 0
      %7376 = vmatprep.subr.mxu0 0.0
      %7377 = vmatpush1.xpose.msra.mxu0 %v6672
      %7378 = vmatprep.subr.mxu0 0.0
      %7379 = vmatpush1.xpose.msra.mxu0 %v6675
      %7380 = vmatprep.subr.mxu0 0.0
      %7381 = vmatpush1.xpose.msra.mxu0 0.0
      %7382 = vmatprep.subr.mxu0 0.0
      %7383 = vmatpush1.xpose.msra.mxu0 0.0
      %7384 = vmatprep.subr.mxu0 0.0
      %7385 = vmatpush1.xpose.msra.mxu0 0.0
      %7386 = vmatprep.subr.mxu0 0.0
      %7387 = vmatpush1.xpose.msra.mxu0 0.0
      %7388 = vmatprep.subr.mxu0 0.0
      %7389 = vmatpush1.xpose.msra.mxu0 0.0
      %7390 = vmatprep.subr.mxu0 0.0
      %7391 = vmatpush1.xpose.msra.mxu0 0.0
      %7392 = vmatprep.subr.mxu0 0.0
      %7393 = vmatpush1.xpose.msra.mxu0 0.0
      %7394 = vmatprep.subr.mxu0 0.0
      %7395 = vmatpush1.xpose.msra.mxu0 0.0
      %7396 = vmatprep.subr.mxu0 0.0
      %7397 = vmatpush1.xpose.msra.mxu0 0.0
      %7398 = vmatprep.subr.mxu0 0.0
      %7399 = vmatpush1.xpose.msra.mxu0 0.0
      %7400 = vmatprep.subr.mxu0 0.0
      %7401 = vmatpush1.xpose.msra.mxu0 0.0
      %7402 = vmatprep.subr.mxu0 0.0
      %7403 = vmatpush1.xpose.msra.mxu0 0.0
      %7404 = vmatprep.subr.mxu0 0.0
      %7405 = vmatpush1.xpose.msra.mxu0 0.0
      %7406 = vmatprep.subr.mxu0 0.0
      %7407 = vmatpush1.xpose.msra.mxu0 0.0
      %7408 = vmatprep.subr.mxu0 0.0
      %7409 = vmatpush1.xpose.msra.mxu0 0.0
      %7410 = vmatprep.subr.mxu0 0.0
      %7411 = vmatpush1.xpose.msra.mxu0 0.0
      %7412 = vmatprep.subr.mxu0 0.0
      %7413 = vmatpush1.xpose.msra.mxu0 0.0
      %7414 = vmatprep.subr.mxu0 0.0
      %7415 = vmatpush1.xpose.msra.mxu0 0.0
      %7416 = vmatprep.subr.mxu0 0.0
      %7417 = vmatpush1.xpose.msra.mxu0 0.0
      %7418 = vmatprep.subr.mxu0 0.0
      %7419 = vmatpush1.xpose.msra.mxu0 0.0
      %7420 = vmatprep.subr.mxu0 0.0
      %7421 = vmatpush1.xpose.msra.mxu0 0.0
      %7422 = vmatprep.subr.mxu0 0.0
      %7423 = vmatpush1.xpose.msra.mxu0 0.0
      %7424 = vmatprep.subr.mxu0 0.0
      %7425 = vmatpush1.xpose.msra.mxu0 0.0
      %7426 = vmatprep.subr.mxu0 0.0
      %7427 = vmatpush1.xpose.msra.mxu0 0.0
      %7428 = vmatprep.subr.mxu0 0.0
      %7429 = vmatpush1.xpose.msra.mxu0 0.0
      %7430 = vmatprep.subr.mxu0 0.0
      %7431 = vmatpush1.xpose.msra.mxu0 0.0
      %7432 = vmatprep.subr.mxu0 0.0
      %7433 = vmatpush1.xpose.msra.mxu0 0.0
      %7434 = vmatprep.subr.mxu0 0.0
      %7435 = vmatpush1.xpose.msra.mxu0 0.0
      %7436 = vmatprep.subr.mxu0 0.0
      %7437 = vmatpush1.xpose.msra.mxu0 0.0
      %7438 = vmatprep.subr.mxu0 0.0
      %7439 = vmatpush1.xpose.msra.mxu0 0.0
      %7440 = vmatprep.mubr.f32.mxu0 0.0
      %7441 = vmatmul.mubr.f32.gmra.mrb[0].mxu0 %v7371
      %v7442 = vpop.f32.mrb[0].mxu0
      %v7443 = vadd.f32 0.0, %v7442
      %v7444 = vpop.f32.mrb[0].mxu0
      %7445 = vmatprep.mubr.f32.mxu0 0.0
      %7446 = vmatmul.mubr.f32.gmra.mrb[0].mxu0 %v7374
      %v7447 = vpop.f32.mrb[0].mxu0
      %v7448 = vadd.f32 0.0, %v7447
      %v7449 = vpop.f32.mrb[0].mxu0
      %7450 = vdwg.mxu0
      %v7452 = vsel %vm728, %v6867, 0
      %v7455 = vsel %vm728, %v6872, 0
      %7457 = vmatprep.subr.mxu0 0.0
      %7458 = vmatpush1.xpose.msra.mxu0 %v6678
      %7459 = vmatprep.subr.mxu0 0.0
      %7460 = vmatpush1.xpose.msra.mxu0 %v6681
      %7461 = vmatprep.subr.mxu0 0.0
      %7462 = vmatpush1.xpose.msra.mxu0 0.0
      %7463 = vmatprep.subr.mxu0 0.0
      %7464 = vmatpush1.xpose.msra.mxu0 0.0
      %7465 = vmatprep.subr.mxu0 0.0
      %7466 = vmatpush1.xpose.msra.mxu0 0.0
      %7467 = vmatprep.subr.mxu0 0.0
      %7468 = vmatpush1.xpose.msra.mxu0 0.0
      %7469 = vmatprep.subr.mxu0 0.0
      %7470 = vmatpush1.xpose.msra.mxu0 0.0
      %7471 = vmatprep.subr.mxu0 0.0
      %7472 = vmatpush1.xpose.msra.mxu0 0.0
      %7473 = vmatprep.subr.mxu0 0.0
      %7474 = vmatpush1.xpose.msra.mxu0 0.0
      %7475 = vmatprep.subr.mxu0 0.0
      %7476 = vmatpush1.xpose.msra.mxu0 0.0
      %7477 = vmatprep.subr.mxu0 0.0
      %7478 = vmatpush1.xpose.msra.mxu0 0.0
      %7479 = vmatprep.subr.mxu0 0.0
      %7480 = vmatpush1.xpose.msra.mxu0 0.0
      %7481 = vmatprep.subr.mxu0 0.0
      %7482 = vmatpush1.xpose.msra.mxu0 0.0
      %7483 = vmatprep.subr.mxu0 0.0
      %7484 = vmatpush1.xpose.msra.mxu0 0.0
      %7485 = vmatprep.subr.mxu0 0.0
      %7486 = vmatpush1.xpose.msra.mxu0 0.0
      %7487 = vmatprep.subr.mxu0 0.0
      %7488 = vmatpush1.xpose.msra.mxu0 0.0
      %7489 = vmatprep.subr.mxu0 0.0
      %7490 = vmatpush1.xpose.msra.mxu0 0.0
      %7491 = vmatprep.subr.mxu0 0.0
      %7492 = vmatpush1.xpose.msra.mxu0 0.0
      %7493 = vmatprep.subr.mxu0 0.0
      %7494 = vmatpush1.xpose.msra.mxu0 0.0
      %7495 = vmatprep.subr.mxu0 0.0
      %7496 = vmatpush1.xpose.msra.mxu0 0.0
      %7497 = vmatprep.subr.mxu0 0.0
      %7498 = vmatpush1.xpose.msra.mxu0 0.0
      %7499 = vmatprep.subr.mxu0 0.0
      %7500 = vmatpush1.xpose.msra.mxu0 0.0
      %7501 = vmatprep.subr.mxu0 0.0
      %7502 = vmatpush1.xpose.msra.mxu0 0.0
      %7503 = vmatprep.subr.mxu0 0.0
      %7504 = vmatpush1.xpose.msra.mxu0 0.0
      %7505 = vmatprep.subr.mxu0 0.0
      %7506 = vmatpush1.xpose.msra.mxu0 0.0
      %7507 = vmatprep.subr.mxu0 0.0
      %7508 = vmatpush1.xpose.msra.mxu0 0.0
      %7509 = vmatprep.subr.mxu0 0.0
      %7510 = vmatpush1.xpose.msra.mxu0 0.0
      %7511 = vmatprep.subr.mxu0 0.0
      %7512 = vmatpush1.xpose.msra.mxu0 0.0
      %7513 = vmatprep.subr.mxu0 0.0
      %7514 = vmatpush1.xpose.msra.mxu0 0.0
      %7515 = vmatprep.subr.mxu0 0.0
      %7516 = vmatpush1.xpose.msra.mxu0 0.0
      %7517 = vmatprep.subr.mxu0 0.0
      %7518 = vmatpush1.xpose.msra.mxu0 0.0
      %7519 = vmatprep.subr.mxu0 0.0
      %7520 = vmatpush1.xpose.msra.mxu0 0.0
      %7521 = vmatprep.mubr.f32.mxu0 0.0
      %7522 = vmatmul.mubr.f32.gmra.mrb[0].mxu0 %v7452
      %v7523 = vpop.f32.mrb[0].mxu0
      %v7524 = vadd.f32 0.0, %v7523
      %v7525 = vpop.f32.mrb[0].mxu0
      %7526 = vmatprep.mubr.f32.mxu0 0.0
      %7527 = vmatmul.mubr.f32.gmra.mrb[0].mxu0 %v7455
      %v7528 = vpop.f32.mrb[0].mxu0
      %v7529 = vadd.f32 0.0, %v7528
      %v7530 = vpop.f32.mrb[0].mxu0
      %7531 = vdwg.mxu0
      %v7533 = vsel %vm728, %v6877, 0
      %v7536 = vsel %vm728, %v6882, 0
      %7538 = vmatprep.subr.mxu0 0.0
      %7539 = vmatpush1.xpose.msra.mxu0 %v6684
      %7540 = vmatprep.subr.mxu0 0.0
      %7541 = vmatpush1.xpose.msra.mxu0 %v6687
      %7542 = vmatprep.subr.mxu0 0.0
      %7543 = vmatpush1.xpose.msra.mxu0 0.0
      %7544 = vmatprep.subr.mxu0 0.0
      %7545 = vmatpush1.xpose.msra.mxu0 0.0
      %7546 = vmatprep.subr.mxu0 0.0
      %7547 = vmatpush1.xpose.msra.mxu0 0.0
      %7548 = vmatprep.subr.mxu0 0.0
      %7549 = vmatpush1.xpose.msra.mxu0 0.0
      %7550 = vmatprep.subr.mxu0 0.0
      %7551 = vmatpush1.xpose.msra.mxu0 0.0
      %7552 = vmatprep.subr.mxu0 0.0
      %7553 = vmatpush1.xpose.msra.mxu0 0.0
      %7554 = vmatprep.subr.mxu0 0.0
      %7555 = vmatpush1.xpose.msra.mxu0 0.0
      %7556 = vmatprep.subr.mxu0 0.0
      %7557 = vmatpush1.xpose.msra.mxu0 0.0
      %7558 = vmatprep.subr.mxu0 0.0
      %7559 = vmatpush1.xpose.msra.mxu0 0.0
      %7560 = vmatprep.subr.mxu0 0.0
      %7561 = vmatpush1.xpose.msra.mxu0 0.0
      %7562 = vmatprep.subr.mxu0 0.0
      %7563 = vmatpush1.xpose.msra.mxu0 0.0
      %7564 = vmatprep.subr.mxu0 0.0
      %7565 = vmatpush1.xpose.msra.mxu0 0.0
      %7566 = vmatprep.subr.mxu0 0.0
      %7567 = vmatpush1.xpose.msra.mxu0 0.0
      %7568 = vmatprep.subr.mxu0 0.0
      %7569 = vmatpush1.xpose.msra.mxu0 0.0
      %7570 = vmatprep.subr.mxu0 0.0
      %7571 = vmatpush1.xpose.msra.mxu0 0.0
      %7572 = vmatprep.subr.mxu0 0.0
      %7573 = vmatpush1.xpose.msra.mxu0 0.0
      %7574 = vmatprep.subr.mxu0 0.0
      %7575 = vmatpush1.xpose.msra.mxu0 0.0
      %7576 = vmatprep.subr.mxu0 0.0
      %7577 = vmatpush1.xpose.msra.mxu0 0.0
      %7578 = vmatprep.subr.mxu0 0.0
      %7579 = vmatpush1.xpose.msra.mxu0 0.0
      %7580 = vmatprep.subr.mxu0 0.0
      %7581 = vmatpush1.xpose.msra.mxu0 0.0
      %7582 = vmatprep.subr.mxu0 0.0
      %7583 = vmatpush1.xpose.msra.mxu0 0.0
      %7584 = vmatprep.subr.mxu0 0.0
      %7585 = vmatpush1.xpose.msra.mxu0 0.0
      %7586 = vmatprep.subr.mxu0 0.0
      %7587 = vmatpush1.xpose.msra.mxu0 0.0
      %7588 = vmatprep.subr.mxu0 0.0
      %7589 = vmatpush1.xpose.msra.mxu0 0.0
      %7590 = vmatprep.subr.mxu0 0.0
      %7591 = vmatpush1.xpose.msra.mxu0 0.0
      %7592 = vmatprep.subr.mxu0 0.0
      %7593 = vmatpush1.xpose.msra.mxu0 0.0
      %7594 = vmatprep.subr.mxu0 0.0
      %7595 = vmatpush1.xpose.msra.mxu0 0.0
      %7596 = vmatprep.subr.mxu0 0.0
      %7597 = vmatpush1.xpose.msra.mxu0 0.0
      %7598 = vmatprep.subr.mxu0 0.0
      %7599 = vmatpush1.xpose.msra.mxu0 0.0
      %7600 = vmatprep.subr.mxu0 0.0
      %7601 = vmatpush1.xpose.msra.mxu0 0.0
      %7602 = vmatprep.mubr.f32.mxu0 0.0
      %7603 = vmatmul.mubr.f32.gmra.mrb[0].mxu0 %v7533
      %v7604 = vpop.f32.mrb[0].mxu0
      %v7605 = vadd.f32 0.0, %v7604
      %v7606 = vpop.f32.mrb[0].mxu0
      %7607 = vmatprep.mubr.f32.mxu0 0.0
      %7608 = vmatmul.mubr.f32.gmra.mrb[0].mxu0 %v7536
      %v7609 = vpop.f32.mrb[0].mxu0
      %v7610 = vadd.f32 0.0, %v7609
      %v7611 = vpop.f32.mrb[0].mxu0
      %7612 = vdwg.mxu0
      %v7614 = vsel %vm728, %v6887, 0
      %v7617 = vsel %vm728, %v6892, 0
      %7619 = vmatprep.subr.mxu0 0.0
      %7620 = vmatpush1.xpose.msra.mxu0 %v6690
      %7621 = vmatprep.subr.mxu0 0.0
      %7622 = vmatpush1.xpose.msra.mxu0 %v6693
      %7623 = vmatprep.subr.mxu0 0.0
      %7624 = vmatpush1.xpose.msra.mxu0 0.0
      %7625 = vmatprep.subr.mxu0 0.0
      %7626 = vmatpush1.xpose.msra.mxu0 0.0
      %7627 = vmatprep.subr.mxu0 0.0
      %7628 = vmatpush1.xpose.msra.mxu0 0.0
      %7629 = vmatprep.subr.mxu0 0.0
      %7630 = vmatpush1.xpose.msra.mxu0 0.0
      %7631 = vmatprep.subr.mxu0 0.0
      %7632 = vmatpush1.xpose.msra.mxu0 0.0
      %7633 = vmatprep.subr.mxu0 0.0
      %7634 = vmatpush1.xpose.msra.mxu0 0.0
      %7635 = vmatprep.subr.mxu0 0.0
      %7636 = vmatpush1.xpose.msra.mxu0 0.0
      %7637 = vmatprep.subr.mxu0 0.0
      %7638 = vmatpush1.xpose.msra.mxu0 0.0
      %7639 = vmatprep.subr.mxu0 0.0
      %7640 = vmatpush1.xpose.msra.mxu0 0.0
      %7641 = vmatprep.subr.mxu0 0.0
      %7642 = vmatpush1.xpose.msra.mxu0 0.0
      %7643 = vmatprep.subr.mxu0 0.0
      %7644 = vmatpush1.xpose.msra.mxu0 0.0
      %7645 = vmatprep.subr.mxu0 0.0
      %7646 = vmatpush1.xpose.msra.mxu0 0.0
      %7647 = vmatprep.subr.mxu0 0.0
      %7648 = vmatpush1.xpose.msra.mxu0 0.0
      %7649 = vmatprep.subr.mxu0 0.0
      %7650 = vmatpush1.xpose.msra.mxu0 0.0
      %7651 = vmatprep.subr.mxu0 0.0
      %7652 = vmatpush1.xpose.msra.mxu0 0.0
      %7653 = vmatprep.subr.mxu0 0.0
      %7654 = vmatpush1.xpose.msra.mxu0 0.0
      %7655 = vmatprep.subr.mxu0 0.0
      %7656 = vmatpush1.xpose.msra.mxu0 0.0
      %7657 = vmatprep.subr.mxu0 0.0
      %7658 = vmatpush1.xpose.msra.mxu0 0.0
      %7659 = vmatprep.subr.mxu0 0.0
      %7660 = vmatpush1.xpose.msra.mxu0 0.0
      %7661 = vmatprep.subr.mxu0 0.0
      %7662 = vmatpush1.xpose.msra.mxu0 0.0
      %7663 = vmatprep.subr.mxu0 0.0
      %7664 = vmatpush1.xpose.msra.mxu0 0.0
      %7665 = vmatprep.subr.mxu0 0.0
      %7666 = vmatpush1.xpose.msra.mxu0 0.0
      %7667 = vmatprep.subr.mxu0 0.0
      %7668 = vmatpush1.xpose.msra.mxu0 0.0
      %7669 = vmatprep.subr.mxu0 0.0
      %7670 = vmatpush1.xpose.msra.mxu0 0.0
      %7671 = vmatprep.subr.mxu0 0.0
      %7672 = vmatpush1.xpose.msra.mxu0 0.0
      %7673 = vmatprep.subr.mxu0 0.0
      %7674 = vmatpush1.xpose.msra.mxu0 0.0
      %7675 = vmatprep.subr.mxu0 0.0
      %7676 = vmatpush1.xpose.msra.mxu0 0.0
      %7677 = vmatprep.subr.mxu0 0.0
      %7678 = vmatpush1.xpose.msra.mxu0 0.0
      %7679 = vmatprep.subr.mxu0 0.0
      %7680 = vmatpush1.xpose.msra.mxu0 0.0
      %7681 = vmatprep.subr.mxu0 0.0
      %7682 = vmatpush1.xpose.msra.mxu0 0.0
      %7683 = vmatprep.mubr.f32.mxu0 0.0
      %7684 = vmatmul.mubr.f32.gmra.mrb[0].mxu0 %v7614
      %v7685 = vpop.f32.mrb[0].mxu0
      %v7686 = vadd.f32 0.0, %v7685
      %v7687 = vpop.f32.mrb[0].mxu0
      %7688 = vmatprep.mubr.f32.mxu0 0.0
      %7689 = vmatmul.mubr.f32.gmra.mrb[0].mxu0 %v7617
      %v7690 = vpop.f32.mrb[0].mxu0
      %v7691 = vadd.f32 0.0, %v7690
      %v7692 = vpop.f32.mrb[0].mxu0
      %7693 = vdwg.mxu0
      %v7695 = vsel %vm728, %v6897, 0
      %v7698 = vsel %vm728, %v6902, 0
      %7700 = vmatprep.subr.mxu0 0.0
      %7701 = vmatpush1.xpose.msra.mxu0 %v6696
      %7702 = vmatprep.subr.mxu0 0.0
      %7703 = vmatpush1.xpose.msra.mxu0 %v6699
      %7704 = vmatprep.subr.mxu0 0.0
      %7705 = vmatpush1.xpose.msra.mxu0 0.0
      %7706 = vmatprep.subr.mxu0 0.0
      %7707 = vmatpush1.xpose.msra.mxu0 0.0
      %7708 = vmatprep.subr.mxu0 0.0
      %7709 = vmatpush1.xpose.msra.mxu0 0.0
      %7710 = vmatprep.subr.mxu0 0.0
      %7711 = vmatpush1.xpose.msra.mxu0 0.0
      %7712 = vmatprep.subr.mxu0 0.0
      %7713 = vmatpush1.xpose.msra.mxu0 0.0
      %7714 = vmatprep.subr.mxu0 0.0
      %7715 = vmatpush1.xpose.msra.mxu0 0.0
      %7716 = vmatprep.subr.mxu0 0.0
      %7717 = vmatpush1.xpose.msra.mxu0 0.0
      %7718 = vmatprep.subr.mxu0 0.0
      %7719 = vmatpush1.xpose.msra.mxu0 0.0
      %7720 = vmatprep.subr.mxu0 0.0
      %7721 = vmatpush1.xpose.msra.mxu0 0.0
      %7722 = vmatprep.subr.mxu0 0.0
      %7723 = vmatpush1.xpose.msra.mxu0 0.0
      %7724 = vmatprep.subr.mxu0 0.0
      %7725 = vmatpush1.xpose.msra.mxu0 0.0
      %7726 = vmatprep.subr.mxu0 0.0
      %7727 = vmatpush1.xpose.msra.mxu0 0.0
      %7728 = vmatprep.subr.mxu0 0.0
      %7729 = vmatpush1.xpose.msra.mxu0 0.0
      %7730 = vmatprep.subr.mxu0 0.0
      %7731 = vmatpush1.xpose.msra.mxu0 0.0
      %7732 = vmatprep.subr.mxu0 0.0
      %7733 = vmatpush1.xpose.msra.mxu0 0.0
      %7734 = vmatprep.subr.mxu0 0.0
      %7735 = vmatpush1.xpose.msra.mxu0 0.0
      %7736 = vmatprep.subr.mxu0 0.0
      %7737 = vmatpush1.xpose.msra.mxu0 0.0
      %7738 = vmatprep.subr.mxu0 0.0
      %7739 = vmatpush1.xpose.msra.mxu0 0.0
      %7740 = vmatprep.subr.mxu0 0.0
      %7741 = vmatpush1.xpose.msra.mxu0 0.0
      %7742 = vmatprep.subr.mxu0 0.0
      %7743 = vmatpush1.xpose.msra.mxu0 0.0
      %7744 = vmatprep.subr.mxu0 0.0
      %7745 = vmatpush1.xpose.msra.mxu0 0.0
      %7746 = vmatprep.subr.mxu0 0.0
      %7747 = vmatpush1.xpose.msra.mxu0 0.0
      %7748 = vmatprep.subr.mxu0 0.0
      %7749 = vmatpush1.xpose.msra.mxu0 0.0
      %7750 = vmatprep.subr.mxu0 0.0
      %7751 = vmatpush1.xpose.msra.mxu0 0.0
      %7752 = vmatprep.subr.mxu0 0.0
      %7753 = vmatpush1.xpose.msra.mxu0 0.0
      %7754 = vmatprep.subr.mxu0 0.0
      %7755 = vmatpush1.xpose.msra.mxu0 0.0
      %7756 = vmatprep.subr.mxu0 0.0
      %7757 = vmatpush1.xpose.msra.mxu0 0.0
      %7758 = vmatprep.subr.mxu0 0.0
      %7759 = vmatpush1.xpose.msra.mxu0 0.0
      %7760 = vmatprep.subr.mxu0 0.0
      %7761 = vmatpush1.xpose.msra.mxu0 0.0
      %7762 = vmatprep.subr.mxu0 0.0
      %7763 = vmatpush1.xpose.msra.mxu0 0.0
      %7764 = vmatprep.mubr.f32.mxu0 0.0
      %7765 = vmatmul.mubr.f32.gmra.mrb[0].mxu0 %v7695
      %v7766 = vpop.f32.mrb[0].mxu0
      %v7767 = vadd.f32 0.0, %v7766
      %v7768 = vpop.f32.mrb[0].mxu0
      %7769 = vmatprep.mubr.f32.mxu0 0.0
      %7770 = vmatmul.mubr.f32.gmra.mrb[0].mxu0 %v7698
      %v7771 = vpop.f32.mrb[0].mxu0
      %v7772 = vadd.f32 0.0, %v7771
      %v7773 = vpop.f32.mrb[0].mxu0
      %7774 = vdwg.mxu0
      %v7776 = vsel %vm728, %v6907, 0
      %v7779 = vsel %vm728, %v6912, 0
      %7781 = vmatprep.subr.mxu0 0.0
      %7782 = vmatpush1.xpose.msra.mxu0 %v6702
      %7783 = vmatprep.subr.mxu0 0.0
      %7784 = vmatpush1.xpose.msra.mxu0 %v6705
      %7785 = vmatprep.subr.mxu0 0.0
      %7786 = vmatpush1.xpose.msra.mxu0 0.0
      %7787 = vmatprep.subr.mxu0 0.0
      %7788 = vmatpush1.xpose.msra.mxu0 0.0
      %7789 = vmatprep.subr.mxu0 0.0
      %7790 = vmatpush1.xpose.msra.mxu0 0.0
      %7791 = vmatprep.subr.mxu0 0.0
      %7792 = vmatpush1.xpose.msra.mxu0 0.0
      %7793 = vmatprep.subr.mxu0 0.0
      %7794 = vmatpush1.xpose.msra.mxu0 0.0
      %7795 = vmatprep.subr.mxu0 0.0
      %7796 = vmatpush1.xpose.msra.mxu0 0.0
      %7797 = vmatprep.subr.mxu0 0.0
      %7798 = vmatpush1.xpose.msra.mxu0 0.0
      %7799 = vmatprep.subr.mxu0 0.0
      %7800 = vmatpush1.xpose.msra.mxu0 0.0
      %7801 = vmatprep.subr.mxu0 0.0
      %7802 = vmatpush1.xpose.msra.mxu0 0.0
      %7803 = vmatprep.subr.mxu0 0.0
      %7804 = vmatpush1.xpose.msra.mxu0 0.0
      %7805 = vmatprep.subr.mxu0 0.0
      %7806 = vmatpush1.xpose.msra.mxu0 0.0
      %7807 = vmatprep.subr.mxu0 0.0
      %7808 = vmatpush1.xpose.msra.mxu0 0.0
      %7809 = vmatprep.subr.mxu0 0.0
      %7810 = vmatpush1.xpose.msra.mxu0 0.0
      %7811 = vmatprep.subr.mxu0 0.0
      %7812 = vmatpush1.xpose.msra.mxu0 0.0
      %7813 = vmatprep.subr.mxu0 0.0
      %7814 = vmatpush1.xpose.msra.mxu0 0.0
      %7815 = vmatprep.subr.mxu0 0.0
      %7816 = vmatpush1.xpose.msra.mxu0 0.0
      %7817 = vmatprep.subr.mxu0 0.0
      %7818 = vmatpush1.xpose.msra.mxu0 0.0
      %7819 = vmatprep.subr.mxu0 0.0
      %7820 = vmatpush1.xpose.msra.mxu0 0.0
      %7821 = vmatprep.subr.mxu0 0.0
      %7822 = vmatpush1.xpose.msra.mxu0 0.0
      %7823 = vmatprep.subr.mxu0 0.0
      %7824 = vmatpush1.xpose.msra.mxu0 0.0
      %7825 = vmatprep.subr.mxu0 0.0
      %7826 = vmatpush1.xpose.msra.mxu0 0.0
      %7827 = vmatprep.subr.mxu0 0.0
      %7828 = vmatpush1.xpose.msra.mxu0 0.0
      %7829 = vmatprep.subr.mxu0 0.0
      %7830 = vmatpush1.xpose.msra.mxu0 0.0
      %7831 = vmatprep.subr.mxu0 0.0
      %7832 = vmatpush1.xpose.msra.mxu0 0.0
      %7833 = vmatprep.subr.mxu0 0.0
      %7834 = vmatpush1.xpose.msra.mxu0 0.0
      %7835 = vmatprep.subr.mxu0 0.0
      %7836 = vmatpush1.xpose.msra.mxu0 0.0
      %7837 = vmatprep.subr.mxu0 0.0
      %7838 = vmatpush1.xpose.msra.mxu0 0.0
      %7839 = vmatprep.subr.mxu0 0.0
      %7840 = vmatpush1.xpose.msra.mxu0 0.0
      %7841 = vmatprep.subr.mxu0 0.0
      %7842 = vmatpush1.xpose.msra.mxu0 0.0
      %7843 = vmatprep.subr.mxu0 0.0
      %7844 = vmatpush1.xpose.msra.mxu0 0.0
      %7845 = vmatprep.mubr.f32.mxu0 0.0
      %7846 = vmatmul.mubr.f32.gmra.mrb[0].mxu0 %v7776
      %v7847 = vpop.f32.mrb[0].mxu0
      %v7848 = vadd.f32 0.0, %v7847
      %v7849 = vpop.f32.mrb[0].mxu0
      %7850 = vmatprep.mubr.f32.mxu0 0.0
      %7851 = vmatmul.mubr.f32.gmra.mrb[0].mxu0 %v7779
      %v7852 = vpop.f32.mrb[0].mxu0
      %v7853 = vadd.f32 0.0, %v7852
      %v7854 = vpop.f32.mrb[0].mxu0
      %7855 = vdwg.mxu0
      %v7857 = vsel %vm728, %v6917, 0
      %v7860 = vsel %vm728, %v6922, 0
      %7862 = vmatprep.subr.mxu0 0.0
      %7863 = vmatpush1.xpose.msra.mxu0 %v6708
      %7864 = vmatprep.subr.mxu0 0.0
      %7865 = vmatpush1.xpose.msra.mxu0 %v6711
      %7866 = vmatprep.subr.mxu0 0.0
      %7867 = vmatpush1.xpose.msra.mxu0 0.0
      %7868 = vmatprep.subr.mxu0 0.0
      %7869 = vmatpush1.xpose.msra.mxu0 0.0
      %7870 = vmatprep.subr.mxu0 0.0
      %7871 = vmatpush1.xpose.msra.mxu0 0.0
      %7872 = vmatprep.subr.mxu0 0.0
      %7873 = vmatpush1.xpose.msra.mxu0 0.0
      %7874 = vmatprep.subr.mxu0 0.0
      %7875 = vmatpush1.xpose.msra.mxu0 0.0
      %7876 = vmatprep.subr.mxu0 0.0
      %7877 = vmatpush1.xpose.msra.mxu0 0.0
      %7878 = vmatprep.subr.mxu0 0.0
      %7879 = vmatpush1.xpose.msra.mxu0 0.0
      %7880 = vmatprep.subr.mxu0 0.0
      %7881 = vmatpush1.xpose.msra.mxu0 0.0
      %7882 = vmatprep.subr.mxu0 0.0
      %7883 = vmatpush1.xpose.msra.mxu0 0.0
      %7884 = vmatprep.subr.mxu0 0.0
      %7885 = vmatpush1.xpose.msra.mxu0 0.0
      %7886 = vmatprep.subr.mxu0 0.0
      %7887 = vmatpush1.xpose.msra.mxu0 0.0
      %7888 = vmatprep.subr.mxu0 0.0
      %7889 = vmatpush1.xpose.msra.mxu0 0.0
      %7890 = vmatprep.subr.mxu0 0.0
      %7891 = vmatpush1.xpose.msra.mxu0 0.0
      %7892 = vmatprep.subr.mxu0 0.0
      %7893 = vmatpush1.xpose.msra.mxu0 0.0
      %7894 = vmatprep.subr.mxu0 0.0
      %7895 = vmatpush1.xpose.msra.mxu0 0.0
      %7896 = vmatprep.subr.mxu0 0.0
      %7897 = vmatpush1.xpose.msra.mxu0 0.0
      %7898 = vmatprep.subr.mxu0 0.0
      %7899 = vmatpush1.xpose.msra.mxu0 0.0
      %7900 = vmatprep.subr.mxu0 0.0
      %7901 = vmatpush1.xpose.msra.mxu0 0.0
      %7902 = vmatprep.subr.mxu0 0.0
      %7903 = vmatpush1.xpose.msra.mxu0 0.0
      %7904 = vmatprep.subr.mxu0 0.0
      %7905 = vmatpush1.xpose.msra.mxu0 0.0
      %7906 = vmatprep.subr.mxu0 0.0
      %7907 = vmatpush1.xpose.msra.mxu0 0.0
      %7908 = vmatprep.subr.mxu0 0.0
      %7909 = vmatpush1.xpose.msra.mxu0 0.0
      %7910 = vmatprep.subr.mxu0 0.0
      %7911 = vmatpush1.xpose.msra.mxu0 0.0
      %7912 = vmatprep.subr.mxu0 0.0
      %7913 = vmatpush1.xpose.msra.mxu0 0.0
      %7914 = vmatprep.subr.mxu0 0.0
      %7915 = vmatpush1.xpose.msra.mxu0 0.0
      %7916 = vmatprep.subr.mxu0 0.0
      %7917 = vmatpush1.xpose.msra.mxu0 0.0
      %7918 = vmatprep.subr.mxu0 0.0
      %7919 = vmatpush1.xpose.msra.mxu0 0.0
      %7920 = vmatprep.subr.mxu0 0.0
      %7921 = vmatpush1.xpose.msra.mxu0 0.0
      %7922 = vmatprep.subr.mxu0 0.0
      %7923 = vmatpush1.xpose.msra.mxu0 0.0
      %7924 = vmatprep.subr.mxu0 0.0
      %7925 = vmatpush1.xpose.msra.mxu0 0.0
      %7926 = vmatprep.mubr.f32.mxu0 0.0
      %7927 = vmatmul.mubr.f32.gmra.mrb[0].mxu0 %v7857
      %v7928 = vpop.f32.mrb[0].mxu0
      %v7929 = vadd.f32 0.0, %v7928
      %v7930 = vpop.f32.mrb[0].mxu0
      %7931 = vmatprep.mubr.f32.mxu0 0.0
      %7932 = vmatmul.mubr.f32.gmra.mrb[0].mxu0 %v7860
      %v7933 = vpop.f32.mrb[0].mxu0
      %v7934 = vadd.f32 0.0, %v7933
      %v7935 = vpop.f32.mrb[0].mxu0
      %7936 = vdwg.mxu0
      %v7938 = vsel %vm728, %v6927, 0
      %v7941 = vsel %vm728, %v6932, 0
      %7943 = vmatprep.subr.mxu0 0.0
      %7944 = vmatpush1.xpose.msra.mxu0 %v6714
      %7945 = vmatprep.subr.mxu0 0.0
      %7946 = vmatpush1.xpose.msra.mxu0 %v6717
      %7947 = vmatprep.subr.mxu0 0.0
      %7948 = vmatpush1.xpose.msra.mxu0 0.0
      %7949 = vmatprep.subr.mxu0 0.0
      %7950 = vmatpush1.xpose.msra.mxu0 0.0
      %7951 = vmatprep.subr.mxu0 0.0
      %7952 = vmatpush1.xpose.msra.mxu0 0.0
      %7953 = vmatprep.subr.mxu0 0.0
      %7954 = vmatpush1.xpose.msra.mxu0 0.0
      %7955 = vmatprep.subr.mxu0 0.0
      %7956 = vmatpush1.xpose.msra.mxu0 0.0
      %7957 = vmatprep.subr.mxu0 0.0
      %7958 = vmatpush1.xpose.msra.mxu0 0.0
      %7959 = vmatprep.subr.mxu0 0.0
      %7960 = vmatpush1.xpose.msra.mxu0 0.0
      %7961 = vmatprep.subr.mxu0 0.0
      %7962 = vmatpush1.xpose.msra.mxu0 0.0
      %7963 = vmatprep.subr.mxu0 0.0
      %7964 = vmatpush1.xpose.msra.mxu0 0.0
      %7965 = vmatprep.subr.mxu0 0.0
      %7966 = vmatpush1.xpose.msra.mxu0 0.0
      %7967 = vmatprep.subr.mxu0 0.0
      %7968 = vmatpush1.xpose.msra.mxu0 0.0
      %7969 = vmatprep.subr.mxu0 0.0
      %7970 = vmatpush1.xpose.msra.mxu0 0.0
      %7971 = vmatprep.subr.mxu0 0.0
      %7972 = vmatpush1.xpose.msra.mxu0 0.0
      %7973 = vmatprep.subr.mxu0 0.0
      %7974 = vmatpush1.xpose.msra.mxu0 0.0
      %7975 = vmatprep.subr.mxu0 0.0
      %7976 = vmatpush1.xpose.msra.mxu0 0.0
      %7977 = vmatprep.subr.mxu0 0.0
      %7978 = vmatpush1.xpose.msra.mxu0 0.0
      %7979 = vmatprep.subr.mxu0 0.0
      %7980 = vmatpush1.xpose.msra.mxu0 0.0
      %7981 = vmatprep.subr.mxu0 0.0
      %7982 = vmatpush1.xpose.msra.mxu0 0.0
      %7983 = vmatprep.subr.mxu0 0.0
      %7984 = vmatpush1.xpose.msra.mxu0 0.0
      %7985 = vmatprep.subr.mxu0 0.0
      %7986 = vmatpush1.xpose.msra.mxu0 0.0
      %7987 = vmatprep.subr.mxu0 0.0
      %7988 = vmatpush1.xpose.msra.mxu0 0.0
      %7989 = vmatprep.subr.mxu0 0.0
      %7990 = vmatpush1.xpose.msra.mxu0 0.0
      %7991 = vmatprep.subr.mxu0 0.0
      %7992 = vmatpush1.xpose.msra.mxu0 0.0
      %7993 = vmatprep.subr.mxu0 0.0
      %7994 = vmatpush1.xpose.msra.mxu0 0.0
      %7995 = vmatprep.subr.mxu0 0.0
      %7996 = vmatpush1.xpose.msra.mxu0 0.0
      %7997 = vmatprep.subr.mxu0 0.0
      %7998 = vmatpush1.xpose.msra.mxu0 0.0
      %7999 = vmatprep.subr.mxu0 0.0
      %8000 = vmatpush1.xpose.msra.mxu0 0.0
      %8001 = vmatprep.subr.mxu0 0.0
      %8002 = vmatpush1.xpose.msra.mxu0 0.0
      %8003 = vmatprep.subr.mxu0 0.0
      %8004 = vmatpush1.xpose.msra.mxu0 0.0
      %8005 = vmatprep.subr.mxu0 0.0
      %8006 = vmatpush1.xpose.msra.mxu0 0.0
      %8007 = vmatprep.mubr.f32.mxu0 0.0
      %8008 = vmatmul.mubr.f32.gmra.mrb[0].mxu0 %v7938
      %v8009 = vpop.f32.mrb[0].mxu0
      %v8010 = vadd.f32 0.0, %v8009
      %v8011 = vpop.f32.mrb[0].mxu0
      %8012 = vmatprep.mubr.f32.mxu0 0.0
      %8013 = vmatmul.mubr.f32.gmra.mrb[0].mxu0 %v7941
      %v8014 = vpop.f32.mrb[0].mxu0
      %v8015 = vadd.f32 0.0, %v8014
      %v8016 = vpop.f32.mrb[0].mxu0
      %8017 = vdwg.mxu0
      %v8019 = vsel %vm728, %v6937, 0
      %v8022 = vsel %vm728, %v6942, 0
      %8024 = vmatprep.subr.mxu0 0.0
      %8025 = vmatpush1.xpose.msra.mxu0 %v6720
      %8026 = vmatprep.subr.mxu0 0.0
      %8027 = vmatpush1.xpose.msra.mxu0 %v6723
      %8028 = vmatprep.subr.mxu0 0.0
      %8029 = vmatpush1.xpose.msra.mxu0 0.0
      %8030 = vmatprep.subr.mxu0 0.0
      %8031 = vmatpush1.xpose.msra.mxu0 0.0
      %8032 = vmatprep.subr.mxu0 0.0
      %8033 = vmatpush1.xpose.msra.mxu0 0.0
      %8034 = vmatprep.subr.mxu0 0.0
      %8035 = vmatpush1.xpose.msra.mxu0 0.0
      %8036 = vmatprep.subr.mxu0 0.0
      %8037 = vmatpush1.xpose.msra.mxu0 0.0
      %8038 = vmatprep.subr.mxu0 0.0
      %8039 = vmatpush1.xpose.msra.mxu0 0.0
      %8040 = vmatprep.subr.mxu0 0.0
      %8041 = vmatpush1.xpose.msra.mxu0 0.0
      %8042 = vmatprep.subr.mxu0 0.0
      %8043 = vmatpush1.xpose.msra.mxu0 0.0
      %8044 = vmatprep.subr.mxu0 0.0
      %8045 = vmatpush1.xpose.msra.mxu0 0.0
      %8046 = vmatprep.subr.mxu0 0.0
      %8047 = vmatpush1.xpose.msra.mxu0 0.0
      %8048 = vmatprep.subr.mxu0 0.0
      %8049 = vmatpush1.xpose.msra.mxu0 0.0
      %8050 = vmatprep.subr.mxu0 0.0
      %8051 = vmatpush1.xpose.msra.mxu0 0.0
      %8052 = vmatprep.subr.mxu0 0.0
      %8053 = vmatpush1.xpose.msra.mxu0 0.0
      %8054 = vmatprep.subr.mxu0 0.0
      %8055 = vmatpush1.xpose.msra.mxu0 0.0
      %8056 = vmatprep.subr.mxu0 0.0
      %8057 = vmatpush1.xpose.msra.mxu0 0.0
      %8058 = vmatprep.subr.mxu0 0.0
      %8059 = vmatpush1.xpose.msra.mxu0 0.0
      %8060 = vmatprep.subr.mxu0 0.0
      %8061 = vmatpush1.xpose.msra.mxu0 0.0
      %8062 = vmatprep.subr.mxu0 0.0
      %8063 = vmatpush1.xpose.msra.mxu0 0.0
      %8064 = vmatprep.subr.mxu0 0.0
      %8065 = vmatpush1.xpose.msra.mxu0 0.0
      %8066 = vmatprep.subr.mxu0 0.0
      %8067 = vmatpush1.xpose.msra.mxu0 0.0
      %8068 = vmatprep.subr.mxu0 0.0
      %8069 = vmatpush1.xpose.msra.mxu0 0.0
      %8070 = vmatprep.subr.mxu0 0.0
      %8071 = vmatpush1.xpose.msra.mxu0 0.0
      %8072 = vmatprep.subr.mxu0 0.0
      %8073 = vmatpush1.xpose.msra.mxu0 0.0
      %8074 = vmatprep.subr.mxu0 0.0
      %8075 = vmatpush1.xpose.msra.mxu0 0.0
      %8076 = vmatprep.subr.mxu0 0.0
      %8077 = vmatpush1.xpose.msra.mxu0 0.0
      %8078 = vmatprep.subr.mxu0 0.0
      %8079 = vmatpush1.xpose.msra.mxu0 0.0
      %8080 = vmatprep.subr.mxu0 0.0
      %8081 = vmatpush1.xpose.msra.mxu0 0.0
      %8082 = vmatprep.subr.mxu0 0.0
      %8083 = vmatpush1.xpose.msra.mxu0 0.0
      %8084 = vmatprep.subr.mxu0 0.0
      %8085 = vmatpush1.xpose.msra.mxu0 0.0
      %8086 = vmatprep.subr.mxu0 0.0
      %8087 = vmatpush1.xpose.msra.mxu0 0.0
      %8088 = vmatprep.mubr.f32.mxu0 0.0
      %8089 = vmatmul.mubr.f32.gmra.mrb[0].mxu0 %v8019
      %v8090 = vpop.f32.mrb[0].mxu0
      %v8091 = vadd.f32 0.0, %v8090
      %v8092 = vpop.f32.mrb[0].mxu0
      %8093 = vmatprep.mubr.f32.mxu0 0.0
      %8094 = vmatmul.mubr.f32.gmra.mrb[0].mxu0 %v8022
      %v8095 = vpop.f32.mrb[0].mxu0
      %v8096 = vadd.f32 0.0, %v8095
      %v8097 = vpop.f32.mrb[0].mxu0
      %8098 = vdwg.mxu0
      %v8100 = vsel %vm728, %v6947, 0
      %v8103 = vsel %vm728, %v6952, 0
      %8105 = vmatprep.subr.mxu0 0.0
      %8106 = vmatpush1.xpose.msra.mxu0 %v6726
      %8107 = vmatprep.subr.mxu0 0.0
      %8108 = vmatpush1.xpose.msra.mxu0 %v6729
      %8109 = vmatprep.subr.mxu0 0.0
      %8110 = vmatpush1.xpose.msra.mxu0 0.0
      %8111 = vmatprep.subr.mxu0 0.0
      %8112 = vmatpush1.xpose.msra.mxu0 0.0
      %8113 = vmatprep.subr.mxu0 0.0
      %8114 = vmatpush1.xpose.msra.mxu0 0.0
      %8115 = vmatprep.subr.mxu0 0.0
      %8116 = vmatpush1.xpose.msra.mxu0 0.0
      %8117 = vmatprep.subr.mxu0 0.0
      %8118 = vmatpush1.xpose.msra.mxu0 0.0
      %8119 = vmatprep.subr.mxu0 0.0
      %8120 = vmatpush1.xpose.msra.mxu0 0.0
      %8121 = vmatprep.subr.mxu0 0.0
      %8122 = vmatpush1.xpose.msra.mxu0 0.0
      %8123 = vmatprep.subr.mxu0 0.0
      %8124 = vmatpush1.xpose.msra.mxu0 0.0
      %8125 = vmatprep.subr.mxu0 0.0
      %8126 = vmatpush1.xpose.msra.mxu0 0.0
      %8127 = vmatprep.subr.mxu0 0.0
      %8128 = vmatpush1.xpose.msra.mxu0 0.0
      %8129 = vmatprep.subr.mxu0 0.0
      %8130 = vmatpush1.xpose.msra.mxu0 0.0
      %8131 = vmatprep.subr.mxu0 0.0
      %8132 = vmatpush1.xpose.msra.mxu0 0.0
      %8133 = vmatprep.subr.mxu0 0.0
      %8134 = vmatpush1.xpose.msra.mxu0 0.0
      %8135 = vmatprep.subr.mxu0 0.0
      %8136 = vmatpush1.xpose.msra.mxu0 0.0
      %8137 = vmatprep.subr.mxu0 0.0
      %8138 = vmatpush1.xpose.msra.mxu0 0.0
      %8139 = vmatprep.subr.mxu0 0.0
      %8140 = vmatpush1.xpose.msra.mxu0 0.0
      %8141 = vmatprep.subr.mxu0 0.0
      %8142 = vmatpush1.xpose.msra.mxu0 0.0
      %8143 = vmatprep.subr.mxu0 0.0
      %8144 = vmatpush1.xpose.msra.mxu0 0.0
      %8145 = vmatprep.subr.mxu0 0.0
      %8146 = vmatpush1.xpose.msra.mxu0 0.0
      %8147 = vmatprep.subr.mxu0 0.0
      %8148 = vmatpush1.xpose.msra.mxu0 0.0
      %8149 = vmatprep.subr.mxu0 0.0
      %8150 = vmatpush1.xpose.msra.mxu0 0.0
      %8151 = vmatprep.subr.mxu0 0.0
      %8152 = vmatpush1.xpose.msra.mxu0 0.0
      %8153 = vmatprep.subr.mxu0 0.0
      %8154 = vmatpush1.xpose.msra.mxu0 0.0
      %8155 = vmatprep.subr.mxu0 0.0
      %8156 = vmatpush1.xpose.msra.mxu0 0.0
      %8157 = vmatprep.subr.mxu0 0.0
      %8158 = vmatpush1.xpose.msra.mxu0 0.0
      %8159 = vmatprep.subr.mxu0 0.0
      %8160 = vmatpush1.xpose.msra.mxu0 0.0
      %8161 = vmatprep.subr.mxu0 0.0
      %8162 = vmatpush1.xpose.msra.mxu0 0.0
      %8163 = vmatprep.subr.mxu0 0.0
      %8164 = vmatpush1.xpose.msra.mxu0 0.0
      %8165 = vmatprep.subr.mxu0 0.0
      %8166 = vmatpush1.xpose.msra.mxu0 0.0
      %8167 = vmatprep.subr.mxu0 0.0
      %8168 = vmatpush1.xpose.msra.mxu0 0.0
      %8169 = vmatprep.mubr.f32.mxu0 0.0
      %8170 = vmatmul.mubr.f32.gmra.mrb[0].mxu0 %v8100
      %v8171 = vpop.f32.mrb[0].mxu0
      %v8172 = vadd.f32 0.0, %v8171
      %v8173 = vpop.f32.mrb[0].mxu0
      %8174 = vmatprep.mubr.f32.mxu0 0.0
      %8175 = vmatmul.mubr.f32.gmra.mrb[0].mxu0 %v8103
      %v8176 = vpop.f32.mrb[0].mxu0
      %v8177 = vadd.f32 0.0, %v8176
      %v8178 = vpop.f32.mrb[0].mxu0
      %8179 = vdwg.mxu0
      %v8181 = vsel %vm728, %v6957, 0
      %v8184 = vsel %vm728, %v6962, 0
      %8186 = vmatprep.subr.mxu0 0.0
      %8187 = vmatpush1.xpose.msra.mxu0 %v6732
      %8188 = vmatprep.subr.mxu0 0.0
      %8189 = vmatpush1.xpose.msra.mxu0 %v6735
      %8190 = vmatprep.subr.mxu0 0.0
      %8191 = vmatpush1.xpose.msra.mxu0 0.0
      %8192 = vmatprep.subr.mxu0 0.0
      %8193 = vmatpush1.xpose.msra.mxu0 0.0
      %8194 = vmatprep.subr.mxu0 0.0
      %8195 = vmatpush1.xpose.msra.mxu0 0.0
      %8196 = vmatprep.subr.mxu0 0.0
      %8197 = vmatpush1.xpose.msra.mxu0 0.0
      %8198 = vmatprep.subr.mxu0 0.0
      %8199 = vmatpush1.xpose.msra.mxu0 0.0
      %8200 = vmatprep.subr.mxu0 0.0
      %8201 = vmatpush1.xpose.msra.mxu0 0.0
      %8202 = vmatprep.subr.mxu0 0.0
      %8203 = vmatpush1.xpose.msra.mxu0 0.0
      %8204 = vmatprep.subr.mxu0 0.0
      %8205 = vmatpush1.xpose.msra.mxu0 0.0
      %8206 = vmatprep.subr.mxu0 0.0
      %8207 = vmatpush1.xpose.msra.mxu0 0.0
      %8208 = vmatprep.subr.mxu0 0.0
      %8209 = vmatpush1.xpose.msra.mxu0 0.0
      %8210 = vmatprep.subr.mxu0 0.0
      %8211 = vmatpush1.xpose.msra.mxu0 0.0
      %8212 = vmatprep.subr.mxu0 0.0
      %8213 = vmatpush1.xpose.msra.mxu0 0.0
      %8214 = vmatprep.subr.mxu0 0.0
      %8215 = vmatpush1.xpose.msra.mxu0 0.0
      %8216 = vmatprep.subr.mxu0 0.0
      %8217 = vmatpush1.xpose.msra.mxu0 0.0
      %8218 = vmatprep.subr.mxu0 0.0
      %8219 = vmatpush1.xpose.msra.mxu0 0.0
      %8220 = vmatprep.subr.mxu0 0.0
      %8221 = vmatpush1.xpose.msra.mxu0 0.0
      %8222 = vmatprep.subr.mxu0 0.0
      %8223 = vmatpush1.xpose.msra.mxu0 0.0
      %8224 = vmatprep.subr.mxu0 0.0
      %8225 = vmatpush1.xpose.msra.mxu0 0.0
      %8226 = vmatprep.subr.mxu0 0.0
      %8227 = vmatpush1.xpose.msra.mxu0 0.0
      %8228 = vmatprep.subr.mxu0 0.0
      %8229 = vmatpush1.xpose.msra.mxu0 0.0
      %8230 = vmatprep.subr.mxu0 0.0
      %8231 = vmatpush1.xpose.msra.mxu0 0.0
      %8232 = vmatprep.subr.mxu0 0.0
      %8233 = vmatpush1.xpose.msra.mxu0 0.0
      %8234 = vmatprep.subr.mxu0 0.0
      %8235 = vmatpush1.xpose.msra.mxu0 0.0
      %8236 = vmatprep.subr.mxu0 0.0
      %8237 = vmatpush1.xpose.msra.mxu0 0.0
      %8238 = vmatprep.subr.mxu0 0.0
      %8239 = vmatpush1.xpose.msra.mxu0 0.0
      %8240 = vmatprep.subr.mxu0 0.0
      %8241 = vmatpush1.xpose.msra.mxu0 0.0
      %8242 = vmatprep.subr.mxu0 0.0
      %8243 = vmatpush1.xpose.msra.mxu0 0.0
      %8244 = vmatprep.subr.mxu0 0.0
      %8245 = vmatpush1.xpose.msra.mxu0 0.0
      %8246 = vmatprep.subr.mxu0 0.0
      %8247 = vmatpush1.xpose.msra.mxu0 0.0
      %8248 = vmatprep.subr.mxu0 0.0
      %8249 = vmatpush1.xpose.msra.mxu0 0.0
      %8250 = vmatprep.mubr.f32.mxu0 0.0
      %8251 = vmatmul.mubr.f32.gmra.mrb[0].mxu0 %v8181
      %v8252 = vpop.f32.mrb[0].mxu0
      %v8253 = vadd.f32 0.0, %v8252
      %v8254 = vpop.f32.mrb[0].mxu0
      %8255 = vmatprep.mubr.f32.mxu0 0.0
      %8256 = vmatmul.mubr.f32.gmra.mrb[0].mxu0 %v8184
      %v8257 = vpop.f32.mrb[0].mxu0
      %v8258 = vadd.f32 0.0, %v8257
      %v8259 = vpop.f32.mrb[0].mxu0
      %8260 = vdwg.mxu0
      %v8261 = vsel %vm2350, %v7038, -inf
      %8262 = vmax.xlane.f32.xlu0 %v8261
      %v8263 = vpop.xlane.xlu0 %8262
      %v8264 = vsel %vm2350, %v7043, -inf
      %8265 = vmax.xlane.f32.xlu0 %v8264
      %v8266 = vpop.xlane.xlu0 %8265
      %v8267 = vsel %vm2350, %v7119, -inf
      %8268 = vmax.xlane.f32.xlu0 %v8267
      %v8269 = vpop.xlane.xlu0 %8268
      %v8270 = vsel %vm2350, %v7124, -inf
      %8271 = vmax.xlane.f32.xlu0 %v8270
      %v8272 = vpop.xlane.xlu0 %8271
      %v8273 = vsel %vm2350, %v7200, -inf
      %8274 = vmax.xlane.f32.xlu0 %v8273
      %v8275 = vpop.xlane.xlu0 %8274
      %v8276 = vsel %vm2350, %v7205, -inf
      %8277 = vmax.xlane.f32.xlu0 %v8276
      %v8278 = vpop.xlane.xlu0 %8277
      %v8279 = vsel %vm2350, %v7281, -inf
      %8280 = vmax.xlane.f32.xlu0 %v8279
      %v8281 = vpop.xlane.xlu0 %8280
      %v8282 = vsel %vm2350, %v7286, -inf
      %8283 = vmax.xlane.f32.xlu0 %v8282
      %v8284 = vpop.xlane.xlu0 %8283
      %v8285 = vsel %vm2350, %v7362, -inf
      %8286 = vmax.xlane.f32.xlu0 %v8285
      %v8287 = vpop.xlane.xlu0 %8286
      %v8288 = vsel %vm2350, %v7367, -inf
      %8289 = vmax.xlane.f32.xlu0 %v8288
      %v8290 = vpop.xlane.xlu0 %8289
      %v8291 = vsel %vm2350, %v7443, -inf
      %8292 = vmax.xlane.f32.xlu0 %v8291
      %v8293 = vpop.xlane.xlu0 %8292
      %v8294 = vsel %vm2350, %v7448, -inf
      %8295 = vmax.xlane.f32.xlu0 %v8294
      %v8296 = vpop.xlane.xlu0 %8295
      %v8297 = vsel %vm2350, %v7524, -inf
      %8298 = vmax.xlane.f32.xlu0 %v8297
      %v8299 = vpop.xlane.xlu0 %8298
      %v8300 = vsel %vm2350, %v7529, -inf
      %8301 = vmax.xlane.f32.xlu0 %v8300
      %v8302 = vpop.xlane.xlu0 %8301
      %v8303 = vsel %vm2350, %v7605, -inf
      %8304 = vmax.xlane.f32.xlu0 %v8303
      %v8305 = vpop.xlane.xlu0 %8304
      %v8306 = vsel %vm2350, %v7610, -inf
      %8307 = vmax.xlane.f32.xlu0 %v8306
      %v8308 = vpop.xlane.xlu0 %8307
      %v8309 = vsel %vm2350, %v7686, -inf
      %8310 = vmax.xlane.f32.xlu0 %v8309
      %v8311 = vpop.xlane.xlu0 %8310
      %v8312 = vsel %vm2350, %v7691, -inf
      %8313 = vmax.xlane.f32.xlu0 %v8312
      %v8314 = vpop.xlane.xlu0 %8313
      %v8315 = vsel %vm2350, %v7767, -inf
      %8316 = vmax.xlane.f32.xlu0 %v8315
      %v8317 = vpop.xlane.xlu0 %8316
      %v8318 = vsel %vm2350, %v7772, -inf
      %8319 = vmax.xlane.f32.xlu0 %v8318
      %v8320 = vpop.xlane.xlu0 %8319
      %v8321 = vsel %vm2350, %v7848, -inf
      %8322 = vmax.xlane.f32.xlu0 %v8321
      %v8323 = vpop.xlane.xlu0 %8322
      %v8324 = vsel %vm2350, %v7853, -inf
      %8325 = vmax.xlane.f32.xlu0 %v8324
      %v8326 = vpop.xlane.xlu0 %8325
      %v8327 = vsel %vm2350, %v7929, -inf
      %8328 = vmax.xlane.f32.xlu0 %v8327
      %v8329 = vpop.xlane.xlu0 %8328
      %v8330 = vsel %vm2350, %v7934, -inf
      %8331 = vmax.xlane.f32.xlu0 %v8330
      %v8332 = vpop.xlane.xlu0 %8331
      %v8333 = vsel %vm2350, %v8010, -inf
      %8334 = vmax.xlane.f32.xlu0 %v8333
      %v8335 = vpop.xlane.xlu0 %8334
      %v8336 = vsel %vm2350, %v8015, -inf
      %8337 = vmax.xlane.f32.xlu0 %v8336
      %v8338 = vpop.xlane.xlu0 %8337
      %v8339 = vsel %vm2350, %v8091, -inf
      %8340 = vmax.xlane.f32.xlu0 %v8339
      %v8341 = vpop.xlane.xlu0 %8340
      %v8342 = vsel %vm2350, %v8096, -inf
      %8343 = vmax.xlane.f32.xlu0 %v8342
      %v8344 = vpop.xlane.xlu0 %8343
      %v8345 = vsel %vm2350, %v8172, -inf
      %8346 = vmax.xlane.f32.xlu0 %v8345
      %v8347 = vpop.xlane.xlu0 %8346
      %v8348 = vsel %vm2350, %v8177, -inf
      %8349 = vmax.xlane.f32.xlu0 %v8348
      %v8350 = vpop.xlane.xlu0 %8349
      %v8351 = vsel %vm2350, %v8253, -inf
      %8352 = vmax.xlane.f32.xlu0 %v8351
      %v8353 = vpop.xlane.xlu0 %8352
      %v8354 = vsel %vm2350, %v8258, -inf
      %8355 = vmax.xlane.f32.xlu0 %v8354
      %v8356 = vpop.xlane.xlu0 %8355
      %v8357 = vsub.f32 %v7038, %v8263
      %v8358 = vsub.f32 %v7043, %v8266
      %v8359 = vsub.f32 %v7119, %v8269
      %v8360 = vsub.f32 %v7124, %v8272
      %v8361 = vsub.f32 %v7200, %v8275
      %v8362 = vsub.f32 %v7205, %v8278
      %v8363 = vsub.f32 %v7281, %v8281
      %v8364 = vsub.f32 %v7286, %v8284
      %v8365 = vsub.f32 %v7362, %v8287
      %v8366 = vsub.f32 %v7367, %v8290
      %v8367 = vsub.f32 %v7443, %v8293
      %v8368 = vsub.f32 %v7448, %v8296
      %v8369 = vsub.f32 %v7524, %v8299
      %v8370 = vsub.f32 %v7529, %v8302
      %v8371 = vsub.f32 %v7605, %v8305
      %v8372 = vsub.f32 %v7610, %v8308
      %v8373 = vsub.f32 %v7686, %v8311
      %v8374 = vsub.f32 %v7691, %v8314
      %v8375 = vsub.f32 %v7767, %v8317
      %v8376 = vsub.f32 %v7772, %v8320
      %v8377 = vsub.f32 %v7848, %v8323
      %v8378 = vsub.f32 %v7853, %v8326
      %v8379 = vsub.f32 %v7929, %v8329
      %v8380 = vsub.f32 %v7934, %v8332
      %v8381 = vsub.f32 %v8010, %v8335
      %v8382 = vsub.f32 %v8015, %v8338
      %v8383 = vsub.f32 %v8091, %v8341
      %v8384 = vsub.f32 %v8096, %v8344
      %v8385 = vsub.f32 %v8172, %v8347
      %v8386 = vsub.f32 %v8177, %v8350
      %v8387 = vsub.f32 %v8253, %v8353
      %v8388 = vsub.f32 %v8258, %v8356
      %v8389 = vmul.f32 %v8357, 1.442695
      %v8390 = vpow.pop %v8389
      %v8391 = vmul.f32 %v8358, 1.442695
      %v8392 = vpow.pop %v8391
      %v8393 = vmul.f32 %v8359, 1.442695
      %v8394 = vpow.pop %v8393
      %v8395 = vmul.f32 %v8360, 1.442695
      %v8396 = vpow.pop %v8395
      %v8397 = vmul.f32 %v8361, 1.442695
      %v8398 = vpow.pop %v8397
      %v8399 = vmul.f32 %v8362, 1.442695
      %v8400 = vpow.pop %v8399
      %v8401 = vmul.f32 %v8363, 1.442695
      %v8402 = vpow.pop %v8401
      %v8403 = vmul.f32 %v8364, 1.442695
      %v8404 = vpow.pop %v8403
      %v8405 = vmul.f32 %v8365, 1.442695
      %v8406 = vpow.pop %v8405
      %v8407 = vmul.f32 %v8366, 1.442695
      %v8408 = vpow.pop %v8407
      %v8409 = vmul.f32 %v8367, 1.442695
      %v8410 = vpow.pop %v8409
      %v8411 = vmul.f32 %v8368, 1.442695
      %v8412 = vpow.pop %v8411
      %v8413 = vmul.f32 %v8369, 1.442695
      %v8414 = vpow.pop %v8413
      %v8415 = vmul.f32 %v8370, 1.442695
      %v8416 = vpow.pop %v8415
      %v8417 = vmul.f32 %v8371, 1.442695
      %v8418 = vpow.pop %v8417
      %v8419 = vmul.f32 %v8372, 1.442695
      %v8420 = vpow.pop %v8419
      %v8421 = vmul.f32 %v8373, 1.442695
      %v8422 = vpow.pop %v8421
      %v8423 = vmul.f32 %v8374, 1.442695
      %v8424 = vpow.pop %v8423
      %v8425 = vmul.f32 %v8375, 1.442695
      %v8426 = vpow.pop %v8425
      %v8427 = vmul.f32 %v8376, 1.442695
      %v8428 = vpow.pop %v8427
      %v8429 = vmul.f32 %v8377, 1.442695
      %v8430 = vpow.pop %v8429
      %v8431 = vmul.f32 %v8378, 1.442695
      %v8432 = vpow.pop %v8431
      %v8433 = vmul.f32 %v8379, 1.442695
      %v8434 = vpow.pop %v8433
      %v8435 = vmul.f32 %v8380, 1.442695
      %v8436 = vpow.pop %v8435
      %v8437 = vmul.f32 %v8381, 1.442695
      %v8438 = vpow.pop %v8437
      %v8439 = vmul.f32 %v8382, 1.442695
      %v8440 = vpow.pop %v8439
      %v8441 = vmul.f32 %v8383, 1.442695
      %v8442 = vpow.pop %v8441
      %v8443 = vmul.f32 %v8384, 1.442695
      %v8444 = vpow.pop %v8443
      %v8445 = vmul.f32 %v8385, 1.442695
      %v8446 = vpow.pop %v8445
      %v8447 = vmul.f32 %v8386, 1.442695
      %v8448 = vpow.pop %v8447
      %v8449 = vmul.f32 %v8387, 1.442695
      %v8450 = vpow.pop %v8449
      %v8451 = vmul.f32 %v8388, 1.442695
      %v8452 = vpow.pop %v8451
      %v8453 = vsel %vm2350, %v8390, 0.0
      %8454 = vadd.xlane.f32.xlu0 %v8453
      %v8455 = vpop.xlane.xlu0 %8454
      %v8456 = vsel %vm2350, %v8392, 0.0
      %8457 = vadd.xlane.f32.xlu0 %v8456
      %v8458 = vpop.xlane.xlu0 %8457
      %v8459 = vsel %vm2350, %v8394, 0.0
      %8460 = vadd.xlane.f32.xlu0 %v8459
      %v8461 = vpop.xlane.xlu0 %8460
      %v8462 = vsel %vm2350, %v8396, 0.0
      %8463 = vadd.xlane.f32.xlu0 %v8462
      %v8464 = vpop.xlane.xlu0 %8463
      %v8465 = vsel %vm2350, %v8398, 0.0
      %8466 = vadd.xlane.f32.xlu0 %v8465
      %v8467 = vpop.xlane.xlu0 %8466
      %v8468 = vsel %vm2350, %v8400, 0.0
      %8469 = vadd.xlane.f32.xlu0 %v8468
      %v8470 = vpop.xlane.xlu0 %8469
      %v8471 = vsel %vm2350, %v8402, 0.0
      %8472 = vadd.xlane.f32.xlu0 %v8471
      %v8473 = vpop.xlane.xlu0 %8472
      %v8474 = vsel %vm2350, %v8404, 0.0
      %8475 = vadd.xlane.f32.xlu0 %v8474
      %v8476 = vpop.xlane.xlu0 %8475
      %v8477 = vsel %vm2350, %v8406, 0.0
      %8478 = vadd.xlane.f32.xlu0 %v8477
      %v8479 = vpop.xlane.xlu0 %8478
      %v8480 = vsel %vm2350, %v8408, 0.0
      %8481 = vadd.xlane.f32.xlu0 %v8480
      %v8482 = vpop.xlane.xlu0 %8481
      %v8483 = vsel %vm2350, %v8410, 0.0
      %8484 = vadd.xlane.f32.xlu0 %v8483
      %v8485 = vpop.xlane.xlu0 %8484
      %v8486 = vsel %vm2350, %v8412, 0.0
      %8487 = vadd.xlane.f32.xlu0 %v8486
      %v8488 = vpop.xlane.xlu0 %8487
      %v8489 = vsel %vm2350, %v8414, 0.0
      %8490 = vadd.xlane.f32.xlu0 %v8489
      %v8491 = vpop.xlane.xlu0 %8490
      %v8492 = vsel %vm2350, %v8416, 0.0
      %8493 = vadd.xlane.f32.xlu0 %v8492
      %v8494 = vpop.xlane.xlu0 %8493
      %v8495 = vsel %vm2350, %v8418, 0.0
      %8496 = vadd.xlane.f32.xlu0 %v8495
      %v8497 = vpop.xlane.xlu0 %8496
      %v8498 = vsel %vm2350, %v8420, 0.0
      %8499 = vadd.xlane.f32.xlu0 %v8498
      %v8500 = vpop.xlane.xlu0 %8499
      %v8501 = vsel %vm2350, %v8422, 0.0
      %8502 = vadd.xlane.f32.xlu0 %v8501
      %v8503 = vpop.xlane.xlu0 %8502
      %v8504 = vsel %vm2350, %v8424, 0.0
      %8505 = vadd.xlane.f32.xlu0 %v8504
      %v8506 = vpop.xlane.xlu0 %8505
      %v8507 = vsel %vm2350, %v8426, 0.0
      %8508 = vadd.xlane.f32.xlu0 %v8507
      %v8509 = vpop.xlane.xlu0 %8508
      %v8510 = vsel %vm2350, %v8428, 0.0
      %8511 = vadd.xlane.f32.xlu0 %v8510
      %v8512 = vpop.xlane.xlu0 %8511
      %v8513 = vsel %vm2350, %v8430, 0.0
      %8514 = vadd.xlane.f32.xlu0 %v8513
      %v8515 = vpop.xlane.xlu0 %8514
      %v8516 = vsel %vm2350, %v8432, 0.0
      %8517 = vadd.xlane.f32.xlu0 %v8516
      %v8518 = vpop.xlane.xlu0 %8517
      %v8519 = vsel %vm2350, %v8434, 0.0
      %8520 = vadd.xlane.f32.xlu0 %v8519
      %v8521 = vpop.xlane.xlu0 %8520
      %v8522 = vsel %vm2350, %v8436, 0.0
      %8523 = vadd.xlane.f32.xlu0 %v8522
      %v8524 = vpop.xlane.xlu0 %8523
      %v8525 = vsel %vm2350, %v8438, 0.0
      %8526 = vadd.xlane.f32.xlu0 %v8525
      %v8527 = vpop.xlane.xlu0 %8526
      %v8528 = vsel %vm2350, %v8440, 0.0
      %8529 = vadd.xlane.f32.xlu0 %v8528
      %v8530 = vpop.xlane.xlu0 %8529
      %v8531 = vsel %vm2350, %v8442, 0.0
      %8532 = vadd.xlane.f32.xlu0 %v8531
      %v8533 = vpop.xlane.xlu0 %8532
      %v8534 = vsel %vm2350, %v8444, 0.0
      %8535 = vadd.xlane.f32.xlu0 %v8534
      %v8536 = vpop.xlane.xlu0 %8535
      %v8537 = vsel %vm2350, %v8446, 0.0
      %8538 = vadd.xlane.f32.xlu0 %v8537
      %v8539 = vpop.xlane.xlu0 %8538
      %v8540 = vsel %vm2350, %v8448, 0.0
      %8541 = vadd.xlane.f32.xlu0 %v8540
      %v8542 = vpop.xlane.xlu0 %8541
      %v8543 = vsel %vm2350, %v8450, 0.0
      %8544 = vadd.xlane.f32.xlu0 %v8543
      %v8545 = vpop.xlane.xlu0 %8544
      %v8546 = vsel %vm2350, %v8452, 0.0
      %8547 = vadd.xlane.f32.xlu0 %v8546
      %v8548 = vpop.xlane.xlu0 %8547
      %v8549 = vrcp.pop %v8455
      %v8550 = vrcp.pop %v8458
      %v8551 = vrcp.pop %v8461
      %v8552 = vrcp.pop %v8464
      %v8553 = vrcp.pop %v8467
      %v8554 = vrcp.pop %v8470
      %v8555 = vrcp.pop %v8473
      %v8556 = vrcp.pop %v8476
      %v8557 = vrcp.pop %v8479
      %v8558 = vrcp.pop %v8482
      %v8559 = vrcp.pop %v8485
      %v8560 = vrcp.pop %v8488
      %v8561 = vrcp.pop %v8491
      %v8562 = vrcp.pop %v8494
      %v8563 = vrcp.pop %v8497
      %v8564 = vrcp.pop %v8500
      %v8565 = vrcp.pop %v8503
      %v8566 = vrcp.pop %v8506
      %v8567 = vrcp.pop %v8509
      %v8568 = vrcp.pop %v8512
      %v8569 = vrcp.pop %v8515
      %v8570 = vrcp.pop %v8518
      %v8571 = vrcp.pop %v8521
      %v8572 = vrcp.pop %v8524
      %v8573 = vrcp.pop %v8527
      %v8574 = vrcp.pop %v8530
      %v8575 = vrcp.pop %v8533
      %v8576 = vrcp.pop %v8536
      %v8577 = vrcp.pop %v8539
      %v8578 = vrcp.pop %v8542
      %v8579 = vrcp.pop %v8545
      %v8580 = vrcp.pop %v8548
      %v8581 = vmul.f32 %v8390, %v8549
      %v8582 = vmul.f32 %v8392, %v8550
      %v8583 = vmul.f32 %v8394, %v8551
      %v8584 = vmul.f32 %v8396, %v8552
      %v8585 = vmul.f32 %v8398, %v8553
      %v8586 = vmul.f32 %v8400, %v8554
      %v8587 = vmul.f32 %v8402, %v8555
      %v8588 = vmul.f32 %v8404, %v8556
      %v8589 = vmul.f32 %v8406, %v8557
      %v8590 = vmul.f32 %v8408, %v8558
      %v8591 = vmul.f32 %v8410, %v8559
      %v8592 = vmul.f32 %v8412, %v8560
      %v8593 = vmul.f32 %v8414, %v8561
      %v8594 = vmul.f32 %v8416, %v8562
      %v8595 = vmul.f32 %v8418, %v8563
      %v8596 = vmul.f32 %v8420, %v8564
      %v8597 = vmul.f32 %v8422, %v8565
      %v8598 = vmul.f32 %v8424, %v8566
      %v8599 = vmul.f32 %v8426, %v8567
      %v8600 = vmul.f32 %v8428, %v8568
      %v8601 = vmul.f32 %v8430, %v8569
      %v8602 = vmul.f32 %v8432, %v8570
      %v8603 = vmul.f32 %v8434, %v8571
      %v8604 = vmul.f32 %v8436, %v8572
      %v8605 = vmul.f32 %v8438, %v8573
      %v8606 = vmul.f32 %v8440, %v8574
      %v8607 = vmul.f32 %v8442, %v8575
      %v8608 = vmul.f32 %v8444, %v8576
      %v8609 = vmul.f32 %v8446, %v8577
      %v8610 = vmul.f32 %v8448, %v8578
      %v8611 = vmul.f32 %v8450, %v8579
      %v8612 = vmul.f32 %v8452, %v8580
      %v8614 = vsel %vm2350, %v8581, 0
      %v8617 = vsel %vm2350, %v8582, 0
      %8619 = vmatprep.subr.mxu0 0.0
      %8620 = vmatpush1.msra.mxu0 %v6600
      %8621 = vmatprep.subr.mxu0 0.0
      %8622 = vmatpush1.msra.mxu0 %v6601
      %8623 = vmatprep.subr.mxu0 0.0
      %8624 = vmatpush1.msra.mxu0 0.0
      %8625 = vmatprep.subr.mxu0 0.0
      %8626 = vmatpush1.msra.mxu0 0.0
      %8627 = vmatprep.subr.mxu0 0.0
      %8628 = vmatpush1.msra.mxu0 0.0
      %8629 = vmatprep.subr.mxu0 0.0
      %8630 = vmatpush1.msra.mxu0 0.0
      %8631 = vmatprep.subr.mxu0 0.0
      %8632 = vmatpush1.msra.mxu0 0.0
      %8633 = vmatprep.subr.mxu0 0.0
      %8634 = vmatpush1.msra.mxu0 0.0
      %8635 = vmatprep.subr.mxu0 0.0
      %8636 = vmatpush1.msra.mxu0 0.0
      %8637 = vmatprep.subr.mxu0 0.0
      %8638 = vmatpush1.msra.mxu0 0.0
      %8639 = vmatprep.subr.mxu0 0.0
      %8640 = vmatpush1.msra.mxu0 0.0
      %8641 = vmatprep.subr.mxu0 0.0
      %8642 = vmatpush1.msra.mxu0 0.0
      %8643 = vmatprep.subr.mxu0 0.0
      %8644 = vmatpush1.msra.mxu0 0.0
      %8645 = vmatprep.subr.mxu0 0.0
      %8646 = vmatpush1.msra.mxu0 0.0
      %8647 = vmatprep.subr.mxu0 0.0
      %8648 = vmatpush1.msra.mxu0 0.0
      %8649 = vmatprep.subr.mxu0 0.0
      %8650 = vmatpush1.msra.mxu0 0.0
      %8651 = vmatprep.subr.mxu0 0.0
      %8652 = vmatpush1.msra.mxu0 0.0
      %8653 = vmatprep.subr.mxu0 0.0
      %8654 = vmatpush1.msra.mxu0 0.0
      %8655 = vmatprep.subr.mxu0 0.0
      %8656 = vmatpush1.msra.mxu0 0.0
      %8657 = vmatprep.subr.mxu0 0.0
      %8658 = vmatpush1.msra.mxu0 0.0
      %8659 = vmatprep.subr.mxu0 0.0
      %8660 = vmatpush1.msra.mxu0 0.0
      %8661 = vmatprep.subr.mxu0 0.0
      %8662 = vmatpush1.msra.mxu0 0.0
      %8663 = vmatprep.subr.mxu0 0.0
      %8664 = vmatpush1.msra.mxu0 0.0
      %8665 = vmatprep.subr.mxu0 0.0
      %8666 = vmatpush1.msra.mxu0 0.0
      %8667 = vmatprep.subr.mxu0 0.0
      %8668 = vmatpush1.msra.mxu0 0.0
      %8669 = vmatprep.subr.mxu0 0.0
      %8670 = vmatpush1.msra.mxu0 0.0
      %8671 = vmatprep.subr.mxu0 0.0
      %8672 = vmatpush1.msra.mxu0 0.0
      %8673 = vmatprep.subr.mxu0 0.0
      %8674 = vmatpush1.msra.mxu0 0.0
      %8675 = vmatprep.subr.mxu0 0.0
      %8676 = vmatpush1.msra.mxu0 0.0
      %8677 = vmatprep.subr.mxu0 0.0
      %8678 = vmatpush1.msra.mxu0 0.0
      %8679 = vmatprep.subr.mxu0 0.0
      %8680 = vmatpush1.msra.mxu0 0.0
      %8681 = vmatprep.subr.mxu0 0.0
      %8682 = vmatpush1.msra.mxu0 0.0
      %8683 = vmatprep.mubr.f32.mxu0 0.0
      %8684 = vmatmul.mubr.f32.gmra.mrb[0].mxu0 %v8614
      %v8685 = vpop.f32.mrb[0].mxu0
      %v8686 = vadd.f32 0.0, %v8685
      %v8687 = vpop.f32.mrb[0].mxu0
      %8688 = vmatprep.mubr.f32.mxu0 0.0
      %8689 = vmatmul.mubr.f32.gmra.mrb[0].mxu0 %v8617
      %v8690 = vpop.f32.mrb[0].mxu0
      %v8691 = vadd.f32 0.0, %v8690
      %v8692 = vpop.f32.mrb[0].mxu0
      %8693 = vdwg.mxu0
      %v8695 = vsel %vm2350, %v8583, 0
      %v8698 = vsel %vm2350, %v8584, 0
      %8700 = vmatprep.subr.mxu0 0.0
      %8701 = vmatpush1.msra.mxu0 %v6602
      %8702 = vmatprep.subr.mxu0 0.0
      %8703 = vmatpush1.msra.mxu0 %v6603
      %8704 = vmatprep.subr.mxu0 0.0
      %8705 = vmatpush1.msra.mxu0 0.0
      %8706 = vmatprep.subr.mxu0 0.0
      %8707 = vmatpush1.msra.mxu0 0.0
      %8708 = vmatprep.subr.mxu0 0.0
      %8709 = vmatpush1.msra.mxu0 0.0
      %8710 = vmatprep.subr.mxu0 0.0
      %8711 = vmatpush1.msra.mxu0 0.0
      %8712 = vmatprep.subr.mxu0 0.0
      %8713 = vmatpush1.msra.mxu0 0.0
      %8714 = vmatprep.subr.mxu0 0.0
      %8715 = vmatpush1.msra.mxu0 0.0
      %8716 = vmatprep.subr.mxu0 0.0
      %8717 = vmatpush1.msra.mxu0 0.0
      %8718 = vmatprep.subr.mxu0 0.0
      %8719 = vmatpush1.msra.mxu0 0.0
      %8720 = vmatprep.subr.mxu0 0.0
      %8721 = vmatpush1.msra.mxu0 0.0
      %8722 = vmatprep.subr.mxu0 0.0
      %8723 = vmatpush1.msra.mxu0 0.0
      %8724 = vmatprep.subr.mxu0 0.0
      %8725 = vmatpush1.msra.mxu0 0.0
      %8726 = vmatprep.subr.mxu0 0.0
      %8727 = vmatpush1.msra.mxu0 0.0
      %8728 = vmatprep.subr.mxu0 0.0
      %8729 = vmatpush1.msra.mxu0 0.0
      %8730 = vmatprep.subr.mxu0 0.0
      %8731 = vmatpush1.msra.mxu0 0.0
      %8732 = vmatprep.subr.mxu0 0.0
      %8733 = vmatpush1.msra.mxu0 0.0
      %8734 = vmatprep.subr.mxu0 0.0
      %8735 = vmatpush1.msra.mxu0 0.0
      %8736 = vmatprep.subr.mxu0 0.0
      %8737 = vmatpush1.msra.mxu0 0.0
      %8738 = vmatprep.subr.mxu0 0.0
      %8739 = vmatpush1.msra.mxu0 0.0
      %8740 = vmatprep.subr.mxu0 0.0
      %8741 = vmatpush1.msra.mxu0 0.0
      %8742 = vmatprep.subr.mxu0 0.0
      %8743 = vmatpush1.msra.mxu0 0.0
      %8744 = vmatprep.subr.mxu0 0.0
      %8745 = vmatpush1.msra.mxu0 0.0
      %8746 = vmatprep.subr.mxu0 0.0
      %8747 = vmatpush1.msra.mxu0 0.0
      %8748 = vmatprep.subr.mxu0 0.0
      %8749 = vmatpush1.msra.mxu0 0.0
      %8750 = vmatprep.subr.mxu0 0.0
      %8751 = vmatpush1.msra.mxu0 0.0
      %8752 = vmatprep.subr.mxu0 0.0
      %8753 = vmatpush1.msra.mxu0 0.0
      %8754 = vmatprep.subr.mxu0 0.0
      %8755 = vmatpush1.msra.mxu0 0.0
      %8756 = vmatprep.subr.mxu0 0.0
      %8757 = vmatpush1.msra.mxu0 0.0
      %8758 = vmatprep.subr.mxu0 0.0
      %8759 = vmatpush1.msra.mxu0 0.0
      %8760 = vmatprep.subr.mxu0 0.0
      %8761 = vmatpush1.msra.mxu0 0.0
      %8762 = vmatprep.subr.mxu0 0.0
      %8763 = vmatpush1.msra.mxu0 0.0
      %8764 = vmatprep.mubr.f32.mxu0 0.0
      %8765 = vmatmul.mubr.f32.gmra.mrb[0].mxu0 %v8695
      %v8766 = vpop.f32.mrb[0].mxu0
      %v8767 = vadd.f32 0.0, %v8766
      %v8768 = vpop.f32.mrb[0].mxu0
      %8769 = vmatprep.mubr.f32.mxu0 0.0
      %8770 = vmatmul.mubr.f32.gmra.mrb[0].mxu0 %v8698
      %v8771 = vpop.f32.mrb[0].mxu0
      %v8772 = vadd.f32 0.0, %v8771
      %v8773 = vpop.f32.mrb[0].mxu0
      %8774 = vdwg.mxu0
      %v8776 = vsel %vm2350, %v8585, 0
      %v8779 = vsel %vm2350, %v8586, 0
      %8781 = vmatprep.subr.mxu0 0.0
      %8782 = vmatpush1.msra.mxu0 %v6604
      %8783 = vmatprep.subr.mxu0 0.0
      %8784 = vmatpush1.msra.mxu0 %v6605
      %8785 = vmatprep.subr.mxu0 0.0
      %8786 = vmatpush1.msra.mxu0 0.0
      %8787 = vmatprep.subr.mxu0 0.0
      %8788 = vmatpush1.msra.mxu0 0.0
      %8789 = vmatprep.subr.mxu0 0.0
      %8790 = vmatpush1.msra.mxu0 0.0
      %8791 = vmatprep.subr.mxu0 0.0
      %8792 = vmatpush1.msra.mxu0 0.0
      %8793 = vmatprep.subr.mxu0 0.0
      %8794 = vmatpush1.msra.mxu0 0.0
      %8795 = vmatprep.subr.mxu0 0.0
      %8796 = vmatpush1.msra.mxu0 0.0
      %8797 = vmatprep.subr.mxu0 0.0
      %8798 = vmatpush1.msra.mxu0 0.0
      %8799 = vmatprep.subr.mxu0 0.0
      %8800 = vmatpush1.msra.mxu0 0.0
      %8801 = vmatprep.subr.mxu0 0.0
      %8802 = vmatpush1.msra.mxu0 0.0
      %8803 = vmatprep.subr.mxu0 0.0
      %8804 = vmatpush1.msra.mxu0 0.0
      %8805 = vmatprep.subr.mxu0 0.0
      %8806 = vmatpush1.msra.mxu0 0.0
      %8807 = vmatprep.subr.mxu0 0.0
      %8808 = vmatpush1.msra.mxu0 0.0
      %8809 = vmatprep.subr.mxu0 0.0
      %8810 = vmatpush1.msra.mxu0 0.0
      %8811 = vmatprep.subr.mxu0 0.0
      %8812 = vmatpush1.msra.mxu0 0.0
      %8813 = vmatprep.subr.mxu0 0.0
      %8814 = vmatpush1.msra.mxu0 0.0
      %8815 = vmatprep.subr.mxu0 0.0
      %8816 = vmatpush1.msra.mxu0 0.0
      %8817 = vmatprep.subr.mxu0 0.0
      %8818 = vmatpush1.msra.mxu0 0.0
      %8819 = vmatprep.subr.mxu0 0.0
      %8820 = vmatpush1.msra.mxu0 0.0
      %8821 = vmatprep.subr.mxu0 0.0
      %8822 = vmatpush1.msra.mxu0 0.0
      %8823 = vmatprep.subr.mxu0 0.0
      %8824 = vmatpush1.msra.mxu0 0.0
      %8825 = vmatprep.subr.mxu0 0.0
      %8826 = vmatpush1.msra.mxu0 0.0
      %8827 = vmatprep.subr.mxu0 0.0
      %8828 = vmatpush1.msra.mxu0 0.0
      %8829 = vmatprep.subr.mxu0 0.0
      %8830 = vmatpush1.msra.mxu0 0.0
      %8831 = vmatprep.subr.mxu0 0.0
      %8832 = vmatpush1.msra.mxu0 0.0
      %8833 = vmatprep.subr.mxu0 0.0
      %8834 = vmatpush1.msra.mxu0 0.0
      %8835 = vmatprep.subr.mxu0 0.0
      %8836 = vmatpush1.msra.mxu0 0.0
      %8837 = vmatprep.subr.mxu0 0.0
      %8838 = vmatpush1.msra.mxu0 0.0
      %8839 = vmatprep.subr.mxu0 0.0
      %8840 = vmatpush1.msra.mxu0 0.0
      %8841 = vmatprep.subr.mxu0 0.0
      %8842 = vmatpush1.msra.mxu0 0.0
      %8843 = vmatprep.subr.mxu0 0.0
      %8844 = vmatpush1.msra.mxu0 0.0
      %8845 = vmatprep.mubr.f32.mxu0 0.0
      %8846 = vmatmul.mubr.f32.gmra.mrb[0].mxu0 %v8776
      %v8847 = vpop.f32.mrb[0].mxu0
      %v8848 = vadd.f32 0.0, %v8847
      %v8849 = vpop.f32.mrb[0].mxu0
      %8850 = vmatprep.mubr.f32.mxu0 0.0
      %8851 = vmatmul.mubr.f32.gmra.mrb[0].mxu0 %v8779
      %v8852 = vpop.f32.mrb[0].mxu0
      %v8853 = vadd.f32 0.0, %v8852
      %v8854 = vpop.f32.mrb[0].mxu0
      %8855 = vdwg.mxu0
      %v8857 = vsel %vm2350, %v8587, 0
      %v8860 = vsel %vm2350, %v8588, 0
      %8862 = vmatprep.subr.mxu0 0.0
      %8863 = vmatpush1.msra.mxu0 %v6606
      %8864 = vmatprep.subr.mxu0 0.0
      %8865 = vmatpush1.msra.mxu0 %v6607
      %8866 = vmatprep.subr.mxu0 0.0
      %8867 = vmatpush1.msra.mxu0 0.0
      %8868 = vmatprep.subr.mxu0 0.0
      %8869 = vmatpush1.msra.mxu0 0.0
      %8870 = vmatprep.subr.mxu0 0.0
      %8871 = vmatpush1.msra.mxu0 0.0
      %8872 = vmatprep.subr.mxu0 0.0
      %8873 = vmatpush1.msra.mxu0 0.0
      %8874 = vmatprep.subr.mxu0 0.0
      %8875 = vmatpush1.msra.mxu0 0.0
      %8876 = vmatprep.subr.mxu0 0.0
      %8877 = vmatpush1.msra.mxu0 0.0
      %8878 = vmatprep.subr.mxu0 0.0
      %8879 = vmatpush1.msra.mxu0 0.0
      %8880 = vmatprep.subr.mxu0 0.0
      %8881 = vmatpush1.msra.mxu0 0.0
      %8882 = vmatprep.subr.mxu0 0.0
      %8883 = vmatpush1.msra.mxu0 0.0
      %8884 = vmatprep.subr.mxu0 0.0
      %8885 = vmatpush1.msra.mxu0 0.0
      %8886 = vmatprep.subr.mxu0 0.0
      %8887 = vmatpush1.msra.mxu0 0.0
      %8888 = vmatprep.subr.mxu0 0.0
      %8889 = vmatpush1.msra.mxu0 0.0
      %8890 = vmatprep.subr.mxu0 0.0
      %8891 = vmatpush1.msra.mxu0 0.0
      %8892 = vmatprep.subr.mxu0 0.0
      %8893 = vmatpush1.msra.mxu0 0.0
      %8894 = vmatprep.subr.mxu0 0.0
      %8895 = vmatpush1.msra.mxu0 0.0
      %8896 = vmatprep.subr.mxu0 0.0
      %8897 = vmatpush1.msra.mxu0 0.0
      %8898 = vmatprep.subr.mxu0 0.0
      %8899 = vmatpush1.msra.mxu0 0.0
      %8900 = vmatprep.subr.mxu0 0.0
      %8901 = vmatpush1.msra.mxu0 0.0
      %8902 = vmatprep.subr.mxu0 0.0
      %8903 = vmatpush1.msra.mxu0 0.0
      %8904 = vmatprep.subr.mxu0 0.0
      %8905 = vmatpush1.msra.mxu0 0.0
      %8906 = vmatprep.subr.mxu0 0.0
      %8907 = vmatpush1.msra.mxu0 0.0
      %8908 = vmatprep.subr.mxu0 0.0
      %8909 = vmatpush1.msra.mxu0 0.0
      %8910 = vmatprep.subr.mxu0 0.0
      %8911 = vmatpush1.msra.mxu0 0.0
      %8912 = vmatprep.subr.mxu0 0.0
      %8913 = vmatpush1.msra.mxu0 0.0
      %8914 = vmatprep.subr.mxu0 0.0
      %8915 = vmatpush1.msra.mxu0 0.0
      %8916 = vmatprep.subr.mxu0 0.0
      %8917 = vmatpush1.msra.mxu0 0.0
      %8918 = vmatprep.subr.mxu0 0.0
      %8919 = vmatpush1.msra.mxu0 0.0
      %8920 = vmatprep.subr.mxu0 0.0
      %8921 = vmatpush1.msra.mxu0 0.0
      %8922 = vmatprep.subr.mxu0 0.0
      %8923 = vmatpush1.msra.mxu0 0.0
      %8924 = vmatprep.subr.mxu0 0.0
      %8925 = vmatpush1.msra.mxu0 0.0
      %8926 = vmatprep.mubr.f32.mxu0 0.0
      %8927 = vmatmul.mubr.f32.gmra.mrb[0].mxu0 %v8857
      %v8928 = vpop.f32.mrb[0].mxu0
      %v8929 = vadd.f32 0.0, %v8928
      %v8930 = vpop.f32.mrb[0].mxu0
      %8931 = vmatprep.mubr.f32.mxu0 0.0
      %8932 = vmatmul.mubr.f32.gmra.mrb[0].mxu0 %v8860
      %v8933 = vpop.f32.mrb[0].mxu0
      %v8934 = vadd.f32 0.0, %v8933
      %v8935 = vpop.f32.mrb[0].mxu0
      %8936 = vdwg.mxu0
      %v8938 = vsel %vm2350, %v8589, 0
      %v8941 = vsel %vm2350, %v8590, 0
      %8943 = vmatprep.subr.mxu0 0.0
      %8944 = vmatpush1.msra.mxu0 %v6608
      %8945 = vmatprep.subr.mxu0 0.0
      %8946 = vmatpush1.msra.mxu0 %v6609
      %8947 = vmatprep.subr.mxu0 0.0
      %8948 = vmatpush1.msra.mxu0 0.0
      %8949 = vmatprep.subr.mxu0 0.0
      %8950 = vmatpush1.msra.mxu0 0.0
      %8951 = vmatprep.subr.mxu0 0.0
      %8952 = vmatpush1.msra.mxu0 0.0
      %8953 = vmatprep.subr.mxu0 0.0
      %8954 = vmatpush1.msra.mxu0 0.0
      %8955 = vmatprep.subr.mxu0 0.0
      %8956 = vmatpush1.msra.mxu0 0.0
      %8957 = vmatprep.subr.mxu0 0.0
      %8958 = vmatpush1.msra.mxu0 0.0
      %8959 = vmatprep.subr.mxu0 0.0
      %8960 = vmatpush1.msra.mxu0 0.0
      %8961 = vmatprep.subr.mxu0 0.0
      %8962 = vmatpush1.msra.mxu0 0.0
      %8963 = vmatprep.subr.mxu0 0.0
      %8964 = vmatpush1.msra.mxu0 0.0
      %8965 = vmatprep.subr.mxu0 0.0
      %8966 = vmatpush1.msra.mxu0 0.0
      %8967 = vmatprep.subr.mxu0 0.0
      %8968 = vmatpush1.msra.mxu0 0.0
      %8969 = vmatprep.subr.mxu0 0.0
      %8970 = vmatpush1.msra.mxu0 0.0
      %8971 = vmatprep.subr.mxu0 0.0
      %8972 = vmatpush1.msra.mxu0 0.0
      %8973 = vmatprep.subr.mxu0 0.0
      %8974 = vmatpush1.msra.mxu0 0.0
      %8975 = vmatprep.subr.mxu0 0.0
      %8976 = vmatpush1.msra.mxu0 0.0
      %8977 = vmatprep.subr.mxu0 0.0
      %8978 = vmatpush1.msra.mxu0 0.0
      %8979 = vmatprep.subr.mxu0 0.0
      %8980 = vmatpush1.msra.mxu0 0.0
      %8981 = vmatprep.subr.mxu0 0.0
      %8982 = vmatpush1.msra.mxu0 0.0
      %8983 = vmatprep.subr.mxu0 0.0
      %8984 = vmatpush1.msra.mxu0 0.0
      %8985 = vmatprep.subr.mxu0 0.0
      %8986 = vmatpush1.msra.mxu0 0.0
      %8987 = vmatprep.subr.mxu0 0.0
      %8988 = vmatpush1.msra.mxu0 0.0
      %8989 = vmatprep.subr.mxu0 0.0
      %8990 = vmatpush1.msra.mxu0 0.0
      %8991 = vmatprep.subr.mxu0 0.0
      %8992 = vmatpush1.msra.mxu0 0.0
      %8993 = vmatprep.subr.mxu0 0.0
      %8994 = vmatpush1.msra.mxu0 0.0
      %8995 = vmatprep.subr.mxu0 0.0
      %8996 = vmatpush1.msra.mxu0 0.0
      %8997 = vmatprep.subr.mxu0 0.0
      %8998 = vmatpush1.msra.mxu0 0.0
      %8999 = vmatprep.subr.mxu0 0.0
      %9000 = vmatpush1.msra.mxu0 0.0
      %9001 = vmatprep.subr.mxu0 0.0
      %9002 = vmatpush1.msra.mxu0 0.0
      %9003 = vmatprep.subr.mxu0 0.0
      %9004 = vmatpush1.msra.mxu0 0.0
      %9005 = vmatprep.subr.mxu0 0.0
      %9006 = vmatpush1.msra.mxu0 0.0
      %9007 = vmatprep.mubr.f32.mxu0 0.0
      %9008 = vmatmul.mubr.f32.gmra.mrb[0].mxu0 %v8938
      %v9009 = vpop.f32.mrb[0].mxu0
      %v9010 = vadd.f32 0.0, %v9009
      %v9011 = vpop.f32.mrb[0].mxu0
      %9012 = vmatprep.mubr.f32.mxu0 0.0
      %9013 = vmatmul.mubr.f32.gmra.mrb[0].mxu0 %v8941
      %v9014 = vpop.f32.mrb[0].mxu0
      %v9015 = vadd.f32 0.0, %v9014
      %v9016 = vpop.f32.mrb[0].mxu0
      %9017 = vdwg.mxu0
      %v9019 = vsel %vm2350, %v8591, 0
      %v9022 = vsel %vm2350, %v8592, 0
      %9024 = vmatprep.subr.mxu0 0.0
      %9025 = vmatpush1.msra.mxu0 %v6610
      %9026 = vmatprep.subr.mxu0 0.0
      %9027 = vmatpush1.msra.mxu0 %v6611
      %9028 = vmatprep.subr.mxu0 0.0
      %9029 = vmatpush1.msra.mxu0 0.0
      %9030 = vmatprep.subr.mxu0 0.0
      %9031 = vmatpush1.msra.mxu0 0.0
      %9032 = vmatprep.subr.mxu0 0.0
      %9033 = vmatpush1.msra.mxu0 0.0
      %9034 = vmatprep.subr.mxu0 0.0
      %9035 = vmatpush1.msra.mxu0 0.0
      %9036 = vmatprep.subr.mxu0 0.0
      %9037 = vmatpush1.msra.mxu0 0.0
      %9038 = vmatprep.subr.mxu0 0.0
      %9039 = vmatpush1.msra.mxu0 0.0
      %9040 = vmatprep.subr.mxu0 0.0
      %9041 = vmatpush1.msra.mxu0 0.0
      %9042 = vmatprep.subr.mxu0 0.0
      %9043 = vmatpush1.msra.mxu0 0.0
      %9044 = vmatprep.subr.mxu0 0.0
      %9045 = vmatpush1.msra.mxu0 0.0
      %9046 = vmatprep.subr.mxu0 0.0
      %9047 = vmatpush1.msra.mxu0 0.0
      %9048 = vmatprep.subr.mxu0 0.0
      %9049 = vmatpush1.msra.mxu0 0.0
      %9050 = vmatprep.subr.mxu0 0.0
      %9051 = vmatpush1.msra.mxu0 0.0
      %9052 = vmatprep.subr.mxu0 0.0
      %9053 = vmatpush1.msra.mxu0 0.0
      %9054 = vmatprep.subr.mxu0 0.0
      %9055 = vmatpush1.msra.mxu0 0.0
      %9056 = vmatprep.subr.mxu0 0.0
      %9057 = vmatpush1.msra.mxu0 0.0
      %9058 = vmatprep.subr.mxu0 0.0
      %9059 = vmatpush1.msra.mxu0 0.0
      %9060 = vmatprep.subr.mxu0 0.0
      %9061 = vmatpush1.msra.mxu0 0.0
      %9062 = vmatprep.subr.mxu0 0.0
      %9063 = vmatpush1.msra.mxu0 0.0
      %9064 = vmatprep.subr.mxu0 0.0
      %9065 = vmatpush1.msra.mxu0 0.0
      %9066 = vmatprep.subr.mxu0 0.0
      %9067 = vmatpush1.msra.mxu0 0.0
      %9068 = vmatprep.subr.mxu0 0.0
      %9069 = vmatpush1.msra.mxu0 0.0
      %9070 = vmatprep.subr.mxu0 0.0
      %9071 = vmatpush1.msra.mxu0 0.0
      %9072 = vmatprep.subr.mxu0 0.0
      %9073 = vmatpush1.msra.mxu0 0.0
      %9074 = vmatprep.subr.mxu0 0.0
      %9075 = vmatpush1.msra.mxu0 0.0
      %9076 = vmatprep.subr.mxu0 0.0
      %9077 = vmatpush1.msra.mxu0 0.0
      %9078 = vmatprep.subr.mxu0 0.0
      %9079 = vmatpush1.msra.mxu0 0.0
      %9080 = vmatprep.subr.mxu0 0.0
      %9081 = vmatpush1.msra.mxu0 0.0
      %9082 = vmatprep.subr.mxu0 0.0
      %9083 = vmatpush1.msra.mxu0 0.0
      %9084 = vmatprep.subr.mxu0 0.0
      %9085 = vmatpush1.msra.mxu0 0.0
      %9086 = vmatprep.subr.mxu0 0.0
      %9087 = vmatpush1.msra.mxu0 0.0
      %9088 = vmatprep.mubr.f32.mxu0 0.0
      %9089 = vmatmul.mubr.f32.gmra.mrb[0].mxu0 %v9019
      %v9090 = vpop.f32.mrb[0].mxu0
      %v9091 = vadd.f32 0.0, %v9090
      %v9092 = vpop.f32.mrb[0].mxu0
      %9093 = vmatprep.mubr.f32.mxu0 0.0
      %9094 = vmatmul.mubr.f32.gmra.mrb[0].mxu0 %v9022
      %v9095 = vpop.f32.mrb[0].mxu0
      %v9096 = vadd.f32 0.0, %v9095
      %v9097 = vpop.f32.mrb[0].mxu0
      %9098 = vdwg.mxu0
      %v9100 = vsel %vm2350, %v8593, 0
      %v9103 = vsel %vm2350, %v8594, 0
      %9105 = vmatprep.subr.mxu0 0.0
      %9106 = vmatpush1.msra.mxu0 %v6612
      %9107 = vmatprep.subr.mxu0 0.0
      %9108 = vmatpush1.msra.mxu0 %v6613
      %9109 = vmatprep.subr.mxu0 0.0
      %9110 = vmatpush1.msra.mxu0 0.0
      %9111 = vmatprep.subr.mxu0 0.0
      %9112 = vmatpush1.msra.mxu0 0.0
      %9113 = vmatprep.subr.mxu0 0.0
      %9114 = vmatpush1.msra.mxu0 0.0
      %9115 = vmatprep.subr.mxu0 0.0
      %9116 = vmatpush1.msra.mxu0 0.0
      %9117 = vmatprep.subr.mxu0 0.0
      %9118 = vmatpush1.msra.mxu0 0.0
      %9119 = vmatprep.subr.mxu0 0.0
      %9120 = vmatpush1.msra.mxu0 0.0
      %9121 = vmatprep.subr.mxu0 0.0
      %9122 = vmatpush1.msra.mxu0 0.0
      %9123 = vmatprep.subr.mxu0 0.0
      %9124 = vmatpush1.msra.mxu0 0.0
      %9125 = vmatprep.subr.mxu0 0.0
      %9126 = vmatpush1.msra.mxu0 0.0
      %9127 = vmatprep.subr.mxu0 0.0
      %9128 = vmatpush1.msra.mxu0 0.0
      %9129 = vmatprep.subr.mxu0 0.0
      %9130 = vmatpush1.msra.mxu0 0.0
      %9131 = vmatprep.subr.mxu0 0.0
      %9132 = vmatpush1.msra.mxu0 0.0
      %9133 = vmatprep.subr.mxu0 0.0
      %9134 = vmatpush1.msra.mxu0 0.0
      %9135 = vmatprep.subr.mxu0 0.0
      %9136 = vmatpush1.msra.mxu0 0.0
      %9137 = vmatprep.subr.mxu0 0.0
      %9138 = vmatpush1.msra.mxu0 0.0
      %9139 = vmatprep.subr.mxu0 0.0
      %9140 = vmatpush1.msra.mxu0 0.0
      %9141 = vmatprep.subr.mxu0 0.0
      %9142 = vmatpush1.msra.mxu0 0.0
      %9143 = vmatprep.subr.mxu0 0.0
      %9144 = vmatpush1.msra.mxu0 0.0
      %9145 = vmatprep.subr.mxu0 0.0
      %9146 = vmatpush1.msra.mxu0 0.0
      %9147 = vmatprep.subr.mxu0 0.0
      %9148 = vmatpush1.msra.mxu0 0.0
      %9149 = vmatprep.subr.mxu0 0.0
      %9150 = vmatpush1.msra.mxu0 0.0
      %9151 = vmatprep.subr.mxu0 0.0
      %9152 = vmatpush1.msra.mxu0 0.0
      %9153 = vmatprep.subr.mxu0 0.0
      %9154 = vmatpush1.msra.mxu0 0.0
      %9155 = vmatprep.subr.mxu0 0.0
      %9156 = vmatpush1.msra.mxu0 0.0
      %9157 = vmatprep.subr.mxu0 0.0
      %9158 = vmatpush1.msra.mxu0 0.0
      %9159 = vmatprep.subr.mxu0 0.0
      %9160 = vmatpush1.msra.mxu0 0.0
      %9161 = vmatprep.subr.mxu0 0.0
      %9162 = vmatpush1.msra.mxu0 0.0
      %9163 = vmatprep.subr.mxu0 0.0
      %9164 = vmatpush1.msra.mxu0 0.0
      %9165 = vmatprep.subr.mxu0 0.0
      %9166 = vmatpush1.msra.mxu0 0.0
      %9167 = vmatprep.subr.mxu0 0.0
      %9168 = vmatpush1.msra.mxu0 0.0
      %9169 = vmatprep.mubr.f32.mxu0 0.0
      %9170 = vmatmul.mubr.f32.gmra.mrb[0].mxu0 %v9100
      %v9171 = vpop.f32.mrb[0].mxu0
      %v9172 = vadd.f32 0.0, %v9171
      %v9173 = vpop.f32.mrb[0].mxu0
      %9174 = vmatprep.mubr.f32.mxu0 0.0
      %9175 = vmatmul.mubr.f32.gmra.mrb[0].mxu0 %v9103
      %v9176 = vpop.f32.mrb[0].mxu0
      %v9177 = vadd.f32 0.0, %v9176
      %v9178 = vpop.f32.mrb[0].mxu0
      %9179 = vdwg.mxu0
      %v9181 = vsel %vm2350, %v8595, 0
      %v9184 = vsel %vm2350, %v8596, 0
      %9186 = vmatprep.subr.mxu0 0.0
      %9187 = vmatpush1.msra.mxu0 %v6614
      %9188 = vmatprep.subr.mxu0 0.0
      %9189 = vmatpush1.msra.mxu0 %v6615
      %9190 = vmatprep.subr.mxu0 0.0
      %9191 = vmatpush1.msra.mxu0 0.0
      %9192 = vmatprep.subr.mxu0 0.0
      %9193 = vmatpush1.msra.mxu0 0.0
      %9194 = vmatprep.subr.mxu0 0.0
      %9195 = vmatpush1.msra.mxu0 0.0
      %9196 = vmatprep.subr.mxu0 0.0
      %9197 = vmatpush1.msra.mxu0 0.0
      %9198 = vmatprep.subr.mxu0 0.0
      %9199 = vmatpush1.msra.mxu0 0.0
      %9200 = vmatprep.subr.mxu0 0.0
      %9201 = vmatpush1.msra.mxu0 0.0
      %9202 = vmatprep.subr.mxu0 0.0
      %9203 = vmatpush1.msra.mxu0 0.0
      %9204 = vmatprep.subr.mxu0 0.0
      %9205 = vmatpush1.msra.mxu0 0.0
      %9206 = vmatprep.subr.mxu0 0.0
      %9207 = vmatpush1.msra.mxu0 0.0
      %9208 = vmatprep.subr.mxu0 0.0
      %9209 = vmatpush1.msra.mxu0 0.0
      %9210 = vmatprep.subr.mxu0 0.0
      %9211 = vmatpush1.msra.mxu0 0.0
      %9212 = vmatprep.subr.mxu0 0.0
      %9213 = vmatpush1.msra.mxu0 0.0
      %9214 = vmatprep.subr.mxu0 0.0
      %9215 = vmatpush1.msra.mxu0 0.0
      %9216 = vmatprep.subr.mxu0 0.0
      %9217 = vmatpush1.msra.mxu0 0.0
      %9218 = vmatprep.subr.mxu0 0.0
      %9219 = vmatpush1.msra.mxu0 0.0
      %9220 = vmatprep.subr.mxu0 0.0
      %9221 = vmatpush1.msra.mxu0 0.0
      %9222 = vmatprep.subr.mxu0 0.0
      %9223 = vmatpush1.msra.mxu0 0.0
      %9224 = vmatprep.subr.mxu0 0.0
      %9225 = vmatpush1.msra.mxu0 0.0
      %9226 = vmatprep.subr.mxu0 0.0
      %9227 = vmatpush1.msra.mxu0 0.0
      %9228 = vmatprep.subr.mxu0 0.0
      %9229 = vmatpush1.msra.mxu0 0.0
      %9230 = vmatprep.subr.mxu0 0.0
      %9231 = vmatpush1.msra.mxu0 0.0
      %9232 = vmatprep.subr.mxu0 0.0
      %9233 = vmatpush1.msra.mxu0 0.0
      %9234 = vmatprep.subr.mxu0 0.0
      %9235 = vmatpush1.msra.mxu0 0.0
      %9236 = vmatprep.subr.mxu0 0.0
      %9237 = vmatpush1.msra.mxu0 0.0
      %9238 = vmatprep.subr.mxu0 0.0
      %9239 = vmatpush1.msra.mxu0 0.0
      %9240 = vmatprep.subr.mxu0 0.0
      %9241 = vmatpush1.msra.mxu0 0.0
      %9242 = vmatprep.subr.mxu0 0.0
      %9243 = vmatpush1.msra.mxu0 0.0
      %9244 = vmatprep.subr.mxu0 0.0
      %9245 = vmatpush1.msra.mxu0 0.0
      %9246 = vmatprep.subr.mxu0 0.0
      %9247 = vmatpush1.msra.mxu0 0.0
      %9248 = vmatprep.subr.mxu0 0.0
      %9249 = vmatpush1.msra.mxu0 0.0
      %9250 = vmatprep.mubr.f32.mxu0 0.0
      %9251 = vmatmul.mubr.f32.gmra.mrb[0].mxu0 %v9181
      %v9252 = vpop.f32.mrb[0].mxu0
      %v9253 = vadd.f32 0.0, %v9252
      %v9254 = vpop.f32.mrb[0].mxu0
      %9255 = vmatprep.mubr.f32.mxu0 0.0
      %9256 = vmatmul.mubr.f32.gmra.mrb[0].mxu0 %v9184
      %v9257 = vpop.f32.mrb[0].mxu0
      %v9258 = vadd.f32 0.0, %v9257
      %v9259 = vpop.f32.mrb[0].mxu0
      %9260 = vdwg.mxu0
      %v9262 = vsel %vm2350, %v8597, 0
      %v9265 = vsel %vm2350, %v8598, 0
      %9267 = vmatprep.subr.mxu0 0.0
      %9268 = vmatpush1.msra.mxu0 %v6616
      %9269 = vmatprep.subr.mxu0 0.0
      %9270 = vmatpush1.msra.mxu0 %v6617
      %9271 = vmatprep.subr.mxu0 0.0
      %9272 = vmatpush1.msra.mxu0 0.0
      %9273 = vmatprep.subr.mxu0 0.0
      %9274 = vmatpush1.msra.mxu0 0.0
      %9275 = vmatprep.subr.mxu0 0.0
      %9276 = vmatpush1.msra.mxu0 0.0
      %9277 = vmatprep.subr.mxu0 0.0
      %9278 = vmatpush1.msra.mxu0 0.0
      %9279 = vmatprep.subr.mxu0 0.0
      %9280 = vmatpush1.msra.mxu0 0.0
      %9281 = vmatprep.subr.mxu0 0.0
      %9282 = vmatpush1.msra.mxu0 0.0
      %9283 = vmatprep.subr.mxu0 0.0
      %9284 = vmatpush1.msra.mxu0 0.0
      %9285 = vmatprep.subr.mxu0 0.0
      %9286 = vmatpush1.msra.mxu0 0.0
      %9287 = vmatprep.subr.mxu0 0.0
      %9288 = vmatpush1.msra.mxu0 0.0
      %9289 = vmatprep.subr.mxu0 0.0
      %9290 = vmatpush1.msra.mxu0 0.0
      %9291 = vmatprep.subr.mxu0 0.0
      %9292 = vmatpush1.msra.mxu0 0.0
      %9293 = vmatprep.subr.mxu0 0.0
      %9294 = vmatpush1.msra.mxu0 0.0
      %9295 = vmatprep.subr.mxu0 0.0
      %9296 = vmatpush1.msra.mxu0 0.0
      %9297 = vmatprep.subr.mxu0 0.0
      %9298 = vmatpush1.msra.mxu0 0.0
      %9299 = vmatprep.subr.mxu0 0.0
      %9300 = vmatpush1.msra.mxu0 0.0
      %9301 = vmatprep.subr.mxu0 0.0
      %9302 = vmatpush1.msra.mxu0 0.0
      %9303 = vmatprep.subr.mxu0 0.0
      %9304 = vmatpush1.msra.mxu0 0.0
      %9305 = vmatprep.subr.mxu0 0.0
      %9306 = vmatpush1.msra.mxu0 0.0
      %9307 = vmatprep.subr.mxu0 0.0
      %9308 = vmatpush1.msra.mxu0 0.0
      %9309 = vmatprep.subr.mxu0 0.0
      %9310 = vmatpush1.msra.mxu0 0.0
      %9311 = vmatprep.subr.mxu0 0.0
      %9312 = vmatpush1.msra.mxu0 0.0
      %9313 = vmatprep.subr.mxu0 0.0
      %9314 = vmatpush1.msra.mxu0 0.0
      %9315 = vmatprep.subr.mxu0 0.0
      %9316 = vmatpush1.msra.mxu0 0.0
      %9317 = vmatprep.subr.mxu0 0.0
      %9318 = vmatpush1.msra.mxu0 0.0
      %9319 = vmatprep.subr.mxu0 0.0
      %9320 = vmatpush1.msra.mxu0 0.0
      %9321 = vmatprep.subr.mxu0 0.0
      %9322 = vmatpush1.msra.mxu0 0.0
      %9323 = vmatprep.subr.mxu0 0.0
      %9324 = vmatpush1.msra.mxu0 0.0
      %9325 = vmatprep.subr.mxu0 0.0
      %9326 = vmatpush1.msra.mxu0 0.0
      %9327 = vmatprep.subr.mxu0 0.0
      %9328 = vmatpush1.msra.mxu0 0.0
      %9329 = vmatprep.subr.mxu0 0.0
      %9330 = vmatpush1.msra.mxu0 0.0
      %9331 = vmatprep.mubr.f32.mxu0 0.0
      %9332 = vmatmul.mubr.f32.gmra.mrb[0].mxu0 %v9262
      %v9333 = vpop.f32.mrb[0].mxu0
      %v9334 = vadd.f32 0.0, %v9333
      %v9335 = vpop.f32.mrb[0].mxu0
      %9336 = vmatprep.mubr.f32.mxu0 0.0
      %9337 = vmatmul.mubr.f32.gmra.mrb[0].mxu0 %v9265
      %v9338 = vpop.f32.mrb[0].mxu0
      %v9339 = vadd.f32 0.0, %v9338
      %v9340 = vpop.f32.mrb[0].mxu0
      %9341 = vdwg.mxu0
      %v9343 = vsel %vm2350, %v8599, 0
      %v9346 = vsel %vm2350, %v8600, 0
      %9348 = vmatprep.subr.mxu0 0.0
      %9349 = vmatpush1.msra.mxu0 %v6618
      %9350 = vmatprep.subr.mxu0 0.0
      %9351 = vmatpush1.msra.mxu0 %v6619
      %9352 = vmatprep.subr.mxu0 0.0
      %9353 = vmatpush1.msra.mxu0 0.0
      %9354 = vmatprep.subr.mxu0 0.0
      %9355 = vmatpush1.msra.mxu0 0.0
      %9356 = vmatprep.subr.mxu0 0.0
      %9357 = vmatpush1.msra.mxu0 0.0
      %9358 = vmatprep.subr.mxu0 0.0
      %9359 = vmatpush1.msra.mxu0 0.0
      %9360 = vmatprep.subr.mxu0 0.0
      %9361 = vmatpush1.msra.mxu0 0.0
      %9362 = vmatprep.subr.mxu0 0.0
      %9363 = vmatpush1.msra.mxu0 0.0
      %9364 = vmatprep.subr.mxu0 0.0
      %9365 = vmatpush1.msra.mxu0 0.0
      %9366 = vmatprep.subr.mxu0 0.0
      %9367 = vmatpush1.msra.mxu0 0.0
      %9368 = vmatprep.subr.mxu0 0.0
      %9369 = vmatpush1.msra.mxu0 0.0
      %9370 = vmatprep.subr.mxu0 0.0
      %9371 = vmatpush1.msra.mxu0 0.0
      %9372 = vmatprep.subr.mxu0 0.0
      %9373 = vmatpush1.msra.mxu0 0.0
      %9374 = vmatprep.subr.mxu0 0.0
      %9375 = vmatpush1.msra.mxu0 0.0
      %9376 = vmatprep.subr.mxu0 0.0
      %9377 = vmatpush1.msra.mxu0 0.0
      %9378 = vmatprep.subr.mxu0 0.0
      %9379 = vmatpush1.msra.mxu0 0.0
      %9380 = vmatprep.subr.mxu0 0.0
      %9381 = vmatpush1.msra.mxu0 0.0
      %9382 = vmatprep.subr.mxu0 0.0
      %9383 = vmatpush1.msra.mxu0 0.0
      %9384 = vmatprep.subr.mxu0 0.0
      %9385 = vmatpush1.msra.mxu0 0.0
      %9386 = vmatprep.subr.mxu0 0.0
      %9387 = vmatpush1.msra.mxu0 0.0
      %9388 = vmatprep.subr.mxu0 0.0
      %9389 = vmatpush1.msra.mxu0 0.0
      %9390 = vmatprep.subr.mxu0 0.0
      %9391 = vmatpush1.msra.mxu0 0.0
      %9392 = vmatprep.subr.mxu0 0.0
      %9393 = vmatpush1.msra.mxu0 0.0
      %9394 = vmatprep.subr.mxu0 0.0
      %9395 = vmatpush1.msra.mxu0 0.0
      %9396 = vmatprep.subr.mxu0 0.0
      %9397 = vmatpush1.msra.mxu0 0.0
      %9398 = vmatprep.subr.mxu0 0.0
      %9399 = vmatpush1.msra.mxu0 0.0
      %9400 = vmatprep.subr.mxu0 0.0
      %9401 = vmatpush1.msra.mxu0 0.0
      %9402 = vmatprep.subr.mxu0 0.0
      %9403 = vmatpush1.msra.mxu0 0.0
      %9404 = vmatprep.subr.mxu0 0.0
      %9405 = vmatpush1.msra.mxu0 0.0
      %9406 = vmatprep.subr.mxu0 0.0
      %9407 = vmatpush1.msra.mxu0 0.0
      %9408 = vmatprep.subr.mxu0 0.0
      %9409 = vmatpush1.msra.mxu0 0.0
      %9410 = vmatprep.subr.mxu0 0.0
      %9411 = vmatpush1.msra.mxu0 0.0
      %9412 = vmatprep.mubr.f32.mxu0 0.0
      %9413 = vmatmul.mubr.f32.gmra.mrb[0].mxu0 %v9343
      %v9414 = vpop.f32.mrb[0].mxu0
      %v9415 = vadd.f32 0.0, %v9414
      %v9416 = vpop.f32.mrb[0].mxu0
      %9417 = vmatprep.mubr.f32.mxu0 0.0
      %9418 = vmatmul.mubr.f32.gmra.mrb[0].mxu0 %v9346
      %v9419 = vpop.f32.mrb[0].mxu0
      %v9420 = vadd.f32 0.0, %v9419
      %v9421 = vpop.f32.mrb[0].mxu0
      %9422 = vdwg.mxu0
      %v9424 = vsel %vm2350, %v8601, 0
      %v9427 = vsel %vm2350, %v8602, 0
      %9429 = vmatprep.subr.mxu0 0.0
      %9430 = vmatpush1.msra.mxu0 %v6620
      %9431 = vmatprep.subr.mxu0 0.0
      %9432 = vmatpush1.msra.mxu0 %v6621
      %9433 = vmatprep.subr.mxu0 0.0
      %9434 = vmatpush1.msra.mxu0 0.0
      %9435 = vmatprep.subr.mxu0 0.0
      %9436 = vmatpush1.msra.mxu0 0.0
      %9437 = vmatprep.subr.mxu0 0.0
      %9438 = vmatpush1.msra.mxu0 0.0
      %9439 = vmatprep.subr.mxu0 0.0
      %9440 = vmatpush1.msra.mxu0 0.0
      %9441 = vmatprep.subr.mxu0 0.0
      %9442 = vmatpush1.msra.mxu0 0.0
      %9443 = vmatprep.subr.mxu0 0.0
      %9444 = vmatpush1.msra.mxu0 0.0
      %9445 = vmatprep.subr.mxu0 0.0
      %9446 = vmatpush1.msra.mxu0 0.0
      %9447 = vmatprep.subr.mxu0 0.0
      %9448 = vmatpush1.msra.mxu0 0.0
      %9449 = vmatprep.subr.mxu0 0.0
      %9450 = vmatpush1.msra.mxu0 0.0
      %9451 = vmatprep.subr.mxu0 0.0
      %9452 = vmatpush1.msra.mxu0 0.0
      %9453 = vmatprep.subr.mxu0 0.0
      %9454 = vmatpush1.msra.mxu0 0.0
      %9455 = vmatprep.subr.mxu0 0.0
      %9456 = vmatpush1.msra.mxu0 0.0
      %9457 = vmatprep.subr.mxu0 0.0
      %9458 = vmatpush1.msra.mxu0 0.0
      %9459 = vmatprep.subr.mxu0 0.0
      %9460 = vmatpush1.msra.mxu0 0.0
      %9461 = vmatprep.subr.mxu0 0.0
      %9462 = vmatpush1.msra.mxu0 0.0
      %9463 = vmatprep.subr.mxu0 0.0
      %9464 = vmatpush1.msra.mxu0 0.0
      %9465 = vmatprep.subr.mxu0 0.0
      %9466 = vmatpush1.msra.mxu0 0.0
      %9467 = vmatprep.subr.mxu0 0.0
      %9468 = vmatpush1.msra.mxu0 0.0
      %9469 = vmatprep.subr.mxu0 0.0
      %9470 = vmatpush1.msra.mxu0 0.0
      %9471 = vmatprep.subr.mxu0 0.0
      %9472 = vmatpush1.msra.mxu0 0.0
      %9473 = vmatprep.subr.mxu0 0.0
      %9474 = vmatpush1.msra.mxu0 0.0
      %9475 = vmatprep.subr.mxu0 0.0
      %9476 = vmatpush1.msra.mxu0 0.0
      %9477 = vmatprep.subr.mxu0 0.0
      %9478 = vmatpush1.msra.mxu0 0.0
      %9479 = vmatprep.subr.mxu0 0.0
      %9480 = vmatpush1.msra.mxu0 0.0
      %9481 = vmatprep.subr.mxu0 0.0
      %9482 = vmatpush1.msra.mxu0 0.0
      %9483 = vmatprep.subr.mxu0 0.0
      %9484 = vmatpush1.msra.mxu0 0.0
      %9485 = vmatprep.subr.mxu0 0.0
      %9486 = vmatpush1.msra.mxu0 0.0
      %9487 = vmatprep.subr.mxu0 0.0
      %9488 = vmatpush1.msra.mxu0 0.0
      %9489 = vmatprep.subr.mxu0 0.0
      %9490 = vmatpush1.msra.mxu0 0.0
      %9491 = vmatprep.subr.mxu0 0.0
      %9492 = vmatpush1.msra.mxu0 0.0
      %9493 = vmatprep.mubr.f32.mxu0 0.0
      %9494 = vmatmul.mubr.f32.gmra.mrb[0].mxu0 %v9424
      %v9495 = vpop.f32.mrb[0].mxu0
      %v9496 = vadd.f32 0.0, %v9495
      %v9497 = vpop.f32.mrb[0].mxu0
      %9498 = vmatprep.mubr.f32.mxu0 0.0
      %9499 = vmatmul.mubr.f32.gmra.mrb[0].mxu0 %v9427
      %v9500 = vpop.f32.mrb[0].mxu0
      %v9501 = vadd.f32 0.0, %v9500
      %v9502 = vpop.f32.mrb[0].mxu0
      %9503 = vdwg.mxu0
      %v9505 = vsel %vm2350, %v8603, 0
      %v9508 = vsel %vm2350, %v8604, 0
      %9510 = vmatprep.subr.mxu0 0.0
      %9511 = vmatpush1.msra.mxu0 %v6622
      %9512 = vmatprep.subr.mxu0 0.0
      %9513 = vmatpush1.msra.mxu0 %v6623
      %9514 = vmatprep.subr.mxu0 0.0
      %9515 = vmatpush1.msra.mxu0 0.0
      %9516 = vmatprep.subr.mxu0 0.0
      %9517 = vmatpush1.msra.mxu0 0.0
      %9518 = vmatprep.subr.mxu0 0.0
      %9519 = vmatpush1.msra.mxu0 0.0
      %9520 = vmatprep.subr.mxu0 0.0
      %9521 = vmatpush1.msra.mxu0 0.0
      %9522 = vmatprep.subr.mxu0 0.0
      %9523 = vmatpush1.msra.mxu0 0.0
      %9524 = vmatprep.subr.mxu0 0.0
      %9525 = vmatpush1.msra.mxu0 0.0
      %9526 = vmatprep.subr.mxu0 0.0
      %9527 = vmatpush1.msra.mxu0 0.0
      %9528 = vmatprep.subr.mxu0 0.0
      %9529 = vmatpush1.msra.mxu0 0.0
      %9530 = vmatprep.subr.mxu0 0.0
      %9531 = vmatpush1.msra.mxu0 0.0
      %9532 = vmatprep.subr.mxu0 0.0
      %9533 = vmatpush1.msra.mxu0 0.0
      %9534 = vmatprep.subr.mxu0 0.0
      %9535 = vmatpush1.msra.mxu0 0.0
      %9536 = vmatprep.subr.mxu0 0.0
      %9537 = vmatpush1.msra.mxu0 0.0
      %9538 = vmatprep.subr.mxu0 0.0
      %9539 = vmatpush1.msra.mxu0 0.0
      %9540 = vmatprep.subr.mxu0 0.0
      %9541 = vmatpush1.msra.mxu0 0.0
      %9542 = vmatprep.subr.mxu0 0.0
      %9543 = vmatpush1.msra.mxu0 0.0
      %9544 = vmatprep.subr.mxu0 0.0
      %9545 = vmatpush1.msra.mxu0 0.0
      %9546 = vmatprep.subr.mxu0 0.0
      %9547 = vmatpush1.msra.mxu0 0.0
      %9548 = vmatprep.subr.mxu0 0.0
      %9549 = vmatpush1.msra.mxu0 0.0
      %9550 = vmatprep.subr.mxu0 0.0
      %9551 = vmatpush1.msra.mxu0 0.0
      %9552 = vmatprep.subr.mxu0 0.0
      %9553 = vmatpush1.msra.mxu0 0.0
      %9554 = vmatprep.subr.mxu0 0.0
      %9555 = vmatpush1.msra.mxu0 0.0
      %9556 = vmatprep.subr.mxu0 0.0
      %9557 = vmatpush1.msra.mxu0 0.0
      %9558 = vmatprep.subr.mxu0 0.0
      %9559 = vmatpush1.msra.mxu0 0.0
      %9560 = vmatprep.subr.mxu0 0.0
      %9561 = vmatpush1.msra.mxu0 0.0
      %9562 = vmatprep.subr.mxu0 0.0
      %9563 = vmatpush1.msra.mxu0 0.0
      %9564 = vmatprep.subr.mxu0 0.0
      %9565 = vmatpush1.msra.mxu0 0.0
      %9566 = vmatprep.subr.mxu0 0.0
      %9567 = vmatpush1.msra.mxu0 0.0
      %9568 = vmatprep.subr.mxu0 0.0
      %9569 = vmatpush1.msra.mxu0 0.0
      %9570 = vmatprep.subr.mxu0 0.0
      %9571 = vmatpush1.msra.mxu0 0.0
      %9572 = vmatprep.subr.mxu0 0.0
      %9573 = vmatpush1.msra.mxu0 0.0
      %9574 = vmatprep.mubr.f32.mxu0 0.0
      %9575 = vmatmul.mubr.f32.gmra.mrb[0].mxu0 %v9505
      %v9576 = vpop.f32.mrb[0].mxu0
      %v9577 = vadd.f32 0.0, %v9576
      %v9578 = vpop.f32.mrb[0].mxu0
      %9579 = vmatprep.mubr.f32.mxu0 0.0
      %9580 = vmatmul.mubr.f32.gmra.mrb[0].mxu0 %v9508
      %v9581 = vpop.f32.mrb[0].mxu0
      %v9582 = vadd.f32 0.0, %v9581
      %v9583 = vpop.f32.mrb[0].mxu0
      %9584 = vdwg.mxu0
      %v9586 = vsel %vm2350, %v8605, 0
      %v9589 = vsel %vm2350, %v8606, 0
      %9591 = vmatprep.subr.mxu0 0.0
      %9592 = vmatpush1.msra.mxu0 %v6624
      %9593 = vmatprep.subr.mxu0 0.0
      %9594 = vmatpush1.msra.mxu0 %v6625
      %9595 = vmatprep.subr.mxu0 0.0
      %9596 = vmatpush1.msra.mxu0 0.0
      %9597 = vmatprep.subr.mxu0 0.0
      %9598 = vmatpush1.msra.mxu0 0.0
      %9599 = vmatprep.subr.mxu0 0.0
      %9600 = vmatpush1.msra.mxu0 0.0
      %9601 = vmatprep.subr.mxu0 0.0
      %9602 = vmatpush1.msra.mxu0 0.0
      %9603 = vmatprep.subr.mxu0 0.0
      %9604 = vmatpush1.msra.mxu0 0.0
      %9605 = vmatprep.subr.mxu0 0.0
      %9606 = vmatpush1.msra.mxu0 0.0
      %9607 = vmatprep.subr.mxu0 0.0
      %9608 = vmatpush1.msra.mxu0 0.0
      %9609 = vmatprep.subr.mxu0 0.0
      %9610 = vmatpush1.msra.mxu0 0.0
      %9611 = vmatprep.subr.mxu0 0.0
      %9612 = vmatpush1.msra.mxu0 0.0
      %9613 = vmatprep.subr.mxu0 0.0
      %9614 = vmatpush1.msra.mxu0 0.0
      %9615 = vmatprep.subr.mxu0 0.0
      %9616 = vmatpush1.msra.mxu0 0.0
      %9617 = vmatprep.subr.mxu0 0.0
      %9618 = vmatpush1.msra.mxu0 0.0
      %9619 = vmatprep.subr.mxu0 0.0
      %9620 = vmatpush1.msra.mxu0 0.0
      %9621 = vmatprep.subr.mxu0 0.0
      %9622 = vmatpush1.msra.mxu0 0.0
      %9623 = vmatprep.subr.mxu0 0.0
      %9624 = vmatpush1.msra.mxu0 0.0
      %9625 = vmatprep.subr.mxu0 0.0
      %9626 = vmatpush1.msra.mxu0 0.0
      %9627 = vmatprep.subr.mxu0 0.0
      %9628 = vmatpush1.msra.mxu0 0.0
      %9629 = vmatprep.subr.mxu0 0.0
      %9630 = vmatpush1.msra.mxu0 0.0
      %9631 = vmatprep.subr.mxu0 0.0
      %9632 = vmatpush1.msra.mxu0 0.0
      %9633 = vmatprep.subr.mxu0 0.0
      %9634 = vmatpush1.msra.mxu0 0.0
      %9635 = vmatprep.subr.mxu0 0.0
      %9636 = vmatpush1.msra.mxu0 0.0
      %9637 = vmatprep.subr.mxu0 0.0
      %9638 = vmatpush1.msra.mxu0 0.0
      %9639 = vmatprep.subr.mxu0 0.0
      %9640 = vmatpush1.msra.mxu0 0.0
      %9641 = vmatprep.subr.mxu0 0.0
      %9642 = vmatpush1.msra.mxu0 0.0
      %9643 = vmatprep.subr.mxu0 0.0
      %9644 = vmatpush1.msra.mxu0 0.0
      %9645 = vmatprep.subr.mxu0 0.0
      %9646 = vmatpush1.msra.mxu0 0.0
      %9647 = vmatprep.subr.mxu0 0.0
      %9648 = vmatpush1.msra.mxu0 0.0
      %9649 = vmatprep.subr.mxu0 0.0
      %9650 = vmatpush1.msra.mxu0 0.0
      %9651 = vmatprep.subr.mxu0 0.0
      %9652 = vmatpush1.msra.mxu0 0.0
      %9653 = vmatprep.subr.mxu0 0.0
      %9654 = vmatpush1.msra.mxu0 0.0
      %9655 = vmatprep.mubr.f32.mxu0 0.0
      %9656 = vmatmul.mubr.f32.gmra.mrb[0].mxu0 %v9586
      %v9657 = vpop.f32.mrb[0].mxu0
      %v9658 = vadd.f32 0.0, %v9657
      %v9659 = vpop.f32.mrb[0].mxu0
      %9660 = vmatprep.mubr.f32.mxu0 0.0
      %9661 = vmatmul.mubr.f32.gmra.mrb[0].mxu0 %v9589
      %v9662 = vpop.f32.mrb[0].mxu0
      %v9663 = vadd.f32 0.0, %v9662
      %v9664 = vpop.f32.mrb[0].mxu0
      %9665 = vdwg.mxu0
      %v9667 = vsel %vm2350, %v8607, 0
      %v9670 = vsel %vm2350, %v8608, 0
      %9672 = vmatprep.subr.mxu0 0.0
      %9673 = vmatpush1.msra.mxu0 %v6626
      %9674 = vmatprep.subr.mxu0 0.0
      %9675 = vmatpush1.msra.mxu0 %v6627
      %9676 = vmatprep.subr.mxu0 0.0
      %9677 = vmatpush1.msra.mxu0 0.0
      %9678 = vmatprep.subr.mxu0 0.0
      %9679 = vmatpush1.msra.mxu0 0.0
      %9680 = vmatprep.subr.mxu0 0.0
      %9681 = vmatpush1.msra.mxu0 0.0
      %9682 = vmatprep.subr.mxu0 0.0
      %9683 = vmatpush1.msra.mxu0 0.0
      %9684 = vmatprep.subr.mxu0 0.0
      %9685 = vmatpush1.msra.mxu0 0.0
      %9686 = vmatprep.subr.mxu0 0.0
      %9687 = vmatpush1.msra.mxu0 0.0
      %9688 = vmatprep.subr.mxu0 0.0
      %9689 = vmatpush1.msra.mxu0 0.0
      %9690 = vmatprep.subr.mxu0 0.0
      %9691 = vmatpush1.msra.mxu0 0.0
      %9692 = vmatprep.subr.mxu0 0.0
      %9693 = vmatpush1.msra.mxu0 0.0
      %9694 = vmatprep.subr.mxu0 0.0
      %9695 = vmatpush1.msra.mxu0 0.0
      %9696 = vmatprep.subr.mxu0 0.0
      %9697 = vmatpush1.msra.mxu0 0.0
      %9698 = vmatprep.subr.mxu0 0.0
      %9699 = vmatpush1.msra.mxu0 0.0
      %9700 = vmatprep.subr.mxu0 0.0
      %9701 = vmatpush1.msra.mxu0 0.0
      %9702 = vmatprep.subr.mxu0 0.0
      %9703 = vmatpush1.msra.mxu0 0.0
      %9704 = vmatprep.subr.mxu0 0.0
      %9705 = vmatpush1.msra.mxu0 0.0
      %9706 = vmatprep.subr.mxu0 0.0
      %9707 = vmatpush1.msra.mxu0 0.0
      %9708 = vmatprep.subr.mxu0 0.0
      %9709 = vmatpush1.msra.mxu0 0.0
      %9710 = vmatprep.subr.mxu0 0.0
      %9711 = vmatpush1.msra.mxu0 0.0
      %9712 = vmatprep.subr.mxu0 0.0
      %9713 = vmatpush1.msra.mxu0 0.0
      %9714 = vmatprep.subr.mxu0 0.0
      %9715 = vmatpush1.msra.mxu0 0.0
      %9716 = vmatprep.subr.mxu0 0.0
      %9717 = vmatpush1.msra.mxu0 0.0
      %9718 = vmatprep.subr.mxu0 0.0
      %9719 = vmatpush1.msra.mxu0 0.0
      %9720 = vmatprep.subr.mxu0 0.0
      %9721 = vmatpush1.msra.mxu0 0.0
      %9722 = vmatprep.subr.mxu0 0.0
      %9723 = vmatpush1.msra.mxu0 0.0
      %9724 = vmatprep.subr.mxu0 0.0
      %9725 = vmatpush1.msra.mxu0 0.0
      %9726 = vmatprep.subr.mxu0 0.0
      %9727 = vmatpush1.msra.mxu0 0.0
      %9728 = vmatprep.subr.mxu0 0.0
      %9729 = vmatpush1.msra.mxu0 0.0
      %9730 = vmatprep.subr.mxu0 0.0
      %9731 = vmatpush1.msra.mxu0 0.0
      %9732 = vmatprep.subr.mxu0 0.0
      %9733 = vmatpush1.msra.mxu0 0.0
      %9734 = vmatprep.subr.mxu0 0.0
      %9735 = vmatpush1.msra.mxu0 0.0
      %9736 = vmatprep.mubr.f32.mxu0 0.0
      %9737 = vmatmul.mubr.f32.gmra.mrb[0].mxu0 %v9667
      %v9738 = vpop.f32.mrb[0].mxu0
      %v9739 = vadd.f32 0.0, %v9738
      %v9740 = vpop.f32.mrb[0].mxu0
      %9741 = vmatprep.mubr.f32.mxu0 0.0
      %9742 = vmatmul.mubr.f32.gmra.mrb[0].mxu0 %v9670
      %v9743 = vpop.f32.mrb[0].mxu0
      %v9744 = vadd.f32 0.0, %v9743
      %v9745 = vpop.f32.mrb[0].mxu0
      %9746 = vdwg.mxu0
      %v9748 = vsel %vm2350, %v8609, 0
      %v9751 = vsel %vm2350, %v8610, 0
      %9753 = vmatprep.subr.mxu0 0.0
      %9754 = vmatpush1.msra.mxu0 %v6628
      %9755 = vmatprep.subr.mxu0 0.0
      %9756 = vmatpush1.msra.mxu0 %v6629
      %9757 = vmatprep.subr.mxu0 0.0
      %9758 = vmatpush1.msra.mxu0 0.0
      %9759 = vmatprep.subr.mxu0 0.0
      %9760 = vmatpush1.msra.mxu0 0.0
      %9761 = vmatprep.subr.mxu0 0.0
      %9762 = vmatpush1.msra.mxu0 0.0
      %9763 = vmatprep.subr.mxu0 0.0
      %9764 = vmatpush1.msra.mxu0 0.0
      %9765 = vmatprep.subr.mxu0 0.0
      %9766 = vmatpush1.msra.mxu0 0.0
      %9767 = vmatprep.subr.mxu0 0.0
      %9768 = vmatpush1.msra.mxu0 0.0
      %9769 = vmatprep.subr.mxu0 0.0
      %9770 = vmatpush1.msra.mxu0 0.0
      %9771 = vmatprep.subr.mxu0 0.0
      %9772 = vmatpush1.msra.mxu0 0.0
      %9773 = vmatprep.subr.mxu0 0.0
      %9774 = vmatpush1.msra.mxu0 0.0
      %9775 = vmatprep.subr.mxu0 0.0
      %9776 = vmatpush1.msra.mxu0 0.0
      %9777 = vmatprep.subr.mxu0 0.0
      %9778 = vmatpush1.msra.mxu0 0.0
      %9779 = vmatprep.subr.mxu0 0.0
      %9780 = vmatpush1.msra.mxu0 0.0
      %9781 = vmatprep.subr.mxu0 0.0
      %9782 = vmatpush1.msra.mxu0 0.0
      %9783 = vmatprep.subr.mxu0 0.0
      %9784 = vmatpush1.msra.mxu0 0.0
      %9785 = vmatprep.subr.mxu0 0.0
      %9786 = vmatpush1.msra.mxu0 0.0
      %9787 = vmatprep.subr.mxu0 0.0
      %9788 = vmatpush1.msra.mxu0 0.0
      %9789 = vmatprep.subr.mxu0 0.0
      %9790 = vmatpush1.msra.mxu0 0.0
      %9791 = vmatprep.subr.mxu0 0.0
      %9792 = vmatpush1.msra.mxu0 0.0
      %9793 = vmatprep.subr.mxu0 0.0
      %9794 = vmatpush1.msra.mxu0 0.0
      %9795 = vmatprep.subr.mxu0 0.0
      %9796 = vmatpush1.msra.mxu0 0.0
      %9797 = vmatprep.subr.mxu0 0.0
      %9798 = vmatpush1.msra.mxu0 0.0
      %9799 = vmatprep.subr.mxu0 0.0
      %9800 = vmatpush1.msra.mxu0 0.0
      %9801 = vmatprep.subr.mxu0 0.0
      %9802 = vmatpush1.msra.mxu0 0.0
      %9803 = vmatprep.subr.mxu0 0.0
      %9804 = vmatpush1.msra.mxu0 0.0
      %9805 = vmatprep.subr.mxu0 0.0
      %9806 = vmatpush1.msra.mxu0 0.0
      %9807 = vmatprep.subr.mxu0 0.0
      %9808 = vmatpush1.msra.mxu0 0.0
      %9809 = vmatprep.subr.mxu0 0.0
      %9810 = vmatpush1.msra.mxu0 0.0
      %9811 = vmatprep.subr.mxu0 0.0
      %9812 = vmatpush1.msra.mxu0 0.0
      %9813 = vmatprep.subr.mxu0 0.0
      %9814 = vmatpush1.msra.mxu0 0.0
      %9815 = vmatprep.subr.mxu0 0.0
      %9816 = vmatpush1.msra.mxu0 0.0
      %9817 = vmatprep.mubr.f32.mxu0 0.0
      %9818 = vmatmul.mubr.f32.gmra.mrb[0].mxu0 %v9748
      %v9819 = vpop.f32.mrb[0].mxu0
      %v9820 = vadd.f32 0.0, %v9819
      %v9821 = vpop.f32.mrb[0].mxu0
      %9822 = vmatprep.mubr.f32.mxu0 0.0
      %9823 = vmatmul.mubr.f32.gmra.mrb[0].mxu0 %v9751
      %v9824 = vpop.f32.mrb[0].mxu0
      %v9825 = vadd.f32 0.0, %v9824
      %v9826 = vpop.f32.mrb[0].mxu0
      %9827 = vdwg.mxu0
      %v9829 = vsel %vm2350, %v8611, 0
      %v9832 = vsel %vm2350, %v8612, 0
      %9834 = vmatprep.subr.mxu0 0.0
      %9835 = vmatpush1.msra.mxu0 %v6630
      %9836 = vmatprep.subr.mxu0 0.0
      %9837 = vmatpush1.msra.mxu0 %v6631
      %9838 = vmatprep.subr.mxu0 0.0
      %9839 = vmatpush1.msra.mxu0 0.0
      %9840 = vmatprep.subr.mxu0 0.0
      %9841 = vmatpush1.msra.mxu0 0.0
      %9842 = vmatprep.subr.mxu0 0.0
      %9843 = vmatpush1.msra.mxu0 0.0
      %9844 = vmatprep.subr.mxu0 0.0
      %9845 = vmatpush1.msra.mxu0 0.0
      %9846 = vmatprep.subr.mxu0 0.0
      %9847 = vmatpush1.msra.mxu0 0.0
      %9848 = vmatprep.subr.mxu0 0.0
      %9849 = vmatpush1.msra.mxu0 0.0
      %9850 = vmatprep.subr.mxu0 0.0
      %9851 = vmatpush1.msra.mxu0 0.0
      %9852 = vmatprep.subr.mxu0 0.0
      %9853 = vmatpush1.msra.mxu0 0.0
      %9854 = vmatprep.subr.mxu0 0.0
      %9855 = vmatpush1.msra.mxu0 0.0
      %9856 = vmatprep.subr.mxu0 0.0
      %9857 = vmatpush1.msra.mxu0 0.0
      %9858 = vmatprep.subr.mxu0 0.0
      %9859 = vmatpush1.msra.mxu0 0.0
      %9860 = vmatprep.subr.mxu0 0.0
      %9861 = vmatpush1.msra.mxu0 0.0
      %9862 = vmatprep.subr.mxu0 0.0
      %9863 = vmatpush1.msra.mxu0 0.0
      %9864 = vmatprep.subr.mxu0 0.0
      %9865 = vmatpush1.msra.mxu0 0.0
      %9866 = vmatprep.subr.mxu0 0.0
      %9867 = vmatpush1.msra.mxu0 0.0
      %9868 = vmatprep.subr.mxu0 0.0
      %9869 = vmatpush1.msra.mxu0 0.0
      %9870 = vmatprep.subr.mxu0 0.0
      %9871 = vmatpush1.msra.mxu0 0.0
      %9872 = vmatprep.subr.mxu0 0.0
      %9873 = vmatpush1.msra.mxu0 0.0
      %9874 = vmatprep.subr.mxu0 0.0
      %9875 = vmatpush1.msra.mxu0 0.0
      %9876 = vmatprep.subr.mxu0 0.0
      %9877 = vmatpush1.msra.mxu0 0.0
      %9878 = vmatprep.subr.mxu0 0.0
      %9879 = vmatpush1.msra.mxu0 0.0
      %9880 = vmatprep.subr.mxu0 0.0
      %9881 = vmatpush1.msra.mxu0 0.0
      %9882 = vmatprep.subr.mxu0 0.0
      %9883 = vmatpush1.msra.mxu0 0.0
      %9884 = vmatprep.subr.mxu0 0.0
      %9885 = vmatpush1.msra.mxu0 0.0
      %9886 = vmatprep.subr.mxu0 0.0
      %9887 = vmatpush1.msra.mxu0 0.0
      %9888 = vmatprep.subr.mxu0 0.0
      %9889 = vmatpush1.msra.mxu0 0.0
      %9890 = vmatprep.subr.mxu0 0.0
      %9891 = vmatpush1.msra.mxu0 0.0
      %9892 = vmatprep.subr.mxu0 0.0
      %9893 = vmatpush1.msra.mxu0 0.0
      %9894 = vmatprep.subr.mxu0 0.0
      %9895 = vmatpush1.msra.mxu0 0.0
      %9896 = vmatprep.subr.mxu0 0.0
      %9897 = vmatpush1.msra.mxu0 0.0
      %9898 = vmatprep.mubr.f32.mxu0 0.0
      %9899 = vmatmul.mubr.f32.gmra.mrb[0].mxu0 %v9829
      %v9900 = vpop.f32.mrb[0].mxu0
      %v9901 = vadd.f32 0.0, %v9900
      %v9902 = vpop.f32.mrb[0].mxu0
      %9903 = vmatprep.mubr.f32.mxu0 0.0
      %9904 = vmatmul.mubr.f32.gmra.mrb[0].mxu0 %v9832
      %v9905 = vpop.f32.mrb[0].mxu0
      %v9906 = vadd.f32 0.0, %v9905
      %v9907 = vpop.f32.mrb[0].mxu0
      %9908 = vdwg.mxu0
      %v9910 = vsel %vm728, %v8686, 0
      %v9913 = vsel %vm728, %v8691, 0
      %v9916 = vsel %vm728, %v8767, 0
      %v9919 = vsel %vm728, %v8772, 0
      %v9922 = vsel %vm728, %v8848, 0
      %v9925 = vsel %vm728, %v8853, 0
      %v9928 = vsel %vm728, %v8929, 0
      %v9931 = vsel %vm728, %v8934, 0
      %v9934 = vsel %vm728, %v9010, 0
      %v9937 = vsel %vm728, %v9015, 0
      %v9940 = vsel %vm728, %v9091, 0
      %v9943 = vsel %vm728, %v9096, 0
      %v9946 = vsel %vm728, %v9172, 0
      %v9949 = vsel %vm728, %v9177, 0
      %v9952 = vsel %vm728, %v9253, 0
      %v9955 = vsel %vm728, %v9258, 0
      %v9958 = vsel %vm728, %v9334, 0
      %v9961 = vsel %vm728, %v9339, 0
      %v9964 = vsel %vm728, %v9415, 0
      %v9967 = vsel %vm728, %v9420, 0
      %v9970 = vsel %vm728, %v9496, 0
      %v9973 = vsel %vm728, %v9501, 0
      %v9976 = vsel %vm728, %v9577, 0
      %v9979 = vsel %vm728, %v9582, 0
      %v9982 = vsel %vm728, %v9658, 0
      %v9985 = vsel %vm728, %v9663, 0
      %v9988 = vsel %vm728, %v9739, 0
      %v9991 = vsel %vm728, %v9744, 0
      %v9994 = vsel %vm728, %v9820, 0
      %v9997 = vsel %vm728, %v9825, 0
      %v10000 = vsel %vm728, %v9901, 0
      %v10003 = vsel %vm728, %v9906, 0
      %v10006 = vsel %vm825, %v6634, 0
      %10008 = vmatprep.subr.mxu0 0.0
      %10009 = vmatpush1.msra.mxu0 %v10006
      %10010 = vmatprep.subr.mxu0 0.0
      %10011 = vmatpush1.msra.mxu0 0.0
      %10012 = vmatprep.subr.mxu0 0.0
      %10013 = vmatpush1.msra.mxu0 0.0
      %10014 = vmatprep.subr.mxu0 0.0
      %10015 = vmatpush1.msra.mxu0 0.0
      %10016 = vmatprep.subr.mxu0 0.0
      %10017 = vmatpush1.msra.mxu0 0.0
      %10018 = vmatprep.subr.mxu0 0.0
      %10019 = vmatpush1.msra.mxu0 0.0
      %10020 = vmatprep.subr.mxu0 0.0
      %10021 = vmatpush1.msra.mxu0 0.0
      %10022 = vmatprep.subr.mxu0 0.0
      %10023 = vmatpush1.msra.mxu0 0.0
      %10024 = vmatprep.subr.mxu0 0.0
      %10025 = vmatpush1.msra.mxu0 0.0
      %10026 = vmatprep.subr.mxu0 0.0
      %10027 = vmatpush1.msra.mxu0 0.0
      %10028 = vmatprep.subr.mxu0 0.0
      %10029 = vmatpush1.msra.mxu0 0.0
      %10030 = vmatprep.subr.mxu0 0.0
      %10031 = vmatpush1.msra.mxu0 0.0
      %10032 = vmatprep.subr.mxu0 0.0
      %10033 = vmatpush1.msra.mxu0 0.0
      %10034 = vmatprep.subr.mxu0 0.0
      %10035 = vmatpush1.msra.mxu0 0.0
      %10036 = vmatprep.subr.mxu0 0.0
      %10037 = vmatpush1.msra.mxu0 0.0
      %10038 = vmatprep.subr.mxu0 0.0
      %10039 = vmatpush1.msra.mxu0 0.0
      %10040 = vmatprep.subr.mxu0 0.0
      %10041 = vmatpush1.msra.mxu0 0.0
      %10042 = vmatprep.subr.mxu0 0.0
      %10043 = vmatpush1.msra.mxu0 0.0
      %10044 = vmatprep.subr.mxu0 0.0
      %10045 = vmatpush1.msra.mxu0 0.0
      %10046 = vmatprep.subr.mxu0 0.0
      %10047 = vmatpush1.msra.mxu0 0.0
      %10048 = vmatprep.subr.mxu0 0.0
      %10049 = vmatpush1.msra.mxu0 0.0
      %10050 = vmatprep.subr.mxu0 0.0
      %10051 = vmatpush1.msra.mxu0 0.0
      %10052 = vmatprep.subr.mxu0 0.0
      %10053 = vmatpush1.msra.mxu0 0.0
      %10054 = vmatprep.subr.mxu0 0.0
      %10055 = vmatpush1.msra.mxu0 0.0
      %10056 = vmatprep.subr.mxu0 0.0
      %10057 = vmatpush1.msra.mxu0 0.0
      %10058 = vmatprep.subr.mxu0 0.0
      %10059 = vmatpush1.msra.mxu0 0.0
      %10060 = vmatprep.subr.mxu0 0.0
      %10061 = vmatpush1.msra.mxu0 0.0
      %10062 = vmatprep.subr.mxu0 0.0
      %10063 = vmatpush1.msra.mxu0 0.0
      %10064 = vmatprep.subr.mxu0 0.0
      %10065 = vmatpush1.msra.mxu0 0.0
      %10066 = vmatprep.subr.mxu0 0.0
      %10067 = vmatpush1.msra.mxu0 0.0
      %10068 = vmatprep.subr.mxu0 0.0
      %10069 = vmatpush1.msra.mxu0 0.0
      %10070 = vmatprep.subr.mxu0 0.0
      %10071 = vmatpush1.msra.mxu0 0.0
      %10072 = vmatprep.mubr.f32.mxu0 0.0
      %10073 = vmatmul.mubr.f32.gmra.mrb[0].mxu0 %v9910
      %v10074 = vpop.f32.mrb[0].mxu0
      %v10075 = vadd.f32 0.0, %v10074
      %v10076 = vpop.f32.mrb[0].mxu0
      %10077 = vmatprep.mubr.f32.mxu0 0.0
      %10078 = vmatmul.mubr.f32.gmra.mrb[0].mxu0 %v9913
      %v10079 = vpop.f32.mrb[0].mxu0
      %v10080 = vadd.f32 0.0, %v10079
      %v10081 = vpop.f32.mrb[0].mxu0
      %10082 = vmatprep.mubr.f32.mxu0 0.0
      %10083 = vmatmul.mubr.f32.gmra.mrb[0].mxu0 %v9916
      %v10084 = vpop.f32.mrb[0].mxu0
      %v10085 = vadd.f32 0.0, %v10084
      %v10086 = vpop.f32.mrb[0].mxu0
      %10087 = vmatprep.mubr.f32.mxu0 0.0
      %10088 = vmatmul.mubr.f32.gmra.mrb[0].mxu0 %v9919
      %v10089 = vpop.f32.mrb[0].mxu0
      %v10090 = vadd.f32 0.0, %v10089
      %v10091 = vpop.f32.mrb[0].mxu0
      %10092 = vmatprep.mubr.f32.mxu0 0.0
      %10093 = vmatmul.mubr.f32.gmra.mrb[0].mxu0 %v9922
      %v10094 = vpop.f32.mrb[0].mxu0
      %v10095 = vadd.f32 0.0, %v10094
      %v10096 = vpop.f32.mrb[0].mxu0
      %10097 = vmatprep.mubr.f32.mxu0 0.0
      %10098 = vmatmul.mubr.f32.gmra.mrb[0].mxu0 %v9925
      %v10099 = vpop.f32.mrb[0].mxu0
      %v10100 = vadd.f32 0.0, %v10099
      %v10101 = vpop.f32.mrb[0].mxu0
      %10102 = vmatprep.mubr.f32.mxu0 0.0
      %10103 = vmatmul.mubr.f32.gmra.mrb[0].mxu0 %v9928
      %v10104 = vpop.f32.mrb[0].mxu0
      %v10105 = vadd.f32 0.0, %v10104
      %v10106 = vpop.f32.mrb[0].mxu0
      %10107 = vmatprep.mubr.f32.mxu0 0.0
      %10108 = vmatmul.mubr.f32.gmra.mrb[0].mxu0 %v9931
      %v10109 = vpop.f32.mrb[0].mxu0
      %v10110 = vadd.f32 0.0, %v10109
      %v10111 = vpop.f32.mrb[0].mxu0
      %10112 = vmatprep.mubr.f32.mxu0 0.0
      %10113 = vmatmul.mubr.f32.gmra.mrb[0].mxu0 %v9934
      %v10114 = vpop.f32.mrb[0].mxu0
      %v10115 = vadd.f32 0.0, %v10114
      %v10116 = vpop.f32.mrb[0].mxu0
      %10117 = vmatprep.mubr.f32.mxu0 0.0
      %10118 = vmatmul.mubr.f32.gmra.mrb[0].mxu0 %v9937
      %v10119 = vpop.f32.mrb[0].mxu0
      %v10120 = vadd.f32 0.0, %v10119
      %v10121 = vpop.f32.mrb[0].mxu0
      %10122 = vmatprep.mubr.f32.mxu0 0.0
      %10123 = vmatmul.mubr.f32.gmra.mrb[0].mxu0 %v9940
      %v10124 = vpop.f32.mrb[0].mxu0
      %v10125 = vadd.f32 0.0, %v10124
      %v10126 = vpop.f32.mrb[0].mxu0
      %10127 = vmatprep.mubr.f32.mxu0 0.0
      %10128 = vmatmul.mubr.f32.gmra.mrb[0].mxu0 %v9943
      %v10129 = vpop.f32.mrb[0].mxu0
      %v10130 = vadd.f32 0.0, %v10129
      %v10131 = vpop.f32.mrb[0].mxu0
      %10132 = vmatprep.mubr.f32.mxu0 0.0
      %10133 = vmatmul.mubr.f32.gmra.mrb[0].mxu0 %v9946
      %v10134 = vpop.f32.mrb[0].mxu0
      %v10135 = vadd.f32 0.0, %v10134
      %v10136 = vpop.f32.mrb[0].mxu0
      %10137 = vmatprep.mubr.f32.mxu0 0.0
      %10138 = vmatmul.mubr.f32.gmra.mrb[0].mxu0 %v9949
      %v10139 = vpop.f32.mrb[0].mxu0
      %v10140 = vadd.f32 0.0, %v10139
      %v10141 = vpop.f32.mrb[0].mxu0
      %10142 = vmatprep.mubr.f32.mxu0 0.0
      %10143 = vmatmul.mubr.f32.gmra.mrb[0].mxu0 %v9952
      %v10144 = vpop.f32.mrb[0].mxu0
      %v10145 = vadd.f32 0.0, %v10144
      %v10146 = vpop.f32.mrb[0].mxu0
      %10147 = vmatprep.mubr.f32.mxu0 0.0
      %10148 = vmatmul.mubr.f32.gmra.mrb[0].mxu0 %v9955
      %v10149 = vpop.f32.mrb[0].mxu0
      %v10150 = vadd.f32 0.0, %v10149
      %v10151 = vpop.f32.mrb[0].mxu0
      %10152 = vmatprep.mubr.f32.mxu0 0.0
      %10153 = vmatmul.mubr.f32.gmra.mrb[0].mxu0 %v9958
      %v10154 = vpop.f32.mrb[0].mxu0
      %v10155 = vadd.f32 0.0, %v10154
      %v10156 = vpop.f32.mrb[0].mxu0
      %10157 = vmatprep.mubr.f32.mxu0 0.0
      %10158 = vmatmul.mubr.f32.gmra.mrb[0].mxu0 %v9961
      %v10159 = vpop.f32.mrb[0].mxu0
      %v10160 = vadd.f32 0.0, %v10159
      %v10161 = vpop.f32.mrb[0].mxu0
      %10162 = vmatprep.mubr.f32.mxu0 0.0
      %10163 = vmatmul.mubr.f32.gmra.mrb[0].mxu0 %v9964
      %v10164 = vpop.f32.mrb[0].mxu0
      %v10165 = vadd.f32 0.0, %v10164
      %v10166 = vpop.f32.mrb[0].mxu0
      %10167 = vmatprep.mubr.f32.mxu0 0.0
      %10168 = vmatmul.mubr.f32.gmra.mrb[0].mxu0 %v9967
      %v10169 = vpop.f32.mrb[0].mxu0
      %v10170 = vadd.f32 0.0, %v10169
      %v10171 = vpop.f32.mrb[0].mxu0
      %10172 = vmatprep.mubr.f32.mxu0 0.0
      %10173 = vmatmul.mubr.f32.gmra.mrb[0].mxu0 %v9970
      %v10174 = vpop.f32.mrb[0].mxu0
      %v10175 = vadd.f32 0.0, %v10174
      %v10176 = vpop.f32.mrb[0].mxu0
      %10177 = vmatprep.mubr.f32.mxu0 0.0
      %10178 = vmatmul.mubr.f32.gmra.mrb[0].mxu0 %v9973
      %v10179 = vpop.f32.mrb[0].mxu0
      %v10180 = vadd.f32 0.0, %v10179
      %v10181 = vpop.f32.mrb[0].mxu0
      %10182 = vmatprep.mubr.f32.mxu0 0.0
      %10183 = vmatmul.mubr.f32.gmra.mrb[0].mxu0 %v9976
      %v10184 = vpop.f32.mrb[0].mxu0
      %v10185 = vadd.f32 0.0, %v10184
      %v10186 = vpop.f32.mrb[0].mxu0
      %10187 = vmatprep.mubr.f32.mxu0 0.0
      %10188 = vmatmul.mubr.f32.gmra.mrb[0].mxu0 %v9979
      %v10189 = vpop.f32.mrb[0].mxu0
      %v10190 = vadd.f32 0.0, %v10189
      %v10191 = vpop.f32.mrb[0].mxu0
      %10192 = vmatprep.mubr.f32.mxu0 0.0
      %10193 = vmatmul.mubr.f32.gmra.mrb[0].mxu0 %v9982
      %v10194 = vpop.f32.mrb[0].mxu0
      %v10195 = vadd.f32 0.0, %v10194
      %v10196 = vpop.f32.mrb[0].mxu0
      %10197 = vmatprep.mubr.f32.mxu0 0.0
      %10198 = vmatmul.mubr.f32.gmra.mrb[0].mxu0 %v9985
      %v10199 = vpop.f32.mrb[0].mxu0
      %v10200 = vadd.f32 0.0, %v10199
      %v10201 = vpop.f32.mrb[0].mxu0
      %10202 = vmatprep.mubr.f32.mxu0 0.0
      %10203 = vmatmul.mubr.f32.gmra.mrb[0].mxu0 %v9988
      %v10204 = vpop.f32.mrb[0].mxu0
      %v10205 = vadd.f32 0.0, %v10204
      %v10206 = vpop.f32.mrb[0].mxu0
      %10207 = vmatprep.mubr.f32.mxu0 0.0
      %10208 = vmatmul.mubr.f32.gmra.mrb[0].mxu0 %v9991
      %v10209 = vpop.f32.mrb[0].mxu0
      %v10210 = vadd.f32 0.0, %v10209
      %v10211 = vpop.f32.mrb[0].mxu0
      %10212 = vmatprep.mubr.f32.mxu0 0.0
      %10213 = vmatmul.mubr.f32.gmra.mrb[0].mxu0 %v9994
      %v10214 = vpop.f32.mrb[0].mxu0
      %v10215 = vadd.f32 0.0, %v10214
      %v10216 = vpop.f32.mrb[0].mxu0
      %10217 = vmatprep.mubr.f32.mxu0 0.0
      %10218 = vmatmul.mubr.f32.gmra.mrb[0].mxu0 %v9997
      %v10219 = vpop.f32.mrb[0].mxu0
      %v10220 = vadd.f32 0.0, %v10219
      %v10221 = vpop.f32.mrb[0].mxu0
      %10222 = vmatprep.mubr.f32.mxu0 0.0
      %10223 = vmatmul.mubr.f32.gmra.mrb[0].mxu0 %v10000
      %v10224 = vpop.f32.mrb[0].mxu0
      %v10225 = vadd.f32 0.0, %v10224
      %v10226 = vpop.f32.mrb[0].mxu0
      %10227 = vmatprep.mubr.f32.mxu0 0.0
      %10228 = vmatmul.mubr.f32.gmra.mrb[0].mxu0 %v10003
      %v10229 = vpop.f32.mrb[0].mxu0
      %v10230 = vadd.f32 0.0, %v10229
      %v10231 = vpop.f32.mrb[0].mxu0
      %10232 = vdwg.mxu0
      %v10233 = vadd.f32 %v10075, %v6600
      %v10234 = vadd.f32 %v10080, %v6601
      %v10235 = vadd.f32 %v10085, %v6602
      %v10236 = vadd.f32 %v10090, %v6603
      %v10237 = vadd.f32 %v10095, %v6604
      %v10238 = vadd.f32 %v10100, %v6605
      %v10239 = vadd.f32 %v10105, %v6606
      %v10240 = vadd.f32 %v10110, %v6607
      %v10241 = vadd.f32 %v10115, %v6608
      %v10242 = vadd.f32 %v10120, %v6609
      %v10243 = vadd.f32 %v10125, %v6610
      %v10244 = vadd.f32 %v10130, %v6611
      %v10245 = vadd.f32 %v10135, %v6612
      %v10246 = vadd.f32 %v10140, %v6613
      %v10247 = vadd.f32 %v10145, %v6614
      %v10248 = vadd.f32 %v10150, %v6615
      %v10249 = vadd.f32 %v10155, %v6616
      %v10250 = vadd.f32 %v10160, %v6617
      %v10251 = vadd.f32 %v10165, %v6618
      %v10252 = vadd.f32 %v10170, %v6619
      %v10253 = vadd.f32 %v10175, %v6620
      %v10254 = vadd.f32 %v10180, %v6621
      %v10255 = vadd.f32 %v10185, %v6622
      %v10256 = vadd.f32 %v10190, %v6623
      %v10257 = vadd.f32 %v10195, %v6624
      %v10258 = vadd.f32 %v10200, %v6625
      %v10259 = vadd.f32 %v10205, %v6626
      %v10260 = vadd.f32 %v10210, %v6627
      %v10261 = vadd.f32 %v10215, %v6628
      %v10262 = vadd.f32 %v10220, %v6629
      %v10263 = vadd.f32 %v10225, %v6630
      %v10264 = vadd.f32 %v10230, %v6631
      %v10297 = vrot.slane %v10233, 7
      %v10298 = vrot.slane %v10234, 7
      %v10299 = vsel %vm4931, %v10297, %v10298
      %v10300 = vrot.slane %v10235, 7
      %v10301 = vrot.slane %v10236, 7
      %v10302 = vsel %vm4931, %v10300, %v10301
      %v10303 = vrot.slane %v10237, 7
      %v10304 = vrot.slane %v10238, 7
      %v10305 = vsel %vm4931, %v10303, %v10304
      %v10306 = vrot.slane %v10239, 7
      %v10307 = vrot.slane %v10240, 7
      %v10308 = vsel %vm4931, %v10306, %v10307
      %v10309 = vrot.slane %v10241, 7
      %v10310 = vrot.slane %v10242, 7
      %v10311 = vsel %vm4931, %v10309, %v10310
      %v10312 = vrot.slane %v10243, 7
      %v10313 = vrot.slane %v10244, 7
      %v10314 = vsel %vm4931, %v10312, %v10313
      %v10315 = vrot.slane %v10245, 7
      %v10316 = vrot.slane %v10246, 7
      %v10317 = vsel %vm4931, %v10315, %v10316
      %v10318 = vrot.slane %v10247, 7
      %v10319 = vrot.slane %v10248, 7
      %v10320 = vsel %vm4931, %v10318, %v10319
      %v10321 = vrot.slane %v10249, 7
      %v10322 = vrot.slane %v10250, 7
      %v10323 = vsel %vm4931, %v10321, %v10322
      %v10324 = vrot.slane %v10251, 7
      %v10325 = vrot.slane %v10252, 7
      %v10326 = vsel %vm4931, %v10324, %v10325
      %v10327 = vrot.slane %v10253, 7
      %v10328 = vrot.slane %v10254, 7
      %v10329 = vsel %vm4931, %v10327, %v10328
      %v10330 = vrot.slane %v10255, 7
      %v10331 = vrot.slane %v10256, 7
      %v10332 = vsel %vm4931, %v10330, %v10331
      %v10333 = vrot.slane %v10257, 7
      %v10334 = vrot.slane %v10258, 7
      %v10335 = vsel %vm4931, %v10333, %v10334
      %v10336 = vrot.slane %v10259, 7
      %v10337 = vrot.slane %v10260, 7
      %v10338 = vsel %vm4931, %v10336, %v10337
      %v10339 = vrot.slane %v10261, 7
      %v10340 = vrot.slane %v10262, 7
      %v10341 = vsel %vm4931, %v10339, %v10340
      %v10342 = vrot.slane %v10263, 7
      %v10343 = vrot.slane %v10264, 7
      %v10344 = vsel %vm4931, %v10342, %v10343
      %v10392 = vsel %vm4931, 0.0, %v10297
      %v10393 = vsel %vm4931, 0.0, %v10300
      %v10394 = vsel %vm4931, 0.0, %v10303
      %v10395 = vsel %vm4931, 0.0, %v10306
      %v10396 = vsel %vm4931, 0.0, %v10309
      %v10397 = vsel %vm4931, 0.0, %v10312
      %v10398 = vsel %vm4931, 0.0, %v10315
      %v10399 = vsel %vm4931, 0.0, %v10318
      %v10400 = vsel %vm4931, 0.0, %v10321
      %v10401 = vsel %vm4931, 0.0, %v10324
      %v10402 = vsel %vm4931, 0.0, %v10327
      %v10403 = vsel %vm4931, 0.0, %v10330
      %v10404 = vsel %vm4931, 0.0, %v10333
      %v10405 = vsel %vm4931, 0.0, %v10336
      %v10406 = vsel %vm4931, 0.0, %v10339
      %v10407 = vsel %vm4931, 0.0, %v10342
      %v10408 = vsel %vm4931, %v10298, 0.0
      %v10409 = vsel %vm4931, %v10301, 0.0
      %v10410 = vsel %vm4931, %v10304, 0.0
      %v10411 = vsel %vm4931, %v10307, 0.0
      %v10412 = vsel %vm4931, %v10310, 0.0
      %v10413 = vsel %vm4931, %v10313, 0.0
      %v10414 = vsel %vm4931, %v10316, 0.0
      %v10415 = vsel %vm4931, %v10319, 0.0
      %v10416 = vsel %vm4931, %v10322, 0.0
      %v10417 = vsel %vm4931, %v10325, 0.0
      %v10418 = vsel %vm4931, %v10328, 0.0
      %v10419 = vsel %vm4931, %v10331, 0.0
      %v10420 = vsel %vm4931, %v10334, 0.0
      %v10421 = vsel %vm4931, %v10337, 0.0
      %v10422 = vsel %vm4931, %v10340, 0.0
      %v10423 = vsel %vm4931, %v10343, 0.0
      %v10454 = vrot.slane %v10392, 1
      %v10455 = vrot.slane %v10299, 1
      %v10456 = vsel %vm5090, %v10454, %v10455
      %v10457 = vrot.slane %v10408, 1
      %v10458 = vsel %vm5090, %v10455, %v10457
      %v10459 = vrot.slane %v10393, 1
      %v10460 = vrot.slane %v10302, 1
      %v10461 = vsel %vm5090, %v10459, %v10460
      %v10462 = vrot.slane %v10409, 1
      %v10463 = vsel %vm5090, %v10460, %v10462
      %v10464 = vrot.slane %v10394, 1
      %v10465 = vrot.slane %v10305, 1
      %v10466 = vsel %vm5090, %v10464, %v10465
      %v10467 = vrot.slane %v10410, 1
      %v10468 = vsel %vm5090, %v10465, %v10467
      %v10469 = vrot.slane %v10395, 1
      %v10470 = vrot.slane %v10308, 1
      %v10471 = vsel %vm5090, %v10469, %v10470
      %v10472 = vrot.slane %v10411, 1
      %v10473 = vsel %vm5090, %v10470, %v10472
      %v10474 = vrot.slane %v10396, 1
      %v10475 = vrot.slane %v10311, 1
      %v10476 = vsel %vm5090, %v10474, %v10475
      %v10477 = vrot.slane %v10412, 1
      %v10478 = vsel %vm5090, %v10475, %v10477
      %v10479 = vrot.slane %v10397, 1
      %v10480 = vrot.slane %v10314, 1
      %v10481 = vsel %vm5090, %v10479, %v10480
      %v10482 = vrot.slane %v10413, 1
      %v10483 = vsel %vm5090, %v10480, %v10482
      %v10484 = vrot.slane %v10398, 1
      %v10485 = vrot.slane %v10317, 1
      %v10486 = vsel %vm5090, %v10484, %v10485
      %v10487 = vrot.slane %v10414, 1
      %v10488 = vsel %vm5090, %v10485, %v10487
      %v10489 = vrot.slane %v10399, 1
      %v10490 = vrot.slane %v10320, 1
      %v10491 = vsel %vm5090, %v10489, %v10490
      %v10492 = vrot.slane %v10415, 1
      %v10493 = vsel %vm5090, %v10490, %v10492
      %v10494 = vrot.slane %v10400, 1
      %v10495 = vrot.slane %v10323, 1
      %v10496 = vsel %vm5090, %v10494, %v10495
      %v10497 = vrot.slane %v10416, 1
      %v10498 = vsel %vm5090, %v10495, %v10497
      %v10499 = vrot.slane %v10401, 1
      %v10500 = vrot.slane %v10326, 1
      %v10501 = vsel %vm5090, %v10499, %v10500
      %v10502 = vrot.slane %v10417, 1
      %v10503 = vsel %vm5090, %v10500, %v10502
      %v10504 = vrot.slane %v10402, 1
      %v10505 = vrot.slane %v10329, 1
      %v10506 = vsel %vm5090, %v10504, %v10505
      %v10507 = vrot.slane %v10418, 1
      %v10508 = vsel %vm5090, %v10505, %v10507
      %v10509 = vrot.slane %v10403, 1
      %v10510 = vrot.slane %v10332, 1
      %v10511 = vsel %vm5090, %v10509, %v10510
      %v10512 = vrot.slane %v10419, 1
      %v10513 = vsel %vm5090, %v10510, %v10512
      %v10514 = vrot.slane %v10404, 1
      %v10515 = vrot.slane %v10335, 1
      %v10516 = vsel %vm5090, %v10514, %v10515
      %v10517 = vrot.slane %v10420, 1
      %v10518 = vsel %vm5090, %v10515, %v10517
      %v10519 = vrot.slane %v10405, 1
      %v10520 = vrot.slane %v10338, 1
      %v10521 = vsel %vm5090, %v10519, %v10520
      %v10522 = vrot.slane %v10421, 1
      %v10523 = vsel %vm5090, %v10520, %v10522
      %v10524 = vrot.slane %v10406, 1
      %v10525 = vrot.slane %v10341, 1
      %v10526 = vsel %vm5090, %v10524, %v10525
      %v10527 = vrot.slane %v10422, 1
      %v10528 = vsel %vm5090, %v10525, %v10527
      %10529 = vrot.lane.b32.xlu0 %v10456, 4
      %v10530 = vpop.permute.xlu0 %10529
      %10531 = vrot.lane.b32.xlu0 %v10458, 4
      %v10532 = vpop.permute.xlu0 %10531
      %10533 = vrot.lane.b32.xlu0 %v10461, 4
      %v10534 = vpop.permute.xlu0 %10533
      %10535 = vrot.lane.b32.xlu0 %v10463, 4
      %v10536 = vpop.permute.xlu0 %10535
      %10537 = vrot.lane.b32.xlu0 %v10466, 4
      %v10538 = vpop.permute.xlu0 %10537
      %10539 = vrot.lane.b32.xlu0 %v10468, 4
      %v10540 = vpop.permute.xlu0 %10539
      %10541 = vrot.lane.b32.xlu0 %v10471, 4
      %v10542 = vpop.permute.xlu0 %10541
      %10543 = vrot.lane.b32.xlu0 %v10473, 4
      %v10544 = vpop.permute.xlu0 %10543
      %10545 = vrot.lane.b32.xlu0 %v10476, 4
      %v10546 = vpop.permute.xlu0 %10545
      %10547 = vrot.lane.b32.xlu0 %v10478, 4
      %v10548 = vpop.permute.xlu0 %10547
      %10549 = vrot.lane.b32.xlu0 %v10481, 4
      %v10550 = vpop.permute.xlu0 %10549
      %10551 = vrot.lane.b32.xlu0 %v10483, 4
      %v10552 = vpop.permute.xlu0 %10551
      %10553 = vrot.lane.b32.xlu0 %v10486, 4
      %v10554 = vpop.permute.xlu0 %10553
      %10555 = vrot.lane.b32.xlu0 %v10488, 4
      %v10556 = vpop.permute.xlu0 %10555
      %10557 = vrot.lane.b32.xlu0 %v10491, 4
      %v10558 = vpop.permute.xlu0 %10557
      %10559 = vrot.lane.b32.xlu0 %v10493, 4
      %v10560 = vpop.permute.xlu0 %10559
      %10561 = vrot.lane.b32.xlu0 %v10496, 4
      %v10562 = vpop.permute.xlu0 %10561
      %10563 = vrot.lane.b32.xlu0 %v10498, 4
      %v10564 = vpop.permute.xlu0 %10563
      %10565 = vrot.lane.b32.xlu0 %v10501, 4
      %v10566 = vpop.permute.xlu0 %10565
      %10567 = vrot.lane.b32.xlu0 %v10503, 4
      %v10568 = vpop.permute.xlu0 %10567
      %10569 = vrot.lane.b32.xlu0 %v10506, 4
      %v10570 = vpop.permute.xlu0 %10569
      %10571 = vrot.lane.b32.xlu0 %v10508, 4
      %v10572 = vpop.permute.xlu0 %10571
      %10573 = vrot.lane.b32.xlu0 %v10511, 4
      %v10574 = vpop.permute.xlu0 %10573
      %10575 = vrot.lane.b32.xlu0 %v10513, 4
      %v10576 = vpop.permute.xlu0 %10575
      %10577 = vrot.lane.b32.xlu0 %v10516, 4
      %v10578 = vpop.permute.xlu0 %10577
      %10579 = vrot.lane.b32.xlu0 %v10518, 4
      %v10580 = vpop.permute.xlu0 %10579
      %10581 = vrot.lane.b32.xlu0 %v10521, 4
      %v10582 = vpop.permute.xlu0 %10581
      %10583 = vrot.lane.b32.xlu0 %v10523, 4
      %v10584 = vpop.permute.xlu0 %10583
      %10585 = vrot.lane.b32.xlu0 %v10526, 4
      %v10586 = vpop.permute.xlu0 %10585
      %10587 = vrot.lane.b32.xlu0 %v10528, 4
      %v10588 = vpop.permute.xlu0 %10587
      %v10619 = vrot.slane %v10392, 2
      %v10620 = vrot.slane %v10299, 2
      %v10621 = vsel %vm5261, %v10619, %v10620
      %v10622 = vrot.slane %v10408, 2
      %v10623 = vsel %vm5261, %v10620, %v10622
      %v10624 = vrot.slane %v10393, 2
      %v10625 = vrot.slane %v10302, 2
      %v10626 = vsel %vm5261, %v10624, %v10625
      %v10627 = vrot.slane %v10409, 2
      %v10628 = vsel %vm5261, %v10625, %v10627
      %v10629 = vrot.slane %v10394, 2
      %v10630 = vrot.slane %v10305, 2
      %v10631 = vsel %vm5261, %v10629, %v10630
      %v10632 = vrot.slane %v10410, 2
      %v10633 = vsel %vm5261, %v10630, %v10632
      %v10634 = vrot.slane %v10395, 2
      %v10635 = vrot.slane %v10308, 2
      %v10636 = vsel %vm5261, %v10634, %v10635
      %v10637 = vrot.slane %v10411, 2
      %v10638 = vsel %vm5261, %v10635, %v10637
      %v10639 = vrot.slane %v10396, 2
      %v10640 = vrot.slane %v10311, 2
      %v10641 = vsel %vm5261, %v10639, %v10640
      %v10642 = vrot.slane %v10412, 2
      %v10643 = vsel %vm5261, %v10640, %v10642
      %v10644 = vrot.slane %v10397, 2
      %v10645 = vrot.slane %v10314, 2
      %v10646 = vsel %vm5261, %v10644, %v10645
      %v10647 = vrot.slane %v10413, 2
      %v10648 = vsel %vm5261, %v10645, %v10647
      %v10649 = vrot.slane %v10398, 2
      %v10650 = vrot.slane %v10317, 2
      %v10651 = vsel %vm5261, %v10649, %v10650
      %v10652 = vrot.slane %v10414, 2
      %v10653 = vsel %vm5261, %v10650, %v10652
      %v10654 = vrot.slane %v10399, 2
      %v10655 = vrot.slane %v10320, 2
      %v10656 = vsel %vm5261, %v10654, %v10655
      %v10657 = vrot.slane %v10415, 2
      %v10658 = vsel %vm5261, %v10655, %v10657
      %v10659 = vrot.slane %v10400, 2
      %v10660 = vrot.slane %v10323, 2
      %v10661 = vsel %vm5261, %v10659, %v10660
      %v10662 = vrot.slane %v10416, 2
      %v10663 = vsel %vm5261, %v10660, %v10662
      %v10664 = vrot.slane %v10401, 2
      %v10665 = vrot.slane %v10326, 2
      %v10666 = vsel %vm5261, %v10664, %v10665
      %v10667 = vrot.slane %v10417, 2
      %v10668 = vsel %vm5261, %v10665, %v10667
      %v10669 = vrot.slane %v10402, 2
      %v10670 = vrot.slane %v10329, 2
      %v10671 = vsel %vm5261, %v10669, %v10670
      %v10672 = vrot.slane %v10418, 2
      %v10673 = vsel %vm5261, %v10670, %v10672
      %v10674 = vrot.slane %v10403, 2
      %v10675 = vrot.slane %v10332, 2
      %v10676 = vsel %vm5261, %v10674, %v10675
      %v10677 = vrot.slane %v10419, 2
      %v10678 = vsel %vm5261, %v10675, %v10677
      %v10679 = vrot.slane %v10404, 2
      %v10680 = vrot.slane %v10335, 2
      %v10681 = vsel %vm5261, %v10679, %v10680
      %v10682 = vrot.slane %v10420, 2
      %v10683 = vsel %vm5261, %v10680, %v10682
      %v10684 = vrot.slane %v10405, 2
      %v10685 = vrot.slane %v10338, 2
      %v10686 = vsel %vm5261, %v10684, %v10685
      %v10687 = vrot.slane %v10421, 2
      %v10688 = vsel %vm5261, %v10685, %v10687
      %v10689 = vrot.slane %v10406, 2
      %v10690 = vrot.slane %v10341, 2
      %v10691 = vsel %vm5261, %v10689, %v10690
      %v10692 = vrot.slane %v10422, 2
      %v10693 = vsel %vm5261, %v10690, %v10692
      %10694 = vrot.lane.b32.xlu0 %v10621, 8
      %v10695 = vpop.permute.xlu0 %10694
      %10696 = vrot.lane.b32.xlu0 %v10623, 8
      %v10697 = vpop.permute.xlu0 %10696
      %10698 = vrot.lane.b32.xlu0 %v10626, 8
      %v10699 = vpop.permute.xlu0 %10698
      %10700 = vrot.lane.b32.xlu0 %v10628, 8
      %v10701 = vpop.permute.xlu0 %10700
      %10702 = vrot.lane.b32.xlu0 %v10631, 8
      %v10703 = vpop.permute.xlu0 %10702
      %10704 = vrot.lane.b32.xlu0 %v10633, 8
      %v10705 = vpop.permute.xlu0 %10704
      %10706 = vrot.lane.b32.xlu0 %v10636, 8
      %v10707 = vpop.permute.xlu0 %10706
      %10708 = vrot.lane.b32.xlu0 %v10638, 8
      %v10709 = vpop.permute.xlu0 %10708
      %10710 = vrot.lane.b32.xlu0 %v10641, 8
      %v10711 = vpop.permute.xlu0 %10710
      %10712 = vrot.lane.b32.xlu0 %v10643, 8
      %v10713 = vpop.permute.xlu0 %10712
      %10714 = vrot.lane.b32.xlu0 %v10646, 8
      %v10715 = vpop.permute.xlu0 %10714
      %10716 = vrot.lane.b32.xlu0 %v10648, 8
      %v10717 = vpop.permute.xlu0 %10716
      %10718 = vrot.lane.b32.xlu0 %v10651, 8
      %v10719 = vpop.permute.xlu0 %10718
      %10720 = vrot.lane.b32.xlu0 %v10653, 8
      %v10721 = vpop.permute.xlu0 %10720
      %10722 = vrot.lane.b32.xlu0 %v10656, 8
      %v10723 = vpop.permute.xlu0 %10722
      %10724 = vrot.lane.b32.xlu0 %v10658, 8
      %v10725 = vpop.permute.xlu0 %10724
      %10726 = vrot.lane.b32.xlu0 %v10661, 8
      %v10727 = vpop.permute.xlu0 %10726
      %10728 = vrot.lane.b32.xlu0 %v10663, 8
      %v10729 = vpop.permute.xlu0 %10728
      %10730 = vrot.lane.b32.xlu0 %v10666, 8
      %v10731 = vpop.permute.xlu0 %10730
      %10732 = vrot.lane.b32.xlu0 %v10668, 8
      %v10733 = vpop.permute.xlu0 %10732
      %10734 = vrot.lane.b32.xlu0 %v10671, 8
      %v10735 = vpop.permute.xlu0 %10734
      %10736 = vrot.lane.b32.xlu0 %v10673, 8
      %v10737 = vpop.permute.xlu0 %10736
      %10738 = vrot.lane.b32.xlu0 %v10676, 8
      %v10739 = vpop.permute.xlu0 %10738
      %10740 = vrot.lane.b32.xlu0 %v10678, 8
      %v10741 = vpop.permute.xlu0 %10740
      %10742 = vrot.lane.b32.xlu0 %v10681, 8
      %v10743 = vpop.permute.xlu0 %10742
      %10744 = vrot.lane.b32.xlu0 %v10683, 8
      %v10745 = vpop.permute.xlu0 %10744
      %10746 = vrot.lane.b32.xlu0 %v10686, 8
      %v10747 = vpop.permute.xlu0 %10746
      %10748 = vrot.lane.b32.xlu0 %v10688, 8
      %v10749 = vpop.permute.xlu0 %10748
      %10750 = vrot.lane.b32.xlu0 %v10691, 8
      %v10751 = vpop.permute.xlu0 %10750
      %10752 = vrot.lane.b32.xlu0 %v10693, 8
      %v10753 = vpop.permute.xlu0 %10752
      %10785 = vrot.lane.b32.xlu0 %v10392, 12
      %v10786 = vpop.permute.xlu0 %10785
      %10787 = vrot.lane.b32.xlu0 %v10299, 12
      %v10788 = vpop.permute.xlu0 %10787
      %10789 = vrot.lane.b32.xlu0 %v10393, 12
      %v10790 = vpop.permute.xlu0 %10789
      %10791 = vrot.lane.b32.xlu0 %v10302, 12
      %v10792 = vpop.permute.xlu0 %10791
      %10793 = vrot.lane.b32.xlu0 %v10394, 12
      %v10794 = vpop.permute.xlu0 %10793
      %10795 = vrot.lane.b32.xlu0 %v10305, 12
      %v10796 = vpop.permute.xlu0 %10795
      %10797 = vrot.lane.b32.xlu0 %v10395, 12
      %v10798 = vpop.permute.xlu0 %10797
      %10799 = vrot.lane.b32.xlu0 %v10308, 12
      %v10800 = vpop.permute.xlu0 %10799
      %10801 = vrot.lane.b32.xlu0 %v10396, 12
      %v10802 = vpop.permute.xlu0 %10801
      %10803 = vrot.lane.b32.xlu0 %v10311, 12
      %v10804 = vpop.permute.xlu0 %10803
      %10805 = vrot.lane.b32.xlu0 %v10397, 12
      %v10806 = vpop.permute.xlu0 %10805
      %10807 = vrot.lane.b32.xlu0 %v10314, 12
      %v10808 = vpop.permute.xlu0 %10807
      %10809 = vrot.lane.b32.xlu0 %v10398, 12
      %v10810 = vpop.permute.xlu0 %10809
      %10811 = vrot.lane.b32.xlu0 %v10317, 12
      %v10812 = vpop.permute.xlu0 %10811
      %10813 = vrot.lane.b32.xlu0 %v10399, 12
      %v10814 = vpop.permute.xlu0 %10813
      %10815 = vrot.lane.b32.xlu0 %v10320, 12
      %v10816 = vpop.permute.xlu0 %10815
      %10817 = vrot.lane.b32.xlu0 %v10400, 12
      %v10818 = vpop.permute.xlu0 %10817
      %10819 = vrot.lane.b32.xlu0 %v10323, 12
      %v10820 = vpop.permute.xlu0 %10819
      %10821 = vrot.lane.b32.xlu0 %v10401, 12
      %v10822 = vpop.permute.xlu0 %10821
      %10823 = vrot.lane.b32.xlu0 %v10326, 12
      %v10824 = vpop.permute.xlu0 %10823
      %10825 = vrot.lane.b32.xlu0 %v10402, 12
      %v10826 = vpop.permute.xlu0 %10825
      %10827 = vrot.lane.b32.xlu0 %v10329, 12
      %v10828 = vpop.permute.xlu0 %10827
      %10829 = vrot.lane.b32.xlu0 %v10403, 12
      %v10830 = vpop.permute.xlu0 %10829
      %10831 = vrot.lane.b32.xlu0 %v10332, 12
      %v10832 = vpop.permute.xlu0 %10831
      %10833 = vrot.lane.b32.xlu0 %v10404, 12
      %v10834 = vpop.permute.xlu0 %10833
      %10835 = vrot.lane.b32.xlu0 %v10335, 12
      %v10836 = vpop.permute.xlu0 %10835
      %10837 = vrot.lane.b32.xlu0 %v10405, 12
      %v10838 = vpop.permute.xlu0 %10837
      %10839 = vrot.lane.b32.xlu0 %v10338, 12
      %v10840 = vpop.permute.xlu0 %10839
      %10841 = vrot.lane.b32.xlu0 %v10406, 12
      %v10842 = vpop.permute.xlu0 %10841
      %10843 = vrot.lane.b32.xlu0 %v10341, 12
      %v10844 = vpop.permute.xlu0 %10843
      %10845 = vrot.lane.b32.xlu0 %v10407, 12
      %v10846 = vpop.permute.xlu0 %10845
      %10847 = vrot.lane.b32.xlu0 %v10344, 12
      %v10848 = vpop.permute.xlu0 %10847
      %v10882 = vrot.slane %v10407, 1
      %v10883 = vrot.slane %v10344, 1
      %v10884 = vsel %vm5090, %v10882, %v10883
      %v10885 = vrot.slane %v10423, 1
      %v10886 = vsel %vm5090, %v10883, %v10885
      %10887 = vrot.lane.b32.xlu0 %v10456, 16
      %v10888 = vpop.permute.xlu0 %10887
      %10889 = vrot.lane.b32.xlu0 %v10458, 16
      %v10890 = vpop.permute.xlu0 %10889
      %10891 = vrot.lane.b32.xlu0 %v10461, 16
      %v10892 = vpop.permute.xlu0 %10891
      %10893 = vrot.lane.b32.xlu0 %v10463, 16
      %v10894 = vpop.permute.xlu0 %10893
      %10895 = vrot.lane.b32.xlu0 %v10466, 16
      %v10896 = vpop.permute.xlu0 %10895
      %10897 = vrot.lane.b32.xlu0 %v10468, 16
      %v10898 = vpop.permute.xlu0 %10897
      %10899 = vrot.lane.b32.xlu0 %v10471, 16
      %v10900 = vpop.permute.xlu0 %10899
      %10901 = vrot.lane.b32.xlu0 %v10473, 16
      %v10902 = vpop.permute.xlu0 %10901
      %10903 = vrot.lane.b32.xlu0 %v10476, 16
      %v10904 = vpop.permute.xlu0 %10903
      %10905 = vrot.lane.b32.xlu0 %v10478, 16
      %v10906 = vpop.permute.xlu0 %10905
      %10907 = vrot.lane.b32.xlu0 %v10481, 16
      %v10908 = vpop.permute.xlu0 %10907
      %10909 = vrot.lane.b32.xlu0 %v10483, 16
      %v10910 = vpop.permute.xlu0 %10909
      %10911 = vrot.lane.b32.xlu0 %v10486, 16
      %v10912 = vpop.permute.xlu0 %10911
      %10913 = vrot.lane.b32.xlu0 %v10488, 16
      %v10914 = vpop.permute.xlu0 %10913
      %10915 = vrot.lane.b32.xlu0 %v10491, 16
      %v10916 = vpop.permute.xlu0 %10915
      %10917 = vrot.lane.b32.xlu0 %v10493, 16
      %v10918 = vpop.permute.xlu0 %10917
      %10919 = vrot.lane.b32.xlu0 %v10496, 16
      %v10920 = vpop.permute.xlu0 %10919
      %10921 = vrot.lane.b32.xlu0 %v10498, 16
      %v10922 = vpop.permute.xlu0 %10921
      %10923 = vrot.lane.b32.xlu0 %v10501, 16
      %v10924 = vpop.permute.xlu0 %10923
      %10925 = vrot.lane.b32.xlu0 %v10503, 16
      %v10926 = vpop.permute.xlu0 %10925
      %10927 = vrot.lane.b32.xlu0 %v10506, 16
      %v10928 = vpop.permute.xlu0 %10927
      %10929 = vrot.lane.b32.xlu0 %v10508, 16
      %v10930 = vpop.permute.xlu0 %10929
      %10931 = vrot.lane.b32.xlu0 %v10511, 16
      %v10932 = vpop.permute.xlu0 %10931
      %10933 = vrot.lane.b32.xlu0 %v10513, 16
      %v10934 = vpop.permute.xlu0 %10933
      %10935 = vrot.lane.b32.xlu0 %v10516, 16
      %v10936 = vpop.permute.xlu0 %10935
      %10937 = vrot.lane.b32.xlu0 %v10518, 16
      %v10938 = vpop.permute.xlu0 %10937
      %10939 = vrot.lane.b32.xlu0 %v10521, 16
      %v10940 = vpop.permute.xlu0 %10939
      %10941 = vrot.lane.b32.xlu0 %v10523, 16
      %v10942 = vpop.permute.xlu0 %10941
      %10943 = vrot.lane.b32.xlu0 %v10526, 16
      %v10944 = vpop.permute.xlu0 %10943
      %10945 = vrot.lane.b32.xlu0 %v10528, 16
      %v10946 = vpop.permute.xlu0 %10945
      %10947 = vrot.lane.b32.xlu0 %v10884, 16
      %v10948 = vpop.permute.xlu0 %10947
      %10949 = vrot.lane.b32.xlu0 %v10886, 16
      %v10950 = vpop.permute.xlu0 %10949
      %v10983 = vrot.slane %v10407, 2
      %v10984 = vrot.slane %v10344, 2
      %v10985 = vsel %vm5261, %v10983, %v10984
      %v10986 = vrot.slane %v10423, 2
      %v10987 = vsel %vm5261, %v10984, %v10986
      %10988 = vrot.lane.b32.xlu0 %v10621, 20
      %v10989 = vpop.permute.xlu0 %10988
      %10990 = vrot.lane.b32.xlu0 %v10623, 20
      %v10991 = vpop.permute.xlu0 %10990
      %10992 = vrot.lane.b32.xlu0 %v10626, 20
      %v10993 = vpop.permute.xlu0 %10992
      %10994 = vrot.lane.b32.xlu0 %v10628, 20
      %v10995 = vpop.permute.xlu0 %10994
      %10996 = vrot.lane.b32.xlu0 %v10631, 20
      %v10997 = vpop.permute.xlu0 %10996
      %10998 = vrot.lane.b32.xlu0 %v10633, 20
      %v10999 = vpop.permute.xlu0 %10998
      %11000 = vrot.lane.b32.xlu0 %v10636, 20
      %v11001 = vpop.permute.xlu0 %11000
      %11002 = vrot.lane.b32.xlu0 %v10638, 20
      %v11003 = vpop.permute.xlu0 %11002
      %11004 = vrot.lane.b32.xlu0 %v10641, 20
      %v11005 = vpop.permute.xlu0 %11004
      %11006 = vrot.lane.b32.xlu0 %v10643, 20
      %v11007 = vpop.permute.xlu0 %11006
      %11008 = vrot.lane.b32.xlu0 %v10646, 20
      %v11009 = vpop.permute.xlu0 %11008
      %11010 = vrot.lane.b32.xlu0 %v10648, 20
      %v11011 = vpop.permute.xlu0 %11010
      %11012 = vrot.lane.b32.xlu0 %v10651, 20
      %v11013 = vpop.permute.xlu0 %11012
      %11014 = vrot.lane.b32.xlu0 %v10653, 20
      %v11015 = vpop.permute.xlu0 %11014
      %11016 = vrot.lane.b32.xlu0 %v10656, 20
      %v11017 = vpop.permute.xlu0 %11016
      %11018 = vrot.lane.b32.xlu0 %v10658, 20
      %v11019 = vpop.permute.xlu0 %11018
      %11020 = vrot.lane.b32.xlu0 %v10661, 20
      %v11021 = vpop.permute.xlu0 %11020
      %11022 = vrot.lane.b32.xlu0 %v10663, 20
      %v11023 = vpop.permute.xlu0 %11022
      %11024 = vrot.lane.b32.xlu0 %v10666, 20
      %v11025 = vpop.permute.xlu0 %11024
      %11026 = vrot.lane.b32.xlu0 %v10668, 20
      %v11027 = vpop.permute.xlu0 %11026
      %11028 = vrot.lane.b32.xlu0 %v10671, 20
      %v11029 = vpop.permute.xlu0 %11028
      %11030 = vrot.lane.b32.xlu0 %v10673, 20
      %v11031 = vpop.permute.xlu0 %11030
      %11032 = vrot.lane.b32.xlu0 %v10676, 20
      %v11033 = vpop.permute.xlu0 %11032
      %11034 = vrot.lane.b32.xlu0 %v10678, 20
      %v11035 = vpop.permute.xlu0 %11034
      %11036 = vrot.lane.b32.xlu0 %v10681, 20
      %v11037 = vpop.permute.xlu0 %11036
      %11038 = vrot.lane.b32.xlu0 %v10683, 20
      %v11039 = vpop.permute.xlu0 %11038
      %11040 = vrot.lane.b32.xlu0 %v10686, 20
      %v11041 = vpop.permute.xlu0 %11040
      %11042 = vrot.lane.b32.xlu0 %v10688, 20
      %v11043 = vpop.permute.xlu0 %11042
      %11044 = vrot.lane.b32.xlu0 %v10691, 20
      %v11045 = vpop.permute.xlu0 %11044
      %11046 = vrot.lane.b32.xlu0 %v10693, 20
      %v11047 = vpop.permute.xlu0 %11046
      %11048 = vrot.lane.b32.xlu0 %v10985, 20
      %v11049 = vpop.permute.xlu0 %11048
      %11050 = vrot.lane.b32.xlu0 %v10987, 20
      %v11051 = vpop.permute.xlu0 %11050
      %11084 = vrot.lane.b32.xlu0 %v10393, 24
      %v11085 = vpop.permute.xlu0 %11084
      %11086 = vrot.lane.b32.xlu0 %v10302, 24
      %v11087 = vpop.permute.xlu0 %11086
      %11088 = vrot.lane.b32.xlu0 %v10394, 24
      %v11089 = vpop.permute.xlu0 %11088
      %11090 = vrot.lane.b32.xlu0 %v10305, 24
      %v11091 = vpop.permute.xlu0 %11090
      %11092 = vrot.lane.b32.xlu0 %v10395, 24
      %v11093 = vpop.permute.xlu0 %11092
      %11094 = vrot.lane.b32.xlu0 %v10308, 24
      %v11095 = vpop.permute.xlu0 %11094
      %11096 = vrot.lane.b32.xlu0 %v10396, 24
      %v11097 = vpop.permute.xlu0 %11096
      %11098 = vrot.lane.b32.xlu0 %v10311, 24
      %v11099 = vpop.permute.xlu0 %11098
      %11100 = vrot.lane.b32.xlu0 %v10397, 24
      %v11101 = vpop.permute.xlu0 %11100
      %11102 = vrot.lane.b32.xlu0 %v10314, 24
      %v11103 = vpop.permute.xlu0 %11102
      %11104 = vrot.lane.b32.xlu0 %v10398, 24
      %v11105 = vpop.permute.xlu0 %11104
      %11106 = vrot.lane.b32.xlu0 %v10317, 24
      %v11107 = vpop.permute.xlu0 %11106
      %11108 = vrot.lane.b32.xlu0 %v10399, 24
      %v11109 = vpop.permute.xlu0 %11108
      %11110 = vrot.lane.b32.xlu0 %v10320, 24
      %v11111 = vpop.permute.xlu0 %11110
      %11112 = vrot.lane.b32.xlu0 %v10400, 24
      %v11113 = vpop.permute.xlu0 %11112
      %11114 = vrot.lane.b32.xlu0 %v10323, 24
      %v11115 = vpop.permute.xlu0 %11114
      %11116 = vrot.lane.b32.xlu0 %v10401, 24
      %v11117 = vpop.permute.xlu0 %11116
      %11118 = vrot.lane.b32.xlu0 %v10326, 24
      %v11119 = vpop.permute.xlu0 %11118
      %11120 = vrot.lane.b32.xlu0 %v10402, 24
      %v11121 = vpop.permute.xlu0 %11120
      %11122 = vrot.lane.b32.xlu0 %v10329, 24
      %v11123 = vpop.permute.xlu0 %11122
      %11124 = vrot.lane.b32.xlu0 %v10403, 24
      %v11125 = vpop.permute.xlu0 %11124
      %11126 = vrot.lane.b32.xlu0 %v10332, 24
      %v11127 = vpop.permute.xlu0 %11126
      %11128 = vrot.lane.b32.xlu0 %v10404, 24
      %v11129 = vpop.permute.xlu0 %11128
      %11130 = vrot.lane.b32.xlu0 %v10335, 24
      %v11131 = vpop.permute.xlu0 %11130
      %11132 = vrot.lane.b32.xlu0 %v10405, 24
      %v11133 = vpop.permute.xlu0 %11132
      %11134 = vrot.lane.b32.xlu0 %v10338, 24
      %v11135 = vpop.permute.xlu0 %11134
      %11136 = vrot.lane.b32.xlu0 %v10406, 24
      %v11137 = vpop.permute.xlu0 %11136
      %11138 = vrot.lane.b32.xlu0 %v10341, 24
      %v11139 = vpop.permute.xlu0 %11138
      %11140 = vrot.lane.b32.xlu0 %v10407, 24
      %v11141 = vpop.permute.xlu0 %11140
      %11142 = vrot.lane.b32.xlu0 %v10344, 24
      %v11143 = vpop.permute.xlu0 %11142
      %11174 = vrot.lane.b32.xlu0 %v10461, 28
      %v11175 = vpop.permute.xlu0 %11174
      %11176 = vrot.lane.b32.xlu0 %v10463, 28
      %v11177 = vpop.permute.xlu0 %11176
      %11178 = vrot.lane.b32.xlu0 %v10466, 28
      %v11179 = vpop.permute.xlu0 %11178
      %11180 = vrot.lane.b32.xlu0 %v10468, 28
      %v11181 = vpop.permute.xlu0 %11180
      %11182 = vrot.lane.b32.xlu0 %v10471, 28
      %v11183 = vpop.permute.xlu0 %11182
      %11184 = vrot.lane.b32.xlu0 %v10473, 28
      %v11185 = vpop.permute.xlu0 %11184
      %11186 = vrot.lane.b32.xlu0 %v10476, 28
      %v11187 = vpop.permute.xlu0 %11186
      %11188 = vrot.lane.b32.xlu0 %v10478, 28
      %v11189 = vpop.permute.xlu0 %11188
      %11190 = vrot.lane.b32.xlu0 %v10481, 28
      %v11191 = vpop.permute.xlu0 %11190
      %11192 = vrot.lane.b32.xlu0 %v10483, 28
      %v11193 = vpop.permute.xlu0 %11192
      %11194 = vrot.lane.b32.xlu0 %v10486, 28
      %v11195 = vpop.permute.xlu0 %11194
      %11196 = vrot.lane.b32.xlu0 %v10488, 28
      %v11197 = vpop.permute.xlu0 %11196
      %11198 = vrot.lane.b32.xlu0 %v10491, 28
      %v11199 = vpop.permute.xlu0 %11198
      %11200 = vrot.lane.b32.xlu0 %v10493, 28
      %v11201 = vpop.permute.xlu0 %11200
      %11202 = vrot.lane.b32.xlu0 %v10496, 28
      %v11203 = vpop.permute.xlu0 %11202
      %11204 = vrot.lane.b32.xlu0 %v10498, 28
      %v11205 = vpop.permute.xlu0 %11204
      %11206 = vrot.lane.b32.xlu0 %v10501, 28
      %v11207 = vpop.permute.xlu0 %11206
      %11208 = vrot.lane.b32.xlu0 %v10503, 28
      %v11209 = vpop.permute.xlu0 %11208
      %11210 = vrot.lane.b32.xlu0 %v10506, 28
      %v11211 = vpop.permute.xlu0 %11210
      %11212 = vrot.lane.b32.xlu0 %v10508, 28
      %v11213 = vpop.permute.xlu0 %11212
      %11214 = vrot.lane.b32.xlu0 %v10511, 28
      %v11215 = vpop.permute.xlu0 %11214
      %11216 = vrot.lane.b32.xlu0 %v10513, 28
      %v11217 = vpop.permute.xlu0 %11216
      %11218 = vrot.lane.b32.xlu0 %v10516, 28
      %v11219 = vpop.permute.xlu0 %11218
      %11220 = vrot.lane.b32.xlu0 %v10518, 28
      %v11221 = vpop.permute.xlu0 %11220
      %11222 = vrot.lane.b32.xlu0 %v10521, 28
      %v11223 = vpop.permute.xlu0 %11222
      %11224 = vrot.lane.b32.xlu0 %v10523, 28
      %v11225 = vpop.permute.xlu0 %11224
      %11226 = vrot.lane.b32.xlu0 %v10526, 28
      %v11227 = vpop.permute.xlu0 %11226
      %11228 = vrot.lane.b32.xlu0 %v10528, 28
      %v11229 = vpop.permute.xlu0 %11228
      %11230 = vrot.lane.b32.xlu0 %v10884, 28
      %v11231 = vpop.permute.xlu0 %11230
      %11232 = vrot.lane.b32.xlu0 %v10886, 28
      %v11233 = vpop.permute.xlu0 %11232
      %11264 = vrot.lane.b32.xlu0 %v10626, 32
      %v11265 = vpop.permute.xlu0 %11264
      %11266 = vrot.lane.b32.xlu0 %v10628, 32
      %v11267 = vpop.permute.xlu0 %11266
      %11268 = vrot.lane.b32.xlu0 %v10631, 32
      %v11269 = vpop.permute.xlu0 %11268
      %11270 = vrot.lane.b32.xlu0 %v10633, 32
      %v11271 = vpop.permute.xlu0 %11270
      %11272 = vrot.lane.b32.xlu0 %v10636, 32
      %v11273 = vpop.permute.xlu0 %11272
      %11274 = vrot.lane.b32.xlu0 %v10638, 32
      %v11275 = vpop.permute.xlu0 %11274
      %11276 = vrot.lane.b32.xlu0 %v10641, 32
      %v11277 = vpop.permute.xlu0 %11276
      %11278 = vrot.lane.b32.xlu0 %v10643, 32
      %v11279 = vpop.permute.xlu0 %11278
      %11280 = vrot.lane.b32.xlu0 %v10646, 32
      %v11281 = vpop.permute.xlu0 %11280
      %11282 = vrot.lane.b32.xlu0 %v10648, 32
      %v11283 = vpop.permute.xlu0 %11282
      %11284 = vrot.lane.b32.xlu0 %v10651, 32
      %v11285 = vpop.permute.xlu0 %11284
      %11286 = vrot.lane.b32.xlu0 %v10653, 32
      %v11287 = vpop.permute.xlu0 %11286
      %11288 = vrot.lane.b32.xlu0 %v10656, 32
      %v11289 = vpop.permute.xlu0 %11288
      %11290 = vrot.lane.b32.xlu0 %v10658, 32
      %v11291 = vpop.permute.xlu0 %11290
      %11292 = vrot.lane.b32.xlu0 %v10661, 32
      %v11293 = vpop.permute.xlu0 %11292
      %11294 = vrot.lane.b32.xlu0 %v10663, 32
      %v11295 = vpop.permute.xlu0 %11294
      %11296 = vrot.lane.b32.xlu0 %v10666, 32
      %v11297 = vpop.permute.xlu0 %11296
      %11298 = vrot.lane.b32.xlu0 %v10668, 32
      %v11299 = vpop.permute.xlu0 %11298
      %11300 = vrot.lane.b32.xlu0 %v10671, 32
      %v11301 = vpop.permute.xlu0 %11300
      %11302 = vrot.lane.b32.xlu0 %v10673, 32
      %v11303 = vpop.permute.xlu0 %11302
      %11304 = vrot.lane.b32.xlu0 %v10676, 32
      %v11305 = vpop.permute.xlu0 %11304
      %11306 = vrot.lane.b32.xlu0 %v10678, 32
      %v11307 = vpop.permute.xlu0 %11306
      %11308 = vrot.lane.b32.xlu0 %v10681, 32
      %v11309 = vpop.permute.xlu0 %11308
      %11310 = vrot.lane.b32.xlu0 %v10683, 32
      %v11311 = vpop.permute.xlu0 %11310
      %11312 = vrot.lane.b32.xlu0 %v10686, 32
      %v11313 = vpop.permute.xlu0 %11312
      %11314 = vrot.lane.b32.xlu0 %v10688, 32
      %v11315 = vpop.permute.xlu0 %11314
      %11316 = vrot.lane.b32.xlu0 %v10691, 32
      %v11317 = vpop.permute.xlu0 %11316
      %11318 = vrot.lane.b32.xlu0 %v10693, 32
      %v11319 = vpop.permute.xlu0 %11318
      %11320 = vrot.lane.b32.xlu0 %v10985, 32
      %v11321 = vpop.permute.xlu0 %11320
      %11322 = vrot.lane.b32.xlu0 %v10987, 32
      %v11323 = vpop.permute.xlu0 %11322
      %v11354 = vsel %vm728, %v10392, %v10530
      %v11355 = vsel %vm728, %v10299, %v10532
      %v11356 = vsel %vm728, %v10393, %v10534
      %v11357 = vsel %vm728, %v10302, %v10536
      %v11358 = vsel %vm728, %v10394, %v10538
      %v11359 = vsel %vm728, %v10305, %v10540
      %v11360 = vsel %vm728, %v10395, %v10542
      %v11361 = vsel %vm728, %v10308, %v10544
      %v11362 = vsel %vm728, %v10396, %v10546
      %v11363 = vsel %vm728, %v10311, %v10548
      %v11364 = vsel %vm728, %v10397, %v10550
      %v11365 = vsel %vm728, %v10314, %v10552
      %v11366 = vsel %vm728, %v10398, %v10554
      %v11367 = vsel %vm728, %v10317, %v10556
      %v11368 = vsel %vm728, %v10399, %v10558
      %v11369 = vsel %vm728, %v10320, %v10560
      %v11370 = vsel %vm728, %v10400, %v10562
      %v11371 = vsel %vm728, %v10323, %v10564
      %v11372 = vsel %vm728, %v10401, %v10566
      %v11373 = vsel %vm728, %v10326, %v10568
      %v11374 = vsel %vm728, %v10402, %v10570
      %v11375 = vsel %vm728, %v10329, %v10572
      %v11376 = vsel %vm728, %v10403, %v10574
      %v11377 = vsel %vm728, %v10332, %v10576
      %v11378 = vsel %vm728, %v10404, %v10578
      %v11379 = vsel %vm728, %v10335, %v10580
      %v11380 = vsel %vm728, %v10405, %v10582
      %v11381 = vsel %vm728, %v10338, %v10584
      %v11382 = vsel %vm728, %v10406, %v10586
      %v11383 = vsel %vm728, %v10341, %v10588
      %v11384 = vsel %vm6042, %v11354, %v10695
      %v11385 = vsel %vm6042, %v11355, %v10697
      %v11386 = vsel %vm6042, %v11356, %v10699
      %v11387 = vsel %vm6042, %v11357, %v10701
      %v11388 = vsel %vm6042, %v11358, %v10703
      %v11389 = vsel %vm6042, %v11359, %v10705
      %v11390 = vsel %vm6042, %v11360, %v10707
      %v11391 = vsel %vm6042, %v11361, %v10709
      %v11392 = vsel %vm6042, %v11362, %v10711
      %v11393 = vsel %vm6042, %v11363, %v10713
      %v11394 = vsel %vm6042, %v11364, %v10715
      %v11395 = vsel %vm6042, %v11365, %v10717
      %v11396 = vsel %vm6042, %v11366, %v10719
      %v11397 = vsel %vm6042, %v11367, %v10721
      %v11398 = vsel %vm6042, %v11368, %v10723
      %v11399 = vsel %vm6042, %v11369, %v10725
      %v11400 = vsel %vm6042, %v11370, %v10727
      %v11401 = vsel %vm6042, %v11371, %v10729
      %v11402 = vsel %vm6042, %v11372, %v10731
      %v11403 = vsel %vm6042, %v11373, %v10733
      %v11404 = vsel %vm6042, %v11374, %v10735
      %v11405 = vsel %vm6042, %v11375, %v10737
      %v11406 = vsel %vm6042, %v11376, %v10739
      %v11407 = vsel %vm6042, %v11377, %v10741
      %v11408 = vsel %vm6042, %v11378, %v10743
      %v11409 = vsel %vm6042, %v11379, %v10745
      %v11410 = vsel %vm6042, %v11380, %v10747
      %v11411 = vsel %vm6042, %v11381, %v10749
      %v11412 = vsel %vm6042, %v11382, %v10751
      %v11413 = vsel %vm6042, %v11383, %v10753
      %v11414 = vsel %vm6074, %v6043, %v10786
      %v11415 = vsel %vm6074, %v6043, %v10788
      %v11416 = vsel %vm6074, %v11384, %v10790
      %v11417 = vsel %vm6074, %v11385, %v10792
      %v11418 = vsel %vm6074, %v11386, %v10794
      %v11419 = vsel %vm6074, %v11387, %v10796
      %v11420 = vsel %vm6074, %v11388, %v10798
      %v11421 = vsel %vm6074, %v11389, %v10800
      %v11422 = vsel %vm6074, %v11390, %v10802
      %v11423 = vsel %vm6074, %v11391, %v10804
      %v11424 = vsel %vm6074, %v11392, %v10806
      %v11425 = vsel %vm6074, %v11393, %v10808
      %v11426 = vsel %vm6074, %v11394, %v10810
      %v11427 = vsel %vm6074, %v11395, %v10812
      %v11428 = vsel %vm6074, %v11396, %v10814
      %v11429 = vsel %vm6074, %v11397, %v10816
      %v11430 = vsel %vm6074, %v11398, %v10818
      %v11431 = vsel %vm6074, %v11399, %v10820
      %v11432 = vsel %vm6074, %v11400, %v10822
      %v11433 = vsel %vm6074, %v11401, %v10824
      %v11434 = vsel %vm6074, %v11402, %v10826
      %v11435 = vsel %vm6074, %v11403, %v10828
      %v11436 = vsel %vm6074, %v11404, %v10830
      %v11437 = vsel %vm6074, %v11405, %v10832
      %v11438 = vsel %vm6074, %v11406, %v10834
      %v11439 = vsel %vm6074, %v11407, %v10836
      %v11440 = vsel %vm6074, %v11408, %v10838
      %v11441 = vsel %vm6074, %v11409, %v10840
      %v11442 = vsel %vm6074, %v11410, %v10842
      %v11443 = vsel %vm6074, %v11411, %v10844
      %v11444 = vsel %vm6074, %v11412, %v10846
      %v11445 = vsel %vm6074, %v11413, %v10848
      %v11446 = vsel %vm2350, %v11414, %v10888
      %v11447 = vsel %vm2350, %v11415, %v10890
      %v11448 = vsel %vm2350, %v11416, %v10892
      %v11449 = vsel %vm2350, %v11417, %v10894
      %v11450 = vsel %vm2350, %v11418, %v10896
      %v11451 = vsel %vm2350, %v11419, %v10898
      %v11452 = vsel %vm2350, %v11420, %v10900
      %v11453 = vsel %vm2350, %v11421, %v10902
      %v11454 = vsel %vm2350, %v11422, %v10904
      %v11455 = vsel %vm2350, %v11423, %v10906
      %v11456 = vsel %vm2350, %v11424, %v10908
      %v11457 = vsel %vm2350, %v11425, %v10910
      %v11458 = vsel %vm2350, %v11426, %v10912
      %v11459 = vsel %vm2350, %v11427, %v10914
      %v11460 = vsel %vm2350, %v11428, %v10916
      %v11461 = vsel %vm2350, %v11429, %v10918
      %v11462 = vsel %vm2350, %v11430, %v10920
      %v11463 = vsel %vm2350, %v11431, %v10922
      %v11464 = vsel %vm2350, %v11432, %v10924
      %v11465 = vsel %vm2350, %v11433, %v10926
      %v11466 = vsel %vm2350, %v11434, %v10928
      %v11467 = vsel %vm2350, %v11435, %v10930
      %v11468 = vsel %vm2350, %v11436, %v10932
      %v11469 = vsel %vm2350, %v11437, %v10934
      %v11470 = vsel %vm2350, %v11438, %v10936
      %v11471 = vsel %vm2350, %v11439, %v10938
      %v11472 = vsel %vm2350, %v11440, %v10940
      %v11473 = vsel %vm2350, %v11441, %v10942
      %v11474 = vsel %vm2350, %v11442, %v10944
      %v11475 = vsel %vm2350, %v11443, %v10946
      %v11476 = vsel %vm2350, %v11444, %v10948
      %v11477 = vsel %vm2350, %v11445, %v10950
      %v11478 = vsel %vm6139, %v11446, %v10989
      %v11479 = vsel %vm6139, %v11447, %v10991
      %v11480 = vsel %vm6139, %v11448, %v10993
      %v11481 = vsel %vm6139, %v11449, %v10995
      %v11482 = vsel %vm6139, %v11450, %v10997
      %v11483 = vsel %vm6139, %v11451, %v10999
      %v11484 = vsel %vm6139, %v11452, %v11001
      %v11485 = vsel %vm6139, %v11453, %v11003
      %v11486 = vsel %vm6139, %v11454, %v11005
      %v11487 = vsel %vm6139, %v11455, %v11007
      %v11488 = vsel %vm6139, %v11456, %v11009
      %v11489 = vsel %vm6139, %v11457, %v11011
      %v11490 = vsel %vm6139, %v11458, %v11013
      %v11491 = vsel %vm6139, %v11459, %v11015
      %v11492 = vsel %vm6139, %v11460, %v11017
      %v11493 = vsel %vm6139, %v11461, %v11019
      %v11494 = vsel %vm6139, %v11462, %v11021
      %v11495 = vsel %vm6139, %v11463, %v11023
      %v11496 = vsel %vm6139, %v11464, %v11025
      %v11497 = vsel %vm6139, %v11465, %v11027
      %v11498 = vsel %vm6139, %v11466, %v11029
      %v11499 = vsel %vm6139, %v11467, %v11031
      %v11500 = vsel %vm6139, %v11468, %v11033
      %v11501 = vsel %vm6139, %v11469, %v11035
      %v11502 = vsel %vm6139, %v11470, %v11037
      %v11503 = vsel %vm6139, %v11471, %v11039
      %v11504 = vsel %vm6139, %v11472, %v11041
      %v11505 = vsel %vm6139, %v11473, %v11043
      %v11506 = vsel %vm6139, %v11474, %v11045
      %v11507 = vsel %vm6139, %v11475, %v11047
      %v11508 = vsel %vm6139, %v11476, %v11049
      %v11509 = vsel %vm6139, %v11477, %v11051
      %v11510 = vsel %vm6172, %v11478, %v11085
      %v11511 = vsel %vm6172, %v11479, %v11087
      %v11512 = vsel %vm6172, %v11480, %v11089
      %v11513 = vsel %vm6172, %v11481, %v11091
      %v11514 = vsel %vm6172, %v11482, %v11093
      %v11515 = vsel %vm6172, %v11483, %v11095
      %v11516 = vsel %vm6172, %v11484, %v11097
      %v11517 = vsel %vm6172, %v11485, %v11099
      %v11518 = vsel %vm6172, %v11486, %v11101
      %v11519 = vsel %vm6172, %v11487, %v11103
      %v11520 = vsel %vm6172, %v11488, %v11105
      %v11521 = vsel %vm6172, %v11489, %v11107
      %v11522 = vsel %vm6172, %v11490, %v11109
      %v11523 = vsel %vm6172, %v11491, %v11111
      %v11524 = vsel %vm6172, %v11492, %v11113
      %v11525 = vsel %vm6172, %v11493, %v11115
      %v11526 = vsel %vm6172, %v11494, %v11117
      %v11527 = vsel %vm6172, %v11495, %v11119
      %v11528 = vsel %vm6172, %v11496, %v11121
      %v11529 = vsel %vm6172, %v11497, %v11123
      %v11530 = vsel %vm6172, %v11498, %v11125
      %v11531 = vsel %vm6172, %v11499, %v11127
      %v11532 = vsel %vm6172, %v11500, %v11129
      %v11533 = vsel %vm6172, %v11501, %v11131
      %v11534 = vsel %vm6172, %v11502, %v11133
      %v11535 = vsel %vm6172, %v11503, %v11135
      %v11536 = vsel %vm6172, %v11504, %v11137
      %v11537 = vsel %vm6172, %v11505, %v11139
      %v11538 = vsel %vm6172, %v11506, %v11141
      %v11539 = vsel %vm6172, %v11507, %v11143
      %v11540 = vsel %vm6172, %v11508, %v5793
      %v11541 = vsel %vm6172, %v11509, %v5793
      %v11542 = vsel %vm6205, %v11510, %v11175
      %v11543 = vsel %vm6205, %v11511, %v11177
      %v11544 = vsel %vm6205, %v11512, %v11179
      %v11545 = vsel %vm6205, %v11513, %v11181
      %v11546 = vsel %vm6205, %v11514, %v11183
      %v11547 = vsel %vm6205, %v11515, %v11185
      %v11548 = vsel %vm6205, %v11516, %v11187
      %v11549 = vsel %vm6205, %v11517, %v11189
      %v11550 = vsel %vm6205, %v11518, %v11191
      %v11551 = vsel %vm6205, %v11519, %v11193
      %v11552 = vsel %vm6205, %v11520, %v11195
      %v11553 = vsel %vm6205, %v11521, %v11197
      %v11554 = vsel %vm6205, %v11522, %v11199
      %v11555 = vsel %vm6205, %v11523, %v11201
      %v11556 = vsel %vm6205, %v11524, %v11203
      %v11557 = vsel %vm6205, %v11525, %v11205
      %v11558 = vsel %vm6205, %v11526, %v11207
      %v11559 = vsel %vm6205, %v11527, %v11209
      %v11560 = vsel %vm6205, %v11528, %v11211
      %v11561 = vsel %vm6205, %v11529, %v11213
      %v11562 = vsel %vm6205, %v11530, %v11215
      %v11563 = vsel %vm6205, %v11531, %v11217
      %v11564 = vsel %vm6205, %v11532, %v11219
      %v11565 = vsel %vm6205, %v11533, %v11221
      %v11566 = vsel %vm6205, %v11534, %v11223
      %v11567 = vsel %vm6205, %v11535, %v11225
      %v11568 = vsel %vm6205, %v11536, %v11227
      %v11569 = vsel %vm6205, %v11537, %v11229
      %v11570 = vsel %vm6205, %v11538, %v11231
      %v11571 = vsel %vm6205, %v11539, %v11233
      %v11572 = vsel %vm6205, %v11540, %v5886
      %v11573 = vsel %vm6205, %v11541, %v5886
      %v11574 = vsel %vm6238, %v11542, %v11265
      %v11575 = vsel %vm6238, %v11543, %v11267
      %v11576 = vsel %vm6238, %v11544, %v11269
      %v11577 = vsel %vm6238, %v11545, %v11271
      %v11578 = vsel %vm6238, %v11546, %v11273
      %v11579 = vsel %vm6238, %v11547, %v11275
      %v11580 = vsel %vm6238, %v11548, %v11277
      %v11581 = vsel %vm6238, %v11549, %v11279
      %v11582 = vsel %vm6238, %v11550, %v11281
      %v11583 = vsel %vm6238, %v11551, %v11283
      %v11584 = vsel %vm6238, %v11552, %v11285
      %v11585 = vsel %vm6238, %v11553, %v11287
      %v11586 = vsel %vm6238, %v11554, %v11289
      %v11587 = vsel %vm6238, %v11555, %v11291
      %v11588 = vsel %vm6238, %v11556, %v11293
      %v11589 = vsel %vm6238, %v11557, %v11295
      %v11590 = vsel %vm6238, %v11558, %v11297
      %v11591 = vsel %vm6238, %v11559, %v11299
      %v11592 = vsel %vm6238, %v11560, %v11301
      %v11593 = vsel %vm6238, %v11561, %v11303
      %v11594 = vsel %vm6238, %v11562, %v11305
      %v11595 = vsel %vm6238, %v11563, %v11307
      %v11596 = vsel %vm6238, %v11564, %v11309
      %v11597 = vsel %vm6238, %v11565, %v11311
      %v11598 = vsel %vm6238, %v11566, %v11313
      %v11599 = vsel %vm6238, %v11567, %v11315
      %v11600 = vsel %vm6238, %v11568, %v11317
      %v11601 = vsel %vm6238, %v11569, %v11319
      %v11602 = vsel %vm6238, %v11570, %v11321
      %v11603 = vsel %vm6238, %v11571, %v11323
      %v11604 = vsel %vm6238, %v11572, %v5979
      %v11605 = vsel %vm6238, %v11573, %v5979
      %v11606 = vlaneseq
      %v11607 = vshrl.u32 %v11606, 7
      %v11608 = vsub.s32 0, %v11607
      %v11609 = vrot.slane %v6640, %v11608
      %v11611 = vsel %vm6275, %v11574, 0
      %v11614 = vsel %vm6275, %v11575, 0
      %v11617 = vsel %vm6275, %v11576, 0
      %v11620 = vsel %vm6275, %v11577, 0
      %v11623 = vsel %vm6275, %v11578, 0
      %v11626 = vsel %vm6275, %v11579, 0
      %v11629 = vsel %vm6275, %v11580, 0
      %v11632 = vsel %vm6275, %v11581, 0
      %v11635 = vsel %vm6275, %v11582, 0
      %v11638 = vsel %vm6275, %v11583, 0
      %v11641 = vsel %vm6275, %v11584, 0
      %v11644 = vsel %vm6275, %v11585, 0
      %v11647 = vsel %vm6275, %v11586, 0
      %v11650 = vsel %vm6275, %v11587, 0
      %v11653 = vsel %vm6275, %v11588, 0
      %v11656 = vsel %vm6275, %v11589, 0
      %v11659 = vsel %vm6275, %v11590, 0
      %v11662 = vsel %vm6275, %v11591, 0
      %v11665 = vsel %vm6275, %v11592, 0
      %v11668 = vsel %vm6275, %v11593, 0
      %v11671 = vsel %vm6275, %v11594, 0
      %v11674 = vsel %vm6275, %v11595, 0
      %v11677 = vsel %vm6275, %v11596, 0
      %v11680 = vsel %vm6275, %v11597, 0
      %v11683 = vsel %vm6275, %v11598, 0
      %v11686 = vsel %vm6275, %v11599, 0
      %v11689 = vsel %vm6275, %v11600, 0
      %v11692 = vsel %vm6275, %v11601, 0
      %v11695 = vsel %vm6275, %v11602, 0
      %v11698 = vsel %vm6275, %v11603, 0
      %v11701 = vsel %vm6275, %v11604, 0
      %v11704 = vsel %vm6275, %v11605, 0
      %v11707 = vsel %vm825, %v6639, 0
      %11709 = vmatprep.subr.mxu0 0.0
      %11710 = vmatpush1.msra.mxu0 %v6635
      %11711 = vmatprep.subr.mxu0 0.0
      %11712 = vmatpush1.msra.mxu0 %v6636
      %11713 = vmatprep.subr.mxu0 0.0
      %11714 = vmatpush1.msra.mxu0 %v6637
      %11715 = vmatprep.subr.mxu0 0.0
      %11716 = vmatpush1.msra.mxu0 %v6638
      %11717 = vmatprep.subr.mxu0 0.0
      %11718 = vmatpush1.msra.mxu0 %v11707
      %11719 = vmatprep.subr.mxu0 0.0
      %11720 = vmatpush1.msra.mxu0 0.0
      %11721 = vmatprep.subr.mxu0 0.0
      %11722 = vmatpush1.msra.mxu0 0.0
      %11723 = vmatprep.subr.mxu0 0.0
      %11724 = vmatpush1.msra.mxu0 0.0
      %11725 = vmatprep.subr.mxu0 0.0
      %11726 = vmatpush1.msra.mxu0 0.0
      %11727 = vmatprep.subr.mxu0 0.0
      %11728 = vmatpush1.msra.mxu0 0.0
      %11729 = vmatprep.subr.mxu0 0.0
      %11730 = vmatpush1.msra.mxu0 0.0
      %11731 = vmatprep.subr.mxu0 0.0
      %11732 = vmatpush1.msra.mxu0 0.0
      %11733 = vmatprep.subr.mxu0 0.0
      %11734 = vmatpush1.msra.mxu0 0.0
      %11735 = vmatprep.subr.mxu0 0.0
      %11736 = vmatpush1.msra.mxu0 0.0
      %11737 = vmatprep.subr.mxu0 0.0
      %11738 = vmatpush1.msra.mxu0 0.0
      %11739 = vmatprep.subr.mxu0 0.0
      %11740 = vmatpush1.msra.mxu0 0.0
      %11741 = vmatprep.subr.mxu0 0.0
      %11742 = vmatpush1.msra.mxu0 0.0
      %11743 = vmatprep.subr.mxu0 0.0
      %11744 = vmatpush1.msra.mxu0 0.0
      %11745 = vmatprep.subr.mxu0 0.0
      %11746 = vmatpush1.msra.mxu0 0.0
      %11747 = vmatprep.subr.mxu0 0.0
      %11748 = vmatpush1.msra.mxu0 0.0
      %11749 = vmatprep.subr.mxu0 0.0
      %11750 = vmatpush1.msra.mxu0 0.0
      %11751 = vmatprep.subr.mxu0 0.0
      %11752 = vmatpush1.msra.mxu0 0.0
      %11753 = vmatprep.subr.mxu0 0.0
      %11754 = vmatpush1.msra.mxu0 0.0
      %11755 = vmatprep.subr.mxu0 0.0
      %11756 = vmatpush1.msra.mxu0 0.0
      %11757 = vmatprep.subr.mxu0 0.0
      %11758 = vmatpush1.msra.mxu0 0.0
      %11759 = vmatprep.subr.mxu0 0.0
      %11760 = vmatpush1.msra.mxu0 0.0
      %11761 = vmatprep.subr.mxu0 0.0
      %11762 = vmatpush1.msra.mxu0 0.0
      %11763 = vmatprep.subr.mxu0 0.0
      %11764 = vmatpush1.msra.mxu0 0.0
      %11765 = vmatprep.subr.mxu0 0.0
      %11766 = vmatpush1.msra.mxu0 0.0
      %11767 = vmatprep.subr.mxu0 0.0
      %11768 = vmatpush1.msra.mxu0 0.0
      %11769 = vmatprep.subr.mxu0 0.0
      %11770 = vmatpush1.msra.mxu0 0.0
      %11771 = vmatprep.subr.mxu0 0.0
      %11772 = vmatpush1.msra.mxu0 0.0
      %11773 = vmatprep.mubr.f32.mxu0 0.0
      %11774 = vmatmul.mubr.f32.gmra.mrb[0].mxu0 %v11611
      %v11775 = vpop.f32.mrb[0].mxu0
      %v11776 = vadd.f32 %v11609, %v11775
      %v11777 = vpop.f32.mrb[0].mxu0
      %11778 = vmatprep.mubr.f32.mxu0 0.0
      %11779 = vmatmul.mubr.f32.gmra.mrb[0].mxu0 %v11614
      %v11780 = vpop.f32.mrb[0].mxu0
      %v11781 = vadd.f32 %v11609, %v11780
      %v11782 = vpop.f32.mrb[0].mxu0
      %11783 = vmatprep.mubr.f32.mxu0 0.0
      %11784 = vmatmul.mubr.f32.gmra.mrb[0].mxu0 %v11617
      %v11785 = vpop.f32.mrb[0].mxu0
      %v11786 = vadd.f32 %v11609, %v11785
      %v11787 = vpop.f32.mrb[0].mxu0
      %11788 = vmatprep.mubr.f32.mxu0 0.0
      %11789 = vmatmul.mubr.f32.gmra.mrb[0].mxu0 %v11620
      %v11790 = vpop.f32.mrb[0].mxu0
      %v11791 = vadd.f32 %v11609, %v11790
      %v11792 = vpop.f32.mrb[0].mxu0
      %11793 = vmatprep.mubr.f32.mxu0 0.0
      %11794 = vmatmul.mubr.f32.gmra.mrb[0].mxu0 %v11623
      %v11795 = vpop.f32.mrb[0].mxu0
      %v11796 = vadd.f32 %v11609, %v11795
      %v11797 = vpop.f32.mrb[0].mxu0
      %11798 = vmatprep.mubr.f32.mxu0 0.0
      %11799 = vmatmul.mubr.f32.gmra.mrb[0].mxu0 %v11626
      %v11800 = vpop.f32.mrb[0].mxu0
      %v11801 = vadd.f32 %v11609, %v11800
      %v11802 = vpop.f32.mrb[0].mxu0
      %11803 = vmatprep.mubr.f32.mxu0 0.0
      %11804 = vmatmul.mubr.f32.gmra.mrb[0].mxu0 %v11629
      %v11805 = vpop.f32.mrb[0].mxu0
      %v11806 = vadd.f32 %v11609, %v11805
      %v11807 = vpop.f32.mrb[0].mxu0
      %11808 = vmatprep.mubr.f32.mxu0 0.0
      %11809 = vmatmul.mubr.f32.gmra.mrb[0].mxu0 %v11632
      %v11810 = vpop.f32.mrb[0].mxu0
      %v11811 = vadd.f32 %v11609, %v11810
      %v11812 = vpop.f32.mrb[0].mxu0
      %11813 = vmatprep.mubr.f32.mxu0 0.0
      %11814 = vmatmul.mubr.f32.gmra.mrb[0].mxu0 %v11635
      %v11815 = vpop.f32.mrb[0].mxu0
      %v11816 = vadd.f32 %v11609, %v11815
      %v11817 = vpop.f32.mrb[0].mxu0
      %11818 = vmatprep.mubr.f32.mxu0 0.0
      %11819 = vmatmul.mubr.f32.gmra.mrb[0].mxu0 %v11638
      %v11820 = vpop.f32.mrb[0].mxu0
      %v11821 = vadd.f32 %v11609, %v11820
      %v11822 = vpop.f32.mrb[0].mxu0
      %11823 = vmatprep.mubr.f32.mxu0 0.0
      %11824 = vmatmul.mubr.f32.gmra.mrb[0].mxu0 %v11641
      %v11825 = vpop.f32.mrb[0].mxu0
      %v11826 = vadd.f32 %v11609, %v11825
      %v11827 = vpop.f32.mrb[0].mxu0
      %11828 = vmatprep.mubr.f32.mxu0 0.0
      %11829 = vmatmul.mubr.f32.gmra.mrb[0].mxu0 %v11644
      %v11830 = vpop.f32.mrb[0].mxu0
      %v11831 = vadd.f32 %v11609, %v11830
      %v11832 = vpop.f32.mrb[0].mxu0
      %11833 = vmatprep.mubr.f32.mxu0 0.0
      %11834 = vmatmul.mubr.f32.gmra.mrb[0].mxu0 %v11647
      %v11835 = vpop.f32.mrb[0].mxu0
      %v11836 = vadd.f32 %v11609, %v11835
      %v11837 = vpop.f32.mrb[0].mxu0
      %11838 = vmatprep.mubr.f32.mxu0 0.0
      %11839 = vmatmul.mubr.f32.gmra.mrb[0].mxu0 %v11650
      %v11840 = vpop.f32.mrb[0].mxu0
      %v11841 = vadd.f32 %v11609, %v11840
      %v11842 = vpop.f32.mrb[0].mxu0
      %11843 = vmatprep.mubr.f32.mxu0 0.0
      %11844 = vmatmul.mubr.f32.gmra.mrb[0].mxu0 %v11653
      %v11845 = vpop.f32.mrb[0].mxu0
      %v11846 = vadd.f32 %v11609, %v11845
      %v11847 = vpop.f32.mrb[0].mxu0
      %11848 = vmatprep.mubr.f32.mxu0 0.0
      %11849 = vmatmul.mubr.f32.gmra.mrb[0].mxu0 %v11656
      %v11850 = vpop.f32.mrb[0].mxu0
      %v11851 = vadd.f32 %v11609, %v11850
      %v11852 = vpop.f32.mrb[0].mxu0
      %11853 = vmatprep.mubr.f32.mxu0 0.0
      %11854 = vmatmul.mubr.f32.gmra.mrb[0].mxu0 %v11659
      %v11855 = vpop.f32.mrb[0].mxu0
      %v11856 = vadd.f32 %v11609, %v11855
      %v11857 = vpop.f32.mrb[0].mxu0
      %11858 = vmatprep.mubr.f32.mxu0 0.0
      %11859 = vmatmul.mubr.f32.gmra.mrb[0].mxu0 %v11662
      %v11860 = vpop.f32.mrb[0].mxu0
      %v11861 = vadd.f32 %v11609, %v11860
      %v11862 = vpop.f32.mrb[0].mxu0
      %11863 = vmatprep.mubr.f32.mxu0 0.0
      %11864 = vmatmul.mubr.f32.gmra.mrb[0].mxu0 %v11665
      %v11865 = vpop.f32.mrb[0].mxu0
      %v11866 = vadd.f32 %v11609, %v11865
      %v11867 = vpop.f32.mrb[0].mxu0
      %11868 = vmatprep.mubr.f32.mxu0 0.0
      %11869 = vmatmul.mubr.f32.gmra.mrb[0].mxu0 %v11668
      %v11870 = vpop.f32.mrb[0].mxu0
      %v11871 = vadd.f32 %v11609, %v11870
      %v11872 = vpop.f32.mrb[0].mxu0
      %11873 = vmatprep.mubr.f32.mxu0 0.0
      %11874 = vmatmul.mubr.f32.gmra.mrb[0].mxu0 %v11671
      %v11875 = vpop.f32.mrb[0].mxu0
      %v11876 = vadd.f32 %v11609, %v11875
      %v11877 = vpop.f32.mrb[0].mxu0
      %11878 = vmatprep.mubr.f32.mxu0 0.0
      %11879 = vmatmul.mubr.f32.gmra.mrb[0].mxu0 %v11674
      %v11880 = vpop.f32.mrb[0].mxu0
      %v11881 = vadd.f32 %v11609, %v11880
      %v11882 = vpop.f32.mrb[0].mxu0
      %11883 = vmatprep.mubr.f32.mxu0 0.0
      %11884 = vmatmul.mubr.f32.gmra.mrb[0].mxu0 %v11677
      %v11885 = vpop.f32.mrb[0].mxu0
      %v11886 = vadd.f32 %v11609, %v11885
      %v11887 = vpop.f32.mrb[0].mxu0
      %11888 = vmatprep.mubr.f32.mxu0 0.0
      %11889 = vmatmul.mubr.f32.gmra.mrb[0].mxu0 %v11680
      %v11890 = vpop.f32.mrb[0].mxu0
      %v11891 = vadd.f32 %v11609, %v11890
      %v11892 = vpop.f32.mrb[0].mxu0
      %11893 = vmatprep.mubr.f32.mxu0 0.0
      %11894 = vmatmul.mubr.f32.gmra.mrb[0].mxu0 %v11683
      %v11895 = vpop.f32.mrb[0].mxu0
      %v11896 = vadd.f32 %v11609, %v11895
      %v11897 = vpop.f32.mrb[0].mxu0
      %11898 = vmatprep.mubr.f32.mxu0 0.0
      %11899 = vmatmul.mubr.f32.gmra.mrb[0].mxu0 %v11686
      %v11900 = vpop.f32.mrb[0].mxu0
      %v11901 = vadd.f32 %v11609, %v11900
      %v11902 = vpop.f32.mrb[0].mxu0
      %11903 = vmatprep.mubr.f32.mxu0 0.0
      %11904 = vmatmul.mubr.f32.gmra.mrb[0].mxu0 %v11689
      %v11905 = vpop.f32.mrb[0].mxu0
      %v11906 = vadd.f32 %v11609, %v11905
      %v11907 = vpop.f32.mrb[0].mxu0
      %11908 = vmatprep.mubr.f32.mxu0 0.0
      %11909 = vmatmul.mubr.f32.gmra.mrb[0].mxu0 %v11692
      %v11910 = vpop.f32.mrb[0].mxu0
      %v11911 = vadd.f32 %v11609, %v11910
      %v11912 = vpop.f32.mrb[0].mxu0
      %11913 = vmatprep.mubr.f32.mxu0 0.0
      %11914 = vmatmul.mubr.f32.gmra.mrb[0].mxu0 %v11695
      %v11915 = vpop.f32.mrb[0].mxu0
      %v11916 = vadd.f32 %v11609, %v11915
      %v11917 = vpop.f32.mrb[0].mxu0
      %11918 = vmatprep.mubr.f32.mxu0 0.0
      %11919 = vmatmul.mubr.f32.gmra.mrb[0].mxu0 %v11698
      %v11920 = vpop.f32.mrb[0].mxu0
      %v11921 = vadd.f32 %v11609, %v11920
      %v11922 = vpop.f32.mrb[0].mxu0
      %11923 = vmatprep.mubr.f32.mxu0 0.0
      %11924 = vmatmul.mubr.f32.gmra.mrb[0].mxu0 %v11701
      %v11925 = vpop.f32.mrb[0].mxu0
      %v11926 = vadd.f32 %v11609, %v11925
      %v11927 = vpop.f32.mrb[0].mxu0
      %11928 = vmatprep.mubr.f32.mxu0 0.0
      %11929 = vmatmul.mubr.f32.gmra.mrb[0].mxu0 %v11704
      %v11930 = vpop.f32.mrb[0].mxu0
      %v11931 = vadd.f32 %v11609, %v11930
      %v11932 = vpop.f32.mrb[0].mxu0
      %11933 = vdwg.mxu0
      %v11934 = vmax.f32 %v11776, 0.0
      %v11935 = vmax.f32 %v11781, 0.0
      %v11936 = vmax.f32 %v11786, 0.0
      %v11937 = vmax.f32 %v11791, 0.0
      %v11938 = vmax.f32 %v11796, 0.0
      %v11939 = vmax.f32 %v11801, 0.0
      %v11940 = vmax.f32 %v11806, 0.0
      %v11941 = vmax.f32 %v11811, 0.0
      %v11942 = vmax.f32 %v11816, 0.0
      %v11943 = vmax.f32 %v11821, 0.0
      %v11944 = vmax.f32 %v11826, 0.0
      %v11945 = vmax.f32 %v11831, 0.0
      %v11946 = vmax.f32 %v11836, 0.0
      %v11947 = vmax.f32 %v11841, 0.0
      %v11948 = vmax.f32 %v11846, 0.0
      %v11949 = vmax.f32 %v11851, 0.0
      %v11950 = vmax.f32 %v11856, 0.0
      %v11951 = vmax.f32 %v11861, 0.0
      %v11952 = vmax.f32 %v11866, 0.0
      %v11953 = vmax.f32 %v11871, 0.0
      %v11954 = vmax.f32 %v11876, 0.0
      %v11955 = vmax.f32 %v11881, 0.0
      %v11956 = vmax.f32 %v11886, 0.0
      %v11957 = vmax.f32 %v11891, 0.0
      %v11958 = vmax.f32 %v11896, 0.0
      %v11959 = vmax.f32 %v11901, 0.0
      %v11960 = vmax.f32 %v11906, 0.0
      %v11961 = vmax.f32 %v11911, 0.0
      %v11962 = vmax.f32 %v11916, 0.0
      %v11963 = vmax.f32 %v11921, 0.0
      %v11964 = vmax.f32 %v11926, 0.0
      %v11965 = vmax.f32 %v11931, 0.0
      %11966 = vst.msk [vmem:[%s143] sm:$0xff] %vm728, %v11934
      %11967 = vst.msk [vmem:[%s143 + $0x8] sm:$0xff] %vm728, %v11935
      %11968 = vst.msk [vmem:[%s143 + $0x10] sm:$0xff] %vm728, %v11936
      %11969 = vst.msk [vmem:[%s143 + $0x18] sm:$0xff] %vm728, %v11937
      %11970 = vst.msk [vmem:[%s143 + $0x20] sm:$0xff] %vm728, %v11938
      %11971 = vst.msk [vmem:[%s143 + $0x28] sm:$0xff] %vm728, %v11939
      %11972 = vst.msk [vmem:[%s143 + $0x30] sm:$0xff] %vm728, %v11940
      %11973 = vst.msk [vmem:[%s143 + $0x38] sm:$0xff] %vm728, %v11941
      %11974 = vst.msk [vmem:[%s143 + $0x40] sm:$0xff] %vm728, %v11942
      %11975 = vst.msk [vmem:[%s143 + $0x48] sm:$0xff] %vm728, %v11943
      %11976 = vst.msk [vmem:[%s143 + $0x50] sm:$0xff] %vm728, %v11944
      %11977 = vst.msk [vmem:[%s143 + $0x58] sm:$0xff] %vm728, %v11945
      %11978 = vst.msk [vmem:[%s143 + $0x60] sm:$0xff] %vm728, %v11946
      %11979 = vst.msk [vmem:[%s143 + $0x68] sm:$0xff] %vm728, %v11947
      %11980 = vst.msk [vmem:[%s143 + $0x70] sm:$0xff] %vm728, %v11948
      %11981 = vst.msk [vmem:[%s143 + $0x78] sm:$0xff] %vm728, %v11949
      %11982 = vst.msk [vmem:[%s143 + $0x80] sm:$0xff] %vm728, %v11950
      %11983 = vst.msk [vmem:[%s143 + $0x88] sm:$0xff] %vm728, %v11951
      %11984 = vst.msk [vmem:[%s143 + $0x90] sm:$0xff] %vm728, %v11952
      %11985 = vst.msk [vmem:[%s143 + $0x98] sm:$0xff] %vm728, %v11953
      %11986 = vst.msk [vmem:[%s143 + $0xa0] sm:$0xff] %vm728, %v11954
      %11987 = vst.msk [vmem:[%s143 + $0xa8] sm:$0xff] %vm728, %v11955
      %11988 = vst.msk [vmem:[%s143 + $0xb0] sm:$0xff] %vm728, %v11956
      %11989 = vst.msk [vmem:[%s143 + $0xb8] sm:$0xff] %vm728, %v11957
      %11990 = vst.msk [vmem:[%s143 + $0xc0] sm:$0xff] %vm728, %v11958
      %11991 = vst.msk [vmem:[%s143 + $0xc8] sm:$0xff] %vm728, %v11959
      %11992 = vst.msk [vmem:[%s143 + $0xd0] sm:$0xff] %vm728, %v11960
      %11993 = vst.msk [vmem:[%s143 + $0xd8] sm:$0xff] %vm728, %v11961
      %11994 = vst.msk [vmem:[%s143 + $0xe0] sm:$0xff] %vm728, %v11962
      %11995 = vst.msk [vmem:[%s143 + $0xe8] sm:$0xff] %vm728, %v11963
      %11996 = vst.msk [vmem:[%s143 + $0xf0] sm:$0xff] %vm728, %v11964
      %11997 = vst.msk [vmem:[%s143 + $0xf8] sm:$0xff] %vm728, %v11965
      %p11998 = scmp.lt.s32.totalorder %s13, 1
      %s11999 = scalar_select %p11998, %s13, 1
      %s12000 = smul.addr %s11999, 32
      %s12001 = smul.addr %s12000, 8
      %s12002 = scalar_lea.vmem %s2, %s12001
      // Predicated region
      $region29: #{lrcs_forward.1} parent=27 // pred_check
        %p12003 = pneg %p78
      $region30: #{lrcs_forward.1} parent=27 // pred_check_branch
        %12005 = sbr.rel (%p12003) target = $region32
      $region31: #{lrcs_forward.1} parent=27 // pred_region
        _
      $region32: #{lrcs_forward.1} parent=27 // pred_fallthru
        _
    $region28: #{lrcs_forward.1} parent=5 // pred_fallthru
      _
    %p12006 = scmp.le.s32.totalorder 2, %s8
    // Predicated region
    $region33: #{lrcs_forward.1} parent=5 // pred_check
      %p12007 = pneg %p12006
    $region34: #{lrcs_forward.1} parent=5 // pred_check_branch
      %12009 = sbr.rel (%p12007) target = $region36
    $region35: #{lrcs_forward.1} parent=5 // pred_region
      %s12010 = ssub.s32 %s8, 2
      // Predicated region
      $region37: #{lrcs_forward.1} parent=35 // pred_check
        %p12011 = pneg %p84
      $region38: #{lrcs_forward.1} parent=35 // pred_check_branch
        %12013 = sbr.rel (%p12011) target = $region40
      $region39: #{lrcs_forward.1} parent=35 // pred_region
        %p12014 = scmp.lt.s32.totalorder %s14, 1
        %s12015 = scalar_select %p12014, %s14, 1
        %s12016 = smul.addr %s12015, 32
        %s12017 = smul.addr %s12016, 8
        %s12018 = scalar_lea.vmem %s2, %s12017
      $region40: #{lrcs_forward.1} parent=35 // pred_fallthru
        _
    $region36: #{lrcs_forward.1} parent=5 // pred_fallthru
      _
  $region6: #{lrcs_forward.1} parent=0 // loop_footer
    %s12 = sadd.s32 1, %s8
  $region7: #{lrcs_forward.1} parent=0 // loop_footer_branch
    %7 = sbr.rel target = $region3
  $region8: #{lrcs_forward.1} parent=0 // loop_exit
    _

</llo_original>
